<compile_context>
chip_gen: v7x
topology: tpu7x:2x2x1
jax: 0.10.0
libtpu: 0.0.40
codegen_flags: <defaults>
</compile_context>

<pallas_src>
import functools

import jax
import jax.numpy as jnp
from jax.experimental import pallas as pl
from jax.experimental.pallas import tpu as pltpu


# ----------------------------------------------------------------------------
# Generic row-tiled matmul (backbone-stub projections + up2_high.conv0)
# ----------------------------------------------------------------------------

def _row_plan(m):
    """Row tile ~m/2 (>=2 grid steps for megacore), capped at 1024, multiple of 8."""
    half = (m + 1) // 2
    tm = max(8, min(1024, ((half + 7) // 8) * 8))
    m_pad = ((m + tm - 1) // tm) * tm
    return tm, m_pad


def _mm_kernel(x_ref, w_ref, o_ref):
    o_ref[...] = jnp.dot(x_ref[...], w_ref[...],
                         preferred_element_type=jnp.float32).astype(o_ref.dtype)


def matmul_pallas(x, w, out_dtype=jnp.float32):
    """(M, K) @ (K, N) with a row-tiled grid; M is zero-padded to the tile."""
    M, K = x.shape
    _, Nc = w.shape
    tm, m_pad = _row_plan(M)
    if m_pad != M:
        x = jnp.pad(x, ((0, m_pad - M), (0, 0)))
    out = pl.pallas_call(
        _mm_kernel,
        out_shape=jax.ShapeDtypeStruct((m_pad, Nc), out_dtype),
        grid=(m_pad // tm,),
        in_specs=[pl.BlockSpec((tm, K), lambda i: (i, 0)),
                  pl.BlockSpec((K, Nc), lambda i: (0, 0))],
        out_specs=pl.BlockSpec((tm, Nc), lambda i: (i, 0)),
        compiler_params=pltpu.CompilerParams(dimension_semantics=("parallel",)),
    )(x, w)
    return out[:M] if m_pad != M else out


# ----------------------------------------------------------------------------
# Bilinear resize as separable interpolation-matrix matmuls (no gathers)
# ----------------------------------------------------------------------------

def _interp_matrix(out_size, in_size):
    """Row-stochastic bilinear matrix matching F.interpolate(align_corners=False)."""
    i = jnp.arange(out_size, dtype=jnp.float32)
    src = jnp.clip((i + 0.5) * (in_size / out_size) - 0.5, 0.0, in_size - 1)
    lo = jnp.floor(src).astype(jnp.int32)
    hi = jnp.minimum(lo + 1, in_size - 1)
    frac = (src - lo.astype(jnp.float32))[:, None]
    cols = jnp.arange(in_size, dtype=jnp.int32)[None, :]
    return ((cols == lo[:, None]).astype(jnp.float32) * (1.0 - frac)
            + (cols == hi[:, None]).astype(jnp.float32) * frac)


def _resize_kernel(x_ref, r_ref, o_ref):
    o_ref[0] = jnp.dot(r_ref[...], x_ref[0],
                       preferred_element_type=jnp.float32).astype(o_ref.dtype)


def bilinear_resize_nhwc(x, out_h, out_w):
    """F.interpolate(bilinear, align_corners=False) via two Pallas matmuls."""
    N, H, W, C = x.shape
    if W != out_w:                                    # resize along W (C on lanes)
        rw = _interp_matrix(out_w, W)
        x = pl.pallas_call(
            _resize_kernel,
            out_shape=jax.ShapeDtypeStruct((N * H, out_w, C), x.dtype),
            grid=(N * H,),
            in_specs=[pl.BlockSpec((1, W, C), lambda i: (i, 0, 0)),
                      pl.BlockSpec((out_w, W), lambda i: (0, 0))],
            out_specs=pl.BlockSpec((1, out_w, C), lambda i: (i, 0, 0)),
            compiler_params=pltpu.CompilerParams(dimension_semantics=("parallel",)),
        )(x.reshape(N * H, W, C), rw).reshape(N, H, out_w, C)
        W = out_w
    if H != out_h:                                    # resize along H (W*C on lanes)
        rh = _interp_matrix(out_h, H)
        x = pl.pallas_call(
            _resize_kernel,
            out_shape=jax.ShapeDtypeStruct((N, out_h, W * C), x.dtype),
            grid=(N,),
            in_specs=[pl.BlockSpec((1, H, W * C), lambda i: (i, 0, 0)),
                      pl.BlockSpec((out_h, H), lambda i: (0, 0))],
            out_specs=pl.BlockSpec((1, out_h, W * C), lambda i: (i, 0, 0)),
            compiler_params=pltpu.CompilerParams(dimension_semantics=("parallel",)),
        )(x.reshape(N, H, W * C), rh).reshape(N, out_h, W, C)
    return x


# ----------------------------------------------------------------------------
# Final full-resolution upsample fused with sigmoid (per image: Rh @ seg @ Rw^T)
# ----------------------------------------------------------------------------

def _upsample_sigmoid_kernel(x_ref, rh_ref, rwt_ref, o_ref):
    t = jnp.dot(rh_ref[...], x_ref[0], preferred_element_type=jnp.float32)
    o_ref[0] = jax.nn.sigmoid(
        jnp.dot(t, rwt_ref[...], preferred_element_type=jnp.float32))


def upsample_sigmoid(seg_nhw, out_h, out_w):
    N, Hl, Wl = seg_nhw.shape
    rh = _interp_matrix(out_h, Hl)                   # (H, Hl)
    rwt = _interp_matrix(out_w, Wl).T                # (Wl, W)
    return pl.pallas_call(
        _upsample_sigmoid_kernel,
        out_shape=jax.ShapeDtypeStruct((N, out_h, out_w), jnp.float32),
        grid=(N,),
        in_specs=[pl.BlockSpec((1, Hl, Wl), lambda n: (n, 0, 0)),
                  pl.BlockSpec((out_h, Hl), lambda n: (0, 0)),
                  pl.BlockSpec((Wl, out_w), lambda n: (0, 0))],
        out_specs=pl.BlockSpec((1, out_h, out_w), lambda n: (n, 0, 0)),
        compiler_params=pltpu.CompilerParams(dimension_semantics=("parallel",)),
    )(seg_nhw, rh, rwt)


# ----------------------------------------------------------------------------
# Fused decoder (conbine_feature minus conv0, + SegNIN) -- one kernel per image
# ----------------------------------------------------------------------------

def _decoder_kernel(Hl, Wl,
                    in0_ref, low_ref, cmask_ref, wlow_ref, wb_ref, wr_ref,
                    wseg_ref, vec_ref, o_ref, s_in0, s_act):
    HW = Hl * Wl
    P0 = 2 * Wl + 2          # halo rows for the dilated branches (max |shift|, d=2)
    P1 = Wl + 1              # halo rows for the refine conv (d=1)
    f32 = jnp.float32

    # up2_bn2(up2_low(low)) -- BN scale pre-folded into wlow, bias in vec[1]
    low = jnp.dot(low_ref[0], wlow_ref[...], preferred_element_type=f32) + vec_ref[1:2, :]

    # Stage conv0 output (computed at coarse resolution + upsampled outside) behind
    # a zero halo.  Only the halo rows are zeroed; the interior is fully overwritten.
    # A spatial (dh, dw) shift becomes a flat row shift dh*Wl + dw; wrap-around
    # across image rows is killed by a per-column mask (cmask[:, dw+2]).
    s_in0[0:P0, :] = jnp.zeros((P0, 16), f32)
    s_in0[P0 + HW:P0 + HW + P0, :] = jnp.zeros((P0, 16), f32)
    s_in0[P0:P0 + HW, :] = in0_ref[0].astype(f32)

    # Dilated branches: conv1 (d=1) on ch[:8], conv2 (d=2) on ch[8:].  Their tap
    # weights occupy disjoint column halves of (8,16), so the concatenated 16-wide
    # output is accumulated directly (BN scale folded into the weights).
    bh = jnp.zeros((HW, 16), f32)
    for kh in range(3):
        for kw in range(3):
            t = kh * 3 + kw
            dh, dw = kh - 1, kw - 1
            s1 = P0 + dh * Wl + dw
            x1 = s_in0[s1:s1 + HW, 0:8]
            if dw != 0:
                x1 = x1 * cmask_ref[:, dw + 2:dw + 3]
            bh = bh + jnp.dot(x1, wb_ref[t], preferred_element_type=f32)
            s2 = P0 + 2 * dh * Wl + 2 * dw
            x2 = s_in0[s2:s2 + HW, 8:16]
            if dw != 0:
                x2 = x2 * cmask_ref[:, 2 * dw + 2:2 * dw + 3]
            bh = bh + jnp.dot(x2, wb_ref[9 + t], preferred_element_type=f32)
    bh = bh + vec_ref[0:1, :]                        # folded BN bias (up2_high.bn)

    # up2_act: PReLU(16) over (high + low)
    act = bh + low
    act = jnp.where(act >= 0.0, act, vec_ref[2:3, :] * act)

    # refine: 3x3 conv (pad 1) + BN + shared PReLU
    s_act[0:P1, :] = jnp.zeros((P1, 16), f32)
    s_act[P1 + HW:P1 + HW + P1, :] = jnp.zeros((P1, 16), f32)
    s_act[P1:P1 + HW, :] = act
    r = jnp.zeros((HW, 16), f32)
    for kh in range(3):
        for kw in range(3):
            dh, dw = kh - 1, kw - 1
            s3 = P1 + dh * Wl + dw
            xr = s_act[s3:s3 + HW, :]
            if dw != 0:
                xr = xr * cmask_ref[:, dw + 2:dw + 3]
            r = r + jnp.dot(xr, wr_ref[kh * 3 + kw], preferred_element_type=f32)
    r = r + vec_ref[3:4, :]
    r = jnp.where(r >= 0.0, r, vec_ref[4:5, :] * r)

    # SegNIN: Dropout2d(0.1) is an inference no-op; 1x1 conv 16 -> 1 (no bias)
    o_ref[0] = jnp.dot(r, wseg_ref[...], preferred_element_type=f32)


def w1x1_to_mat(w):
    # (Cout, Cin, 1, 1) -> (Cin, Cout)
    return jnp.transpose(w[:, :, 0, 0], (1, 0))


def w3x3_to_taps(w):
    # (Cout, Cin, 3, 3) -> (9, Cin, Cout), tap index = kh*3 + kw
    return jnp.transpose(w, (2, 3, 1, 0)).reshape(9, w.shape[1], w.shape[0])


def bn_affine(gamma, beta, mean, var, eps=1e-5):
    scale = gamma / jnp.sqrt(var + eps)
    return scale, beta - mean * scale


def decoder_seg(in0_3d, low3d, p, Hl, Wl):
    """conbine_feature (post-conv0) + SegNIN fused into one kernel (grid over batch)."""
    N = in0_3d.shape[0]
    HW = Hl * Wl

    s_hi, b_hi = bn_affine(**p["up2_high_bn"])                          # (16,)
    w1 = w3x3_to_taps(p["up2_high_conv1"]) * s_hi[:8]                   # (9, 8, 8)
    w2 = w3x3_to_taps(p["up2_high_conv2"]) * s_hi[8:]                   # (9, 8, 8)
    wb = jnp.zeros((18, 8, 16), jnp.float32)
    wb = wb.at[:9, :, :8].set(w1).at[9:, :, 8:].set(w2)

    s_lo, b_lo = bn_affine(**p["up2_bn2"])
    wlow = (w1x1_to_mat(p["up2_low"]) * s_lo).astype(jnp.bfloat16)      # (128, 16)

    s_r, b_r = bn_affine(**p["refine_bn"])
    wr = w3x3_to_taps(p["refine_conv"]) * s_r                           # (9, 16, 16)

    wseg = w1x1_to_mat(p["seg_conv"]).astype(jnp.float32)               # (16, 1)

    vecs = jnp.stack([b_hi, b_lo, p["up2_act_alpha"], b_r,
                      jnp.broadcast_to(p["refine_alpha"], (16,))]).astype(jnp.float32)

    # per-column wrap masks for flat row shifts dw in {-2,-1,0,1,2}
    wcol = (jnp.arange(HW, dtype=jnp.int32) % Wl)[:, None]
    dws = jnp.arange(-2, 3, dtype=jnp.int32)[None, :]
    cmask = ((wcol + dws >= 0) & (wcol + dws < Wl)).astype(jnp.float32)  # (HW, 5)

    return pl.pallas_call(
        functools.partial(_decoder_kernel, Hl, Wl),
        out_shape=jax.ShapeDtypeStruct((N, HW, 1), jnp.float32),
        grid=(N,),
        in_specs=[
            pl.BlockSpec((1, HW, 16), lambda n: (n, 0, 0)),
            pl.BlockSpec((1, HW, 128), lambda n: (n, 0, 0)),
            pl.BlockSpec((HW, 5), lambda n: (0, 0)),
            pl.BlockSpec((128, 16), lambda n: (0, 0)),
            pl.BlockSpec((18, 8, 16), lambda n: (0, 0, 0)),
            pl.BlockSpec((9, 16, 16), lambda n: (0, 0, 0)),
            pl.BlockSpec((16, 1), lambda n: (0, 0)),
            pl.BlockSpec((5, 16), lambda n: (0, 0)),
        ],
        out_specs=pl.BlockSpec((1, HW, 1), lambda n: (n, 0, 0)),
        scratch_shapes=[pltpu.VMEM((HW + 2 * (2 * Wl + 2), 16), jnp.float32),
                        pltpu.VMEM((HW + 2 * (Wl + 1), 16), jnp.float32)],
        compiler_params=pltpu.CompilerParams(dimension_semantics=("parallel",)),
    )(in0_3d, low3d, cmask, wlow, wb, wr, wseg, vecs)


# ----------------------------------------------------------------------------
# Parameters (deterministic, module __init__ shapes) and the full forward
# ----------------------------------------------------------------------------

def init_params(key):
    keys = iter(jax.random.split(key, 64))

    def conv(cout, cin, k):
        return 0.1 * jax.random.normal(next(keys), (cout, cin, k, k), jnp.float32)

    def bn(c):
        return dict(
            gamma=1.0 + 0.1 * jax.random.normal(next(keys), (c,), jnp.float32),
            beta=0.05 * jax.random.normal(next(keys), (c,), jnp.float32),
            mean=0.02 * jax.random.normal(next(keys), (c,), jnp.float32),
            var=jnp.abs(1.0 + 0.1 * jax.random.normal(next(keys), (c,), jnp.float32)),
        )

    p = {}
    # decoder.up2_high = DilatedParallelConvBlockD2(nIn=256, nOut=16)  (n = n2 = 8)
    p["up2_high_conv0"] = conv(16, 256, 1)
    p["up2_high_conv1"] = conv(8, 8, 3)
    p["up2_high_conv2"] = conv(8, 8, 3)
    p["up2_high_bn"] = bn(16)
    # decoder.up2_low / up2_bn2 / up2_act
    p["up2_low"] = conv(16, 128, 1)
    p["up2_bn2"] = bn(16)
    p["up2_act_alpha"] = jnp.full((16,), 0.25, jnp.float32)       # nn.PReLU(16)
    # decoder.refine = Conv3x3(16,16) + BN + PReLU()
    p["refine_conv"] = conv(16, 16, 3)
    p["refine_bn"] = bn(16)
    p["refine_alpha"] = jnp.full((1,), 0.25, jnp.float32)         # shared PReLU
    # SegNIN = Dropout2d(0.1) + Conv1x1(16 -> 1, bias=False)
    p["seg_conv"] = conv(1, 16, 1)
    # Stand-in backbone projections (see TODO(synk) in forward)
    p["stub_low_proj"] = conv(128, 3, 1)
    p["stub_high_proj"] = conv(256, 3, 1)
    return p


def avg_pool(x_nhwc, k):
    N, H, W, C = x_nhwc.shape
    return x_nhwc.reshape(N, H // k, k, W // k, k, C).mean(axis=(2, 4))


def ldcnet_forward(x_nchw, p):
    """LDCNet.forward for 4-D NCHW input; returns sigmoid segmentation (N,1,H,W)."""
    N, _, H, W = x_nchw.shape
    x = jnp.transpose(x_nchw, (0, 2, 3, 1)).astype(jnp.float32)    # NHWC
    Hl, Wl = H // 8, W // 8
    Hh, Wh = H // 16, W // 16

    # TODO(synk): res2net50_v1b_26w_4s, LightRFB and DDFPack definitions are not
    # provided; the feature extractor is replaced by a deterministic stand-in
    # (avg-pool + Pallas 1x1 projections, bf16) reproducing the feature shapes:
    # low = 128ch @ H/8, high = 256ch @ H/16.  ddf1/ddf2 residual refinement skipped.
    low_feat = matmul_pallas(
        avg_pool(x, 8).reshape(N * Hl * Wl, 3).astype(jnp.bfloat16),
        w1x1_to_mat(p["stub_low_proj"]).astype(jnp.bfloat16),
        out_dtype=jnp.bfloat16)                                    # (N*Hl*Wl, 128)
    high_feat = matmul_pallas(
        avg_pool(x, 16).reshape(N * Hh * Wh, 3).astype(jnp.bfloat16),
        w1x1_to_mat(p["stub_high_proj"]).astype(jnp.bfloat16),
        out_dtype=jnp.bfloat16)                                    # (N*Hh*Wh, 256)

    # up2_high.conv0 is a bias-free linear 1x1 so it commutes with the bilinear
    # interpolation: apply it on the coarse H/16 grid (4x fewer pixels), then
    # F.interpolate(..., bilinear, align_corners=False) only 16 channels instead
    # of 256 (16x less HBM traffic through the resize).
    in0_coarse = matmul_pallas(
        high_feat,
        w1x1_to_mat(p["up2_high_conv0"]).astype(jnp.bfloat16),
        out_dtype=jnp.bfloat16)                                    # (N*Hh*Wh, 16)
    in0 = bilinear_resize_nhwc(in0_coarse.reshape(N, Hh, Wh, 16), Hl, Wl)

    # decoder (conbine_feature) + SegNIN, fused in one Pallas kernel per image
    seg = decoder_seg(in0.reshape(N, Hl * Wl, 16),
                      low_feat.reshape(N, Hl * Wl, 128), p, Hl, Wl)  # (N, Hl*Wl, 1)

    # sigmoid(F.interpolate(seg, size=(H, W), bilinear, align_corners=False)), fused
    out = upsample_sigmoid(seg.reshape(N, Hl, Wl), H, W)             # (N, H, W)
    return out[:, None, :, :]                                        # (N, 1, H, W)


# ----------------------------------------------------------------------------
# Main
# ----------------------------------------------------------------------------

if __name__ == "__main__":
    key = jax.random.PRNGKey(0)
    pkey, xkey = jax.random.split(key)
    params = init_params(pkey)

    # Small input consistent with the module (NCHW, RGB); /8 and /16 feature grids.
    x = jax.random.normal(xkey, (2, 3, 64, 64), jnp.float32)

    out = jax.jit(ldcnet_forward)(x, params)
    out = jax.block_until_ready(out)

    assert out.shape == (2, 1, 64, 64)
    assert bool(jnp.all(jnp.isfinite(out)))
    assert bool(jnp.all((out >= 0.0) & (out <= 1.0)))
    print("KERNEL_OK")
</pallas_src>

<mosaic_0001>
module attributes {stable_mosaic.version = 11 : i64} {
  func.func @_mm_kernel(%arg0: i32, %arg1: memref<16x256xbf16, #tpu.memory_space<vmem>>, %arg2: memref<256x16xbf16, #tpu.memory_space<vmem>>, %arg3: memref<16x16xbf16, #tpu.memory_space<vmem>>) attributes {dimension_semantics = [#tpu.dimension_semantics<parallel>], iteration_bounds = array<i64: 2>, scalar_prefetch = 0 : i64, scratch_operands = 0 : i64, tpu.core_type = #tpu.core_type<tc>, window_params = [{transform_indices = @transform_0, window_bounds = array<i64: 16, 256>}, {pipeline_mode = #tpu.pipeline_mode<synchronous>, transform_indices = @transform_1, window_bounds = array<i64: 256, 16>}, {transform_indices = @transform_2, window_bounds = array<i64: 16, 16>}]} {
    %c0 = arith.constant 0 : index
    %c0_0 = arith.constant 0 : index
    %0 = vector.load %arg1[%c0, %c0_0] : memref<16x256xbf16, #tpu.memory_space<vmem>>, vector<16x256xbf16>
    %c0_1 = arith.constant 0 : index
    %c0_2 = arith.constant 0 : index
    %1 = vector.load %arg2[%c0_1, %c0_2] : memref<256x16xbf16, #tpu.memory_space<vmem>>, vector<256x16xbf16>
    %cst = arith.constant dense<0.000000e+00> : vector<16x16xf32>
    %2 = tpu.matmul %0, %1, %cst {dimension_numbers = #tpu.dot_dimension_numbers<[1], [0], [0], [1], [0, 0, 1, 1], [], []>} : vector<16x256xbf16>, vector<256x16xbf16>, vector<16x16xf32> -> vector<16x16xf32>
    %3 = arith.truncf %2 : vector<16x16xf32> to vector<16x16xbf16>
    %c0_3 = arith.constant 0 : index
    %c0_4 = arith.constant 0 : index
    %4 = vector.load %arg3[%c0_3, %c0_4] : memref<16x16xbf16, #tpu.memory_space<vmem>>, vector<16x16xbf16>
    tpu.vector_store %arg3[%c0_3, %c0_4], %3 {strides = array<i32>} : memref<16x16xbf16, #tpu.memory_space<vmem>>, vector<16x16xbf16>,
    return
  }
  func.func @transform_0(%arg0: i32) -> (i32, i32) {
    %c0_i32 = arith.constant 0 : i32
    %c0_i32_0 = arith.constant 0 : i32
    return %arg0, %c0_i32 : i32, i32
  }
  func.func @transform_1(%arg0: i32) -> (i32, i32) {
    %c0_i32 = arith.constant 0 : i32
    %c0_i32_0 = arith.constant 0 : i32
    %c0_i32_1 = arith.constant 0 : i32
    return %c0_i32, %c0_i32_0 : i32, i32
  }
  func.func @transform_2(%arg0: i32) -> (i32, i32) {
    %c0_i32 = arith.constant 0 : i32
    %c0_i32_0 = arith.constant 0 : i32
    return %arg0, %c0_i32 : i32, i32
  }
}

module attributes {stable_mosaic.version = 11 : i64} {
  func.func @_mm_kernel(%arg0: i32, %arg1: memref<16x3xbf16, #tpu.memory_space<vmem>>, %arg2: memref<3x256xbf16, #tpu.memory_space<vmem>>, %arg3: memref<16x256xbf16, #tpu.memory_space<vmem>>) attributes {dimension_semantics = [#tpu.dimension_semantics<parallel>], iteration_bounds = array<i64: 2>, scalar_prefetch = 0 : i64, scratch_operands = 0 : i64, tpu.core_type = #tpu.core_type<tc>, window_params = [{transform_indices = @transform_0, window_bounds = array<i64: 16, 3>}, {pipeline_mode = #tpu.pipeline_mode<synchronous>, transform_indices = @transform_1, window_bounds = array<i64: 3, 256>}, {transform_indices = @transform_2, window_bounds = array<i64: 16, 256>}]} {
    %c0 = arith.constant 0 : index
    %c0_0 = arith.constant 0 : index
    %0 = vector.load %arg1[%c0, %c0_0] : memref<16x3xbf16, #tpu.memory_space<vmem>>, vector<16x3xbf16>
    %c0_1 = arith.constant 0 : index
    %c0_2 = arith.constant 0 : index
    %1 = vector.load %arg2[%c0_1, %c0_2] : memref<3x256xbf16, #tpu.memory_space<vmem>>, vector<3x256xbf16>
    %cst = arith.constant dense<0.000000e+00> : vector<16x256xf32>
    %2 = tpu.matmul %0, %1, %cst {dimension_numbers = #tpu.dot_dimension_numbers<[1], [0], [0], [1], [0, 0, 1, 1], [], []>} : vector<16x3xbf16>, vector<3x256xbf16>, vector<16x256xf32> -> vector<16x256xf32>
    %3 = arith.truncf %2 : vector<16x256xf32> to vector<16x256xbf16>
    %c0_3 = arith.constant 0 : index
    %c0_4 = arith.constant 0 : index
    %4 = vector.load %arg3[%c0_3, %c0_4] : memref<16x256xbf16, #tpu.memory_space<vmem>>, vector<16x256xbf16>
    tpu.vector_store %arg3[%c0_3, %c0_4], %3 {strides = array<i32>} : memref<16x256xbf16, #tpu.memory_space<vmem>>, vector<16x256xbf16>,
    return
  }
  func.func @transform_0(%arg0: i32) -> (i32, i32) {
    %c0_i32 = arith.constant 0 : i32
    %c0_i32_0 = arith.constant 0 : i32
    return %arg0, %c0_i32 : i32, i32
  }
  func.func @transform_1(%arg0: i32) -> (i32, i32) {
    %c0_i32 = arith.constant 0 : i32
    %c0_i32_0 = arith.constant 0 : i32
    %c0_i32_1 = arith.constant 0 : i32
    return %c0_i32, %c0_i32_0 : i32, i32
  }
  func.func @transform_2(%arg0: i32) -> (i32, i32) {
    %c0_i32 = arith.constant 0 : i32
    %c0_i32_0 = arith.constant 0 : i32
    return %arg0, %c0_i32 : i32, i32
  }
}

module attributes {stable_mosaic.version = 11 : i64} {
  func.func @_resize_kernel(%arg0: i32, %arg1: memref<1x4x16xbf16, #tpu.memory_space<vmem>>, %arg2: memref<8x4xf32, #tpu.memory_space<vmem>>, %arg3: memref<1x8x16xbf16, #tpu.memory_space<vmem>>) attributes {dimension_semantics = [#tpu.dimension_semantics<parallel>], iteration_bounds = array<i64: 8>, scalar_prefetch = 0 : i64, scratch_operands = 0 : i64, tpu.core_type = #tpu.core_type<tc>, window_params = [{transform_indices = @transform_0, window_bounds = array<i64: 1, 4, 16>}, {pipeline_mode = #tpu.pipeline_mode<synchronous>, transform_indices = @transform_1, window_bounds = array<i64: 8, 4>}, {transform_indices = @transform_2, window_bounds = array<i64: 1, 8, 16>}]} {
    %c0 = arith.constant 0 : index
    %c0_0 = arith.constant 0 : index
    %0 = vector.load %arg2[%c0, %c0_0] : memref<8x4xf32, #tpu.memory_space<vmem>>, vector<8x4xf32>
    %c0_1 = arith.constant 0 : index
    %c0_2 = arith.constant 0 : index
    %c0_3 = arith.constant 0 : index
    %1 = vector.load %arg1[%c0_1, %c0_2, %c0_3] : memref<1x4x16xbf16, #tpu.memory_space<vmem>>, vector<1x4x16xbf16>
    %2 = vector.shape_cast %1 : vector<1x4x16xbf16> to vector<4x16xbf16>
    %cst = arith.constant dense<0.000000e+00> : vector<8x16xf32>
    %3 = tpu.matmul %0, %2, %cst {dimension_numbers = #tpu.dot_dimension_numbers<[1], [0], [0], [1], [0, 0, 1, 1], [], []>} : vector<8x4xf32>, vector<4x16xbf16>, vector<8x16xf32> -> vector<8x16xf32>
    %4 = arith.truncf %3 : vector<8x16xf32> to vector<8x16xbf16>
    %c0_4 = arith.constant 0 : index
    %c0_5 = arith.constant 0 : index
    %c0_6 = arith.constant 0 : index
    %5 = vector.load %arg3[%c0_4, %c0_5, %c0_6] : memref<1x8x16xbf16, #tpu.memory_space<vmem>>, vector<1x8x16xbf16>
    %6 = vector.shape_cast %5 : vector<1x8x16xbf16> to vector<8x16xbf16>
    %7 = vector.shape_cast %4 : vector<8x16xbf16> to vector<1x8x16xbf16>
    tpu.vector_store %arg3[%c0_4, %c0_5, %c0_6], %7 {strides = array<i32>} : memref<1x8x16xbf16, #tpu.memory_space<vmem>>, vector<1x8x16xbf16>,
    return
  }
  func.func @transform_0(%arg0: i32) -> (i32, i32, i32) {
    %c0_i32 = arith.constant 0 : i32
    %c0_i32_0 = arith.constant 0 : i32
    %c0_i32_1 = arith.constant 0 : i32
    return %arg0, %c0_i32, %c0_i32_0 : i32, i32, i32
  }
  func.func @transform_1(%arg0: i32) -> (i32, i32) {
    %c0_i32 = arith.constant 0 : i32
    %c0_i32_0 = arith.constant 0 : i32
    %c0_i32_1 = arith.constant 0 : i32
    return %c0_i32, %c0_i32_0 : i32, i32
  }
  func.func @transform_2(%arg0: i32) -> (i32, i32, i32) {
    %c0_i32 = arith.constant 0 : i32
    %c0_i32_0 = arith.constant 0 : i32
    %c0_i32_1 = arith.constant 0 : i32
    return %arg0, %c0_i32, %c0_i32_0 : i32, i32, i32
  }
}

module attributes {stable_mosaic.version = 11 : i64} {
  func.func @_resize_kernel(%arg0: i32, %arg1: memref<1x4x128xbf16, #tpu.memory_space<vmem>>, %arg2: memref<8x4xf32, #tpu.memory_space<vmem>>, %arg3: memref<1x8x128xbf16, #tpu.memory_space<vmem>>) attributes {dimension_semantics = [#tpu.dimension_semantics<parallel>], iteration_bounds = array<i64: 2>, scalar_prefetch = 0 : i64, scratch_operands = 0 : i64, tpu.core_type = #tpu.core_type<tc>, window_params = [{transform_indices = @transform_0, window_bounds = array<i64: 1, 4, 128>}, {pipeline_mode = #tpu.pipeline_mode<synchronous>, transform_indices = @transform_1, window_bounds = array<i64: 8, 4>}, {transform_indices = @transform_2, window_bounds = array<i64: 1, 8, 128>}]} {
    %c0 = arith.constant 0 : index
    %c0_0 = arith.constant 0 : index
    %0 = vector.load %arg2[%c0, %c0_0] : memref<8x4xf32, #tpu.memory_space<vmem>>, vector<8x4xf32>
    %c0_1 = arith.constant 0 : index
    %c0_2 = arith.constant 0 : index
    %c0_3 = arith.constant 0 : index
    %1 = vector.load %arg1[%c0_1, %c0_2, %c0_3] : memref<1x4x128xbf16, #tpu.memory_space<vmem>>, vector<1x4x128xbf16>
    %2 = vector.shape_cast %1 : vector<1x4x128xbf16> to vector<4x128xbf16>
    %cst = arith.constant dense<0.000000e+00> : vector<8x128xf32>
    %3 = tpu.matmul %0, %2, %cst {dimension_numbers = #tpu.dot_dimension_numbers<[1], [0], [0], [1], [0, 0, 1, 1], [], []>} : vector<8x4xf32>, vector<4x128xbf16>, vector<8x128xf32> -> vector<8x128xf32>
    %4 = arith.truncf %3 : vector<8x128xf32> to vector<8x128xbf16>
    %c0_4 = arith.constant 0 : index
    %c0_5 = arith.constant 0 : index
    %c0_6 = arith.constant 0 : index
    %5 = vector.load %arg3[%c0_4, %c0_5, %c0_6] : memref<1x8x128xbf16, #tpu.memory_space<vmem>>, vector<1x8x128xbf16>
    %6 = vector.shape_cast %5 : vector<1x8x128xbf16> to vector<8x128xbf16>
    %7 = vector.shape_cast %4 : vector<8x128xbf16> to vector<1x8x128xbf16>
    tpu.vector_store %arg3[%c0_4, %c0_5, %c0_6], %7 {strides = array<i32>} : memref<1x8x128xbf16, #tpu.memory_space<vmem>>, vector<1x8x128xbf16>,
    return
  }
  func.func @transform_0(%arg0: i32) -> (i32, i32, i32) {
    %c0_i32 = arith.constant 0 : i32
    %c0_i32_0 = arith.constant 0 : i32
    %c0_i32_1 = arith.constant 0 : i32
    return %arg0, %c0_i32, %c0_i32_0 : i32, i32, i32
  }
  func.func @transform_1(%arg0: i32) -> (i32, i32) {
    %c0_i32 = arith.constant 0 : i32
    %c0_i32_0 = arith.constant 0 : i32
    %c0_i32_1 = arith.constant 0 : i32
    return %c0_i32, %c0_i32_0 : i32, i32
  }
  func.func @transform_2(%arg0: i32) -> (i32, i32, i32) {
    %c0_i32 = arith.constant 0 : i32
    %c0_i32_0 = arith.constant 0 : i32
    %c0_i32_1 = arith.constant 0 : i32
    return %arg0, %c0_i32, %c0_i32_0 : i32, i32, i32
  }
}

module attributes {stable_mosaic.version = 11 : i64} {
  func.func @_mm_kernel(%arg0: i32, %arg1: memref<64x3xbf16, #tpu.memory_space<vmem>>, %arg2: memref<3x128xbf16, #tpu.memory_space<vmem>>, %arg3: memref<64x128xbf16, #tpu.memory_space<vmem>>) attributes {dimension_semantics = [#tpu.dimension_semantics<parallel>], iteration_bounds = array<i64: 2>, scalar_prefetch = 0 : i64, scratch_operands = 0 : i64, tpu.core_type = #tpu.core_type<tc>, window_params = [{transform_indices = @transform_0, window_bounds = array<i64: 64, 3>}, {pipeline_mode = #tpu.pipeline_mode<synchronous>, transform_indices = @transform_1, window_bounds = array<i64: 3, 128>}, {transform_indices = @transform_2, window_bounds = array<i64: 64, 128>}]} {
    %c0 = arith.constant 0 : index
    %c0_0 = arith.constant 0 : index
    %0 = vector.load %arg1[%c0, %c0_0] : memref<64x3xbf16, #tpu.memory_space<vmem>>, vector<64x3xbf16>
    %c0_1 = arith.constant 0 : index
    %c0_2 = arith.constant 0 : index
    %1 = vector.load %arg2[%c0_1, %c0_2] : memref<3x128xbf16, #tpu.memory_space<vmem>>, vector<3x128xbf16>
    %cst = arith.constant dense<0.000000e+00> : vector<64x128xf32>
    %2 = tpu.matmul %0, %1, %cst {dimension_numbers = #tpu.dot_dimension_numbers<[1], [0], [0], [1], [0, 0, 1, 1], [], []>} : vector<64x3xbf16>, vector<3x128xbf16>, vector<64x128xf32> -> vector<64x128xf32>
    %3 = arith.truncf %2 : vector<64x128xf32> to vector<64x128xbf16>
    %c0_3 = arith.constant 0 : index
    %c0_4 = arith.constant 0 : index
    %4 = vector.load %arg3[%c0_3, %c0_4] : memref<64x128xbf16, #tpu.memory_space<vmem>>, vector<64x128xbf16>
    tpu.vector_store %arg3[%c0_3, %c0_4], %3 {strides = array<i32>} : memref<64x128xbf16, #tpu.memory_space<vmem>>, vector<64x128xbf16>,
    return
  }
  func.func @transform_0(%arg0: i32) -> (i32, i32) {
    %c0_i32 = arith.constant 0 : i32
    %c0_i32_0 = arith.constant 0 : i32
    return %arg0, %c0_i32 : i32, i32
  }
  func.func @transform_1(%arg0: i32) -> (i32, i32) {
    %c0_i32 = arith.constant 0 : i32
    %c0_i32_0 = arith.constant 0 : i32
    %c0_i32_1 = arith.constant 0 : i32
    return %c0_i32, %c0_i32_0 : i32, i32
  }
  func.func @transform_2(%arg0: i32) -> (i32, i32) {
    %c0_i32 = arith.constant 0 : i32
    %c0_i32_0 = arith.constant 0 : i32
    return %arg0, %c0_i32 : i32, i32
  }
}

module attributes {stable_mosaic.version = 11 : i64} {
  func.func @_decoder_kernel(%arg0: i32, %arg1: memref<1x64x16xbf16, #tpu.memory_space<vmem>>, %arg2: memref<1x64x128xbf16, #tpu.memory_space<vmem>>, %arg3: memref<64x5xf32, #tpu.memory_space<vmem>>, %arg4: memref<128x16xbf16, #tpu.memory_space<vmem>>, %arg5: memref<18x8x16xf32, #tpu.memory_space<vmem>>, %arg6: memref<9x16x16xf32, #tpu.memory_space<vmem>>, %arg7: memref<16x1xf32, #tpu.memory_space<vmem>>, %arg8: memref<5x16xf32, #tpu.memory_space<vmem>>, %arg9: memref<1x64x1xf32, #tpu.memory_space<vmem>>, %arg10: memref<100x16xf32, #tpu.memory_space<vmem>>, %arg11: memref<82x16xf32, #tpu.memory_space<vmem>>) attributes {dimension_semantics = [#tpu.dimension_semantics<parallel>], iteration_bounds = array<i64: 2>, scalar_prefetch = 0 : i64, scratch_operands = 2 : i64, tpu.core_type = #tpu.core_type<tc>, window_params = [{transform_indices = @transform_0, window_bounds = array<i64: 1, 64, 16>}, {transform_indices = @transform_1, window_bounds = array<i64: 1, 64, 128>}, {pipeline_mode = #tpu.pipeline_mode<synchronous>, transform_indices = @transform_2, window_bounds = array<i64: 64, 5>}, {pipeline_mode = #tpu.pipeline_mode<synchronous>, transform_indices = @transform_3, window_bounds = array<i64: 128, 16>}, {pipeline_mode = #tpu.pipeline_mode<synchronous>, transform_indices = @transform_4, window_bounds = array<i64: 18, 8, 16>}, {pipeline_mode = #tpu.pipeline_mode<synchronous>, transform_indices = @transform_5, window_bounds = array<i64: 9, 16, 16>}, {pipeline_mode = #tpu.pipeline_mode<synchronous>, transform_indices = @transform_6, window_bounds = array<i64: 16, 1>}, {pipeline_mode = #tpu.pipeline_mode<synchronous>, transform_indices = @transform_7, window_bounds = array<i64: 5, 16>}, {transform_indices = @transform_8, window_bounds = array<i64: 1, 64, 1>}]} {
    %c0 = arith.constant 0 : index
    %c0_0 = arith.constant 0 : index
    %c0_1 = arith.constant 0 : index
    %0 = vector.load %arg2[%c0, %c0_0, %c0_1] : memref<1x64x128xbf16, #tpu.memory_space<vmem>>, vector<1x64x128xbf16>
    %1 = vector.shape_cast %0 : vector<1x64x128xbf16> to vector<64x128xbf16>
    %c0_2 = arith.constant 0 : index
    %c0_3 = arith.constant 0 : index
    %2 = vector.load %arg4[%c0_2, %c0_3] : memref<128x16xbf16, #tpu.memory_space<vmem>>, vector<128x16xbf16>
    %cst = arith.constant dense<0.000000e+00> : vector<64x16xf32>
    %3 = tpu.matmul %1, %2, %cst {dimension_numbers = #tpu.dot_dimension_numbers<[1], [0], [0], [1], [0, 0, 1, 1], [], []>} : vector<64x128xbf16>, vector<128x16xbf16>, vector<64x16xf32> -> vector<64x16xf32>
    %c1 = arith.constant 1 : index
    %c0_4 = arith.constant 0 : index
    %4 = vector.load %arg8[%c1, %c0_4] : memref<5x16xf32, #tpu.memory_space<vmem>>, vector<1x16xf32>
    %5 = vector.broadcast %4 : vector<1x16xf32> to vector<64x16xf32>
    %6 = arith.addf %3, %5 : vector<64x16xf32>
    %cst_5 = arith.constant 0.000000e+00 : f32
    %7 = vector.broadcast %cst_5 : f32 to vector<18x16xf32>
    %c0_6 = arith.constant 0 : index
    %c0_7 = arith.constant 0 : index
    %8 = vector.load %arg10[%c0_6, %c0_7] : memref<100x16xf32, #tpu.memory_space<vmem>>, vector<18x16xf32>
    tpu.vector_store %arg10[%c0_6, %c0_7], %7 {strides = array<i32>} : memref<100x16xf32, #tpu.memory_space<vmem>>, vector<18x16xf32>,
    %cst_8 = arith.constant 0.000000e+00 : f32
    %9 = vector.broadcast %cst_8 : f32 to vector<18x16xf32>
    %c82 = arith.constant 82 : index
    %c0_9 = arith.constant 0 : index
    %10 = vector.load %arg10[%c82, %c0_9] : memref<100x16xf32, #tpu.memory_space<vmem>>, vector<18x16xf32>
    tpu.vector_store %arg10[%c82, %c0_9], %9 {strides = array<i32>} : memref<100x16xf32, #tpu.memory_space<vmem>>, vector<18x16xf32>,
    %c0_10 = arith.constant 0 : index
    %c0_11 = arith.constant 0 : index
    %c0_12 = arith.constant 0 : index
    %11 = vector.load %arg1[%c0_10, %c0_11, %c0_12] : memref<1x64x16xbf16, #tpu.memory_space<vmem>>, vector<1x64x16xbf16>
    %12 = vector.shape_cast %11 : vector<1x64x16xbf16> to vector<64x16xbf16>
    %13 = arith.extf %12 : vector<64x16xbf16> to vector<64x16xf32>
    %c18 = arith.constant 18 : index
    %c0_13 = arith.constant 0 : index
    %14 = vector.load %arg10[%c18, %c0_13] : memref<100x16xf32, #tpu.memory_space<vmem>>, vector<64x16xf32>
    tpu.vector_store %arg10[%c18, %c0_13], %13 {strides = array<i32>} : memref<100x16xf32, #tpu.memory_space<vmem>>, vector<64x16xf32>,
    %cst_14 = arith.constant 0.000000e+00 : f32
    %15 = vector.broadcast %cst_14 : f32 to vector<64x16xf32>
    %c9 = arith.constant 9 : index
    %c0_15 = arith.constant 0 : index
    %16 = vector.load %arg10[%c9, %c0_15] : memref<100x16xf32, #tpu.memory_space<vmem>>, vector<64x8xf32>
    %c0_16 = arith.constant 0 : index
    %c1_17 = arith.constant 1 : index
    %17 = vector.load %arg3[%c0_16, %c1_17] : memref<64x5xf32, #tpu.memory_space<vmem>>, vector<64x1xf32>
    %18 = vector.broadcast %17 : vector<64x1xf32> to vector<64x8xf32>
    %19 = arith.mulf %16, %18 : vector<64x8xf32>
    %c0_18 = arith.constant 0 : index
    %c0_19 = arith.constant 0 : index
    %c0_20 = arith.constant 0 : index
    %20 = vector.load %arg5[%c0_18, %c0_19, %c0_20] : memref<18x8x16xf32, #tpu.memory_space<vmem>>, vector<1x8x16xf32>
    %21 = vector.shape_cast %20 : vector<1x8x16xf32> to vector<8x16xf32>
    %cst_21 = arith.constant dense<0.000000e+00> : vector<64x16xf32>
    %22 = tpu.matmul %19, %21, %cst_21 {dimension_numbers = #tpu.dot_dimension_numbers<[1], [0], [0], [1], [0, 0, 1, 1], [], []>} : vector<64x8xf32>, vector<8x16xf32>, vector<64x16xf32> -> vector<64x16xf32>
    %23 = arith.addf %15, %22 : vector<64x16xf32>
    %c0_22 = arith.constant 0 : index
    %c8 = arith.constant 8 : index
    %24 = vector.load %arg10[%c0_22, %c8] : memref<100x16xf32, #tpu.memory_space<vmem>>, vector<64x8xf32>
    %c0_23 = arith.constant 0 : index
    %c0_24 = arith.constant 0 : index
    %25 = vector.load %arg3[%c0_23, %c0_24] : memref<64x5xf32, #tpu.memory_space<vmem>>, vector<64x1xf32>
    %26 = vector.broadcast %25 : vector<64x1xf32> to vector<64x8xf32>
    %27 = arith.mulf %24, %26 : vector<64x8xf32>
    %c9_25 = arith.constant 9 : index
    %c0_26 = arith.constant 0 : index
    %c0_27 = arith.constant 0 : index
    %28 = vector.load %arg5[%c9_25, %c0_26, %c0_27] : memref<18x8x16xf32, #tpu.memory_space<vmem>>, vector<1x8x16xf32>
    %29 = vector.shape_cast %28 : vector<1x8x16xf32> to vector<8x16xf32>
    %cst_28 = arith.constant dense<0.000000e+00> : vector<64x16xf32>
    %30 = tpu.matmul %27, %29, %cst_28 {dimension_numbers = #tpu.dot_dimension_numbers<[1], [0], [0], [1], [0, 0, 1, 1], [], []>} : vector<64x8xf32>, vector<8x16xf32>, vector<64x16xf32> -> vector<64x16xf32>
    %31 = arith.addf %23, %30 : vector<64x16xf32>
    %c10 = arith.constant 10 : index
    %c0_29 = arith.constant 0 : index
    %32 = vector.load %arg10[%c10, %c0_29] : memref<100x16xf32, #tpu.memory_space<vmem>>, vector<64x8xf32>
    %c1_30 = arith.constant 1 : index
    %c0_31 = arith.constant 0 : index
    %c0_32 = arith.constant 0 : index
    %33 = vector.load %arg5[%c1_30, %c0_31, %c0_32] : memref<18x8x16xf32, #tpu.memory_space<vmem>>, vector<1x8x16xf32>
    %34 = vector.shape_cast %33 : vector<1x8x16xf32> to vector<8x16xf32>
    %cst_33 = arith.constant dense<0.000000e+00> : vector<64x16xf32>
    %35 = tpu.matmul %32, %34, %cst_33 {dimension_numbers = #tpu.dot_dimension_numbers<[1], [0], [0], [1], [0, 0, 1, 1], [], []>} : vector<64x8xf32>, vector<8x16xf32>, vector<64x16xf32> -> vector<64x16xf32>
    %36 = arith.addf %31, %35 : vector<64x16xf32>
    %c2 = arith.constant 2 : index
    %c8_34 = arith.constant 8 : index
    %37 = vector.load %arg10[%c2, %c8_34] : memref<100x16xf32, #tpu.memory_space<vmem>>, vector<64x8xf32>
    %c10_35 = arith.constant 10 : index
    %c0_36 = arith.constant 0 : index
    %c0_37 = arith.constant 0 : index
    %38 = vector.load %arg5[%c10_35, %c0_36, %c0_37] : memref<18x8x16xf32, #tpu.memory_space<vmem>>, vector<1x8x16xf32>
    %39 = vector.shape_cast %38 : vector<1x8x16xf32> to vector<8x16xf32>
    %cst_38 = arith.constant dense<0.000000e+00> : vector<64x16xf32>
    %40 = tpu.matmul %37, %39, %cst_38 {dimension_numbers = #tpu.dot_dimension_numbers<[1], [0], [0], [1], [0, 0, 1, 1], [], []>} : vector<64x8xf32>, vector<8x16xf32>, vector<64x16xf32> -> vector<64x16xf32>
    %41 = arith.addf %36, %40 : vector<64x16xf32>
    %c11 = arith.constant 11 : index
    %c0_39 = arith.constant 0 : index
    %42 = vector.load %arg10[%c11, %c0_39] : memref<100x16xf32, #tpu.memory_space<vmem>>, vector<64x8xf32>
    %c0_40 = arith.constant 0 : index
    %c3 = arith.constant 3 : index
    %43 = vector.load %arg3[%c0_40, %c3] : memref<64x5xf32, #tpu.memory_space<vmem>>, vector<64x1xf32>
    %44 = vector.broadcast %43 : vector<64x1xf32> to vector<64x8xf32>
    %45 = arith.mulf %42, %44 : vector<64x8xf32>
    %c2_41 = arith.constant 2 : index
    %c0_42 = arith.constant 0 : index
    %c0_43 = arith.constant 0 : index
    %46 = vector.load %arg5[%c2_41, %c0_42, %c0_43] : memref<18x8x16xf32, #tpu.memory_space<vmem>>, vector<1x8x16xf32>
    %47 = vector.shape_cast %46 : vector<1x8x16xf32> to vector<8x16xf32>
    %cst_44 = arith.constant dense<0.000000e+00> : vector<64x16xf32>
    %48 = tpu.matmul %45, %47, %cst_44 {dimension_numbers = #tpu.dot_dimension_numbers<[1], [0], [0], [1], [0, 0, 1, 1], [], []>} : vector<64x8xf32>, vector<8x16xf32>, vector<64x16xf32> -> vector<64x16xf32>
    %49 = arith.addf %41, %48 : vector<64x16xf32>
    %c4 = arith.constant 4 : index
    %c8_45 = arith.constant 8 : index
    %50 = vector.load %arg10[%c4, %c8_45] : memref<100x16xf32, #tpu.memory_space<vmem>>, vector<64x8xf32>
    %c0_46 = arith.constant 0 : index
    %c4_47 = arith.constant 4 : index
    %51 = vector.load %arg3[%c0_46, %c4_47] : memref<64x5xf32, #tpu.memory_space<vmem>>, vector<64x1xf32>
    %52 = vector.broadcast %51 : vector<64x1xf32> to vector<64x8xf32>
    %53 = arith.mulf %50, %52 : vector<64x8xf32>
    %c11_48 = arith.constant 11 : index
    %c0_49 = arith.constant 0 : index
    %c0_50 = arith.constant 0 : index
    %54 = vector.load %arg5[%c11_48, %c0_49, %c0_50] : memref<18x8x16xf32, #tpu.memory_space<vmem>>, vector<1x8x16xf32>
    %55 = vector.shape_cast %54 : vector<1x8x16xf32> to vector<8x16xf32>
    %cst_51 = arith.constant dense<0.000000e+00> : vector<64x16xf32>
    %56 = tpu.matmul %53, %55, %cst_51 {dimension_numbers = #tpu.dot_dimension_numbers<[1], [0], [0], [1], [0, 0, 1, 1], [], []>} : vector<64x8xf32>, vector<8x16xf32>, vector<64x16xf32> -> vector<64x16xf32>
    %57 = arith.addf %49, %56 : vector<64x16xf32>
    %c17 = arith.constant 17 : index
    %c0_52 = arith.constant 0 : index
    %58 = vector.load %arg10[%c17, %c0_52] : memref<100x16xf32, #tpu.memory_space<vmem>>, vector<64x8xf32>
    %c0_53 = arith.constant 0 : index
    %c1_54 = arith.constant 1 : index
    %59 = vector.load %arg3[%c0_53, %c1_54] : memref<64x5xf32, #tpu.memory_space<vmem>>, vector<64x1xf32>
    %60 = vector.broadcast %59 : vector<64x1xf32> to vector<64x8xf32>
    %61 = arith.mulf %58, %60 : vector<64x8xf32>
    %c3_55 = arith.constant 3 : index
    %c0_56 = arith.constant 0 : index
    %c0_57 = arith.constant 0 : index
    %62 = vector.load %arg5[%c3_55, %c0_56, %c0_57] : memref<18x8x16xf32, #tpu.memory_space<vmem>>, vector<1x8x16xf32>
    %63 = vector.shape_cast %62 : vector<1x8x16xf32> to vector<8x16xf32>
    %cst_58 = arith.constant dense<0.000000e+00> : vector<64x16xf32>
    %64 = tpu.matmul %61, %63, %cst_58 {dimension_numbers = #tpu.dot_dimension_numbers<[1], [0], [0], [1], [0, 0, 1, 1], [], []>} : vector<64x8xf32>, vector<8x16xf32>, vector<64x16xf32> -> vector<64x16xf32>
    %65 = arith.addf %57, %64 : vector<64x16xf32>
    %c16 = arith.constant 16 : index
    %c8_59 = arith.constant 8 : index
    %66 = vector.load %arg10[%c16, %c8_59] : memref<100x16xf32, #tpu.memory_space<vmem>>, vector<64x8xf32>
    %c0_60 = arith.constant 0 : index
    %c0_61 = arith.constant 0 : index
    %67 = vector.load %arg3[%c0_60, %c0_61] : memref<64x5xf32, #tpu.memory_space<vmem>>, vector<64x1xf32>
    %68 = vector.broadcast %67 : vector<64x1xf32> to vector<64x8xf32>
    %69 = arith.mulf %66, %68 : vector<64x8xf32>
    %c12 = arith.constant 12 : index
    %c0_62 = arith.constant 0 : index
    %c0_63 = arith.constant 0 : index
    %70 = vector.load %arg5[%c12, %c0_62, %c0_63] : memref<18x8x16xf32, #tpu.memory_space<vmem>>, vector<1x8x16xf32>
    %71 = vector.shape_cast %70 : vector<1x8x16xf32> to vector<8x16xf32>
    %cst_64 = arith.constant dense<0.000000e+00> : vector<64x16xf32>
    %72 = tpu.matmul %69, %71, %cst_64 {dimension_numbers = #tpu.dot_dimension_numbers<[1], [0], [0], [1], [0, 0, 1, 1], [], []>} : vector<64x8xf32>, vector<8x16xf32>, vector<64x16xf32> -> vector<64x16xf32>
    %73 = arith.addf %65, %72 : vector<64x16xf32>
    %c18_65 = arith.constant 18 : index
    %c0_66 = arith.constant 0 : index
    %74 = vector.load %arg10[%c18_65, %c0_66] : memref<100x16xf32, #tpu.memory_space<vmem>>, vector<64x8xf32>
    %c4_67 = arith.constant 4 : index
    %c0_68 = arith.constant 0 : index
    %c0_69 = arith.constant 0 : index
    %75 = vector.load %arg5[%c4_67, %c0_68, %c0_69] : memref<18x8x16xf32, #tpu.memory_space<vmem>>, vector<1x8x16xf32>
    %76 = vector.shape_cast %75 : vector<1x8x16xf32> to vector<8x16xf32>
    %cst_70 = arith.constant dense<0.000000e+00> : vector<64x16xf32>
    %77 = tpu.matmul %74, %76, %cst_70 {dimension_numbers = #tpu.dot_dimension_numbers<[1], [0], [0], [1], [0, 0, 1, 1], [], []>} : vector<64x8xf32>, vector<8x16xf32>, vector<64x16xf32> -> vector<64x16xf32>
    %78 = arith.addf %73, %77 : vector<64x16xf32>
    %c18_71 = arith.constant 18 : index
    %c8_72 = arith.constant 8 : index
    %79 = vector.load %arg10[%c18_71, %c8_72] : memref<100x16xf32, #tpu.memory_space<vmem>>, vector<64x8xf32>
    %c13 = arith.constant 13 : index
    %c0_73 = arith.constant 0 : index
    %c0_74 = arith.constant 0 : index
    %80 = vector.load %arg5[%c13, %c0_73, %c0_74] : memref<18x8x16xf32, #tpu.memory_space<vmem>>, vector<1x8x16xf32>
    %81 = vector.shape_cast %80 : vector<1x8x16xf32> to vector<8x16xf32>
    %cst_75 = arith.constant dense<0.000000e+00> : vector<64x16xf32>
    %82 = tpu.matmul %79, %81, %cst_75 {dimension_numbers = #tpu.dot_dimension_numbers<[1], [0], [0], [1], [0, 0, 1, 1], [], []>} : vector<64x8xf32>, vector<8x16xf32>, vector<64x16xf32> -> vector<64x16xf32>
    %83 = arith.addf %78, %82 : vector<64x16xf32>
    %c19 = arith.constant 19 : index
    %c0_76 = arith.constant 0 : index
    %84 = vector.load %arg10[%c19, %c0_76] : memref<100x16xf32, #tpu.memory_space<vmem>>, vector<64x8xf32>
    %c0_77 = arith.constant 0 : index
    %c3_78 = arith.constant 3 : index
    %85 = vector.load %arg3[%c0_77, %c3_78] : memref<64x5xf32, #tpu.memory_space<vmem>>, vector<64x1xf32>
    %86 = vector.broadcast %85 : vector<64x1xf32> to vector<64x8xf32>
    %87 = arith.mulf %84, %86 : vector<64x8xf32>
    %c5 = arith.constant 5 : index
    %c0_79 = arith.constant 0 : index
    %c0_80 = arith.constant 0 : index
    %88 = vector.load %arg5[%c5, %c0_79, %c0_80] : memref<18x8x16xf32, #tpu.memory_space<vmem>>, vector<1x8x16xf32>
    %89 = vector.shape_cast %88 : vector<1x8x16xf32> to vector<8x16xf32>
    %cst_81 = arith.constant dense<0.000000e+00> : vector<64x16xf32>
    %90 = tpu.matmul %87, %89, %cst_81 {dimension_numbers = #tpu.dot_dimension_numbers<[1], [0], [0], [1], [0, 0, 1, 1], [], []>} : vector<64x8xf32>, vector<8x16xf32>, vector<64x16xf32> -> vector<64x16xf32>
    %91 = arith.addf %83, %90 : vector<64x16xf32>
    %c20 = arith.constant 20 : index
    %c8_82 = arith.constant 8 : index
    %92 = vector.load %arg10[%c20, %c8_82] : memref<100x16xf32, #tpu.memory_space<vmem>>, vector<64x8xf32>
    %c0_83 = arith.constant 0 : index
    %c4_84 = arith.constant 4 : index
    %93 = vector.load %arg3[%c0_83, %c4_84] : memref<64x5xf32, #tpu.memory_space<vmem>>, vector<64x1xf32>
    %94 = vector.broadcast %93 : vector<64x1xf32> to vector<64x8xf32>
    %95 = arith.mulf %92, %94 : vector<64x8xf32>
    %c14 = arith.constant 14 : index
    %c0_85 = arith.constant 0 : index
    %c0_86 = arith.constant 0 : index
    %96 = vector.load %arg5[%c14, %c0_85, %c0_86] : memref<18x8x16xf32, #tpu.memory_space<vmem>>, vector<1x8x16xf32>
    %97 = vector.shape_cast %96 : vector<1x8x16xf32> to vector<8x16xf32>
    %cst_87 = arith.constant dense<0.000000e+00> : vector<64x16xf32>
    %98 = tpu.matmul %95, %97, %cst_87 {dimension_numbers = #tpu.dot_dimension_numbers<[1], [0], [0], [1], [0, 0, 1, 1], [], []>} : vector<64x8xf32>, vector<8x16xf32>, vector<64x16xf32> -> vector<64x16xf32>
    %99 = arith.addf %91, %98 : vector<64x16xf32>
    %c25 = arith.constant 25 : index
    %c0_88 = arith.constant 0 : index
    %100 = vector.load %arg10[%c25, %c0_88] : memref<100x16xf32, #tpu.memory_space<vmem>>, vector<64x8xf32>
    %c0_89 = arith.constant 0 : index
    %c1_90 = arith.constant 1 : index
    %101 = vector.load %arg3[%c0_89, %c1_90] : memref<64x5xf32, #tpu.memory_space<vmem>>, vector<64x1xf32>
    %102 = vector.broadcast %101 : vector<64x1xf32> to vector<64x8xf32>
    %103 = arith.mulf %100, %102 : vector<64x8xf32>
    %c6 = arith.constant 6 : index
    %c0_91 = arith.constant 0 : index
    %c0_92 = arith.constant 0 : index
    %104 = vector.load %arg5[%c6, %c0_91, %c0_92] : memref<18x8x16xf32, #tpu.memory_space<vmem>>, vector<1x8x16xf32>
    %105 = vector.shape_cast %104 : vector<1x8x16xf32> to vector<8x16xf32>
    %cst_93 = arith.constant dense<0.000000e+00> : vector<64x16xf32>
    %106 = tpu.matmul %103, %105, %cst_93 {dimension_numbers = #tpu.dot_dimension_numbers<[1], [0], [0], [1], [0, 0, 1, 1], [], []>} : vector<64x8xf32>, vector<8x16xf32>, vector<64x16xf32> -> vector<64x16xf32>
    %107 = arith.addf %99, %106 : vector<64x16xf32>
    %c32 = arith.constant 32 : index
    %c8_94 = arith.constant 8 : index
    %108 = vector.load %arg10[%c32, %c8_94] : memref<100x16xf32, #tpu.memory_space<vmem>>, vector<64x8xf32>
    %c0_95 = arith.constant 0 : index
    %c0_96 = arith.constant 0 : index
    %109 = vector.load %arg3[%c0_95, %c0_96] : memref<64x5xf32, #tpu.memory_space<vmem>>, vector<64x1xf32>
    %110 = vector.broadcast %109 : vector<64x1xf32> to vector<64x8xf32>
    %111 = arith.mulf %108, %110 : vector<64x8xf32>
    %c15 = arith.constant 15 : index
    %c0_97 = arith.constant 0 : index
    %c0_98 = arith.constant 0 : index
    %112 = vector.load %arg5[%c15, %c0_97, %c0_98] : memref<18x8x16xf32, #tpu.memory_space<vmem>>, vector<1x8x16xf32>
    %113 = vector.shape_cast %112 : vector<1x8x16xf32> to vector<8x16xf32>
    %cst_99 = arith.constant dense<0.000000e+00> : vector<64x16xf32>
    %114 = tpu.matmul %111, %113, %cst_99 {dimension_numbers = #tpu.dot_dimension_numbers<[1], [0], [0], [1], [0, 0, 1, 1], [], []>} : vector<64x8xf32>, vector<8x16xf32>, vector<64x16xf32> -> vector<64x16xf32>
    %115 = arith.addf %107, %114 : vector<64x16xf32>
    %c26 = arith.constant 26 : index
    %c0_100 = arith.constant 0 : index
    %116 = vector.load %arg10[%c26, %c0_100] : memref<100x16xf32, #tpu.memory_space<vmem>>, vector<64x8xf32>
    %c7 = arith.constant 7 : index
    %c0_101 = arith.constant 0 : index
    %c0_102 = arith.constant 0 : index
    %117 = vector.load %arg5[%c7, %c0_101, %c0_102] : memref<18x8x16xf32, #tpu.memory_space<vmem>>, vector<1x8x16xf32>
    %118 = vector.shape_cast %117 : vector<1x8x16xf32> to vector<8x16xf32>
    %cst_103 = arith.constant dense<0.000000e+00> : vector<64x16xf32>
    %119 = tpu.matmul %116, %118, %cst_103 {dimension_numbers = #tpu.dot_dimension_numbers<[1], [0], [0], [1], [0, 0, 1, 1], [], []>} : vector<64x8xf32>, vector<8x16xf32>, vector<64x16xf32> -> vector<64x16xf32>
    %120 = arith.addf %115, %119 : vector<64x16xf32>
    %c34 = arith.constant 34 : index
    %c8_104 = arith.constant 8 : index
    %121 = vector.load %arg10[%c34, %c8_104] : memref<100x16xf32, #tpu.memory_space<vmem>>, vector<64x8xf32>
    %c16_105 = arith.constant 16 : index
    %c0_106 = arith.constant 0 : index
    %c0_107 = arith.constant 0 : index
    %122 = vector.load %arg5[%c16_105, %c0_106, %c0_107] : memref<18x8x16xf32, #tpu.memory_space<vmem>>, vector<1x8x16xf32>
    %123 = vector.shape_cast %122 : vector<1x8x16xf32> to vector<8x16xf32>
    %cst_108 = arith.constant dense<0.000000e+00> : vector<64x16xf32>
    %124 = tpu.matmul %121, %123, %cst_108 {dimension_numbers = #tpu.dot_dimension_numbers<[1], [0], [0], [1], [0, 0, 1, 1], [], []>} : vector<64x8xf32>, vector<8x16xf32>, vector<64x16xf32> -> vector<64x16xf32>
    %125 = arith.addf %120, %124 : vector<64x16xf32>
    %c27 = arith.constant 27 : index
    %c0_109 = arith.constant 0 : index
    %126 = vector.load %arg10[%c27, %c0_109] : memref<100x16xf32, #tpu.memory_space<vmem>>, vector<64x8xf32>
    %c0_110 = arith.constant 0 : index
    %c3_111 = arith.constant 3 : index
    %127 = vector.load %arg3[%c0_110, %c3_111] : memref<64x5xf32, #tpu.memory_space<vmem>>, vector<64x1xf32>
    %128 = vector.broadcast %127 : vector<64x1xf32> to vector<64x8xf32>
    %129 = arith.mulf %126, %128 : vector<64x8xf32>
    %c8_112 = arith.constant 8 : index
    %c0_113 = arith.constant 0 : index
    %c0_114 = arith.constant 0 : index
    %130 = vector.load %arg5[%c8_112, %c0_113, %c0_114] : memref<18x8x16xf32, #tpu.memory_space<vmem>>, vector<1x8x16xf32>
    %131 = vector.shape_cast %130 : vector<1x8x16xf32> to vector<8x16xf32>
    %cst_115 = arith.constant dense<0.000000e+00> : vector<64x16xf32>
    %132 = tpu.matmul %129, %131, %cst_115 {dimension_numbers = #tpu.dot_dimension_numbers<[1], [0], [0], [1], [0, 0, 1, 1], [], []>} : vector<64x8xf32>, vector<8x16xf32>, vector<64x16xf32> -> vector<64x16xf32>
    %133 = arith.addf %125, %132 : vector<64x16xf32>
    %c36 = arith.constant 36 : index
    %c8_116 = arith.constant 8 : index
    %134 = vector.load %arg10[%c36, %c8_116] : memref<100x16xf32, #tpu.memory_space<vmem>>, vector<64x8xf32>
    %c0_117 = arith.constant 0 : index
    %c4_118 = arith.constant 4 : index
    %135 = vector.load %arg3[%c0_117, %c4_118] : memref<64x5xf32, #tpu.memory_space<vmem>>, vector<64x1xf32>
    %136 = vector.broadcast %135 : vector<64x1xf32> to vector<64x8xf32>
    %137 = arith.mulf %134, %136 : vector<64x8xf32>
    %c17_119 = arith.constant 17 : index
    %c0_120 = arith.constant 0 : index
    %c0_121 = arith.constant 0 : index
    %138 = vector.load %arg5[%c17_119, %c0_120, %c0_121] : memref<18x8x16xf32, #tpu.memory_space<vmem>>, vector<1x8x16xf32>
    %139 = vector.shape_cast %138 : vector<1x8x16xf32> to vector<8x16xf32>
    %cst_122 = arith.constant dense<0.000000e+00> : vector<64x16xf32>
    %140 = tpu.matmul %137, %139, %cst_122 {dimension_numbers = #tpu.dot_dimension_numbers<[1], [0], [0], [1], [0, 0, 1, 1], [], []>} : vector<64x8xf32>, vector<8x16xf32>, vector<64x16xf32> -> vector<64x16xf32>
    %141 = arith.addf %133, %140 : vector<64x16xf32>
    %c0_123 = arith.constant 0 : index
    %c0_124 = arith.constant 0 : index
    %142 = vector.load %arg8[%c0_123, %c0_124] : memref<5x16xf32, #tpu.memory_space<vmem>>, vector<1x16xf32>
    %143 = vector.broadcast %142 : vector<1x16xf32> to vector<64x16xf32>
    %144 = arith.addf %141, %143 : vector<64x16xf32>
    %145 = arith.addf %144, %6 : vector<64x16xf32>
    %cst_125 = arith.constant 0.000000e+00 : f32
    %146 = vector.broadcast %cst_125 : f32 to vector<64x16xf32>
    %147 = arith.cmpf oge, %145, %146 : vector<64x16xf32>
    %c2_126 = arith.constant 2 : index
    %c0_127 = arith.constant 0 : index
    %148 = vector.load %arg8[%c2_126, %c0_127] : memref<5x16xf32, #tpu.memory_space<vmem>>, vector<1x16xf32>
    %149 = vector.broadcast %148 : vector<1x16xf32> to vector<64x16xf32>
    %150 = arith.mulf %149, %145 : vector<64x16xf32>
    %151 = arith.select %147, %145, %150 : vector<64x16xi1>, vector<64x16xf32>
    %cst_128 = arith.constant 0.000000e+00 : f32
    %152 = vector.broadcast %cst_128 : f32 to vector<9x16xf32>
    %c0_129 = arith.constant 0 : index
    %c0_130 = arith.constant 0 : index
    %153 = vector.load %arg11[%c0_129, %c0_130] : memref<82x16xf32, #tpu.memory_space<vmem>>, vector<9x16xf32>
    tpu.vector_store %arg11[%c0_129, %c0_130], %152 {strides = array<i32>} : memref<82x16xf32, #tpu.memory_space<vmem>>, vector<9x16xf32>,
    %cst_131 = arith.constant 0.000000e+00 : f32
    %154 = vector.broadcast %cst_131 : f32 to vector<9x16xf32>
    %c73 = arith.constant 73 : index
    %c0_132 = arith.constant 0 : index
    %155 = vector.load %arg11[%c73, %c0_132] : memref<82x16xf32, #tpu.memory_space<vmem>>, vector<9x16xf32>
    tpu.vector_store %arg11[%c73, %c0_132], %154 {strides = array<i32>} : memref<82x16xf32, #tpu.memory_space<vmem>>, vector<9x16xf32>,
    %c9_133 = arith.constant 9 : index
    %c0_134 = arith.constant 0 : index
    %156 = vector.load %arg11[%c9_133, %c0_134] : memref<82x16xf32, #tpu.memory_space<vmem>>, vector<64x16xf32>
    tpu.vector_store %arg11[%c9_133, %c0_134], %151 {strides = array<i32>} : memref<82x16xf32, #tpu.memory_space<vmem>>, vector<64x16xf32>,
    %cst_135 = arith.constant 0.000000e+00 : f32
    %157 = vector.broadcast %cst_135 : f32 to vector<64x16xf32>
    %c0_136 = arith.constant 0 : index
    %c0_137 = arith.constant 0 : index
    %158 = vector.load %arg11[%c0_136, %c0_137] : memref<82x16xf32, #tpu.memory_space<vmem>>, vector<64x16xf32>
    %c0_138 = arith.constant 0 : index
    %c1_139 = arith.constant 1 : index
    %159 = vector.load %arg3[%c0_138, %c1_139] : memref<64x5xf32, #tpu.memory_space<vmem>>, vector<64x1xf32>
    %160 = vector.broadcast %159 : vector<64x1xf32> to vector<64x16xf32>
    %161 = arith.mulf %158, %160 : vector<64x16xf32>
    %c0_140 = arith.constant 0 : index
    %c0_141 = arith.constant 0 : index
    %c0_142 = arith.constant 0 : index
    %162 = vector.load %arg6[%c0_140, %c0_141, %c0_142] : memref<9x16x16xf32, #tpu.memory_space<vmem>>, vector<1x16x16xf32>
    %163 = vector.shape_cast %162 : vector<1x16x16xf32> to vector<16x16xf32>
    %cst_143 = arith.constant dense<0.000000e+00> : vector<64x16xf32>
    %164 = tpu.matmul %161, %163, %cst_143 {dimension_numbers = #tpu.dot_dimension_numbers<[1], [0], [0], [1], [0, 0, 1, 1], [], []>} : vector<64x16xf32>, vector<16x16xf32>, vector<64x16xf32> -> vector<64x16xf32>
    %165 = arith.addf %157, %164 : vector<64x16xf32>
    %c1_144 = arith.constant 1 : index
    %c0_145 = arith.constant 0 : index
    %166 = vector.load %arg11[%c1_144, %c0_145] : memref<82x16xf32, #tpu.memory_space<vmem>>, vector<64x16xf32>
    %c1_146 = arith.constant 1 : index
    %c0_147 = arith.constant 0 : index
    %c0_148 = arith.constant 0 : index
    %167 = vector.load %arg6[%c1_146, %c0_147, %c0_148] : memref<9x16x16xf32, #tpu.memory_space<vmem>>, vector<1x16x16xf32>
    %168 = vector.shape_cast %167 : vector<1x16x16xf32> to vector<16x16xf32>
    %cst_149 = arith.constant dense<0.000000e+00> : vector<64x16xf32>
    %169 = tpu.matmul %166, %168, %cst_149 {dimension_numbers = #tpu.dot_dimension_numbers<[1], [0], [0], [1], [0, 0, 1, 1], [], []>} : vector<64x16xf32>, vector<16x16xf32>, vector<64x16xf32> -> vector<64x16xf32>
    %170 = arith.addf %165, %169 : vector<64x16xf32>
    %c2_150 = arith.constant 2 : index
    %c0_151 = arith.constant 0 : index
    %171 = vector.load %arg11[%c2_150, %c0_151] : memref<82x16xf32, #tpu.memory_space<vmem>>, vector<64x16xf32>
    %c0_152 = arith.constant 0 : index
    %c3_153 = arith.constant 3 : index
    %172 = vector.load %arg3[%c0_152, %c3_153] : memref<64x5xf32, #tpu.memory_space<vmem>>, vector<64x1xf32>
    %173 = vector.broadcast %172 : vector<64x1xf32> to vector<64x16xf32>
    %174 = arith.mulf %171, %173 : vector<64x16xf32>
    %c2_154 = arith.constant 2 : index
    %c0_155 = arith.constant 0 : index
    %c0_156 = arith.constant 0 : index
    %175 = vector.load %arg6[%c2_154, %c0_155, %c0_156] : memref<9x16x16xf32, #tpu.memory_space<vmem>>, vector<1x16x16xf32>
    %176 = vector.shape_cast %175 : vector<1x16x16xf32> to vector<16x16xf32>
    %cst_157 = arith.constant dense<0.000000e+00> : vector<64x16xf32>
    %177 = tpu.matmul %174, %176, %cst_157 {dimension_numbers = #tpu.dot_dimension_numbers<[1], [0], [0], [1], [0, 0, 1, 1], [], []>} : vector<64x16xf32>, vector<16x16xf32>, vector<64x16xf32> -> vector<64x16xf32>
    %178 = arith.addf %170, %177 : vector<64x16xf32>
    %c8_158 = arith.constant 8 : index
    %c0_159 = arith.constant 0 : index
    %179 = vector.load %arg11[%c8_158, %c0_159] : memref<82x16xf32, #tpu.memory_space<vmem>>, vector<64x16xf32>
    %c0_160 = arith.constant 0 : index
    %c1_161 = arith.constant 1 : index
    %180 = vector.load %arg3[%c0_160, %c1_161] : memref<64x5xf32, #tpu.memory_space<vmem>>, vector<64x1xf32>
    %181 = vector.broadcast %180 : vector<64x1xf32> to vector<64x16xf32>
    %182 = arith.mulf %179, %181 : vector<64x16xf32>
    %c3_162 = arith.constant 3 : index
    %c0_163 = arith.constant 0 : index
    %c0_164 = arith.constant 0 : index
    %183 = vector.load %arg6[%c3_162, %c0_163, %c0_164] : memref<9x16x16xf32, #tpu.memory_space<vmem>>, vector<1x16x16xf32>
    %184 = vector.shape_cast %183 : vector<1x16x16xf32> to vector<16x16xf32>
    %cst_165 = arith.constant dense<0.000000e+00> : vector<64x16xf32>
    %185 = tpu.matmul %182, %184, %cst_165 {dimension_numbers = #tpu.dot_dimension_numbers<[1], [0], [0], [1], [0, 0, 1, 1], [], []>} : vector<64x16xf32>, vector<16x16xf32>, vector<64x16xf32> -> vector<64x16xf32>
    %186 = arith.addf %178, %185 : vector<64x16xf32>
    %c9_166 = arith.constant 9 : index
    %c0_167 = arith.constant 0 : index
    %187 = vector.load %arg11[%c9_166, %c0_167] : memref<82x16xf32, #tpu.memory_space<vmem>>, vector<64x16xf32>
    %c4_168 = arith.constant 4 : index
    %c0_169 = arith.constant 0 : index
    %c0_170 = arith.constant 0 : index
    %188 = vector.load %arg6[%c4_168, %c0_169, %c0_170] : memref<9x16x16xf32, #tpu.memory_space<vmem>>, vector<1x16x16xf32>
    %189 = vector.shape_cast %188 : vector<1x16x16xf32> to vector<16x16xf32>
    %cst_171 = arith.constant dense<0.000000e+00> : vector<64x16xf32>
    %190 = tpu.matmul %187, %189, %cst_171 {dimension_numbers = #tpu.dot_dimension_numbers<[1], [0], [0], [1], [0, 0, 1, 1], [], []>} : vector<64x16xf32>, vector<16x16xf32>, vector<64x16xf32> -> vector<64x16xf32>
    %191 = arith.addf %186, %190 : vector<64x16xf32>
    %c10_172 = arith.constant 10 : index
    %c0_173 = arith.constant 0 : index
    %192 = vector.load %arg11[%c10_172, %c0_173] : memref<82x16xf32, #tpu.memory_space<vmem>>, vector<64x16xf32>
    %c0_174 = arith.constant 0 : index
    %c3_175 = arith.constant 3 : index
    %193 = vector.load %arg3[%c0_174, %c3_175] : memref<64x5xf32, #tpu.memory_space<vmem>>, vector<64x1xf32>
    %194 = vector.broadcast %193 : vector<64x1xf32> to vector<64x16xf32>
    %195 = arith.mulf %192, %194 : vector<64x16xf32>
    %c5_176 = arith.constant 5 : index
    %c0_177 = arith.constant 0 : index
    %c0_178 = arith.constant 0 : index
    %196 = vector.load %arg6[%c5_176, %c0_177, %c0_178] : memref<9x16x16xf32, #tpu.memory_space<vmem>>, vector<1x16x16xf32>
    %197 = vector.shape_cast %196 : vector<1x16x16xf32> to vector<16x16xf32>
    %cst_179 = arith.constant dense<0.000000e+00> : vector<64x16xf32>
    %198 = tpu.matmul %195, %197, %cst_179 {dimension_numbers = #tpu.dot_dimension_numbers<[1], [0], [0], [1], [0, 0, 1, 1], [], []>} : vector<64x16xf32>, vector<16x16xf32>, vector<64x16xf32> -> vector<64x16xf32>
    %199 = arith.addf %191, %198 : vector<64x16xf32>
    %c16_180 = arith.constant 16 : index
    %c0_181 = arith.constant 0 : index
    %200 = vector.load %arg11[%c16_180, %c0_181] : memref<82x16xf32, #tpu.memory_space<vmem>>, vector<64x16xf32>
    %c0_182 = arith.constant 0 : index
    %c1_183 = arith.constant 1 : index
    %201 = vector.load %arg3[%c0_182, %c1_183] : memref<64x5xf32, #tpu.memory_space<vmem>>, vector<64x1xf32>
    %202 = vector.broadcast %201 : vector<64x1xf32> to vector<64x16xf32>
    %203 = arith.mulf %200, %202 : vector<64x16xf32>
    %c6_184 = arith.constant 6 : index
    %c0_185 = arith.constant 0 : index
    %c0_186 = arith.constant 0 : index
    %204 = vector.load %arg6[%c6_184, %c0_185, %c0_186] : memref<9x16x16xf32, #tpu.memory_space<vmem>>, vector<1x16x16xf32>
    %205 = vector.shape_cast %204 : vector<1x16x16xf32> to vector<16x16xf32>
    %cst_187 = arith.constant dense<0.000000e+00> : vector<64x16xf32>
    %206 = tpu.matmul %203, %205, %cst_187 {dimension_numbers = #tpu.dot_dimension_numbers<[1], [0], [0], [1], [0, 0, 1, 1], [], []>} : vector<64x16xf32>, vector<16x16xf32>, vector<64x16xf32> -> vector<64x16xf32>
    %207 = arith.addf %199, %206 : vector<64x16xf32>
    %c17_188 = arith.constant 17 : index
    %c0_189 = arith.constant 0 : index
    %208 = vector.load %arg11[%c17_188, %c0_189] : memref<82x16xf32, #tpu.memory_space<vmem>>, vector<64x16xf32>
    %c7_190 = arith.constant 7 : index
    %c0_191 = arith.constant 0 : index
    %c0_192 = arith.constant 0 : index
    %209 = vector.load %arg6[%c7_190, %c0_191, %c0_192] : memref<9x16x16xf32, #tpu.memory_space<vmem>>, vector<1x16x16xf32>
    %210 = vector.shape_cast %209 : vector<1x16x16xf32> to vector<16x16xf32>
    %cst_193 = arith.constant dense<0.000000e+00> : vector<64x16xf32>
    %211 = tpu.matmul %208, %210, %cst_193 {dimension_numbers = #tpu.dot_dimension_numbers<[1], [0], [0], [1], [0, 0, 1, 1], [], []>} : vector<64x16xf32>, vector<16x16xf32>, vector<64x16xf32> -> vector<64x16xf32>
    %212 = arith.addf %207, %211 : vector<64x16xf32>
    %c18_194 = arith.constant 18 : index
    %c0_195 = arith.constant 0 : index
    %213 = vector.load %arg11[%c18_194, %c0_195] : memref<82x16xf32, #tpu.memory_space<vmem>>, vector<64x16xf32>
    %c0_196 = arith.constant 0 : index
    %c3_197 = arith.constant 3 : index
    %214 = vector.load %arg3[%c0_196, %c3_197] : memref<64x5xf32, #tpu.memory_space<vmem>>, vector<64x1xf32>
    %215 = vector.broadcast %214 : vector<64x1xf32> to vector<64x16xf32>
    %216 = arith.mulf %213, %215 : vector<64x16xf32>
    %c8_198 = arith.constant 8 : index
    %c0_199 = arith.constant 0 : index
    %c0_200 = arith.constant 0 : index
    %217 = vector.load %arg6[%c8_198, %c0_199, %c0_200] : memref<9x16x16xf32, #tpu.memory_space<vmem>>, vector<1x16x16xf32>
    %218 = vector.shape_cast %217 : vector<1x16x16xf32> to vector<16x16xf32>
    %cst_201 = arith.constant dense<0.000000e+00> : vector<64x16xf32>
    %219 = tpu.matmul %216, %218, %cst_201 {dimension_numbers = #tpu.dot_dimension_numbers<[1], [0], [0], [1], [0, 0, 1, 1], [], []>} : vector<64x16xf32>, vector<16x16xf32>, vector<64x16xf32> -> vector<64x16xf32>
    %220 = arith.addf %212, %219 : vector<64x16xf32>
    %c3_202 = arith.constant 3 : index
    %c0_203 = arith.constant 0 : index
    %221 = vector.load %arg8[%c3_202, %c0_203] : memref<5x16xf32, #tpu.memory_space<vmem>>, vector<1x16xf32>
    %222 = vector.broadcast %221 : vector<1x16xf32> to vector<64x16xf32>
    %223 = arith.addf %220, %222 : vector<64x16xf32>
    %cst_204 = arith.constant 0.000000e+00 : f32
    %224 = vector.broadcast %cst_204 : f32 to vector<64x16xf32>
    %225 = arith.cmpf oge, %223, %224 : vector<64x16xf32>
    %c4_205 = arith.constant 4 : index
    %c0_206 = arith.constant 0 : index
    %226 = vector.load %arg8[%c4_205, %c0_206] : memref<5x16xf32, #tpu.memory_space<vmem>>, vector<1x16xf32>
    %227 = vector.broadcast %226 : vector<1x16xf32> to vector<64x16xf32>
    %228 = arith.mulf %227, %223 : vector<64x16xf32>
    %229 = arith.select %225, %223, %228 : vector<64x16xi1>, vector<64x16xf32>
    %c0_207 = arith.constant 0 : index
    %c0_208 = arith.constant 0 : index
    %230 = vector.load %arg7[%c0_207, %c0_208] : memref<16x1xf32, #tpu.memory_space<vmem>>, vector<16x1xf32>
    %cst_209 = arith.constant dense<0.000000e+00> : vector<64x1xf32>
    %231 = tpu.matmul %229, %230, %cst_209 {dimension_numbers = #tpu.dot_dimension_numbers<[1], [0], [0], [1], [0, 0, 1, 1], [], []>} : vector<64x16xf32>, vector<16x1xf32>, vector<64x1xf32> -> vector<64x1xf32>
    %c0_210 = arith.constant 0 : index
    %c0_211 = arith.constant 0 : index
    %c0_212 = arith.constant 0 : index
    %232 = vector.load %arg9[%c0_210, %c0_211, %c0_212] : memref<1x64x1xf32, #tpu.memory_space<vmem>>, vector<1x64x1xf32>
    %233 = vector.shape_cast %232 : vector<1x64x1xf32> to vector<64x1xf32>
    %234 = vector.shape_cast %231 : vector<64x1xf32> to vector<1x64x1xf32>
    tpu.vector_store %arg9[%c0_210, %c0_211, %c0_212], %234 {strides = array<i32>} : memref<1x64x1xf32, #tpu.memory_space<vmem>>, vector<1x64x1xf32>,
    return
  }
  func.func @transform_0(%arg0: i32) -> (i32, i32, i32) {
    %c0_i32 = arith.constant 0 : i32
    %c0_i32_0 = arith.constant 0 : i32
    %c0_i32_1 = arith.constant 0 : i32
    return %arg0, %c0_i32, %c0_i32_0 : i32, i32, i32
  }
  func.func @transform_1(%arg0: i32) -> (i32, i32, i32) {
    %c0_i32 = arith.constant 0 : i32
    %c0_i32_0 = arith.constant 0 : i32
    %c0_i32_1 = arith.constant 0 : i32
    return %arg0, %c0_i32, %c0_i32_0 : i32, i32, i32
  }
  func.func @transform_2(%arg0: i32) -> (i32, i32) {
    %c0_i32 = arith.constant 0 : i32
    %c0_i32_0 = arith.constant 0 : i32
    %c0_i32_1 = arith.constant 0 : i32
    return %c0_i32, %c0_i32_0 : i32, i32
  }
  func.func @transform_3(%arg0: i32) -> (i32, i32) {
    %c0_i32 = arith.constant 0 : i32
    %c0_i32_0 = arith.constant 0 : i32
    %c0_i32_1 = arith.constant 0 : i32
    return %c0_i32, %c0_i32_0 : i32, i32
  }
  func.func @transform_4(%arg0: i32) -> (i32, i32, i32) {
    %c0_i32 = arith.constant 0 : i32
    %c0_i32_0 = arith.constant 0 : i32
    %c0_i32_1 = arith.constant 0 : i32
    %c0_i32_2 = arith.constant 0 : i32
    return %c0_i32, %c0_i32_0, %c0_i32_1 : i32, i32, i32
  }
  func.func @transform_5(%arg0: i32) -> (i32, i32, i32) {
    %c0_i32 = arith.constant 0 : i32
    %c0_i32_0 = arith.constant 0 : i32
    %c0_i32_1 = arith.constant 0 : i32
    %c0_i32_2 = arith.constant 0 : i32
    return %c0_i32, %c0_i32_0, %c0_i32_1 : i32, i32, i32
  }
  func.func @transform_6(%arg0: i32) -> (i32, i32) {
    %c0_i32 = arith.constant 0 : i32
    %c0_i32_0 = arith.constant 0 : i32
    %c0_i32_1 = arith.constant 0 : i32
    return %c0_i32, %c0_i32_0 : i32, i32
  }
  func.func @transform_7(%arg0: i32) -> (i32, i32) {
    %c0_i32 = arith.constant 0 : i32
    %c0_i32_0 = arith.constant 0 : i32
    %c0_i32_1 = arith.constant 0 : i32
    return %c0_i32, %c0_i32_0 : i32, i32
  }
  func.func @transform_8(%arg0: i32) -> (i32, i32, i32) {
    %c0_i32 = arith.constant 0 : i32
    %c0_i32_0 = arith.constant 0 : i32
    %c0_i32_1 = arith.constant 0 : i32
    return %arg0, %c0_i32, %c0_i32_0 : i32, i32, i32
  }
}

module attributes {stable_mosaic.version = 11 : i64} {
  func.func @_upsample_sigmoid_kernel(%arg0: i32, %arg1: memref<1x8x8xf32, #tpu.memory_space<vmem>>, %arg2: memref<64x8xf32, #tpu.memory_space<vmem>>, %arg3: memref<8x64xf32, #tpu.memory_space<vmem>>, %arg4: memref<1x64x64xf32, #tpu.memory_space<vmem>>) attributes {dimension_semantics = [#tpu.dimension_semantics<parallel>], iteration_bounds = array<i64: 2>, scalar_prefetch = 0 : i64, scratch_operands = 0 : i64, tpu.core_type = #tpu.core_type<tc>, window_params = [{transform_indices = @transform_0, window_bounds = array<i64: 1, 8, 8>}, {pipeline_mode = #tpu.pipeline_mode<synchronous>, transform_indices = @transform_1, window_bounds = array<i64: 64, 8>}, {pipeline_mode = #tpu.pipeline_mode<synchronous>, transform_indices = @transform_2, window_bounds = array<i64: 8, 64>}, {transform_indices = @transform_3, window_bounds = array<i64: 1, 64, 64>}]} {
    %c0 = arith.constant 0 : index
    %c0_0 = arith.constant 0 : index
    %0 = vector.load %arg2[%c0, %c0_0] : memref<64x8xf32, #tpu.memory_space<vmem>>, vector<64x8xf32>
    %c0_1 = arith.constant 0 : index
    %c0_2 = arith.constant 0 : index
    %c0_3 = arith.constant 0 : index
    %1 = vector.load %arg1[%c0_1, %c0_2, %c0_3] : memref<1x8x8xf32, #tpu.memory_space<vmem>>, vector<1x8x8xf32>
    %2 = vector.shape_cast %1 : vector<1x8x8xf32> to vector<8x8xf32>
    %cst = arith.constant dense<0.000000e+00> : vector<64x8xf32>
    %3 = tpu.matmul %0, %2, %cst {dimension_numbers = #tpu.dot_dimension_numbers<[1], [0], [0], [1], [0, 0, 1, 1], [], []>} : vector<64x8xf32>, vector<8x8xf32>, vector<64x8xf32> -> vector<64x8xf32>
    %c0_4 = arith.constant 0 : index
    %c0_5 = arith.constant 0 : index
    %4 = vector.load %arg3[%c0_4, %c0_5] : memref<8x64xf32, #tpu.memory_space<vmem>>, vector<8x64xf32>
    %cst_6 = arith.constant dense<0.000000e+00> : vector<64x64xf32>
    %5 = tpu.matmul %3, %4, %cst_6 {dimension_numbers = #tpu.dot_dimension_numbers<[1], [0], [0], [1], [0, 0, 1, 1], [], []>} : vector<64x8xf32>, vector<8x64xf32>, vector<64x64xf32> -> vector<64x64xf32>
    %6 = arith.negf %5 : vector<64x64xf32>
    %7 = math.exp %6 : vector<64x64xf32>
    %cst_7 = arith.constant 1.000000e+00 : f32
    %8 = vector.broadcast %cst_7 : f32 to vector<64x64xf32>
    %9 = arith.addf %8, %7 : vector<64x64xf32>
    %10 = arith.divf %8, %9 : vector<64x64xf32>
    %c0_8 = arith.constant 0 : index
    %c0_9 = arith.constant 0 : index
    %c0_10 = arith.constant 0 : index
    %11 = vector.load %arg4[%c0_8, %c0_9, %c0_10] : memref<1x64x64xf32, #tpu.memory_space<vmem>>, vector<1x64x64xf32>
    %12 = vector.shape_cast %11 : vector<1x64x64xf32> to vector<64x64xf32>
    %13 = vector.shape_cast %10 : vector<64x64xf32> to vector<1x64x64xf32>
    tpu.vector_store %arg4[%c0_8, %c0_9, %c0_10], %13 {strides = array<i32>} : memref<1x64x64xf32, #tpu.memory_space<vmem>>, vector<1x64x64xf32>,
    return
  }
  func.func @transform_0(%arg0: i32) -> (i32, i32, i32) {
    %c0_i32 = arith.constant 0 : i32
    %c0_i32_0 = arith.constant 0 : i32
    %c0_i32_1 = arith.constant 0 : i32
    return %arg0, %c0_i32, %c0_i32_0 : i32, i32, i32
  }
  func.func @transform_1(%arg0: i32) -> (i32, i32) {
    %c0_i32 = arith.constant 0 : i32
    %c0_i32_0 = arith.constant 0 : i32
    %c0_i32_1 = arith.constant 0 : i32
    return %c0_i32, %c0_i32_0 : i32, i32
  }
  func.func @transform_2(%arg0: i32) -> (i32, i32) {
    %c0_i32 = arith.constant 0 : i32
    %c0_i32_0 = arith.constant 0 : i32
    %c0_i32_1 = arith.constant 0 : i32
    return %c0_i32, %c0_i32_0 : i32, i32
  }
  func.func @transform_3(%arg0: i32) -> (i32, i32, i32) {
    %c0_i32 = arith.constant 0 : i32
    %c0_i32_0 = arith.constant 0 : i32
    %c0_i32_1 = arith.constant 0 : i32
    return %arg0, %c0_i32, %c0_i32_0 : i32, i32, i32
  }
}

</mosaic_0001>

<llo_original>
// kernel: ldcnet_forward.8
$region0: #{ldcnet_forward.8}
  #allocation0 [shape = 'u32[]', space=smem, size = 0x4, offset = 0x4, fixed_abs, tag = 'smem constant byte address 0x4 - core index']
  #allocation1 [shape = 'u32[144,128]{1,0:T(1,128)}', space=vmem, size = 0x12000, scoped, tag = 'internal scratch']
  %s0 = inlined_call_operand.vmem [shape: bf16[32,3], index: 0, kind: input, shape index: {}]
  %s1 = inlined_call_operand.vmem [shape: bf16[3,256], index: 1, kind: input, shape index: {}]
  %s2 = inlined_call_operand.vmem [shape: bf16[32,256], index: 2, kind: output, shape index: {}]
  %s3 = sld [smem:[#allocation0]]
  $region41: #{ldcnet_forward.8} parent=0
    _
  %s5 = ssub.s32 1, %s3
  %s6 = scalar_select 0, %s5, %s3
  loop: start=0, step=1, limit=4
  $region2: #{ldcnet_forward.8} parent=0 // loop_pre_header
    _
  $region3: #{ldcnet_forward.8} parent=0 // loop_header
    %s8 = sphi 0, %s12
    %p9 = scmp.ge.s32.totalorder %s8, 4
    %s18 = sphi 0, %s20
    %s21 = sphi 0, %s18
    %s22 = sphi 0, %s21
    %s38 = sphi 0, %s22
    %s42 = sphi 0, %s42
    %s44 = sphi 0, %s42
    %s45 = sphi 0, %s44
    %s59 = sphi 0, %s45
    %s65 = sphi 0, %s67
    %s68 = sphi 0, %s65
    %s69 = sphi 0, %s68
    %s85 = sphi 0, %s69
  $region4: #{ldcnet_forward.8} parent=0 // loop_header_branch
    %11 = sbr.rel (%p9) target = $region8
  $region5: #{ldcnet_forward.8} parent=0 // loop_body
    %s13 = ssub.s32 %s8, 1
    %s14 = ssub.s32 %s8, 2
    %s15 = sadd.s32 %s8, 1
    %s16 = ssub.s32 %s8, %s15
    %p17 = scmp.eq.s32.totalorder %s16, 0
    %s19 = sadd.s32 %s18, 1
    %s20 = scalar_select %p17, %s18, %s19
    %p23 = pneg %p17
    %p24 = scmp.eq.s32.totalorder %s8, 1
    %p25 = por %p23, %p24
    %p26 = scmp.ne.s32.totalorder %s18, %s21
    %p27 = scmp.eq.s32.totalorder %s8, 0
    %p28 = por %p26, %p27
    %p29 = scmp.ne.s32.totalorder %s18, %s21
    %p30 = scmp.eq.s32.totalorder %s13, 1
    %p31 = por %p29, %p30
    %p32 = scmp.ne.s32.totalorder %s21, %s22
    %p33 = scmp.eq.s32.totalorder %s13, 0
    %p34 = por %p32, %p33
    %p35 = scmp.ne.s32.totalorder %s21, %s22
    %p36 = scmp.eq.s32.totalorder %s14, 1
    %p37 = por %p35, %p36
    %p39 = scmp.ne.s32.totalorder %s22, %s38
    %p40 = scmp.eq.s32.totalorder %s14, 0
    %p41 = por %p39, %p40
    %s43 = sadd.s32 %s42, 1
    %p46 = scmp.eq.s32.totalorder %s8, 1
    %p47 = scmp.ne.s32.totalorder %s42, %s44
    %p48 = scmp.eq.s32.totalorder %s8, 0
    %p49 = por %p47, %p48
    %p50 = scmp.ne.s32.totalorder %s42, %s44
    %p51 = scmp.eq.s32.totalorder %s13, 1
    %p52 = por %p50, %p51
    %p53 = scmp.ne.s32.totalorder %s44, %s45
    %p54 = scmp.eq.s32.totalorder %s13, 0
    %p55 = por %p53, %p54
    %p56 = scmp.ne.s32.totalorder %s44, %s45
    %p57 = scmp.eq.s32.totalorder %s14, 1
    %p58 = por %p56, %p57
    %p60 = scmp.ne.s32.totalorder %s45, %s59
    %p61 = scmp.eq.s32.totalorder %s14, 0
    %p62 = por %p60, %p61
    %s63 = ssub.s32 %s8, %s15
    %p64 = scmp.eq.s32.totalorder %s63, 0
    %s66 = sadd.s32 %s65, 1
    %s67 = scalar_select %p64, %s65, %s66
    %p70 = pneg %p64
    %p71 = scmp.eq.s32.totalorder %s8, 1
    %p72 = por %p70, %p71
    %p73 = scmp.ne.s32.totalorder %s65, %s68
    %p74 = scmp.eq.s32.totalorder %s8, 0
    %p75 = por %p73, %p74
    %p76 = scmp.ne.s32.totalorder %s65, %s68
    %p77 = scmp.eq.s32.totalorder %s13, 1
    %p78 = por %p76, %p77
    %p79 = scmp.ne.s32.totalorder %s68, %s69
    %p80 = scmp.eq.s32.totalorder %s13, 0
    %p81 = por %p79, %p80
    %p82 = scmp.ne.s32.totalorder %s68, %s69
    %p83 = scmp.eq.s32.totalorder %s14, 1
    %p84 = por %p82, %p83
    %p86 = scmp.ne.s32.totalorder %s69, %s85
    %p87 = scmp.eq.s32.totalorder %s14, 0
    %p88 = por %p86, %p87
    %p89 = scmp.le.s32.totalorder 1, %s8
    %p90 = scmp.lt.s32.totalorder %s8, 3
    %p91 = pnand %p89, %p90
    %p92 = pneg %p91
    // Predicated region
    $region9: #{ldcnet_forward.8} parent=5 // pred_check
      _
    $region10: #{ldcnet_forward.8} parent=5 // pred_check_branch
      %94 = sbr.rel (%p91) target = $region12
    $region11: #{ldcnet_forward.8} parent=5 // pred_region
      %s95 = ssub.s32 %s8, 1
      // Predicated region
      $region13: #{ldcnet_forward.8} parent=11 // pred_check
        %p96 = pneg %p55
      $region14: #{ldcnet_forward.8} parent=11 // pred_check_branch
        %98 = sbr.rel (%p96) target = $region16
      $region15: #{ldcnet_forward.8} parent=11 // pred_region
        _
      $region16: #{ldcnet_forward.8} parent=11 // pred_fallthru
        _
    $region12: #{ldcnet_forward.8} parent=5 // pred_fallthru
      _
    %p99 = scmp.lt.s32.totalorder %s8, 2
    // Predicated region
    $region17: #{ldcnet_forward.8} parent=5 // pred_check
      %p100 = pneg %p99
    $region18: #{ldcnet_forward.8} parent=5 // pred_check_branch
      %102 = sbr.rel (%p100) target = $region20
    $region19: #{ldcnet_forward.8} parent=5 // pred_region
      // Predicated region
      $region21: #{ldcnet_forward.8} parent=19 // pred_check
        %p103 = pneg %p28
      $region22: #{ldcnet_forward.8} parent=19 // pred_check_branch
        %105 = sbr.rel (%p103) target = $region24
      $region23: #{ldcnet_forward.8} parent=19 // pred_region
        %s106 = smul.u32 2, %s8
        %p107 = scmp.lt.s32.totalorder %s106, 3
        %s108 = scalar_select %p107, %s106, 3
        %s109 = smul.addr %s108, 4
        %s110 = scalar_lea.vmem %s0, %s109
        %s111 = smul.u32 2, %s8
      $region24: #{ldcnet_forward.8} parent=19 // pred_fallthru
        _
    $region20: #{ldcnet_forward.8} parent=5 // pred_fallthru
      _
    %p112 = scmp.le.s32.totalorder 1, %s8
    %p113 = scmp.lt.s32.totalorder %s8, 3
    %p114 = pnand %p112, %p113
    %p115 = pneg %p114
    // Predicated region
    $region25: #{ldcnet_forward.8} parent=5 // pred_check
      _
    $region26: #{ldcnet_forward.8} parent=5 // pred_check_branch
      %117 = sbr.rel (%p114) target = $region28
    $region27: #{ldcnet_forward.8} parent=5 // pred_region
      %s118 = ssub.s32 %s8, 1
      %s119 = smul.u32 2, %s13
      %p120 = scmp.lt.s32.totalorder %s119, 3
      %s121 = scalar_select %p120, %s119, 3
      %s122 = smul.addr %s121, 4
      %s123 = scalar_lea.vmem %s0, %s122
      %p124 = pneg %p34
      %p125 = pneg %p31
      %p126 = pneg %p55
      %p127 = pneg %p52
      %p128 = pneg %p81
      %p129 = pneg %p78
      %s130 = smul.u32 2, %s13
      %p131 = scmp.lt.s32.totalorder %s130, 3
      %s132 = scalar_select %p131, %s130, 3
      %s133 = smul.addr %s132, 2
      %s134 = smul.addr %s133, 4
      %s135 = scalar_lea.vmem %s2, %s134
      %s136 = smul.u32 2, %s13
      %p137 = scmp.lt.s32.totalorder %s136, 3
      %s138 = scalar_select %p137, %s136, 3
      %s139 = smul.addr %s138, 4
      %s140 = scalar_lea.vmem %s0, %s139
      %s141 = smul.u32 2, %s13
      %s142 = smul.u32 2, %s13
      %p143 = scmp.lt.s32.totalorder %s142, 3
      %s144 = scalar_select %p143, %s142, 3
      %s145 = smul.addr %s144, 2
      %s146 = smul.addr %s145, 4
      %s147 = scalar_lea.vmem %s2, %s146
      %s148 = smul.u32 2, %s13
      %v150 = vld [vmem:[%s140] sm:$0xf]
      %v151 = vld [vmem:[%s140 + $0x4] sm:$0xf]
      %v152 = vld [vmem:[%s1] sm:$0xf]
      %v155 = vunpack.c.l.b16 %v150
      %v156 = vunpack.c.l.b16 %v151
      %v157 = vpack.c.b16 %v156, %v155
      %v160 = vunpack.c.l.s4 1983009808
      %v161 = vunpack.c.0.s8 %v160
      %v162 = vlaneseq
      %v163 = vshrl.u32 %v162, 7
      %v164 = vsub.s32 %v161, %v163
      %v165 = vrot.slane %v152, %v164
      %v166 = vcombine.high %v165, %v165
      %vm167 = vcmask 23552
      %v169 = vsel %vm167, %v157, 0
      %vm171 = vcmask 1040384
      %vm172 = vcmask 1041408
      %v173 = vsel %vm171, 4294967295, 65535
      %v174 = vsel %vm172, %v173, 0
      %v176 = vand.u32 %v165, %v174
      %v179 = vand.u32 %v166, %v174
      %181 = vmatprep.subr.bf16.mxu0 %v179
      %182 = vmatpush1.bf16.msra.mxu0 %v176
      %183 = vmatprep.subr.bf16.mxu0 0
      %184 = vmatpush1.bf16.msra.mxu0 0
      %185 = vmatprep.subr.bf16.mxu0 0
      %186 = vmatpush1.bf16.msra.mxu0 0
      %187 = vmatprep.subr.bf16.mxu0 0
      %188 = vmatpush1.bf16.msra.mxu0 0
      %189 = vmatprep.subr.bf16.mxu0 0
      %190 = vmatpush1.bf16.msra.mxu0 0
      %191 = vmatprep.subr.bf16.mxu0 0
      %192 = vmatpush1.bf16.msra.mxu0 0
      %193 = vmatprep.subr.bf16.mxu0 0
      %194 = vmatpush1.bf16.msra.mxu0 0
      %195 = vmatprep.subr.bf16.mxu0 0
      %196 = vmatpush1.bf16.msra.mxu0 0
      %197 = vmatprep.subr.bf16.mxu0 0
      %198 = vmatpush1.bf16.msra.mxu0 0
      %199 = vmatprep.subr.bf16.mxu0 0
      %200 = vmatpush1.bf16.msra.mxu0 0
      %201 = vmatprep.subr.bf16.mxu0 0
      %202 = vmatpush1.bf16.msra.mxu0 0
      %203 = vmatprep.subr.bf16.mxu0 0
      %204 = vmatpush1.bf16.msra.mxu0 0
      %205 = vmatprep.subr.bf16.mxu0 0
      %206 = vmatpush1.bf16.msra.mxu0 0
      %207 = vmatprep.subr.bf16.mxu0 0
      %208 = vmatpush1.bf16.msra.mxu0 0
      %209 = vmatprep.subr.bf16.mxu0 0
      %210 = vmatpush1.bf16.msra.mxu0 0
      %211 = vmatprep.subr.bf16.mxu0 0
      %212 = vmatpush1.bf16.msra.mxu0 0
      %213 = vmatprep.mubr.bf16.mxu0 0
      %214 = vmatmul.mubr.bf16.gmra.mrb[0].mxu0 %v169
      %v215 = vpop.f32.mrb[0].mxu0
      %v216 = vadd.f32 0.0, %v215
      %v217 = vpop.f32.mrb[0].mxu0
      %v218 = vadd.f32 0.0, %v217
      %v219 = vpop.f32.mrb[0].mxu0
      %v220 = vadd.f32 0.0, %v219
      %v221 = vpop.f32.mrb[0].mxu0
      %v222 = vadd.f32 0.0, %v221
      %223 = vdwg.mxu0
      %v224 = vpack.c.bf16 %v220, %v216
      %v225 = vpack.c.bf16 %v222, %v218
      %v228 = vunpack.c.l.b16 %v224
      %v229 = vunpack.c.l.b16 %v225
      %v230 = vunpack.c.h.b16 %v224
      %v231 = vunpack.c.h.b16 %v225
      %v232 = vpack.c.b16 %v229, %v228
      %v233 = vpack.c.b16 %v231, %v230
      %236 = vst [vmem:[%s147] sm:$0xff] %v232
      %237 = vst [vmem:[%s147 + $0x8] sm:$0xff] %v233
      %s238 = smul.u32 2, %s13
      %p239 = scmp.lt.s32.totalorder %s238, 3
      %s240 = scalar_select %p239, %s238, 3
      %s241 = smul.addr %s240, 2
      %s242 = smul.addr %s241, 4
      %s243 = scalar_lea.vmem %s2, %s242
      // Predicated region
      $region29: #{ldcnet_forward.8} parent=27 // pred_check
        %p244 = pneg %p78
      $region30: #{ldcnet_forward.8} parent=27 // pred_check_branch
        %246 = sbr.rel (%p244) target = $region32
      $region31: #{ldcnet_forward.8} parent=27 // pred_region
        %s247 = smul.u32 2, %s13
      $region32: #{ldcnet_forward.8} parent=27 // pred_fallthru
        _
    $region28: #{ldcnet_forward.8} parent=5 // pred_fallthru
      _
    %p248 = scmp.le.s32.totalorder 2, %s8
    // Predicated region
    $region33: #{ldcnet_forward.8} parent=5 // pred_check
      %p249 = pneg %p248
    $region34: #{ldcnet_forward.8} parent=5 // pred_check_branch
      %251 = sbr.rel (%p249) target = $region36
    $region35: #{ldcnet_forward.8} parent=5 // pred_region
      %s252 = ssub.s32 %s8, 2
      // Predicated region
      $region37: #{ldcnet_forward.8} parent=35 // pred_check
        %p253 = pneg %p84
      $region38: #{ldcnet_forward.8} parent=35 // pred_check_branch
        %255 = sbr.rel (%p253) target = $region40
      $region39: #{ldcnet_forward.8} parent=35 // pred_region
        %s256 = smul.u32 2, %s14
        %p257 = scmp.lt.s32.totalorder %s256, 3
        %s258 = scalar_select %p257, %s256, 3
        %s259 = smul.addr %s258, 2
        %s260 = smul.addr %s259, 4
        %s261 = scalar_lea.vmem %s2, %s260
      $region40: #{ldcnet_forward.8} parent=35 // pred_fallthru
        _
    $region36: #{ldcnet_forward.8} parent=5 // pred_fallthru
      _
  $region6: #{ldcnet_forward.8} parent=0 // loop_footer
    %s12 = sadd.s32 1, %s8
  $region7: #{ldcnet_forward.8} parent=0 // loop_footer_branch
    %7 = sbr.rel target = $region3
  $region8: #{ldcnet_forward.8} parent=0 // loop_exit
    _

// kernel: ldcnet_forward.9
$region0: #{ldcnet_forward.9}
  #allocation0 [shape = 'u32[]', space=smem, size = 0x4, offset = 0x4, fixed_abs, tag = 'smem constant byte address 0x4 - core index']
  #allocation1 [shape = 'u32[144,128]{1,0:T(1,128)}', space=vmem, size = 0x12000, scoped, tag = 'internal scratch']
  %s0 = inlined_call_operand.vmem [shape: bf16[32,256], index: 0, kind: input, shape index: {}]
  %s1 = inlined_call_operand.vmem [shape: bf16[256,16], index: 1, kind: input, shape index: {}]
  %s2 = inlined_call_operand.vmem [shape: bf16[32,16], index: 2, kind: output, shape index: {}]
  %s3 = sld [smem:[#allocation0]]
  $region41: #{ldcnet_forward.9} parent=0
    _
  %s5 = ssub.s32 1, %s3
  %s6 = scalar_select 0, %s5, %s3
  loop: start=0, step=1, limit=4
  $region2: #{ldcnet_forward.9} parent=0 // loop_pre_header
    _
  $region3: #{ldcnet_forward.9} parent=0 // loop_header
    %s8 = sphi 0, %s12
    %p9 = scmp.ge.s32.totalorder %s8, 4
    %s18 = sphi 0, %s20
    %s21 = sphi 0, %s18
    %s22 = sphi 0, %s21
    %s38 = sphi 0, %s22
    %s42 = sphi 0, %s42
    %s44 = sphi 0, %s42
    %s45 = sphi 0, %s44
    %s59 = sphi 0, %s45
    %s65 = sphi 0, %s67
    %s68 = sphi 0, %s65
    %s69 = sphi 0, %s68
    %s85 = sphi 0, %s69
  $region4: #{ldcnet_forward.9} parent=0 // loop_header_branch
    %11 = sbr.rel (%p9) target = $region8
  $region5: #{ldcnet_forward.9} parent=0 // loop_body
    %s13 = ssub.s32 %s8, 1
    %s14 = ssub.s32 %s8, 2
    %s15 = sadd.s32 %s8, 1
    %s16 = ssub.s32 %s8, %s15
    %p17 = scmp.eq.s32.totalorder %s16, 0
    %s19 = sadd.s32 %s18, 1
    %s20 = scalar_select %p17, %s18, %s19
    %p23 = pneg %p17
    %p24 = scmp.eq.s32.totalorder %s8, 1
    %p25 = por %p23, %p24
    %p26 = scmp.ne.s32.totalorder %s18, %s21
    %p27 = scmp.eq.s32.totalorder %s8, 0
    %p28 = por %p26, %p27
    %p29 = scmp.ne.s32.totalorder %s18, %s21
    %p30 = scmp.eq.s32.totalorder %s13, 1
    %p31 = por %p29, %p30
    %p32 = scmp.ne.s32.totalorder %s21, %s22
    %p33 = scmp.eq.s32.totalorder %s13, 0
    %p34 = por %p32, %p33
    %p35 = scmp.ne.s32.totalorder %s21, %s22
    %p36 = scmp.eq.s32.totalorder %s14, 1
    %p37 = por %p35, %p36
    %p39 = scmp.ne.s32.totalorder %s22, %s38
    %p40 = scmp.eq.s32.totalorder %s14, 0
    %p41 = por %p39, %p40
    %s43 = sadd.s32 %s42, 1
    %p46 = scmp.eq.s32.totalorder %s8, 1
    %p47 = scmp.ne.s32.totalorder %s42, %s44
    %p48 = scmp.eq.s32.totalorder %s8, 0
    %p49 = por %p47, %p48
    %p50 = scmp.ne.s32.totalorder %s42, %s44
    %p51 = scmp.eq.s32.totalorder %s13, 1
    %p52 = por %p50, %p51
    %p53 = scmp.ne.s32.totalorder %s44, %s45
    %p54 = scmp.eq.s32.totalorder %s13, 0
    %p55 = por %p53, %p54
    %p56 = scmp.ne.s32.totalorder %s44, %s45
    %p57 = scmp.eq.s32.totalorder %s14, 1
    %p58 = por %p56, %p57
    %p60 = scmp.ne.s32.totalorder %s45, %s59
    %p61 = scmp.eq.s32.totalorder %s14, 0
    %p62 = por %p60, %p61
    %s63 = ssub.s32 %s8, %s15
    %p64 = scmp.eq.s32.totalorder %s63, 0
    %s66 = sadd.s32 %s65, 1
    %s67 = scalar_select %p64, %s65, %s66
    %p70 = pneg %p64
    %p71 = scmp.eq.s32.totalorder %s8, 1
    %p72 = por %p70, %p71
    %p73 = scmp.ne.s32.totalorder %s65, %s68
    %p74 = scmp.eq.s32.totalorder %s8, 0
    %p75 = por %p73, %p74
    %p76 = scmp.ne.s32.totalorder %s65, %s68
    %p77 = scmp.eq.s32.totalorder %s13, 1
    %p78 = por %p76, %p77
    %p79 = scmp.ne.s32.totalorder %s68, %s69
    %p80 = scmp.eq.s32.totalorder %s13, 0
    %p81 = por %p79, %p80
    %p82 = scmp.ne.s32.totalorder %s68, %s69
    %p83 = scmp.eq.s32.totalorder %s14, 1
    %p84 = por %p82, %p83
    %p86 = scmp.ne.s32.totalorder %s69, %s85
    %p87 = scmp.eq.s32.totalorder %s14, 0
    %p88 = por %p86, %p87
    %p89 = scmp.le.s32.totalorder 1, %s8
    %p90 = scmp.lt.s32.totalorder %s8, 3
    %p91 = pnand %p89, %p90
    %p92 = pneg %p91
    // Predicated region
    $region9: #{ldcnet_forward.9} parent=5 // pred_check
      _
    $region10: #{ldcnet_forward.9} parent=5 // pred_check_branch
      %94 = sbr.rel (%p91) target = $region12
    $region11: #{ldcnet_forward.9} parent=5 // pred_region
      %s95 = ssub.s32 %s8, 1
      // Predicated region
      $region13: #{ldcnet_forward.9} parent=11 // pred_check
        %p96 = pneg %p55
      $region14: #{ldcnet_forward.9} parent=11 // pred_check_branch
        %98 = sbr.rel (%p96) target = $region16
      $region15: #{ldcnet_forward.9} parent=11 // pred_region
        _
      $region16: #{ldcnet_forward.9} parent=11 // pred_fallthru
        _
    $region12: #{ldcnet_forward.9} parent=5 // pred_fallthru
      _
    %p99 = scmp.lt.s32.totalorder %s8, 2
    // Predicated region
    $region17: #{ldcnet_forward.9} parent=5 // pred_check
      %p100 = pneg %p99
    $region18: #{ldcnet_forward.9} parent=5 // pred_check_branch
      %102 = sbr.rel (%p100) target = $region20
    $region19: #{ldcnet_forward.9} parent=5 // pred_region
      // Predicated region
      $region21: #{ldcnet_forward.9} parent=19 // pred_check
        %p103 = pneg %p28
      $region22: #{ldcnet_forward.9} parent=19 // pred_check_branch
        %105 = sbr.rel (%p103) target = $region24
      $region23: #{ldcnet_forward.9} parent=19 // pred_region
        %s106 = smul.u32 2, %s8
        %p107 = scmp.lt.s32.totalorder %s106, 3
        %s108 = scalar_select %p107, %s106, 3
        %s109 = smul.addr %s108, 2
        %s110 = smul.addr %s109, 4
        %s111 = scalar_lea.vmem %s0, %s110
        %s112 = smul.u32 2, %s8
      $region24: #{ldcnet_forward.9} parent=19 // pred_fallthru
        _
    $region20: #{ldcnet_forward.9} parent=5 // pred_fallthru
      _
    %p113 = scmp.le.s32.totalorder 1, %s8
    %p114 = scmp.lt.s32.totalorder %s8, 3
    %p115 = pnand %p113, %p114
    %p116 = pneg %p115
    // Predicated region
    $region25: #{ldcnet_forward.9} parent=5 // pred_check
      _
    $region26: #{ldcnet_forward.9} parent=5 // pred_check_branch
      %118 = sbr.rel (%p115) target = $region28
    $region27: #{ldcnet_forward.9} parent=5 // pred_region
      %s119 = ssub.s32 %s8, 1
      %s120 = smul.u32 2, %s13
      %p121 = scmp.lt.s32.totalorder %s120, 3
      %s122 = scalar_select %p121, %s120, 3
      %s123 = smul.addr %s122, 2
      %s124 = smul.addr %s123, 4
      %s125 = scalar_lea.vmem %s0, %s124
      %p126 = pneg %p34
      %p127 = pneg %p31
      %p128 = pneg %p55
      %p129 = pneg %p52
      %p130 = pneg %p81
      %p131 = pneg %p78
      %s132 = smul.u32 2, %s13
      %p133 = scmp.lt.s32.totalorder %s132, 3
      %s134 = scalar_select %p133, %s132, 3
      %s135 = smul.addr %s134, 4
      %s136 = scalar_lea.vmem %s2, %s135
      %s137 = smul.u32 2, %s13
      %p138 = scmp.lt.s32.totalorder %s137, 3
      %s139 = scalar_select %p138, %s137, 3
      %s140 = smul.addr %s139, 2
      %s141 = smul.addr %s140, 4
      %s142 = scalar_lea.vmem %s0, %s141
      %s143 = smul.u32 2, %s13
      %s144 = smul.u32 2, %s13
      %p145 = scmp.lt.s32.totalorder %s144, 3
      %s146 = scalar_select %p145, %s144, 3
      %s147 = smul.addr %s146, 4
      %s148 = scalar_lea.vmem %s2, %s147
      %s149 = smul.u32 2, %s13
      %v151 = vld [vmem:[%s142] sm:$0xff]
      %v152 = vld [vmem:[%s142 + $0x8] sm:$0xff]
      %v153 = vld [vmem:[%s1] sm:$0xf]
      %v154 = vld [vmem:[%s1 + $0x4] sm:$0xf]
      %v155 = vld [vmem:[%s1 + $0x8] sm:$0xf]
      %v156 = vld [vmem:[%s1 + $0xc] sm:$0xf]
      %v157 = vld [vmem:[%s1 + $0x10] sm:$0xf]
      %v158 = vld [vmem:[%s1 + $0x14] sm:$0xf]
      %v159 = vld [vmem:[%s1 + $0x18] sm:$0xf]
      %v160 = vld [vmem:[%s1 + $0x1c] sm:$0xf]
      %v161 = vld [vmem:[%s1 + $0x20] sm:$0xf]
      %v162 = vld [vmem:[%s1 + $0x24] sm:$0xf]
      %v163 = vld [vmem:[%s1 + $0x28] sm:$0xf]
      %v164 = vld [vmem:[%s1 + $0x2c] sm:$0xf]
      %v165 = vld [vmem:[%s1 + $0x30] sm:$0xf]
      %v166 = vld [vmem:[%s1 + $0x34] sm:$0xf]
      %v167 = vld [vmem:[%s1 + $0x38] sm:$0xf]
      %v168 = vld [vmem:[%s1 + $0x3c] sm:$0xf]
      %v169 = vld [vmem:[%s1 + $0x40] sm:$0xf]
      %v170 = vld [vmem:[%s1 + $0x44] sm:$0xf]
      %v171 = vld [vmem:[%s1 + $0x48] sm:$0xf]
      %v172 = vld [vmem:[%s1 + $0x4c] sm:$0xf]
      %v173 = vld [vmem:[%s1 + $0x50] sm:$0xf]
      %v174 = vld [vmem:[%s1 + $0x54] sm:$0xf]
      %v175 = vld [vmem:[%s1 + $0x58] sm:$0xf]
      %v176 = vld [vmem:[%s1 + $0x5c] sm:$0xf]
      %v177 = vld [vmem:[%s1 + $0x60] sm:$0xf]
      %v178 = vld [vmem:[%s1 + $0x64] sm:$0xf]
      %v179 = vld [vmem:[%s1 + $0x68] sm:$0xf]
      %v180 = vld [vmem:[%s1 + $0x6c] sm:$0xf]
      %v181 = vld [vmem:[%s1 + $0x70] sm:$0xf]
      %v182 = vld [vmem:[%s1 + $0x74] sm:$0xf]
      %v183 = vld [vmem:[%s1 + $0x78] sm:$0xf]
      %v184 = vld [vmem:[%s1 + $0x7c] sm:$0xf]
      %v187 = vunpack.c.l.b16 %v151
      %v188 = vunpack.c.h.b16 %v151
      %v189 = vunpack.c.l.b16 %v152
      %v190 = vunpack.c.h.b16 %v152
      %v191 = vpack.c.b16 %v189, %v187
      %v192 = vpack.c.b16 %v190, %v188
      %v227 = vunpack.c.l.b16 %v153
      %v228 = vunpack.c.l.b16 %v154
      %v229 = vunpack.c.l.b16 %v155
      %v230 = vunpack.c.l.b16 %v156
      %v231 = vunpack.c.l.b16 %v157
      %v232 = vunpack.c.l.b16 %v158
      %v233 = vunpack.c.l.b16 %v159
      %v234 = vunpack.c.l.b16 %v160
      %v235 = vunpack.c.l.b16 %v161
      %v236 = vunpack.c.l.b16 %v162
      %v237 = vunpack.c.l.b16 %v163
      %v238 = vunpack.c.l.b16 %v164
      %v239 = vunpack.c.l.b16 %v165
      %v240 = vunpack.c.l.b16 %v166
      %v241 = vunpack.c.l.b16 %v167
      %v242 = vunpack.c.l.b16 %v168
      %v243 = vunpack.c.l.b16 %v169
      %v244 = vunpack.c.l.b16 %v170
      %v245 = vunpack.c.l.b16 %v171
      %v246 = vunpack.c.l.b16 %v172
      %v247 = vunpack.c.l.b16 %v173
      %v248 = vunpack.c.l.b16 %v174
      %v249 = vunpack.c.l.b16 %v175
      %v250 = vunpack.c.l.b16 %v176
      %v251 = vunpack.c.l.b16 %v177
      %v252 = vunpack.c.l.b16 %v178
      %v253 = vunpack.c.l.b16 %v179
      %v254 = vunpack.c.l.b16 %v180
      %v255 = vunpack.c.l.b16 %v181
      %v256 = vunpack.c.l.b16 %v182
      %v257 = vunpack.c.l.b16 %v183
      %v258 = vunpack.c.l.b16 %v184
      %v259 = vpack.c.b16 %v228, %v227
      %v260 = vpack.c.b16 %v230, %v229
      %v261 = vpack.c.b16 %v232, %v231
      %v262 = vpack.c.b16 %v234, %v233
      %v263 = vpack.c.b16 %v236, %v235
      %v264 = vpack.c.b16 %v238, %v237
      %v265 = vpack.c.b16 %v240, %v239
      %v266 = vpack.c.b16 %v242, %v241
      %v267 = vpack.c.b16 %v244, %v243
      %v268 = vpack.c.b16 %v246, %v245
      %v269 = vpack.c.b16 %v248, %v247
      %v270 = vpack.c.b16 %v250, %v249
      %v271 = vpack.c.b16 %v252, %v251
      %v272 = vpack.c.b16 %v254, %v253
      %v273 = vpack.c.b16 %v256, %v255
      %v274 = vpack.c.b16 %v258, %v257
      %291 = vmatprep.subr.bf16.mxu0 0
      %292 = vmatpush1.bf16.msra.mxu0 %v259
      %293 = vmatprep.subr.bf16.mxu0 0
      %294 = vmatpush1.bf16.msra.mxu0 %v260
      %295 = vmatprep.subr.bf16.mxu0 0
      %296 = vmatpush1.bf16.msra.mxu0 %v261
      %297 = vmatprep.subr.bf16.mxu0 0
      %298 = vmatpush1.bf16.msra.mxu0 %v262
      %299 = vmatprep.subr.bf16.mxu0 0
      %300 = vmatpush1.bf16.msra.mxu0 %v263
      %301 = vmatprep.subr.bf16.mxu0 0
      %302 = vmatpush1.bf16.msra.mxu0 %v264
      %303 = vmatprep.subr.bf16.mxu0 0
      %304 = vmatpush1.bf16.msra.mxu0 %v265
      %305 = vmatprep.subr.bf16.mxu0 0
      %306 = vmatpush1.bf16.msra.mxu0 %v266
      %307 = vmatprep.subr.bf16.mxu0 0
      %308 = vmatpush1.bf16.msra.mxu0 %v267
      %309 = vmatprep.subr.bf16.mxu0 0
      %310 = vmatpush1.bf16.msra.mxu0 %v268
      %311 = vmatprep.subr.bf16.mxu0 0
      %312 = vmatpush1.bf16.msra.mxu0 %v269
      %313 = vmatprep.subr.bf16.mxu0 0
      %314 = vmatpush1.bf16.msra.mxu0 %v270
      %315 = vmatprep.subr.bf16.mxu0 0
      %316 = vmatpush1.bf16.msra.mxu0 %v271
      %317 = vmatprep.subr.bf16.mxu0 0
      %318 = vmatpush1.bf16.msra.mxu0 %v272
      %319 = vmatprep.subr.bf16.mxu0 0
      %320 = vmatpush1.bf16.msra.mxu0 %v273
      %321 = vmatprep.subr.bf16.mxu0 0
      %322 = vmatpush1.bf16.msra.mxu0 %v274
      %323 = vmatprep.mubr.bf16.mxu0 %v192
      %324 = vmatmul.mubr.bf16.gmra.mrb[0].mxu0 %v191
      %v325 = vpop.f32.mrb[0].mxu0
      %v326 = vadd.f32 0.0, %v325
      %v327 = vpop.f32.mrb[0].mxu0
      %v328 = vpop.f32.mrb[0].mxu0
      %v329 = vadd.f32 0.0, %v328
      %v330 = vpop.f32.mrb[0].mxu0
      %331 = vdwg.mxu0
      %v332 = vpack.c.bf16 %v329, %v326
      %v334 = vunpack.c.l.b16 %v332
      %v335 = vunpack.c.h.b16 %v332
      %v336 = vpack.c.b16 %v334, %v334
      %v337 = vpack.c.b16 %v335, %v335
      %vm340 = vcmask 125952
      %341 = vst.msk [vmem:[%s148] sm:$0xf] %vm340, %v336
      %342 = vst.msk [vmem:[%s148 + $0x4] sm:$0xf] %vm340, %v337
      %s343 = smul.u32 2, %s13
      %p344 = scmp.lt.s32.totalorder %s343, 3
      %s345 = scalar_select %p344, %s343, 3
      %s346 = smul.addr %s345, 4
      %s347 = scalar_lea.vmem %s2, %s346
      // Predicated region
      $region29: #{ldcnet_forward.9} parent=27 // pred_check
        %p348 = pneg %p78
      $region30: #{ldcnet_forward.9} parent=27 // pred_check_branch
        %350 = sbr.rel (%p348) target = $region32
      $region31: #{ldcnet_forward.9} parent=27 // pred_region
        %s351 = smul.u32 2, %s13
      $region32: #{ldcnet_forward.9} parent=27 // pred_fallthru
        _
    $region28: #{ldcnet_forward.9} parent=5 // pred_fallthru
      _
    %p352 = scmp.le.s32.totalorder 2, %s8
    // Predicated region
    $region33: #{ldcnet_forward.9} parent=5 // pred_check
      %p353 = pneg %p352
    $region34: #{ldcnet_forward.9} parent=5 // pred_check_branch
      %355 = sbr.rel (%p353) target = $region36
    $region35: #{ldcnet_forward.9} parent=5 // pred_region
      %s356 = ssub.s32 %s8, 2
      // Predicated region
      $region37: #{ldcnet_forward.9} parent=35 // pred_check
        %p357 = pneg %p84
      $region38: #{ldcnet_forward.9} parent=35 // pred_check_branch
        %359 = sbr.rel (%p357) target = $region40
      $region39: #{ldcnet_forward.9} parent=35 // pred_region
        %s360 = smul.u32 2, %s14
        %p361 = scmp.lt.s32.totalorder %s360, 3
        %s362 = scalar_select %p361, %s360, 3
        %s363 = smul.addr %s362, 4
        %s364 = scalar_lea.vmem %s2, %s363
      $region40: #{ldcnet_forward.9} parent=35 // pred_fallthru
        _
    $region36: #{ldcnet_forward.9} parent=5 // pred_fallthru
      _
  $region6: #{ldcnet_forward.9} parent=0 // loop_footer
    %s12 = sadd.s32 1, %s8
  $region7: #{ldcnet_forward.9} parent=0 // loop_footer_branch
    %7 = sbr.rel target = $region3
  $region8: #{ldcnet_forward.9} parent=0 // loop_exit
    _

// kernel: ldcnet_forward.10
$region0: #{ldcnet_forward.10}
  #allocation0 [shape = 'u32[]', space=smem, size = 0x4, offset = 0x4, fixed_abs, tag = 'smem constant byte address 0x4 - core index']
  #allocation1 [shape = 'u32[144,128]{1,0:T(1,128)}', space=vmem, size = 0x12000, scoped, tag = 'internal scratch']
  %s0 = inlined_call_operand.vmem [shape: bf16[8,4,16], index: 0, kind: input, shape index: {}]
  %s1 = inlined_call_operand.vmem [shape: f32[8,4], index: 1, kind: input, shape index: {}]
  %s2 = inlined_call_operand.vmem [shape: bf16[8,8,16], index: 2, kind: output, shape index: {}]
  %s3 = sld [smem:[#allocation0]]
  $region41: #{ldcnet_forward.10} parent=0
    _
  %s5 = ssub.s32 1, %s3
  %s6 = scalar_select 0, %s5, %s3
  loop: start=0, step=1, limit=10
  $region2: #{ldcnet_forward.10} parent=0 // loop_pre_header
    _
  $region3: #{ldcnet_forward.10} parent=0 // loop_header
    %s8 = sphi 0, %s12
    %p9 = scmp.ge.s32.totalorder %s8, 10
    %s18 = sphi 0, %s20
    %s21 = sphi 0, %s18
    %s22 = sphi 0, %s21
    %s38 = sphi 0, %s22
    %s42 = sphi 0, %s42
    %s44 = sphi 0, %s42
    %s45 = sphi 0, %s44
    %s59 = sphi 0, %s45
    %s65 = sphi 0, %s67
    %s68 = sphi 0, %s65
    %s69 = sphi 0, %s68
    %s85 = sphi 0, %s69
  $region4: #{ldcnet_forward.10} parent=0 // loop_header_branch
    %11 = sbr.rel (%p9) target = $region8
  $region5: #{ldcnet_forward.10} parent=0 // loop_body
    %s13 = ssub.s32 %s8, 1
    %s14 = ssub.s32 %s8, 2
    %s15 = sadd.s32 %s8, 1
    %s16 = ssub.s32 %s8, %s15
    %p17 = scmp.eq.s32.totalorder %s16, 0
    %s19 = sadd.s32 %s18, 1
    %s20 = scalar_select %p17, %s18, %s19
    %p23 = pneg %p17
    %p24 = scmp.eq.s32.totalorder %s8, 7
    %p25 = por %p23, %p24
    %p26 = scmp.ne.s32.totalorder %s18, %s21
    %p27 = scmp.eq.s32.totalorder %s8, 0
    %p28 = por %p26, %p27
    %p29 = scmp.ne.s32.totalorder %s18, %s21
    %p30 = scmp.eq.s32.totalorder %s13, 7
    %p31 = por %p29, %p30
    %p32 = scmp.ne.s32.totalorder %s21, %s22
    %p33 = scmp.eq.s32.totalorder %s13, 0
    %p34 = por %p32, %p33
    %p35 = scmp.ne.s32.totalorder %s21, %s22
    %p36 = scmp.eq.s32.totalorder %s14, 7
    %p37 = por %p35, %p36
    %p39 = scmp.ne.s32.totalorder %s22, %s38
    %p40 = scmp.eq.s32.totalorder %s14, 0
    %p41 = por %p39, %p40
    %s43 = sadd.s32 %s42, 1
    %p46 = scmp.eq.s32.totalorder %s8, 7
    %p47 = scmp.ne.s32.totalorder %s42, %s44
    %p48 = scmp.eq.s32.totalorder %s8, 0
    %p49 = por %p47, %p48
    %p50 = scmp.ne.s32.totalorder %s42, %s44
    %p51 = scmp.eq.s32.totalorder %s13, 7
    %p52 = por %p50, %p51
    %p53 = scmp.ne.s32.totalorder %s44, %s45
    %p54 = scmp.eq.s32.totalorder %s13, 0
    %p55 = por %p53, %p54
    %p56 = scmp.ne.s32.totalorder %s44, %s45
    %p57 = scmp.eq.s32.totalorder %s14, 7
    %p58 = por %p56, %p57
    %p60 = scmp.ne.s32.totalorder %s45, %s59
    %p61 = scmp.eq.s32.totalorder %s14, 0
    %p62 = por %p60, %p61
    %s63 = ssub.s32 %s8, %s15
    %p64 = scmp.eq.s32.totalorder %s63, 0
    %s66 = sadd.s32 %s65, 1
    %s67 = scalar_select %p64, %s65, %s66
    %p70 = pneg %p64
    %p71 = scmp.eq.s32.totalorder %s8, 7
    %p72 = por %p70, %p71
    %p73 = scmp.ne.s32.totalorder %s65, %s68
    %p74 = scmp.eq.s32.totalorder %s8, 0
    %p75 = por %p73, %p74
    %p76 = scmp.ne.s32.totalorder %s65, %s68
    %p77 = scmp.eq.s32.totalorder %s13, 7
    %p78 = por %p76, %p77
    %p79 = scmp.ne.s32.totalorder %s68, %s69
    %p80 = scmp.eq.s32.totalorder %s13, 0
    %p81 = por %p79, %p80
    %p82 = scmp.ne.s32.totalorder %s68, %s69
    %p83 = scmp.eq.s32.totalorder %s14, 7
    %p84 = por %p82, %p83
    %p86 = scmp.ne.s32.totalorder %s69, %s85
    %p87 = scmp.eq.s32.totalorder %s14, 0
    %p88 = por %p86, %p87
    %p89 = scmp.le.s32.totalorder 1, %s8
    %p90 = scmp.lt.s32.totalorder %s8, 9
    %p91 = pnand %p89, %p90
    %p92 = pneg %p91
    // Predicated region
    $region9: #{ldcnet_forward.10} parent=5 // pred_check
      _
    $region10: #{ldcnet_forward.10} parent=5 // pred_check_branch
      %94 = sbr.rel (%p91) target = $region12
    $region11: #{ldcnet_forward.10} parent=5 // pred_region
      %s95 = ssub.s32 %s8, 1
      // Predicated region
      $region13: #{ldcnet_forward.10} parent=11 // pred_check
        %p96 = pneg %p55
      $region14: #{ldcnet_forward.10} parent=11 // pred_check_branch
        %98 = sbr.rel (%p96) target = $region16
      $region15: #{ldcnet_forward.10} parent=11 // pred_region
        _
      $region16: #{ldcnet_forward.10} parent=11 // pred_fallthru
        _
    $region12: #{ldcnet_forward.10} parent=5 // pred_fallthru
      _
    %p99 = scmp.lt.s32.totalorder %s8, 8
    // Predicated region
    $region17: #{ldcnet_forward.10} parent=5 // pred_check
      %p100 = pneg %p99
    $region18: #{ldcnet_forward.10} parent=5 // pred_check_branch
      %102 = sbr.rel (%p100) target = $region20
    $region19: #{ldcnet_forward.10} parent=5 // pred_region
      // Predicated region
      $region21: #{ldcnet_forward.10} parent=19 // pred_check
        %p103 = pneg %p28
      $region22: #{ldcnet_forward.10} parent=19 // pred_check_branch
        %105 = sbr.rel (%p103) target = $region24
      $region23: #{ldcnet_forward.10} parent=19 // pred_region
        %p106 = scmp.lt.s32.totalorder %s8, 7
        %s107 = scalar_select %p106, %s8, 7
        %s108 = smul.addr %s107, 2
        %s109 = scalar_lea.vmem %s0, %s108
      $region24: #{ldcnet_forward.10} parent=19 // pred_fallthru
        _
    $region20: #{ldcnet_forward.10} parent=5 // pred_fallthru
      _
    %p110 = scmp.le.s32.totalorder 1, %s8
    %p111 = scmp.lt.s32.totalorder %s8, 9
    %p112 = pnand %p110, %p111
    %p113 = pneg %p112
    // Predicated region
    $region25: #{ldcnet_forward.10} parent=5 // pred_check
      _
    $region26: #{ldcnet_forward.10} parent=5 // pred_check_branch
      %115 = sbr.rel (%p112) target = $region28
    $region27: #{ldcnet_forward.10} parent=5 // pred_region
      %s116 = ssub.s32 %s8, 1
      %p117 = scmp.lt.s32.totalorder %s13, 7
      %s118 = scalar_select %p117, %s13, 7
      %s119 = smul.addr %s118, 2
      %s120 = scalar_lea.vmem %s0, %s119
      %p121 = pneg %p34
      %p122 = pneg %p31
      %p123 = pneg %p55
      %p124 = pneg %p52
      %p125 = pneg %p81
      %p126 = pneg %p78
      %p127 = scmp.lt.s32.totalorder %s13, 7
      %s128 = scalar_select %p127, %s13, 7
      %s129 = smul.addr %s128, 4
      %s130 = scalar_lea.vmem %s2, %s129
      %p131 = scmp.lt.s32.totalorder %s13, 7
      %s132 = scalar_select %p131, %s13, 7
      %s133 = smul.addr %s132, 2
      %s134 = scalar_lea.vmem %s0, %s133
      %p135 = scmp.lt.s32.totalorder %s13, 7
      %s136 = scalar_select %p135, %s13, 7
      %s137 = smul.addr %s136, 4
      %s138 = scalar_lea.vmem %s2, %s137
      %v140 = vld [vmem:[%s1] sm:$0xff]
      %v141 = vld [vmem:[%s134] sm:$0x3]
      %vm142 = vcmask 31744
      %v144 = vsel %vm142, %v140, 0
      %vm146 = vcmask 1041408
      %v148 = vsel %vm146, %v141, 0
      %150 = vmatprep.subr.bf16.mxu0 0
      %151 = vmatpush1.bf16.msra.mxu0 %v148
      %152 = vmatprep.subr.bf16.mxu0 0
      %153 = vmatpush1.bf16.msra.mxu0 0
      %154 = vmatprep.subr.bf16.mxu0 0
      %155 = vmatpush1.bf16.msra.mxu0 0
      %156 = vmatprep.subr.bf16.mxu0 0
      %157 = vmatpush1.bf16.msra.mxu0 0
      %158 = vmatprep.subr.bf16.mxu0 0
      %159 = vmatpush1.bf16.msra.mxu0 0
      %160 = vmatprep.subr.bf16.mxu0 0
      %161 = vmatpush1.bf16.msra.mxu0 0
      %162 = vmatprep.subr.bf16.mxu0 0
      %163 = vmatpush1.bf16.msra.mxu0 0
      %164 = vmatprep.subr.bf16.mxu0 0
      %165 = vmatpush1.bf16.msra.mxu0 0
      %166 = vmatprep.subr.bf16.mxu0 0
      %167 = vmatpush1.bf16.msra.mxu0 0
      %168 = vmatprep.subr.bf16.mxu0 0
      %169 = vmatpush1.bf16.msra.mxu0 0
      %170 = vmatprep.subr.bf16.mxu0 0
      %171 = vmatpush1.bf16.msra.mxu0 0
      %172 = vmatprep.subr.bf16.mxu0 0
      %173 = vmatpush1.bf16.msra.mxu0 0
      %174 = vmatprep.subr.bf16.mxu0 0
      %175 = vmatpush1.bf16.msra.mxu0 0
      %176 = vmatprep.subr.bf16.mxu0 0
      %177 = vmatpush1.bf16.msra.mxu0 0
      %178 = vmatprep.subr.bf16.mxu0 0
      %179 = vmatpush1.bf16.msra.mxu0 0
      %180 = vmatprep.subr.bf16.mxu0 0
      %181 = vmatpush1.bf16.msra.mxu0 0
      %182 = vmatprep.mubr.f32.mxu0 0.0
      %183 = vmatmul.mubr.f32.gmra.mrb[0].mxu0 %v144
      %v184 = vpop.f32.mrb[0].mxu0
      %v185 = vadd.f32 0.0, %v184
      %v186 = vpop.f32.mrb[0].mxu0
      %187 = vdwg.mxu0
      %v188 = vpack.c.bf16 %v185, %v185
      %vm189 = vcmask 125952
      %190 = vst.msk [vmem:[%s138] sm:$0xf] %vm189, %v188
      %p191 = scmp.lt.s32.totalorder %s13, 7
      %s192 = scalar_select %p191, %s13, 7
      %s193 = smul.addr %s192, 4
      %s194 = scalar_lea.vmem %s2, %s193
      // Predicated region
      $region29: #{ldcnet_forward.10} parent=27 // pred_check
        %p195 = pneg %p78
      $region30: #{ldcnet_forward.10} parent=27 // pred_check_branch
        %197 = sbr.rel (%p195) target = $region32
      $region31: #{ldcnet_forward.10} parent=27 // pred_region
        _
      $region32: #{ldcnet_forward.10} parent=27 // pred_fallthru
        _
    $region28: #{ldcnet_forward.10} parent=5 // pred_fallthru
      _
    %p198 = scmp.le.s32.totalorder 2, %s8
    // Predicated region
    $region33: #{ldcnet_forward.10} parent=5 // pred_check
      %p199 = pneg %p198
    $region34: #{ldcnet_forward.10} parent=5 // pred_check_branch
      %201 = sbr.rel (%p199) target = $region36
    $region35: #{ldcnet_forward.10} parent=5 // pred_region
      %s202 = ssub.s32 %s8, 2
      // Predicated region
      $region37: #{ldcnet_forward.10} parent=35 // pred_check
        %p203 = pneg %p84
      $region38: #{ldcnet_forward.10} parent=35 // pred_check_branch
        %205 = sbr.rel (%p203) target = $region40
      $region39: #{ldcnet_forward.10} parent=35 // pred_region
        %p206 = scmp.lt.s32.totalorder %s14, 7
        %s207 = scalar_select %p206, %s14, 7
        %s208 = smul.addr %s207, 4
        %s209 = scalar_lea.vmem %s2, %s208
      $region40: #{ldcnet_forward.10} parent=35 // pred_fallthru
        _
    $region36: #{ldcnet_forward.10} parent=5 // pred_fallthru
      _
  $region6: #{ldcnet_forward.10} parent=0 // loop_footer
    %s12 = sadd.s32 1, %s8
  $region7: #{ldcnet_forward.10} parent=0 // loop_footer_branch
    %7 = sbr.rel target = $region3
  $region8: #{ldcnet_forward.10} parent=0 // loop_exit
    _

// kernel: ldcnet_forward.11
$region0: #{ldcnet_forward.11}
  #allocation0 [shape = 'u32[]', space=smem, size = 0x4, offset = 0x4, fixed_abs, tag = 'smem constant byte address 0x4 - core index']
  #allocation1 [shape = 'u32[144,128]{1,0:T(1,128)}', space=vmem, size = 0x12000, scoped, tag = 'internal scratch']
  %s0 = inlined_call_operand.vmem [shape: bf16[2,4,128], index: 0, kind: input, shape index: {}]
  %s1 = inlined_call_operand.vmem [shape: f32[8,4], index: 1, kind: input, shape index: {}]
  %s2 = inlined_call_operand.vmem [shape: bf16[2,8,128], index: 2, kind: output, shape index: {}]
  %s3 = sld [smem:[#allocation0]]
  $region41: #{ldcnet_forward.11} parent=0
    _
  %s5 = ssub.s32 1, %s3
  %s6 = scalar_select 0, %s5, %s3
  loop: start=0, step=1, limit=4
  $region2: #{ldcnet_forward.11} parent=0 // loop_pre_header
    _
  $region3: #{ldcnet_forward.11} parent=0 // loop_header
    %s8 = sphi 0, %s12
    %p9 = scmp.ge.s32.totalorder %s8, 4
    %s18 = sphi 0, %s20
    %s21 = sphi 0, %s18
    %s22 = sphi 0, %s21
    %s38 = sphi 0, %s22
    %s42 = sphi 0, %s42
    %s44 = sphi 0, %s42
    %s45 = sphi 0, %s44
    %s59 = sphi 0, %s45
    %s65 = sphi 0, %s67
    %s68 = sphi 0, %s65
    %s69 = sphi 0, %s68
    %s85 = sphi 0, %s69
  $region4: #{ldcnet_forward.11} parent=0 // loop_header_branch
    %11 = sbr.rel (%p9) target = $region8
  $region5: #{ldcnet_forward.11} parent=0 // loop_body
    %s13 = ssub.s32 %s8, 1
    %s14 = ssub.s32 %s8, 2
    %s15 = sadd.s32 %s8, 1
    %s16 = ssub.s32 %s8, %s15
    %p17 = scmp.eq.s32.totalorder %s16, 0
    %s19 = sadd.s32 %s18, 1
    %s20 = scalar_select %p17, %s18, %s19
    %p23 = pneg %p17
    %p24 = scmp.eq.s32.totalorder %s8, 1
    %p25 = por %p23, %p24
    %p26 = scmp.ne.s32.totalorder %s18, %s21
    %p27 = scmp.eq.s32.totalorder %s8, 0
    %p28 = por %p26, %p27
    %p29 = scmp.ne.s32.totalorder %s18, %s21
    %p30 = scmp.eq.s32.totalorder %s13, 1
    %p31 = por %p29, %p30
    %p32 = scmp.ne.s32.totalorder %s21, %s22
    %p33 = scmp.eq.s32.totalorder %s13, 0
    %p34 = por %p32, %p33
    %p35 = scmp.ne.s32.totalorder %s21, %s22
    %p36 = scmp.eq.s32.totalorder %s14, 1
    %p37 = por %p35, %p36
    %p39 = scmp.ne.s32.totalorder %s22, %s38
    %p40 = scmp.eq.s32.totalorder %s14, 0
    %p41 = por %p39, %p40
    %s43 = sadd.s32 %s42, 1
    %p46 = scmp.eq.s32.totalorder %s8, 1
    %p47 = scmp.ne.s32.totalorder %s42, %s44
    %p48 = scmp.eq.s32.totalorder %s8, 0
    %p49 = por %p47, %p48
    %p50 = scmp.ne.s32.totalorder %s42, %s44
    %p51 = scmp.eq.s32.totalorder %s13, 1
    %p52 = por %p50, %p51
    %p53 = scmp.ne.s32.totalorder %s44, %s45
    %p54 = scmp.eq.s32.totalorder %s13, 0
    %p55 = por %p53, %p54
    %p56 = scmp.ne.s32.totalorder %s44, %s45
    %p57 = scmp.eq.s32.totalorder %s14, 1
    %p58 = por %p56, %p57
    %p60 = scmp.ne.s32.totalorder %s45, %s59
    %p61 = scmp.eq.s32.totalorder %s14, 0
    %p62 = por %p60, %p61
    %s63 = ssub.s32 %s8, %s15
    %p64 = scmp.eq.s32.totalorder %s63, 0
    %s66 = sadd.s32 %s65, 1
    %s67 = scalar_select %p64, %s65, %s66
    %p70 = pneg %p64
    %p71 = scmp.eq.s32.totalorder %s8, 1
    %p72 = por %p70, %p71
    %p73 = scmp.ne.s32.totalorder %s65, %s68
    %p74 = scmp.eq.s32.totalorder %s8, 0
    %p75 = por %p73, %p74
    %p76 = scmp.ne.s32.totalorder %s65, %s68
    %p77 = scmp.eq.s32.totalorder %s13, 1
    %p78 = por %p76, %p77
    %p79 = scmp.ne.s32.totalorder %s68, %s69
    %p80 = scmp.eq.s32.totalorder %s13, 0
    %p81 = por %p79, %p80
    %p82 = scmp.ne.s32.totalorder %s68, %s69
    %p83 = scmp.eq.s32.totalorder %s14, 1
    %p84 = por %p82, %p83
    %p86 = scmp.ne.s32.totalorder %s69, %s85
    %p87 = scmp.eq.s32.totalorder %s14, 0
    %p88 = por %p86, %p87
    %p89 = scmp.le.s32.totalorder 1, %s8
    %p90 = scmp.lt.s32.totalorder %s8, 3
    %p91 = pnand %p89, %p90
    %p92 = pneg %p91
    // Predicated region
    $region9: #{ldcnet_forward.11} parent=5 // pred_check
      _
    $region10: #{ldcnet_forward.11} parent=5 // pred_check_branch
      %94 = sbr.rel (%p91) target = $region12
    $region11: #{ldcnet_forward.11} parent=5 // pred_region
      %s95 = ssub.s32 %s8, 1
      // Predicated region
      $region13: #{ldcnet_forward.11} parent=11 // pred_check
        %p96 = pneg %p55
      $region14: #{ldcnet_forward.11} parent=11 // pred_check_branch
        %98 = sbr.rel (%p96) target = $region16
      $region15: #{ldcnet_forward.11} parent=11 // pred_region
        _
      $region16: #{ldcnet_forward.11} parent=11 // pred_fallthru
        _
    $region12: #{ldcnet_forward.11} parent=5 // pred_fallthru
      _
    %p99 = scmp.lt.s32.totalorder %s8, 2
    // Predicated region
    $region17: #{ldcnet_forward.11} parent=5 // pred_check
      %p100 = pneg %p99
    $region18: #{ldcnet_forward.11} parent=5 // pred_check_branch
      %102 = sbr.rel (%p100) target = $region20
    $region19: #{ldcnet_forward.11} parent=5 // pred_region
      // Predicated region
      $region21: #{ldcnet_forward.11} parent=19 // pred_check
        %p103 = pneg %p28
      $region22: #{ldcnet_forward.11} parent=19 // pred_check_branch
        %105 = sbr.rel (%p103) target = $region24
      $region23: #{ldcnet_forward.11} parent=19 // pred_region
        %p106 = scmp.lt.s32.totalorder %s8, 1
        %s107 = scalar_select %p106, %s8, 1
        %s108 = smul.addr %s107, 2
        %s109 = scalar_lea.vmem %s0, %s108
      $region24: #{ldcnet_forward.11} parent=19 // pred_fallthru
        _
    $region20: #{ldcnet_forward.11} parent=5 // pred_fallthru
      _
    %p110 = scmp.le.s32.totalorder 1, %s8
    %p111 = scmp.lt.s32.totalorder %s8, 3
    %p112 = pnand %p110, %p111
    %p113 = pneg %p112
    // Predicated region
    $region25: #{ldcnet_forward.11} parent=5 // pred_check
      _
    $region26: #{ldcnet_forward.11} parent=5 // pred_check_branch
      %115 = sbr.rel (%p112) target = $region28
    $region27: #{ldcnet_forward.11} parent=5 // pred_region
      %s116 = ssub.s32 %s8, 1
      %p117 = scmp.lt.s32.totalorder %s13, 1
      %s118 = scalar_select %p117, %s13, 1
      %s119 = smul.addr %s118, 2
      %s120 = scalar_lea.vmem %s0, %s119
      %p121 = pneg %p34
      %p122 = pneg %p31
      %p123 = pneg %p55
      %p124 = pneg %p52
      %p125 = pneg %p81
      %p126 = pneg %p78
      %p127 = scmp.lt.s32.totalorder %s13, 1
      %s128 = scalar_select %p127, %s13, 1
      %s129 = smul.addr %s128, 4
      %s130 = scalar_lea.vmem %s2, %s129
      %p131 = scmp.lt.s32.totalorder %s13, 1
      %s132 = scalar_select %p131, %s13, 1
      %s133 = smul.addr %s132, 2
      %s134 = scalar_lea.vmem %s0, %s133
      %p135 = scmp.lt.s32.totalorder %s13, 1
      %s136 = scalar_select %p135, %s13, 1
      %s137 = smul.addr %s136, 4
      %s138 = scalar_lea.vmem %s2, %s137
      %v140 = vld [vmem:[%s1] sm:$0xff]
      %v141 = vld [vmem:[%s134] sm:$0x3]
      %vm142 = vcmask 31744
      %v144 = vsel %vm142, %v140, 0
      %vm146 = vcmask 1041408
      %v148 = vsel %vm146, %v141, 0
      %150 = vmatprep.subr.bf16.mxu0 0
      %151 = vmatpush1.bf16.msra.mxu0 %v148
      %152 = vmatprep.subr.bf16.mxu0 0
      %153 = vmatpush1.bf16.msra.mxu0 0
      %154 = vmatprep.subr.bf16.mxu0 0
      %155 = vmatpush1.bf16.msra.mxu0 0
      %156 = vmatprep.subr.bf16.mxu0 0
      %157 = vmatpush1.bf16.msra.mxu0 0
      %158 = vmatprep.subr.bf16.mxu0 0
      %159 = vmatpush1.bf16.msra.mxu0 0
      %160 = vmatprep.subr.bf16.mxu0 0
      %161 = vmatpush1.bf16.msra.mxu0 0
      %162 = vmatprep.subr.bf16.mxu0 0
      %163 = vmatpush1.bf16.msra.mxu0 0
      %164 = vmatprep.subr.bf16.mxu0 0
      %165 = vmatpush1.bf16.msra.mxu0 0
      %166 = vmatprep.subr.bf16.mxu0 0
      %167 = vmatpush1.bf16.msra.mxu0 0
      %168 = vmatprep.subr.bf16.mxu0 0
      %169 = vmatpush1.bf16.msra.mxu0 0
      %170 = vmatprep.subr.bf16.mxu0 0
      %171 = vmatpush1.bf16.msra.mxu0 0
      %172 = vmatprep.subr.bf16.mxu0 0
      %173 = vmatpush1.bf16.msra.mxu0 0
      %174 = vmatprep.subr.bf16.mxu0 0
      %175 = vmatpush1.bf16.msra.mxu0 0
      %176 = vmatprep.subr.bf16.mxu0 0
      %177 = vmatpush1.bf16.msra.mxu0 0
      %178 = vmatprep.subr.bf16.mxu0 0
      %179 = vmatpush1.bf16.msra.mxu0 0
      %180 = vmatprep.subr.bf16.mxu0 0
      %181 = vmatpush1.bf16.msra.mxu0 0
      %182 = vmatprep.mubr.f32.mxu0 0.0
      %183 = vmatmul.mubr.f32.gmra.mrb[0].mxu0 %v144
      %v184 = vpop.f32.mrb[0].mxu0
      %v185 = vadd.f32 0.0, %v184
      %v186 = vpop.f32.mrb[0].mxu0
      %187 = vdwg.mxu0
      %v188 = vpack.c.bf16 %v185, %v185
      %189 = vst [vmem:[%s138] sm:$0xf] %v188
      %p190 = scmp.lt.s32.totalorder %s13, 1
      %s191 = scalar_select %p190, %s13, 1
      %s192 = smul.addr %s191, 4
      %s193 = scalar_lea.vmem %s2, %s192
      // Predicated region
      $region29: #{ldcnet_forward.11} parent=27 // pred_check
        %p194 = pneg %p78
      $region30: #{ldcnet_forward.11} parent=27 // pred_check_branch
        %196 = sbr.rel (%p194) target = $region32
      $region31: #{ldcnet_forward.11} parent=27 // pred_region
        _
      $region32: #{ldcnet_forward.11} parent=27 // pred_fallthru
        _
    $region28: #{ldcnet_forward.11} parent=5 // pred_fallthru
      _
    %p197 = scmp.le.s32.totalorder 2, %s8
    // Predicated region
    $region33: #{ldcnet_forward.11} parent=5 // pred_check
      %p198 = pneg %p197
    $region34: #{ldcnet_forward.11} parent=5 // pred_check_branch
      %200 = sbr.rel (%p198) target = $region36
    $region35: #{ldcnet_forward.11} parent=5 // pred_region
      %s201 = ssub.s32 %s8, 2
      // Predicated region
      $region37: #{ldcnet_forward.11} parent=35 // pred_check
        %p202 = pneg %p84
      $region38: #{ldcnet_forward.11} parent=35 // pred_check_branch
        %204 = sbr.rel (%p202) target = $region40
      $region39: #{ldcnet_forward.11} parent=35 // pred_region
        %p205 = scmp.lt.s32.totalorder %s14, 1
        %s206 = scalar_select %p205, %s14, 1
        %s207 = smul.addr %s206, 4
        %s208 = scalar_lea.vmem %s2, %s207
      $region40: #{ldcnet_forward.11} parent=35 // pred_fallthru
        _
    $region36: #{ldcnet_forward.11} parent=5 // pred_fallthru
      _
  $region6: #{ldcnet_forward.11} parent=0 // loop_footer
    %s12 = sadd.s32 1, %s8
  $region7: #{ldcnet_forward.11} parent=0 // loop_footer_branch
    %7 = sbr.rel target = $region3
  $region8: #{ldcnet_forward.11} parent=0 // loop_exit
    _

// kernel: ldcnet_forward.7
$region0: #{ldcnet_forward.7}
  #allocation0 [shape = 'u32[]', space=smem, size = 0x4, offset = 0x4, fixed_abs, tag = 'smem constant byte address 0x4 - core index']
  #allocation1 [shape = 'u32[144,128]{1,0:T(1,128)}', space=vmem, size = 0x12000, scoped, tag = 'internal scratch']
  %s0 = inlined_call_operand.vmem [shape: bf16[128,3], index: 0, kind: input, shape index: {}]
  %s1 = inlined_call_operand.vmem [shape: bf16[3,128], index: 1, kind: input, shape index: {}]
  %s2 = inlined_call_operand.vmem [shape: bf16[128,128], index: 2, kind: output, shape index: {}]
  %s3 = sld [smem:[#allocation0]]
  $region41: #{ldcnet_forward.7} parent=0
    _
  %s5 = ssub.s32 1, %s3
  %s6 = scalar_select 0, %s5, %s3
  loop: start=0, step=1, limit=4
  $region2: #{ldcnet_forward.7} parent=0 // loop_pre_header
    _
  $region3: #{ldcnet_forward.7} parent=0 // loop_header
    %s8 = sphi 0, %s12
    %p9 = scmp.ge.s32.totalorder %s8, 4
    %s18 = sphi 0, %s20
    %s21 = sphi 0, %s18
    %s22 = sphi 0, %s21
    %s38 = sphi 0, %s22
    %s42 = sphi 0, %s42
    %s44 = sphi 0, %s42
    %s45 = sphi 0, %s44
    %s59 = sphi 0, %s45
    %s65 = sphi 0, %s67
    %s68 = sphi 0, %s65
    %s69 = sphi 0, %s68
    %s85 = sphi 0, %s69
  $region4: #{ldcnet_forward.7} parent=0 // loop_header_branch
    %11 = sbr.rel (%p9) target = $region8
  $region5: #{ldcnet_forward.7} parent=0 // loop_body
    %s13 = ssub.s32 %s8, 1
    %s14 = ssub.s32 %s8, 2
    %s15 = sadd.s32 %s8, 1
    %s16 = ssub.s32 %s8, %s15
    %p17 = scmp.eq.s32.totalorder %s16, 0
    %s19 = sadd.s32 %s18, 1
    %s20 = scalar_select %p17, %s18, %s19
    %p23 = pneg %p17
    %p24 = scmp.eq.s32.totalorder %s8, 1
    %p25 = por %p23, %p24
    %p26 = scmp.ne.s32.totalorder %s18, %s21
    %p27 = scmp.eq.s32.totalorder %s8, 0
    %p28 = por %p26, %p27
    %p29 = scmp.ne.s32.totalorder %s18, %s21
    %p30 = scmp.eq.s32.totalorder %s13, 1
    %p31 = por %p29, %p30
    %p32 = scmp.ne.s32.totalorder %s21, %s22
    %p33 = scmp.eq.s32.totalorder %s13, 0
    %p34 = por %p32, %p33
    %p35 = scmp.ne.s32.totalorder %s21, %s22
    %p36 = scmp.eq.s32.totalorder %s14, 1
    %p37 = por %p35, %p36
    %p39 = scmp.ne.s32.totalorder %s22, %s38
    %p40 = scmp.eq.s32.totalorder %s14, 0
    %p41 = por %p39, %p40
    %s43 = sadd.s32 %s42, 1
    %p46 = scmp.eq.s32.totalorder %s8, 1
    %p47 = scmp.ne.s32.totalorder %s42, %s44
    %p48 = scmp.eq.s32.totalorder %s8, 0
    %p49 = por %p47, %p48
    %p50 = scmp.ne.s32.totalorder %s42, %s44
    %p51 = scmp.eq.s32.totalorder %s13, 1
    %p52 = por %p50, %p51
    %p53 = scmp.ne.s32.totalorder %s44, %s45
    %p54 = scmp.eq.s32.totalorder %s13, 0
    %p55 = por %p53, %p54
    %p56 = scmp.ne.s32.totalorder %s44, %s45
    %p57 = scmp.eq.s32.totalorder %s14, 1
    %p58 = por %p56, %p57
    %p60 = scmp.ne.s32.totalorder %s45, %s59
    %p61 = scmp.eq.s32.totalorder %s14, 0
    %p62 = por %p60, %p61
    %s63 = ssub.s32 %s8, %s15
    %p64 = scmp.eq.s32.totalorder %s63, 0
    %s66 = sadd.s32 %s65, 1
    %s67 = scalar_select %p64, %s65, %s66
    %p70 = pneg %p64
    %p71 = scmp.eq.s32.totalorder %s8, 1
    %p72 = por %p70, %p71
    %p73 = scmp.ne.s32.totalorder %s65, %s68
    %p74 = scmp.eq.s32.totalorder %s8, 0
    %p75 = por %p73, %p74
    %p76 = scmp.ne.s32.totalorder %s65, %s68
    %p77 = scmp.eq.s32.totalorder %s13, 1
    %p78 = por %p76, %p77
    %p79 = scmp.ne.s32.totalorder %s68, %s69
    %p80 = scmp.eq.s32.totalorder %s13, 0
    %p81 = por %p79, %p80
    %p82 = scmp.ne.s32.totalorder %s68, %s69
    %p83 = scmp.eq.s32.totalorder %s14, 1
    %p84 = por %p82, %p83
    %p86 = scmp.ne.s32.totalorder %s69, %s85
    %p87 = scmp.eq.s32.totalorder %s14, 0
    %p88 = por %p86, %p87
    %p89 = scmp.le.s32.totalorder 1, %s8
    %p90 = scmp.lt.s32.totalorder %s8, 3
    %p91 = pnand %p89, %p90
    %p92 = pneg %p91
    // Predicated region
    $region9: #{ldcnet_forward.7} parent=5 // pred_check
      _
    $region10: #{ldcnet_forward.7} parent=5 // pred_check_branch
      %94 = sbr.rel (%p91) target = $region12
    $region11: #{ldcnet_forward.7} parent=5 // pred_region
      %s95 = ssub.s32 %s8, 1
      // Predicated region
      $region13: #{ldcnet_forward.7} parent=11 // pred_check
        %p96 = pneg %p55
      $region14: #{ldcnet_forward.7} parent=11 // pred_check_branch
        %98 = sbr.rel (%p96) target = $region16
      $region15: #{ldcnet_forward.7} parent=11 // pred_region
        _
      $region16: #{ldcnet_forward.7} parent=11 // pred_fallthru
        _
    $region12: #{ldcnet_forward.7} parent=5 // pred_fallthru
      _
    %p99 = scmp.lt.s32.totalorder %s8, 2
    // Predicated region
    $region17: #{ldcnet_forward.7} parent=5 // pred_check
      %p100 = pneg %p99
    $region18: #{ldcnet_forward.7} parent=5 // pred_check_branch
      %102 = sbr.rel (%p100) target = $region20
    $region19: #{ldcnet_forward.7} parent=5 // pred_region
      // Predicated region
      $region21: #{ldcnet_forward.7} parent=19 // pred_check
        %p103 = pneg %p28
      $region22: #{ldcnet_forward.7} parent=19 // pred_check_branch
        %105 = sbr.rel (%p103) target = $region24
      $region23: #{ldcnet_forward.7} parent=19 // pred_region
        %s106 = smul.u32 8, %s8
        %p107 = scmp.lt.s32.totalorder %s106, 15
        %s108 = scalar_select %p107, %s106, 15
        %s109 = smul.addr %s108, 4
        %s110 = scalar_lea.vmem %s0, %s109
        %s111 = smul.u32 8, %s8
      $region24: #{ldcnet_forward.7} parent=19 // pred_fallthru
        _
    $region20: #{ldcnet_forward.7} parent=5 // pred_fallthru
      _
    %p112 = scmp.le.s32.totalorder 1, %s8
    %p113 = scmp.lt.s32.totalorder %s8, 3
    %p114 = pnand %p112, %p113
    %p115 = pneg %p114
    // Predicated region
    $region25: #{ldcnet_forward.7} parent=5 // pred_check
      _
    $region26: #{ldcnet_forward.7} parent=5 // pred_check_branch
      %117 = sbr.rel (%p114) target = $region28
    $region27: #{ldcnet_forward.7} parent=5 // pred_region
      %s118 = ssub.s32 %s8, 1
      %s119 = smul.u32 8, %s13
      %p120 = scmp.lt.s32.totalorder %s119, 15
      %s121 = scalar_select %p120, %s119, 15
      %s122 = smul.addr %s121, 4
      %s123 = scalar_lea.vmem %s0, %s122
      %p124 = pneg %p34
      %p125 = pneg %p31
      %p126 = pneg %p55
      %p127 = pneg %p52
      %p128 = pneg %p81
      %p129 = pneg %p78
      %s130 = smul.u32 8, %s13
      %p131 = scmp.lt.s32.totalorder %s130, 15
      %s132 = scalar_select %p131, %s130, 15
      %s133 = smul.addr %s132, 4
      %s134 = scalar_lea.vmem %s2, %s133
      %s135 = smul.u32 8, %s13
      %p136 = scmp.lt.s32.totalorder %s135, 15
      %s137 = scalar_select %p136, %s135, 15
      %s138 = smul.addr %s137, 4
      %s139 = scalar_lea.vmem %s0, %s138
      %s140 = smul.u32 8, %s13
      %s141 = smul.u32 8, %s13
      %p142 = scmp.lt.s32.totalorder %s141, 15
      %s143 = scalar_select %p142, %s141, 15
      %s144 = smul.addr %s143, 4
      %s145 = scalar_lea.vmem %s2, %s144
      %s146 = smul.u32 8, %s13
      %v148 = vld [vmem:[%s139] sm:$0xf]
      %v149 = vld [vmem:[%s139 + $0x4] sm:$0xf]
      %v150 = vld [vmem:[%s139 + $0x8] sm:$0xf]
      %v151 = vld [vmem:[%s139 + $0xc] sm:$0xf]
      %v152 = vld [vmem:[%s139 + $0x10] sm:$0xf]
      %v153 = vld [vmem:[%s139 + $0x14] sm:$0xf]
      %v154 = vld [vmem:[%s139 + $0x18] sm:$0xf]
      %v155 = vld [vmem:[%s139 + $0x1c] sm:$0xf]
      %v156 = vld [vmem:[%s1] sm:$0x3]
      %v165 = vunpack.c.l.b16 %v148
      %v166 = vunpack.c.l.b16 %v149
      %v167 = vunpack.c.l.b16 %v150
      %v168 = vunpack.c.l.b16 %v151
      %v169 = vunpack.c.l.b16 %v152
      %v170 = vunpack.c.l.b16 %v153
      %v171 = vunpack.c.l.b16 %v154
      %v172 = vunpack.c.l.b16 %v155
      %v173 = vpack.c.b16 %v166, %v165
      %v174 = vpack.c.b16 %v168, %v167
      %v175 = vpack.c.b16 %v170, %v169
      %v176 = vpack.c.b16 %v172, %v171
      %vm177 = vcmask 23552
      %v179 = vsel %vm177, %v173, 0
      %v182 = vsel %vm177, %v174, 0
      %v185 = vsel %vm177, %v175, 0
      %v188 = vsel %vm177, %v176, 0
      %vm190 = vcmask 1040384
      %vm191 = vcmask 1041408
      %v192 = vsel %vm190, 4294967295, 65535
      %v193 = vsel %vm191, %v192, 0
      %v195 = vand.u32 %v156, %v193
      %197 = vmatprep.subr.bf16.mxu0 0
      %198 = vmatpush1.bf16.msra.mxu0 %v195
      %199 = vmatprep.subr.bf16.mxu0 0
      %200 = vmatpush1.bf16.msra.mxu0 0
      %201 = vmatprep.subr.bf16.mxu0 0
      %202 = vmatpush1.bf16.msra.mxu0 0
      %203 = vmatprep.subr.bf16.mxu0 0
      %204 = vmatpush1.bf16.msra.mxu0 0
      %205 = vmatprep.subr.bf16.mxu0 0
      %206 = vmatpush1.bf16.msra.mxu0 0
      %207 = vmatprep.subr.bf16.mxu0 0
      %208 = vmatpush1.bf16.msra.mxu0 0
      %209 = vmatprep.subr.bf16.mxu0 0
      %210 = vmatpush1.bf16.msra.mxu0 0
      %211 = vmatprep.subr.bf16.mxu0 0
      %212 = vmatpush1.bf16.msra.mxu0 0
      %213 = vmatprep.subr.bf16.mxu0 0
      %214 = vmatpush1.bf16.msra.mxu0 0
      %215 = vmatprep.subr.bf16.mxu0 0
      %216 = vmatpush1.bf16.msra.mxu0 0
      %217 = vmatprep.subr.bf16.mxu0 0
      %218 = vmatpush1.bf16.msra.mxu0 0
      %219 = vmatprep.subr.bf16.mxu0 0
      %220 = vmatpush1.bf16.msra.mxu0 0
      %221 = vmatprep.subr.bf16.mxu0 0
      %222 = vmatpush1.bf16.msra.mxu0 0
      %223 = vmatprep.subr.bf16.mxu0 0
      %224 = vmatpush1.bf16.msra.mxu0 0
      %225 = vmatprep.subr.bf16.mxu0 0
      %226 = vmatpush1.bf16.msra.mxu0 0
      %227 = vmatprep.subr.bf16.mxu0 0
      %228 = vmatpush1.bf16.msra.mxu0 0
      %229 = vmatprep.mubr.bf16.mxu0 0
      %230 = vmatmul.mubr.bf16.gmra.mrb[0].mxu0 %v179
      %v231 = vpop.f32.mrb[0].mxu0
      %v232 = vadd.f32 0.0, %v231
      %v233 = vpop.f32.mrb[0].mxu0
      %v234 = vpop.f32.mrb[0].mxu0
      %v235 = vadd.f32 0.0, %v234
      %v236 = vpop.f32.mrb[0].mxu0
      %237 = vmatprep.mubr.bf16.mxu0 0
      %238 = vmatmul.mubr.bf16.gmra.mrb[0].mxu0 %v182
      %v239 = vpop.f32.mrb[0].mxu0
      %v240 = vadd.f32 0.0, %v239
      %v241 = vpop.f32.mrb[0].mxu0
      %v242 = vpop.f32.mrb[0].mxu0
      %v243 = vadd.f32 0.0, %v242
      %v244 = vpop.f32.mrb[0].mxu0
      %245 = vmatprep.mubr.bf16.mxu0 0
      %246 = vmatmul.mubr.bf16.gmra.mrb[0].mxu0 %v185
      %v247 = vpop.f32.mrb[0].mxu0
      %v248 = vadd.f32 0.0, %v247
      %v249 = vpop.f32.mrb[0].mxu0
      %v250 = vpop.f32.mrb[0].mxu0
      %v251 = vadd.f32 0.0, %v250
      %v252 = vpop.f32.mrb[0].mxu0
      %253 = vmatprep.mubr.bf16.mxu0 0
      %254 = vmatmul.mubr.bf16.gmra.mrb[0].mxu0 %v188
      %v255 = vpop.f32.mrb[0].mxu0
      %v256 = vadd.f32 0.0, %v255
      %v257 = vpop.f32.mrb[0].mxu0
      %v258 = vpop.f32.mrb[0].mxu0
      %v259 = vadd.f32 0.0, %v258
      %v260 = vpop.f32.mrb[0].mxu0
      %261 = vdwg.mxu0
      %v262 = vpack.c.bf16 %v235, %v232
      %v263 = vpack.c.bf16 %v243, %v240
      %v264 = vpack.c.bf16 %v251, %v248
      %v265 = vpack.c.bf16 %v259, %v256
      %v270 = vunpack.c.l.b16 %v262
      %v271 = vunpack.c.h.b16 %v262
      %v272 = vunpack.c.l.b16 %v263
      %v273 = vunpack.c.h.b16 %v263
      %v274 = vunpack.c.l.b16 %v264
      %v275 = vunpack.c.h.b16 %v264
      %v276 = vunpack.c.l.b16 %v265
      %v277 = vunpack.c.h.b16 %v265
      %v278 = vpack.c.b16 %v270, %v270
      %v279 = vpack.c.b16 %v271, %v271
      %v280 = vpack.c.b16 %v272, %v272
      %v281 = vpack.c.b16 %v273, %v273
      %v282 = vpack.c.b16 %v274, %v274
      %v283 = vpack.c.b16 %v275, %v275
      %v284 = vpack.c.b16 %v276, %v276
      %v285 = vpack.c.b16 %v277, %v277
      %294 = vst [vmem:[%s145] sm:$0xf] %v278
      %295 = vst [vmem:[%s145 + $0x4] sm:$0xf] %v279
      %296 = vst [vmem:[%s145 + $0x8] sm:$0xf] %v280
      %297 = vst [vmem:[%s145 + $0xc] sm:$0xf] %v281
      %298 = vst [vmem:[%s145 + $0x10] sm:$0xf] %v282
      %299 = vst [vmem:[%s145 + $0x14] sm:$0xf] %v283
      %300 = vst [vmem:[%s145 + $0x18] sm:$0xf] %v284
      %301 = vst [vmem:[%s145 + $0x1c] sm:$0xf] %v285
      %s302 = smul.u32 8, %s13
      %p303 = scmp.lt.s32.totalorder %s302, 15
      %s304 = scalar_select %p303, %s302, 15
      %s305 = smul.addr %s304, 4
      %s306 = scalar_lea.vmem %s2, %s305
      // Predicated region
      $region29: #{ldcnet_forward.7} parent=27 // pred_check
        %p307 = pneg %p78
      $region30: #{ldcnet_forward.7} parent=27 // pred_check_branch
        %309 = sbr.rel (%p307) target = $region32
      $region31: #{ldcnet_forward.7} parent=27 // pred_region
        %s310 = smul.u32 8, %s13
      $region32: #{ldcnet_forward.7} parent=27 // pred_fallthru
        _
    $region28: #{ldcnet_forward.7} parent=5 // pred_fallthru
      _
    %p311 = scmp.le.s32.totalorder 2, %s8
    // Predicated region
    $region33: #{ldcnet_forward.7} parent=5 // pred_check
      %p312 = pneg %p311
    $region34: #{ldcnet_forward.7} parent=5 // pred_check_branch
      %314 = sbr.rel (%p312) target = $region36
    $region35: #{ldcnet_forward.7} parent=5 // pred_region
      %s315 = ssub.s32 %s8, 2
      // Predicated region
      $region37: #{ldcnet_forward.7} parent=35 // pred_check
        %p316 = pneg %p84
      $region38: #{ldcnet_forward.7} parent=35 // pred_check_branch
        %318 = sbr.rel (%p316) target = $region40
      $region39: #{ldcnet_forward.7} parent=35 // pred_region
        %s319 = smul.u32 8, %s14
        %p320 = scmp.lt.s32.totalorder %s319, 15
        %s321 = scalar_select %p320, %s319, 15
        %s322 = smul.addr %s321, 4
        %s323 = scalar_lea.vmem %s2, %s322
      $region40: #{ldcnet_forward.7} parent=35 // pred_fallthru
        _
    $region36: #{ldcnet_forward.7} parent=5 // pred_fallthru
      _
  $region6: #{ldcnet_forward.7} parent=0 // loop_footer
    %s12 = sadd.s32 1, %s8
  $region7: #{ldcnet_forward.7} parent=0 // loop_footer_branch
    %7 = sbr.rel target = $region3
  $region8: #{ldcnet_forward.7} parent=0 // loop_exit
    _

// kernel: ldcnet_forward.13
$region0: #{ldcnet_forward.13}
  #allocation0 [shape = 'u32[]', space=smem, size = 0x4, offset = 0x4, fixed_abs, tag = 'smem constant byte address 0x4 - core index']
  #allocation1 [shape = 'u32[144,128]{1,0:T(1,128)}', space=vmem, size = 0x12000, scoped, tag = 'internal scratch']
  %s0 = inlined_call_operand.vmem [shape: f32[2,8,8], index: 0, kind: input, shape index: {}]
  %s1 = inlined_call_operand.vmem [shape: f32[64,8], index: 1, kind: input, shape index: {}]
  %s2 = inlined_call_operand.vmem [shape: f32[8,64], index: 2, kind: input, shape index: {}]
  %s3 = inlined_call_operand.hbm [shape: f32[2,64,64], index: 3, kind: output, shape index: {}]
  %s4 = sld [smem:[#allocation0]]
  $region45: #{ldcnet_forward.13} parent=0
    _
  %s6 = ssub.s32 1, %s4
  %s7 = scalar_select 0, %s6, %s4
  $region1: #{ldcnet_forward.13} parent=0
    #allocation2 [shape = 'u8[65536]{0}', space=vmem, size = 0x10000, scoped, tag = 'output window, operand 0']
    #allocation3 [shape = 's32[2]{0}', space=sflag, size = 0x8, scoped, tag = 'scoped memory for ldcnet_forward.13']
    %8 = vsyncpa [#allocation3], 0
    %s9 = scalar_lea.sflag [#allocation3], 1
    %10 = vsyncpa %s9, 0
    loop: start=0, step=1, limit=4
    $region2: #{ldcnet_forward.13} parent=1 // loop_pre_header
      _
    $region3: #{ldcnet_forward.13} parent=1 // loop_header
      %s12 = sphi 0, %s16
      %p13 = scmp.ge.s32.totalorder %s12, 4
      %s22 = sphi 0, %s24
      %s25 = sphi 0, %s22
      %s26 = sphi 0, %s25
      %s42 = sphi 0, %s26
      %s46 = sphi 0, %s46
      %s48 = sphi 0, %s46
      %s49 = sphi 0, %s48
      %s63 = sphi 0, %s49
      %s67 = sphi 0, %s67
      %s69 = sphi 0, %s67
      %s70 = sphi 0, %s69
      %s84 = sphi 0, %s70
      %s90 = sphi 0, %s92
      %s93 = sphi 0, %s90
      %s94 = sphi 0, %s93
      %s110 = sphi 0, %s94
    $region4: #{ldcnet_forward.13} parent=1 // loop_header_branch
      %15 = sbr.rel (%p13) target = $region8
    $region5: #{ldcnet_forward.13} parent=1 // loop_body
      %s17 = ssub.s32 %s12, 1
      %s18 = ssub.s32 %s12, 2
      %s19 = sadd.s32 %s12, 1
      %s20 = ssub.s32 %s12, %s19
      %p21 = scmp.eq.s32.totalorder %s20, 0
      %s23 = sadd.s32 %s22, 1
      %s24 = scalar_select %p21, %s22, %s23
      %p27 = pneg %p21
      %p28 = scmp.eq.s32.totalorder %s12, 1
      %p29 = por %p27, %p28
      %p30 = scmp.ne.s32.totalorder %s22, %s25
      %p31 = scmp.eq.s32.totalorder %s12, 0
      %p32 = por %p30, %p31
      %p33 = scmp.ne.s32.totalorder %s22, %s25
      %p34 = scmp.eq.s32.totalorder %s17, 1
      %p35 = por %p33, %p34
      %p36 = scmp.ne.s32.totalorder %s25, %s26
      %p37 = scmp.eq.s32.totalorder %s17, 0
      %p38 = por %p36, %p37
      %p39 = scmp.ne.s32.totalorder %s25, %s26
      %p40 = scmp.eq.s32.totalorder %s18, 1
      %p41 = por %p39, %p40
      %p43 = scmp.ne.s32.totalorder %s26, %s42
      %p44 = scmp.eq.s32.totalorder %s18, 0
      %p45 = por %p43, %p44
      %s47 = sadd.s32 %s46, 1
      %p50 = scmp.eq.s32.totalorder %s12, 1
      %p51 = scmp.ne.s32.totalorder %s46, %s48
      %p52 = scmp.eq.s32.totalorder %s12, 0
      %p53 = por %p51, %p52
      %p54 = scmp.ne.s32.totalorder %s46, %s48
      %p55 = scmp.eq.s32.totalorder %s17, 1
      %p56 = por %p54, %p55
      %p57 = scmp.ne.s32.totalorder %s48, %s49
      %p58 = scmp.eq.s32.totalorder %s17, 0
      %p59 = por %p57, %p58
      %p60 = scmp.ne.s32.totalorder %s48, %s49
      %p61 = scmp.eq.s32.totalorder %s18, 1
      %p62 = por %p60, %p61
      %p64 = scmp.ne.s32.totalorder %s49, %s63
      %p65 = scmp.eq.s32.totalorder %s18, 0
      %p66 = por %p64, %p65
      %s68 = sadd.s32 %s67, 1
      %p71 = scmp.eq.s32.totalorder %s12, 1
      %p72 = scmp.ne.s32.totalorder %s67, %s69
      %p73 = scmp.eq.s32.totalorder %s12, 0
      %p74 = por %p72, %p73
      %p75 = scmp.ne.s32.totalorder %s67, %s69
      %p76 = scmp.eq.s32.totalorder %s17, 1
      %p77 = por %p75, %p76
      %p78 = scmp.ne.s32.totalorder %s69, %s70
      %p79 = scmp.eq.s32.totalorder %s17, 0
      %p80 = por %p78, %p79
      %p81 = scmp.ne.s32.totalorder %s69, %s70
      %p82 = scmp.eq.s32.totalorder %s18, 1
      %p83 = por %p81, %p82
      %p85 = scmp.ne.s32.totalorder %s70, %s84
      %p86 = scmp.eq.s32.totalorder %s18, 0
      %p87 = por %p85, %p86
      %s88 = ssub.s32 %s12, %s19
      %p89 = scmp.eq.s32.totalorder %s88, 0
      %s91 = sadd.s32 %s90, 1
      %s92 = scalar_select %p89, %s90, %s91
      %p95 = pneg %p89
      %p96 = scmp.eq.s32.totalorder %s12, 1
      %p97 = por %p95, %p96
      %p98 = scmp.ne.s32.totalorder %s90, %s93
      %p99 = scmp.eq.s32.totalorder %s12, 0
      %p100 = por %p98, %p99
      %p101 = scmp.ne.s32.totalorder %s90, %s93
      %p102 = scmp.eq.s32.totalorder %s17, 1
      %p103 = por %p101, %p102
      %p104 = scmp.ne.s32.totalorder %s93, %s94
      %p105 = scmp.eq.s32.totalorder %s17, 0
      %p106 = por %p104, %p105
      %p107 = scmp.ne.s32.totalorder %s93, %s94
      %p108 = scmp.eq.s32.totalorder %s18, 1
      %p109 = por %p107, %p108
      %p111 = scmp.ne.s32.totalorder %s94, %s110
      %p112 = scmp.eq.s32.totalorder %s18, 0
      %p113 = por %p111, %p112
      %p114 = scmp.le.s32.totalorder 1, %s12
      %p115 = scmp.lt.s32.totalorder %s12, 3
      %p116 = pnand %p114, %p115
      %p117 = pneg %p116
      // Predicated region
      $region9: #{ldcnet_forward.13} parent=5 // pred_check
        _
      $region10: #{ldcnet_forward.13} parent=5 // pred_check_branch
        %119 = sbr.rel (%p116) target = $region12
      $region11: #{ldcnet_forward.13} parent=5 // pred_region
        %s120 = ssub.s32 %s12, 1
        // Predicated region
        $region13: #{ldcnet_forward.13} parent=11 // pred_check
          %p121 = pneg %p59
        $region14: #{ldcnet_forward.13} parent=11 // pred_check_branch
          %123 = sbr.rel (%p121) target = $region16
        $region15: #{ldcnet_forward.13} parent=11 // pred_region
          _
        $region16: #{ldcnet_forward.13} parent=11 // pred_fallthru
          _
        // Predicated region
        $region17: #{ldcnet_forward.13} parent=11 // pred_check
          %p124 = pneg %p80
        $region18: #{ldcnet_forward.13} parent=11 // pred_check_branch
          %126 = sbr.rel (%p124) target = $region20
        $region19: #{ldcnet_forward.13} parent=11 // pred_region
          _
        $region20: #{ldcnet_forward.13} parent=11 // pred_fallthru
          _
      $region12: #{ldcnet_forward.13} parent=5 // pred_fallthru
        _
      %p127 = scmp.lt.s32.totalorder %s12, 2
      // Predicated region
      $region21: #{ldcnet_forward.13} parent=5 // pred_check
        %p128 = pneg %p127
      $region22: #{ldcnet_forward.13} parent=5 // pred_check_branch
        %130 = sbr.rel (%p128) target = $region24
      $region23: #{ldcnet_forward.13} parent=5 // pred_region
        // Predicated region
        $region25: #{ldcnet_forward.13} parent=23 // pred_check
          %p131 = pneg %p32
        $region26: #{ldcnet_forward.13} parent=23 // pred_check_branch
          %133 = sbr.rel (%p131) target = $region28
        $region27: #{ldcnet_forward.13} parent=23 // pred_region
          %p134 = scmp.lt.s32.totalorder %s12, 1
          %s135 = scalar_select %p134, %s12, 1
          %s136 = smul.addr %s135, 8
          %s137 = scalar_lea.vmem %s0, %s136
        $region28: #{ldcnet_forward.13} parent=23 // pred_fallthru
          _
      $region24: #{ldcnet_forward.13} parent=5 // pred_fallthru
        _
      %p138 = scmp.le.s32.totalorder 1, %s12
      %p139 = scmp.lt.s32.totalorder %s12, 3
      %p140 = pnand %p138, %p139
      %p141 = pneg %p140
      // Predicated region
      $region29: #{ldcnet_forward.13} parent=5 // pred_check
        _
      $region30: #{ldcnet_forward.13} parent=5 // pred_check_branch
        %143 = sbr.rel (%p140) target = $region32
      $region31: #{ldcnet_forward.13} parent=5 // pred_region
        %s144 = ssub.s32 %s12, 1
        %p145 = scmp.lt.s32.totalorder %s17, 1
        %s146 = scalar_select %p145, %s17, 1
        %s147 = smul.addr %s146, 8
        %s148 = scalar_lea.vmem %s0, %s147
        %p149 = pneg %p38
        %p150 = pneg %p35
        %p151 = pneg %p59
        %p152 = pneg %p56
        %p153 = pneg %p80
        %p154 = pneg %p77
        %p155 = pneg %p106
        %p156 = pneg %p103
        %s157 = sand.u32 %s93, 1
        %s158 = scalar_lea.sflag [#allocation3], %s157
        %s159 = sand.u32 %s93, 1
        %s160 = smul.addr %s159, 64
        %s161 = scalar_lea.vmem [#allocation2], %s160
        %p162 = scmp.lt.s32.totalorder %s17, 1
        %s163 = scalar_select %p162, %s17, 1
        %s164 = smul.addr %s163, 8
        %s165 = scalar_lea.vmem %s0, %s164
        %v166 = vld [vmem:[%s1] sm:$0xff]
        %v167 = vld [vmem:[%s1 + $0x8] sm:$0xff]
        %v168 = vld [vmem:[%s1 + $0x10] sm:$0xff]
        %v169 = vld [vmem:[%s1 + $0x18] sm:$0xff]
        %v170 = vld [vmem:[%s1 + $0x20] sm:$0xff]
        %v171 = vld [vmem:[%s1 + $0x28] sm:$0xff]
        %v172 = vld [vmem:[%s1 + $0x30] sm:$0xff]
        %v173 = vld [vmem:[%s1 + $0x38] sm:$0xff]
        %v174 = vld [vmem:[%s165] sm:$0xff]
        %vm175 = vcmask 64512
        %v177 = vsel %vm175, %v166, 0
        %v180 = vsel %vm175, %v167, 0
        %v183 = vsel %vm175, %v168, 0
        %v186 = vsel %vm175, %v169, 0
        %v189 = vsel %vm175, %v170, 0
        %v192 = vsel %vm175, %v171, 0
        %v195 = vsel %vm175, %v172, 0
        %v198 = vsel %vm175, %v173, 0
        %200 = vmatprep.subr.mxu0 0.0
        %201 = vmatpush1.msra.mxu0 %v174
        %202 = vmatprep.subr.mxu0 0.0
        %203 = vmatpush1.msra.mxu0 0.0
        %204 = vmatprep.subr.mxu0 0.0
        %205 = vmatpush1.msra.mxu0 0.0
        %206 = vmatprep.subr.mxu0 0.0
        %207 = vmatpush1.msra.mxu0 0.0
        %208 = vmatprep.subr.mxu0 0.0
        %209 = vmatpush1.msra.mxu0 0.0
        %210 = vmatprep.subr.mxu0 0.0
        %211 = vmatpush1.msra.mxu0 0.0
        %212 = vmatprep.subr.mxu0 0.0
        %213 = vmatpush1.msra.mxu0 0.0
        %214 = vmatprep.subr.mxu0 0.0
        %215 = vmatpush1.msra.mxu0 0.0
        %216 = vmatprep.subr.mxu0 0.0
        %217 = vmatpush1.msra.mxu0 0.0
        %218 = vmatprep.subr.mxu0 0.0
        %219 = vmatpush1.msra.mxu0 0.0
        %220 = vmatprep.subr.mxu0 0.0
        %221 = vmatpush1.msra.mxu0 0.0
        %222 = vmatprep.subr.mxu0 0.0
        %223 = vmatpush1.msra.mxu0 0.0
        %224 = vmatprep.subr.mxu0 0.0
        %225 = vmatpush1.msra.mxu0 0.0
        %226 = vmatprep.subr.mxu0 0.0
        %227 = vmatpush1.msra.mxu0 0.0
        %228 = vmatprep.subr.mxu0 0.0
        %229 = vmatpush1.msra.mxu0 0.0
        %230 = vmatprep.subr.mxu0 0.0
        %231 = vmatpush1.msra.mxu0 0.0
        %232 = vmatprep.subr.mxu0 0.0
        %233 = vmatpush1.msra.mxu0 0.0
        %234 = vmatprep.subr.mxu0 0.0
        %235 = vmatpush1.msra.mxu0 0.0
        %236 = vmatprep.subr.mxu0 0.0
        %237 = vmatpush1.msra.mxu0 0.0
        %238 = vmatprep.subr.mxu0 0.0
        %239 = vmatpush1.msra.mxu0 0.0
        %240 = vmatprep.subr.mxu0 0.0
        %241 = vmatpush1.msra.mxu0 0.0
        %242 = vmatprep.subr.mxu0 0.0
        %243 = vmatpush1.msra.mxu0 0.0
        %244 = vmatprep.subr.mxu0 0.0
        %245 = vmatpush1.msra.mxu0 0.0
        %246 = vmatprep.subr.mxu0 0.0
        %247 = vmatpush1.msra.mxu0 0.0
        %248 = vmatprep.subr.mxu0 0.0
        %249 = vmatpush1.msra.mxu0 0.0
        %250 = vmatprep.subr.mxu0 0.0
        %251 = vmatpush1.msra.mxu0 0.0
        %252 = vmatprep.subr.mxu0 0.0
        %253 = vmatpush1.msra.mxu0 0.0
        %254 = vmatprep.subr.mxu0 0.0
        %255 = vmatpush1.msra.mxu0 0.0
        %256 = vmatprep.subr.mxu0 0.0
        %257 = vmatpush1.msra.mxu0 0.0
        %258 = vmatprep.subr.mxu0 0.0
        %259 = vmatpush1.msra.mxu0 0.0
        %260 = vmatprep.subr.mxu0 0.0
        %261 = vmatpush1.msra.mxu0 0.0
        %262 = vmatprep.subr.mxu0 0.0
        %263 = vmatpush1.msra.mxu0 0.0
        %264 = vmatprep.mubr.f32.mxu0 0.0
        %265 = vmatmul.mubr.f32.gmra.mrb[0].mxu0 %v177
        %v266 = vpop.f32.mrb[0].mxu0
        %v267 = vadd.f32 0.0, %v266
        %v268 = vpop.f32.mrb[0].mxu0
        %269 = vmatprep.mubr.f32.mxu0 0.0
        %270 = vmatmul.mubr.f32.gmra.mrb[0].mxu0 %v180
        %v271 = vpop.f32.mrb[0].mxu0
        %v272 = vadd.f32 0.0, %v271
        %v273 = vpop.f32.mrb[0].mxu0
        %274 = vmatprep.mubr.f32.mxu0 0.0
        %275 = vmatmul.mubr.f32.gmra.mrb[0].mxu0 %v183
        %v276 = vpop.f32.mrb[0].mxu0
        %v277 = vadd.f32 0.0, %v276
        %v278 = vpop.f32.mrb[0].mxu0
        %279 = vmatprep.mubr.f32.mxu0 0.0
        %280 = vmatmul.mubr.f32.gmra.mrb[0].mxu0 %v186
        %v281 = vpop.f32.mrb[0].mxu0
        %v282 = vadd.f32 0.0, %v281
        %v283 = vpop.f32.mrb[0].mxu0
        %284 = vmatprep.mubr.f32.mxu0 0.0
        %285 = vmatmul.mubr.f32.gmra.mrb[0].mxu0 %v189
        %v286 = vpop.f32.mrb[0].mxu0
        %v287 = vadd.f32 0.0, %v286
        %v288 = vpop.f32.mrb[0].mxu0
        %289 = vmatprep.mubr.f32.mxu0 0.0
        %290 = vmatmul.mubr.f32.gmra.mrb[0].mxu0 %v192
        %v291 = vpop.f32.mrb[0].mxu0
        %v292 = vadd.f32 0.0, %v291
        %v293 = vpop.f32.mrb[0].mxu0
        %294 = vmatprep.mubr.f32.mxu0 0.0
        %295 = vmatmul.mubr.f32.gmra.mrb[0].mxu0 %v195
        %v296 = vpop.f32.mrb[0].mxu0
        %v297 = vadd.f32 0.0, %v296
        %v298 = vpop.f32.mrb[0].mxu0
        %299 = vmatprep.mubr.f32.mxu0 0.0
        %300 = vmatmul.mubr.f32.gmra.mrb[0].mxu0 %v198
        %v301 = vpop.f32.mrb[0].mxu0
        %v302 = vadd.f32 0.0, %v301
        %v303 = vpop.f32.mrb[0].mxu0
        %304 = vdwg.mxu0
        %v305 = vld [vmem:[%s2] sm:$0xff]
        %v307 = vsel %vm175, %v267, 0
        %v310 = vsel %vm175, %v272, 0
        %v313 = vsel %vm175, %v277, 0
        %v316 = vsel %vm175, %v282, 0
        %v319 = vsel %vm175, %v287, 0
        %v322 = vsel %vm175, %v292, 0
        %v325 = vsel %vm175, %v297, 0
        %v328 = vsel %vm175, %v302, 0
        %330 = vmatprep.subr.mxu0 0.0
        %331 = vmatpush1.msra.mxu0 %v305
        %332 = vmatprep.subr.mxu0 0.0
        %333 = vmatpush1.msra.mxu0 0.0
        %334 = vmatprep.subr.mxu0 0.0
        %335 = vmatpush1.msra.mxu0 0.0
        %336 = vmatprep.subr.mxu0 0.0
        %337 = vmatpush1.msra.mxu0 0.0
        %338 = vmatprep.subr.mxu0 0.0
        %339 = vmatpush1.msra.mxu0 0.0
        %340 = vmatprep.subr.mxu0 0.0
        %341 = vmatpush1.msra.mxu0 0.0
        %342 = vmatprep.subr.mxu0 0.0
        %343 = vmatpush1.msra.mxu0 0.0
        %344 = vmatprep.subr.mxu0 0.0
        %345 = vmatpush1.msra.mxu0 0.0
        %346 = vmatprep.subr.mxu0 0.0
        %347 = vmatpush1.msra.mxu0 0.0
        %348 = vmatprep.subr.mxu0 0.0
        %349 = vmatpush1.msra.mxu0 0.0
        %350 = vmatprep.subr.mxu0 0.0
        %351 = vmatpush1.msra.mxu0 0.0
        %352 = vmatprep.subr.mxu0 0.0
        %353 = vmatpush1.msra.mxu0 0.0
        %354 = vmatprep.subr.mxu0 0.0
        %355 = vmatpush1.msra.mxu0 0.0
        %356 = vmatprep.subr.mxu0 0.0
        %357 = vmatpush1.msra.mxu0 0.0
        %358 = vmatprep.subr.mxu0 0.0
        %359 = vmatpush1.msra.mxu0 0.0
        %360 = vmatprep.subr.mxu0 0.0
        %361 = vmatpush1.msra.mxu0 0.0
        %362 = vmatprep.subr.mxu0 0.0
        %363 = vmatpush1.msra.mxu0 0.0
        %364 = vmatprep.subr.mxu0 0.0
        %365 = vmatpush1.msra.mxu0 0.0
        %366 = vmatprep.subr.mxu0 0.0
        %367 = vmatpush1.msra.mxu0 0.0
        %368 = vmatprep.subr.mxu0 0.0
        %369 = vmatpush1.msra.mxu0 0.0
        %370 = vmatprep.subr.mxu0 0.0
        %371 = vmatpush1.msra.mxu0 0.0
        %372 = vmatprep.subr.mxu0 0.0
        %373 = vmatpush1.msra.mxu0 0.0
        %374 = vmatprep.subr.mxu0 0.0
        %375 = vmatpush1.msra.mxu0 0.0
        %376 = vmatprep.subr.mxu0 0.0
        %377 = vmatpush1.msra.mxu0 0.0
        %378 = vmatprep.subr.mxu0 0.0
        %379 = vmatpush1.msra.mxu0 0.0
        %380 = vmatprep.subr.mxu0 0.0
        %381 = vmatpush1.msra.mxu0 0.0
        %382 = vmatprep.subr.mxu0 0.0
        %383 = vmatpush1.msra.mxu0 0.0
        %384 = vmatprep.subr.mxu0 0.0
        %385 = vmatpush1.msra.mxu0 0.0
        %386 = vmatprep.subr.mxu0 0.0
        %387 = vmatpush1.msra.mxu0 0.0
        %388 = vmatprep.subr.mxu0 0.0
        %389 = vmatpush1.msra.mxu0 0.0
        %390 = vmatprep.subr.mxu0 0.0
        %391 = vmatpush1.msra.mxu0 0.0
        %392 = vmatprep.subr.mxu0 0.0
        %393 = vmatpush1.msra.mxu0 0.0
        %394 = vmatprep.mubr.f32.mxu0 0.0
        %395 = vmatmul.mubr.f32.gmra.mrb[0].mxu0 %v307
        %v396 = vpop.f32.mrb[0].mxu0
        %v397 = vadd.f32 0.0, %v396
        %v398 = vpop.f32.mrb[0].mxu0
        %399 = vmatprep.mubr.f32.mxu0 0.0
        %400 = vmatmul.mubr.f32.gmra.mrb[0].mxu0 %v310
        %v401 = vpop.f32.mrb[0].mxu0
        %v402 = vadd.f32 0.0, %v401
        %v403 = vpop.f32.mrb[0].mxu0
        %404 = vmatprep.mubr.f32.mxu0 0.0
        %405 = vmatmul.mubr.f32.gmra.mrb[0].mxu0 %v313
        %v406 = vpop.f32.mrb[0].mxu0
        %v407 = vadd.f32 0.0, %v406
        %v408 = vpop.f32.mrb[0].mxu0
        %409 = vmatprep.mubr.f32.mxu0 0.0
        %410 = vmatmul.mubr.f32.gmra.mrb[0].mxu0 %v316
        %v411 = vpop.f32.mrb[0].mxu0
        %v412 = vadd.f32 0.0, %v411
        %v413 = vpop.f32.mrb[0].mxu0
        %414 = vmatprep.mubr.f32.mxu0 0.0
        %415 = vmatmul.mubr.f32.gmra.mrb[0].mxu0 %v319
        %v416 = vpop.f32.mrb[0].mxu0
        %v417 = vadd.f32 0.0, %v416
        %v418 = vpop.f32.mrb[0].mxu0
        %419 = vmatprep.mubr.f32.mxu0 0.0
        %420 = vmatmul.mubr.f32.gmra.mrb[0].mxu0 %v322
        %v421 = vpop.f32.mrb[0].mxu0
        %v422 = vadd.f32 0.0, %v421
        %v423 = vpop.f32.mrb[0].mxu0
        %424 = vmatprep.mubr.f32.mxu0 0.0
        %425 = vmatmul.mubr.f32.gmra.mrb[0].mxu0 %v325
        %v426 = vpop.f32.mrb[0].mxu0
        %v427 = vadd.f32 0.0, %v426
        %v428 = vpop.f32.mrb[0].mxu0
        %429 = vmatprep.mubr.f32.mxu0 0.0
        %430 = vmatmul.mubr.f32.gmra.mrb[0].mxu0 %v328
        %v431 = vpop.f32.mrb[0].mxu0
        %v432 = vadd.f32 0.0, %v431
        %v433 = vpop.f32.mrb[0].mxu0
        %434 = vdwg.mxu0
        %v435 = vxor.u32 %v397, 2147483648
        %v436 = vxor.u32 %v402, 2147483648
        %v437 = vxor.u32 %v407, 2147483648
        %v438 = vxor.u32 %v412, 2147483648
        %v439 = vxor.u32 %v417, 2147483648
        %v440 = vxor.u32 %v422, 2147483648
        %v441 = vxor.u32 %v427, 2147483648
        %v442 = vxor.u32 %v432, 2147483648
        %v443 = vmul.f32 %v435, 1.442695
        %v444 = vpow.pop %v443
        %v445 = vmul.f32 %v436, 1.442695
        %v446 = vpow.pop %v445
        %v447 = vmul.f32 %v437, 1.442695
        %v448 = vpow.pop %v447
        %v449 = vmul.f32 %v438, 1.442695
        %v450 = vpow.pop %v449
        %v451 = vmul.f32 %v439, 1.442695
        %v452 = vpow.pop %v451
        %v453 = vmul.f32 %v440, 1.442695
        %v454 = vpow.pop %v453
        %v455 = vmul.f32 %v441, 1.442695
        %v456 = vpow.pop %v455
        %v457 = vmul.f32 %v442, 1.442695
        %v458 = vpow.pop %v457
        %v459 = vadd.f32 %v444, 1.0
        %v460 = vadd.f32 %v446, 1.0
        %v461 = vadd.f32 %v448, 1.0
        %v462 = vadd.f32 %v450, 1.0
        %v463 = vadd.f32 %v452, 1.0
        %v464 = vadd.f32 %v454, 1.0
        %v465 = vadd.f32 %v456, 1.0
        %v466 = vadd.f32 %v458, 1.0
        %v467 = vrcp.pop %v459
        %v468 = vmul.f32 1.0, %v467
        %v469 = vrcp.pop %v460
        %v470 = vmul.f32 1.0, %v469
        %v471 = vrcp.pop %v461
        %v472 = vmul.f32 1.0, %v471
        %v473 = vrcp.pop %v462
        %v474 = vmul.f32 1.0, %v473
        %v475 = vrcp.pop %v463
        %v476 = vmul.f32 1.0, %v475
        %v477 = vrcp.pop %v464
        %v478 = vmul.f32 1.0, %v477
        %v479 = vrcp.pop %v465
        %v480 = vmul.f32 1.0, %v479
        %v481 = vrcp.pop %v466
        %v482 = vmul.f32 1.0, %v481
        %vm483 = vcmask 523264
        %484 = vst.msk [vmem:[%s161] sm:$0xff] %vm483, %v468
        %485 = vst.msk [vmem:[%s161 + $0x8] sm:$0xff] %vm483, %v470
        %486 = vst.msk [vmem:[%s161 + $0x10] sm:$0xff] %vm483, %v472
        %487 = vst.msk [vmem:[%s161 + $0x18] sm:$0xff] %vm483, %v474
        %488 = vst.msk [vmem:[%s161 + $0x20] sm:$0xff] %vm483, %v476
        %489 = vst.msk [vmem:[%s161 + $0x28] sm:$0xff] %vm483, %v478
        %490 = vst.msk [vmem:[%s161 + $0x30] sm:$0xff] %vm483, %v480
        %491 = vst.msk [vmem:[%s161 + $0x38] sm:$0xff] %vm483, %v482
        %s492 = sand.u32 %s93, 1
        %s493 = scalar_lea.sflag [#allocation3], %s492
        %s494 = sand.u32 %s93, 1
        %s495 = smul.addr %s494, 64
        %s496 = scalar_lea.vmem [#allocation2], %s495
        // Predicated region
        $region33: #{ldcnet_forward.13} parent=31 // pred_check
          %p497 = pneg %p103
        $region34: #{ldcnet_forward.13} parent=31 // pred_check_branch
          %499 = sbr.rel (%p497) target = $region36
        $region35: #{ldcnet_forward.13} parent=31 // pred_region
          %s501 = ssub.s32 1024, 1024
          %502 = vsyncadd %s493, %s501
          %s503 = smul.addr %s17, 8
          %s504 = smul.addr %s503, 128
          %s505 = scalar_lea.hbm %s3, %s504
          %s506 = sshll.u32 %s496, 4
          %s507 = int_to_ptr.vmem [resolvable:$true] %s506
          %512 = dma.vmem_to_hbm [thread:$0]  %s507, 1024, %s505, %s493, 128, 128, 8
        $region36: #{ldcnet_forward.13} parent=31 // pred_fallthru
          _
      $region32: #{ldcnet_forward.13} parent=5 // pred_fallthru
        _
      %p513 = scmp.le.s32.totalorder 2, %s12
      // Predicated region
      $region37: #{ldcnet_forward.13} parent=5 // pred_check
        %p514 = pneg %p513
      $region38: #{ldcnet_forward.13} parent=5 // pred_check_branch
        %516 = sbr.rel (%p514) target = $region40
      $region39: #{ldcnet_forward.13} parent=5 // pred_region
        %s517 = ssub.s32 %s12, 2
        // Predicated region
        $region41: #{ldcnet_forward.13} parent=39 // pred_check
          %p518 = pneg %p109
        $region42: #{ldcnet_forward.13} parent=39 // pred_check_branch
          %520 = sbr.rel (%p518) target = $region44
        $region43: #{ldcnet_forward.13} parent=39 // pred_region
          %s521 = sand.u32 %s94, 1
          %s522 = scalar_lea.sflag [#allocation3], %s521
          %s523 = sand.u32 %s94, 1
          %s524 = smul.addr %s523, 64
          %s525 = scalar_lea.vmem [#allocation2], %s524
          %526 = dma.done %s522, 1024
        $region44: #{ldcnet_forward.13} parent=39 // pred_fallthru
          _
      $region40: #{ldcnet_forward.13} parent=5 // pred_fallthru
        _
    $region6: #{ldcnet_forward.13} parent=1 // loop_footer
      %s16 = sadd.s32 1, %s12
    $region7: #{ldcnet_forward.13} parent=1 // loop_footer_branch
      %11 = sbr.rel target = $region3
    $region8: #{ldcnet_forward.13} parent=1 // loop_exit
      _
    %527 = vsyncpa [#allocation3], 1
    %s528 = scalar_lea.sflag [#allocation3], 1
    %529 = vsyncpa %s528, 1

// kernel: ldcnet_forward.12
$region0: #{ldcnet_forward.12}
  #allocation0 [shape = 'u32[]', space=smem, size = 0x4, offset = 0x4, fixed_abs, tag = 'smem constant byte address 0x4 - core index']
  #allocation1 [shape = 'u32[144,128]{1,0:T(1,128)}', space=vmem, size = 0x12000, scoped, tag = 'internal scratch']
  #allocation2 [shape = 'f32[100,16]{1,0:T(8,128)}', space=vmem, size = 0xd000, scoped, tag = 'scratch operand']
  #allocation3 [shape = 'f32[82,16]{1,0:T(8,128)}', space=vmem, size = 0xb000, scoped, tag = 'scratch operand']
  %s0 = inlined_call_operand.vmem [shape: bf16[2,64,16], index: 0, kind: input, shape index: {}]
  %s1 = inlined_call_operand.vmem [shape: bf16[2,64,128], index: 1, kind: input, shape index: {}]
  %s2 = inlined_call_operand.vmem [shape: f32[64,5], index: 2, kind: input, shape index: {}]
  %s3 = inlined_call_operand.vmem [shape: bf16[128,16], index: 3, kind: input, shape index: {}]
  %s4 = inlined_call_operand.vmem [shape: f32[18,8,16], index: 4, kind: input, shape index: {}]
  %s5 = inlined_call_operand.vmem [shape: f32[9,16,16], index: 5, kind: input, shape index: {}]
  %s6 = inlined_call_operand.vmem [shape: f32[16,1], index: 6, kind: input, shape index: {}]
  %s7 = inlined_call_operand.vmem [shape: f32[5,16], index: 7, kind: input, shape index: {}]
  %s8 = inlined_call_operand.vmem [shape: f32[2,64,1], index: 8, kind: output, shape index: {}]
  %s9 = sld [smem:[#allocation0]]
  $region65: #{ldcnet_forward.12} parent=0
    _
  %s11 = ssub.s32 1, %s9
  %s12 = scalar_select 0, %s11, %s9
  loop: start=0, step=1, limit=4
  $region2: #{ldcnet_forward.12} parent=0 // loop_pre_header
    _
  $region3: #{ldcnet_forward.12} parent=0 // loop_header
    %s14 = sphi 0, %s18
    %p15 = scmp.ge.s32.totalorder %s14, 4
    %s24 = sphi 0, %s26
    %s27 = sphi 0, %s24
    %s28 = sphi 0, %s27
    %s44 = sphi 0, %s28
    %s50 = sphi 0, %s52
    %s53 = sphi 0, %s50
    %s54 = sphi 0, %s53
    %s70 = sphi 0, %s54
    %s74 = sphi 0, %s74
    %s76 = sphi 0, %s74
    %s77 = sphi 0, %s76
    %s91 = sphi 0, %s77
    %s95 = sphi 0, %s95
    %s97 = sphi 0, %s95
    %s98 = sphi 0, %s97
    %s112 = sphi 0, %s98
    %s116 = sphi 0, %s116
    %s118 = sphi 0, %s116
    %s119 = sphi 0, %s118
    %s133 = sphi 0, %s119
    %s137 = sphi 0, %s137
    %s139 = sphi 0, %s137
    %s140 = sphi 0, %s139
    %s154 = sphi 0, %s140
    %s158 = sphi 0, %s158
    %s160 = sphi 0, %s158
    %s161 = sphi 0, %s160
    %s175 = sphi 0, %s161
    %s179 = sphi 0, %s179
    %s181 = sphi 0, %s179
    %s182 = sphi 0, %s181
    %s196 = sphi 0, %s182
    %s202 = sphi 0, %s204
    %s205 = sphi 0, %s202
    %s206 = sphi 0, %s205
    %s222 = sphi 0, %s206
  $region4: #{ldcnet_forward.12} parent=0 // loop_header_branch
    %17 = sbr.rel (%p15) target = $region8
  $region5: #{ldcnet_forward.12} parent=0 // loop_body
    %s19 = ssub.s32 %s14, 1
    %s20 = ssub.s32 %s14, 2
    %s21 = sadd.s32 %s14, 1
    %s22 = ssub.s32 %s14, %s21
    %p23 = scmp.eq.s32.totalorder %s22, 0
    %s25 = sadd.s32 %s24, 1
    %s26 = scalar_select %p23, %s24, %s25
    %p29 = pneg %p23
    %p30 = scmp.eq.s32.totalorder %s14, 1
    %p31 = por %p29, %p30
    %p32 = scmp.ne.s32.totalorder %s24, %s27
    %p33 = scmp.eq.s32.totalorder %s14, 0
    %p34 = por %p32, %p33
    %p35 = scmp.ne.s32.totalorder %s24, %s27
    %p36 = scmp.eq.s32.totalorder %s19, 1
    %p37 = por %p35, %p36
    %p38 = scmp.ne.s32.totalorder %s27, %s28
    %p39 = scmp.eq.s32.totalorder %s19, 0
    %p40 = por %p38, %p39
    %p41 = scmp.ne.s32.totalorder %s27, %s28
    %p42 = scmp.eq.s32.totalorder %s20, 1
    %p43 = por %p41, %p42
    %p45 = scmp.ne.s32.totalorder %s28, %s44
    %p46 = scmp.eq.s32.totalorder %s20, 0
    %p47 = por %p45, %p46
    %s48 = ssub.s32 %s14, %s21
    %p49 = scmp.eq.s32.totalorder %s48, 0
    %s51 = sadd.s32 %s50, 1
    %s52 = scalar_select %p49, %s50, %s51
    %p55 = pneg %p49
    %p56 = scmp.eq.s32.totalorder %s14, 1
    %p57 = por %p55, %p56
    %p58 = scmp.ne.s32.totalorder %s50, %s53
    %p59 = scmp.eq.s32.totalorder %s14, 0
    %p60 = por %p58, %p59
    %p61 = scmp.ne.s32.totalorder %s50, %s53
    %p62 = scmp.eq.s32.totalorder %s19, 1
    %p63 = por %p61, %p62
    %p64 = scmp.ne.s32.totalorder %s53, %s54
    %p65 = scmp.eq.s32.totalorder %s19, 0
    %p66 = por %p64, %p65
    %p67 = scmp.ne.s32.totalorder %s53, %s54
    %p68 = scmp.eq.s32.totalorder %s20, 1
    %p69 = por %p67, %p68
    %p71 = scmp.ne.s32.totalorder %s54, %s70
    %p72 = scmp.eq.s32.totalorder %s20, 0
    %p73 = por %p71, %p72
    %s75 = sadd.s32 %s74, 1
    %p78 = scmp.eq.s32.totalorder %s14, 1
    %p79 = scmp.ne.s32.totalorder %s74, %s76
    %p80 = scmp.eq.s32.totalorder %s14, 0
    %p81 = por %p79, %p80
    %p82 = scmp.ne.s32.totalorder %s74, %s76
    %p83 = scmp.eq.s32.totalorder %s19, 1
    %p84 = por %p82, %p83
    %p85 = scmp.ne.s32.totalorder %s76, %s77
    %p86 = scmp.eq.s32.totalorder %s19, 0
    %p87 = por %p85, %p86
    %p88 = scmp.ne.s32.totalorder %s76, %s77
    %p89 = scmp.eq.s32.totalorder %s20, 1
    %p90 = por %p88, %p89
    %p92 = scmp.ne.s32.totalorder %s77, %s91
    %p93 = scmp.eq.s32.totalorder %s20, 0
    %p94 = por %p92, %p93
    %s96 = sadd.s32 %s95, 1
    %p99 = scmp.eq.s32.totalorder %s14, 1
    %p100 = scmp.ne.s32.totalorder %s95, %s97
    %p101 = scmp.eq.s32.totalorder %s14, 0
    %p102 = por %p100, %p101
    %p103 = scmp.ne.s32.totalorder %s95, %s97
    %p104 = scmp.eq.s32.totalorder %s19, 1
    %p105 = por %p103, %p104
    %p106 = scmp.ne.s32.totalorder %s97, %s98
    %p107 = scmp.eq.s32.totalorder %s19, 0
    %p108 = por %p106, %p107
    %p109 = scmp.ne.s32.totalorder %s97, %s98
    %p110 = scmp.eq.s32.totalorder %s20, 1
    %p111 = por %p109, %p110
    %p113 = scmp.ne.s32.totalorder %s98, %s112
    %p114 = scmp.eq.s32.totalorder %s20, 0
    %p115 = por %p113, %p114
    %s117 = sadd.s32 %s116, 1
    %p120 = scmp.eq.s32.totalorder %s14, 1
    %p121 = scmp.ne.s32.totalorder %s116, %s118
    %p122 = scmp.eq.s32.totalorder %s14, 0
    %p123 = por %p121, %p122
    %p124 = scmp.ne.s32.totalorder %s116, %s118
    %p125 = scmp.eq.s32.totalorder %s19, 1
    %p126 = por %p124, %p125
    %p127 = scmp.ne.s32.totalorder %s118, %s119
    %p128 = scmp.eq.s32.totalorder %s19, 0
    %p129 = por %p127, %p128
    %p130 = scmp.ne.s32.totalorder %s118, %s119
    %p131 = scmp.eq.s32.totalorder %s20, 1
    %p132 = por %p130, %p131
    %p134 = scmp.ne.s32.totalorder %s119, %s133
    %p135 = scmp.eq.s32.totalorder %s20, 0
    %p136 = por %p134, %p135
    %s138 = sadd.s32 %s137, 1
    %p141 = scmp.eq.s32.totalorder %s14, 1
    %p142 = scmp.ne.s32.totalorder %s137, %s139
    %p143 = scmp.eq.s32.totalorder %s14, 0
    %p144 = por %p142, %p143
    %p145 = scmp.ne.s32.totalorder %s137, %s139
    %p146 = scmp.eq.s32.totalorder %s19, 1
    %p147 = por %p145, %p146
    %p148 = scmp.ne.s32.totalorder %s139, %s140
    %p149 = scmp.eq.s32.totalorder %s19, 0
    %p150 = por %p148, %p149
    %p151 = scmp.ne.s32.totalorder %s139, %s140
    %p152 = scmp.eq.s32.totalorder %s20, 1
    %p153 = por %p151, %p152
    %p155 = scmp.ne.s32.totalorder %s140, %s154
    %p156 = scmp.eq.s32.totalorder %s20, 0
    %p157 = por %p155, %p156
    %s159 = sadd.s32 %s158, 1
    %p162 = scmp.eq.s32.totalorder %s14, 1
    %p163 = scmp.ne.s32.totalorder %s158, %s160
    %p164 = scmp.eq.s32.totalorder %s14, 0
    %p165 = por %p163, %p164
    %p166 = scmp.ne.s32.totalorder %s158, %s160
    %p167 = scmp.eq.s32.totalorder %s19, 1
    %p168 = por %p166, %p167
    %p169 = scmp.ne.s32.totalorder %s160, %s161
    %p170 = scmp.eq.s32.totalorder %s19, 0
    %p171 = por %p169, %p170
    %p172 = scmp.ne.s32.totalorder %s160, %s161
    %p173 = scmp.eq.s32.totalorder %s20, 1
    %p174 = por %p172, %p173
    %p176 = scmp.ne.s32.totalorder %s161, %s175
    %p177 = scmp.eq.s32.totalorder %s20, 0
    %p178 = por %p176, %p177
    %s180 = sadd.s32 %s179, 1
    %p183 = scmp.eq.s32.totalorder %s14, 1
    %p184 = scmp.ne.s32.totalorder %s179, %s181
    %p185 = scmp.eq.s32.totalorder %s14, 0
    %p186 = por %p184, %p185
    %p187 = scmp.ne.s32.totalorder %s179, %s181
    %p188 = scmp.eq.s32.totalorder %s19, 1
    %p189 = por %p187, %p188
    %p190 = scmp.ne.s32.totalorder %s181, %s182
    %p191 = scmp.eq.s32.totalorder %s19, 0
    %p192 = por %p190, %p191
    %p193 = scmp.ne.s32.totalorder %s181, %s182
    %p194 = scmp.eq.s32.totalorder %s20, 1
    %p195 = por %p193, %p194
    %p197 = scmp.ne.s32.totalorder %s182, %s196
    %p198 = scmp.eq.s32.totalorder %s20, 0
    %p199 = por %p197, %p198
    %s200 = ssub.s32 %s14, %s21
    %p201 = scmp.eq.s32.totalorder %s200, 0
    %s203 = sadd.s32 %s202, 1
    %s204 = scalar_select %p201, %s202, %s203
    %p207 = pneg %p201
    %p208 = scmp.eq.s32.totalorder %s14, 1
    %p209 = por %p207, %p208
    %p210 = scmp.ne.s32.totalorder %s202, %s205
    %p211 = scmp.eq.s32.totalorder %s14, 0
    %p212 = por %p210, %p211
    %p213 = scmp.ne.s32.totalorder %s202, %s205
    %p214 = scmp.eq.s32.totalorder %s19, 1
    %p215 = por %p213, %p214
    %p216 = scmp.ne.s32.totalorder %s205, %s206
    %p217 = scmp.eq.s32.totalorder %s19, 0
    %p218 = por %p216, %p217
    %p219 = scmp.ne.s32.totalorder %s205, %s206
    %p220 = scmp.eq.s32.totalorder %s20, 1
    %p221 = por %p219, %p220
    %p223 = scmp.ne.s32.totalorder %s206, %s222
    %p224 = scmp.eq.s32.totalorder %s20, 0
    %p225 = por %p223, %p224
    %p226 = scmp.le.s32.totalorder 1, %s14
    %p227 = scmp.lt.s32.totalorder %s14, 3
    %p228 = pnand %p226, %p227
    %p229 = pneg %p228
    // Predicated region
    $region9: #{ldcnet_forward.12} parent=5 // pred_check
      _
    $region10: #{ldcnet_forward.12} parent=5 // pred_check_branch
      %231 = sbr.rel (%p228) target = $region12
    $region11: #{ldcnet_forward.12} parent=5 // pred_region
      %s232 = ssub.s32 %s14, 1
      // Predicated region
      $region13: #{ldcnet_forward.12} parent=11 // pred_check
        %p233 = pneg %p87
      $region14: #{ldcnet_forward.12} parent=11 // pred_check_branch
        %235 = sbr.rel (%p233) target = $region16
      $region15: #{ldcnet_forward.12} parent=11 // pred_region
        _
      $region16: #{ldcnet_forward.12} parent=11 // pred_fallthru
        _
      // Predicated region
      $region17: #{ldcnet_forward.12} parent=11 // pred_check
        %p236 = pneg %p108
      $region18: #{ldcnet_forward.12} parent=11 // pred_check_branch
        %238 = sbr.rel (%p236) target = $region20
      $region19: #{ldcnet_forward.12} parent=11 // pred_region
        _
      $region20: #{ldcnet_forward.12} parent=11 // pred_fallthru
        _
      // Predicated region
      $region21: #{ldcnet_forward.12} parent=11 // pred_check
        %p239 = pneg %p129
      $region22: #{ldcnet_forward.12} parent=11 // pred_check_branch
        %241 = sbr.rel (%p239) target = $region24
      $region23: #{ldcnet_forward.12} parent=11 // pred_region
        _
      $region24: #{ldcnet_forward.12} parent=11 // pred_fallthru
        _
      // Predicated region
      $region25: #{ldcnet_forward.12} parent=11 // pred_check
        %p242 = pneg %p150
      $region26: #{ldcnet_forward.12} parent=11 // pred_check_branch
        %244 = sbr.rel (%p242) target = $region28
      $region27: #{ldcnet_forward.12} parent=11 // pred_region
        _
      $region28: #{ldcnet_forward.12} parent=11 // pred_fallthru
        _
      // Predicated region
      $region29: #{ldcnet_forward.12} parent=11 // pred_check
        %p245 = pneg %p171
      $region30: #{ldcnet_forward.12} parent=11 // pred_check_branch
        %247 = sbr.rel (%p245) target = $region32
      $region31: #{ldcnet_forward.12} parent=11 // pred_region
        _
      $region32: #{ldcnet_forward.12} parent=11 // pred_fallthru
        _
      // Predicated region
      $region33: #{ldcnet_forward.12} parent=11 // pred_check
        %p248 = pneg %p192
      $region34: #{ldcnet_forward.12} parent=11 // pred_check_branch
        %250 = sbr.rel (%p248) target = $region36
      $region35: #{ldcnet_forward.12} parent=11 // pred_region
        _
      $region36: #{ldcnet_forward.12} parent=11 // pred_fallthru
        _
    $region12: #{ldcnet_forward.12} parent=5 // pred_fallthru
      _
    %p251 = scmp.lt.s32.totalorder %s14, 2
    // Predicated region
    $region37: #{ldcnet_forward.12} parent=5 // pred_check
      %p252 = pneg %p251
    $region38: #{ldcnet_forward.12} parent=5 // pred_check_branch
      %254 = sbr.rel (%p252) target = $region40
    $region39: #{ldcnet_forward.12} parent=5 // pred_region
      // Predicated region
      $region41: #{ldcnet_forward.12} parent=39 // pred_check
        %p255 = pneg %p34
      $region42: #{ldcnet_forward.12} parent=39 // pred_check_branch
        %257 = sbr.rel (%p255) target = $region44
      $region43: #{ldcnet_forward.12} parent=39 // pred_region
        %p258 = scmp.lt.s32.totalorder %s14, 1
        %s259 = scalar_select %p258, %s14, 1
        %s260 = smul.addr %s259, 8
        %s261 = smul.addr %s260, 4
        %s262 = scalar_lea.vmem %s0, %s261
      $region44: #{ldcnet_forward.12} parent=39 // pred_fallthru
        _
      // Predicated region
      $region45: #{ldcnet_forward.12} parent=39 // pred_check
        %p263 = pneg %p60
      $region46: #{ldcnet_forward.12} parent=39 // pred_check_branch
        %265 = sbr.rel (%p263) target = $region48
      $region47: #{ldcnet_forward.12} parent=39 // pred_region
        %p266 = scmp.lt.s32.totalorder %s14, 1
        %s267 = scalar_select %p266, %s14, 1
        %s268 = smul.addr %s267, 8
        %s269 = smul.addr %s268, 4
        %s270 = scalar_lea.vmem %s1, %s269
      $region48: #{ldcnet_forward.12} parent=39 // pred_fallthru
        _
    $region40: #{ldcnet_forward.12} parent=5 // pred_fallthru
      _
    %p271 = scmp.le.s32.totalorder 1, %s14
    %p272 = scmp.lt.s32.totalorder %s14, 3
    %p273 = pnand %p271, %p272
    %p274 = pneg %p273
    // Predicated region
    $region49: #{ldcnet_forward.12} parent=5 // pred_check
      _
    $region50: #{ldcnet_forward.12} parent=5 // pred_check_branch
      %276 = sbr.rel (%p273) target = $region52
    $region51: #{ldcnet_forward.12} parent=5 // pred_region
      %s277 = ssub.s32 %s14, 1
      %p278 = scmp.lt.s32.totalorder %s19, 1
      %s279 = scalar_select %p278, %s19, 1
      %s280 = smul.addr %s279, 8
      %s281 = smul.addr %s280, 4
      %s282 = scalar_lea.vmem %s0, %s281
      %p283 = pneg %p40
      %p284 = pneg %p37
      %p285 = scmp.lt.s32.totalorder %s19, 1
      %s286 = scalar_select %p285, %s19, 1
      %s287 = smul.addr %s286, 8
      %s288 = smul.addr %s287, 4
      %s289 = scalar_lea.vmem %s1, %s288
      %p290 = pneg %p66
      %p291 = pneg %p63
      %p292 = pneg %p87
      %p293 = pneg %p84
      %p294 = pneg %p108
      %p295 = pneg %p105
      %p296 = pneg %p129
      %p297 = pneg %p126
      %p298 = pneg %p150
      %p299 = pneg %p147
      %p300 = pneg %p171
      %p301 = pneg %p168
      %p302 = pneg %p192
      %p303 = pneg %p189
      %p304 = pneg %p218
      %p305 = pneg %p215
      %p306 = scmp.lt.s32.totalorder %s19, 1
      %s307 = scalar_select %p306, %s19, 1
      %s308 = smul.addr %s307, 8
      %s309 = smul.addr %s308, 8
      %s310 = scalar_lea.vmem %s8, %s309
      %p311 = scmp.lt.s32.totalorder %s19, 1
      %s312 = scalar_select %p311, %s19, 1
      %s313 = smul.addr %s312, 8
      %s314 = smul.addr %s313, 4
      %s315 = scalar_lea.vmem %s0, %s314
      %p316 = scmp.lt.s32.totalorder %s19, 1
      %s317 = scalar_select %p316, %s19, 1
      %s318 = smul.addr %s317, 8
      %s319 = smul.addr %s318, 4
      %s320 = scalar_lea.vmem %s1, %s319
      %p321 = scmp.lt.s32.totalorder %s19, 1
      %s322 = scalar_select %p321, %s19, 1
      %s323 = smul.addr %s322, 8
      %s324 = smul.addr %s323, 8
      %s325 = scalar_lea.vmem %s8, %s324
      %v327 = vld [vmem:[%s320] sm:$0xf]
      %v328 = vld [vmem:[%s320 + $0x4] sm:$0xf]
      %v329 = vld [vmem:[%s320 + $0x8] sm:$0xf]
      %v330 = vld [vmem:[%s320 + $0xc] sm:$0xf]
      %v331 = vld [vmem:[%s320 + $0x10] sm:$0xf]
      %v332 = vld [vmem:[%s320 + $0x14] sm:$0xf]
      %v333 = vld [vmem:[%s320 + $0x18] sm:$0xf]
      %v334 = vld [vmem:[%s320 + $0x1c] sm:$0xf]
      %v335 = vld [vmem:[%s3] sm:$0xf]
      %v336 = vld [vmem:[%s3 + $0x4] sm:$0xf]
      %v337 = vld [vmem:[%s3 + $0x8] sm:$0xf]
      %v338 = vld [vmem:[%s3 + $0xc] sm:$0xf]
      %v339 = vld [vmem:[%s3 + $0x10] sm:$0xf]
      %v340 = vld [vmem:[%s3 + $0x14] sm:$0xf]
      %v341 = vld [vmem:[%s3 + $0x18] sm:$0xf]
      %v342 = vld [vmem:[%s3 + $0x1c] sm:$0xf]
      %v343 = vld [vmem:[%s3 + $0x20] sm:$0xf]
      %v344 = vld [vmem:[%s3 + $0x24] sm:$0xf]
      %v345 = vld [vmem:[%s3 + $0x28] sm:$0xf]
      %v346 = vld [vmem:[%s3 + $0x2c] sm:$0xf]
      %v347 = vld [vmem:[%s3 + $0x30] sm:$0xf]
      %v348 = vld [vmem:[%s3 + $0x34] sm:$0xf]
      %v349 = vld [vmem:[%s3 + $0x38] sm:$0xf]
      %v350 = vld [vmem:[%s3 + $0x3c] sm:$0xf]
      %v351 = vld [vmem:[%s7 + $0x1] sm:$0x1]
      %v352 = vlaneseq
      %v353 = vshrl.u32 %v352, 7
      %v354 = vsub.s32 0, %v353
      %v355 = vrot.slane %v351, %v354
      %v364 = vunpack.c.l.b16 %v327
      %v365 = vunpack.c.l.b16 %v328
      %v366 = vunpack.c.l.b16 %v329
      %v367 = vunpack.c.l.b16 %v330
      %v368 = vunpack.c.l.b16 %v331
      %v369 = vunpack.c.l.b16 %v332
      %v370 = vunpack.c.l.b16 %v333
      %v371 = vunpack.c.l.b16 %v334
      %v372 = vpack.c.b16 %v365, %v364
      %v373 = vpack.c.b16 %v367, %v366
      %v374 = vpack.c.b16 %v369, %v368
      %v375 = vpack.c.b16 %v371, %v370
      %v396 = vunpack.c.l.b16 %v335
      %v397 = vunpack.c.l.b16 %v336
      %v398 = vunpack.c.l.b16 %v337
      %v399 = vunpack.c.l.b16 %v338
      %v400 = vunpack.c.l.b16 %v339
      %v401 = vunpack.c.l.b16 %v340
      %v402 = vunpack.c.l.b16 %v341
      %v403 = vunpack.c.l.b16 %v342
      %v404 = vunpack.c.l.b16 %v343
      %v405 = vunpack.c.l.b16 %v344
      %v406 = vunpack.c.l.b16 %v345
      %v407 = vunpack.c.l.b16 %v346
      %v408 = vunpack.c.l.b16 %v347
      %v409 = vunpack.c.l.b16 %v348
      %v410 = vunpack.c.l.b16 %v349
      %v411 = vunpack.c.l.b16 %v350
      %v412 = vpack.c.b16 %v397, %v396
      %v413 = vpack.c.b16 %v399, %v398
      %v414 = vpack.c.b16 %v401, %v400
      %v415 = vpack.c.b16 %v403, %v402
      %v416 = vpack.c.b16 %v405, %v404
      %v417 = vpack.c.b16 %v407, %v406
      %v418 = vpack.c.b16 %v409, %v408
      %v419 = vpack.c.b16 %v411, %v410
      %428 = vmatprep.subr.bf16.mxu0 0
      %429 = vmatpush1.bf16.msra.mxu0 %v412
      %430 = vmatprep.subr.bf16.mxu0 0
      %431 = vmatpush1.bf16.msra.mxu0 %v413
      %432 = vmatprep.subr.bf16.mxu0 0
      %433 = vmatpush1.bf16.msra.mxu0 %v414
      %434 = vmatprep.subr.bf16.mxu0 0
      %435 = vmatpush1.bf16.msra.mxu0 %v415
      %436 = vmatprep.subr.bf16.mxu0 0
      %437 = vmatpush1.bf16.msra.mxu0 %v416
      %438 = vmatprep.subr.bf16.mxu0 0
      %439 = vmatpush1.bf16.msra.mxu0 %v417
      %440 = vmatprep.subr.bf16.mxu0 0
      %441 = vmatpush1.bf16.msra.mxu0 %v418
      %442 = vmatprep.subr.bf16.mxu0 0
      %443 = vmatpush1.bf16.msra.mxu0 %v419
      %444 = vmatprep.subr.bf16.mxu0 0
      %445 = vmatpush1.bf16.msra.mxu0 0
      %446 = vmatprep.subr.bf16.mxu0 0
      %447 = vmatpush1.bf16.msra.mxu0 0
      %448 = vmatprep.subr.bf16.mxu0 0
      %449 = vmatpush1.bf16.msra.mxu0 0
      %450 = vmatprep.subr.bf16.mxu0 0
      %451 = vmatpush1.bf16.msra.mxu0 0
      %452 = vmatprep.subr.bf16.mxu0 0
      %453 = vmatpush1.bf16.msra.mxu0 0
      %454 = vmatprep.subr.bf16.mxu0 0
      %455 = vmatpush1.bf16.msra.mxu0 0
      %456 = vmatprep.subr.bf16.mxu0 0
      %457 = vmatpush1.bf16.msra.mxu0 0
      %458 = vmatprep.subr.bf16.mxu0 0
      %459 = vmatpush1.bf16.msra.mxu0 0
      %460 = vmatprep.mubr.bf16.mxu0 0
      %461 = vmatmul.mubr.bf16.gmra.mrb[0].mxu0 %v372
      %v462 = vpop.f32.mrb[0].mxu0
      %v463 = vadd.f32 %v355, %v462
      %v464 = vpop.f32.mrb[0].mxu0
      %v465 = vpop.f32.mrb[0].mxu0
      %v466 = vadd.f32 %v355, %v465
      %v467 = vpop.f32.mrb[0].mxu0
      %468 = vmatprep.mubr.bf16.mxu0 0
      %469 = vmatmul.mubr.bf16.gmra.mrb[0].mxu0 %v373
      %v470 = vpop.f32.mrb[0].mxu0
      %v471 = vadd.f32 %v355, %v470
      %v472 = vpop.f32.mrb[0].mxu0
      %v473 = vpop.f32.mrb[0].mxu0
      %v474 = vadd.f32 %v355, %v473
      %v475 = vpop.f32.mrb[0].mxu0
      %476 = vmatprep.mubr.bf16.mxu0 0
      %477 = vmatmul.mubr.bf16.gmra.mrb[0].mxu0 %v374
      %v478 = vpop.f32.mrb[0].mxu0
      %v479 = vadd.f32 %v355, %v478
      %v480 = vpop.f32.mrb[0].mxu0
      %v481 = vpop.f32.mrb[0].mxu0
      %v482 = vadd.f32 %v355, %v481
      %v483 = vpop.f32.mrb[0].mxu0
      %484 = vmatprep.mubr.bf16.mxu0 0
      %485 = vmatmul.mubr.bf16.gmra.mrb[0].mxu0 %v375
      %v486 = vpop.f32.mrb[0].mxu0
      %v487 = vadd.f32 %v355, %v486
      %v488 = vpop.f32.mrb[0].mxu0
      %v489 = vpop.f32.mrb[0].mxu0
      %v490 = vadd.f32 %v355, %v489
      %v491 = vpop.f32.mrb[0].mxu0
      %492 = vdwg.mxu0
      %vm493 = vcmask 130048
      %494 = vst.msk [vmem:[#allocation2] sm:$0xff] %vm493, 0.0
      %495 = vst.msk [vmem:[#allocation2 + $0x8] sm:$0xff] %vm493, 0.0
      %vm496 = vcmask 123904
      %497 = vst.msk [vmem:[#allocation2 + $0x10] sm:$0x3] %vm496, 0.0
      %498 = vst.msk [vmem:[#allocation2 + $0x52] sm:$0xff] %vm493, 0.0
      %499 = vst.msk [vmem:[#allocation2 + $0x5a] sm:$0xff] %vm493, 0.0
      %500 = vst.msk [vmem:[#allocation2 + $0x62] sm:$0x3] %vm496, 0.0
      %v501 = vld [vmem:[%s315] sm:$0xf]
      %v502 = vld [vmem:[%s315 + $0x4] sm:$0xf]
      %v503 = vld [vmem:[%s315 + $0x8] sm:$0xf]
      %v504 = vld [vmem:[%s315 + $0xc] sm:$0xf]
      %v505 = vld [vmem:[%s315 + $0x10] sm:$0xf]
      %v506 = vld [vmem:[%s315 + $0x14] sm:$0xf]
      %v507 = vld [vmem:[%s315 + $0x18] sm:$0xf]
      %v508 = vld [vmem:[%s315 + $0x1c] sm:$0xf]
      %v509 = vunpack.c.l.bf16 %v501
      %v510 = vunpack.c.l.bf16 %v502
      %v511 = vunpack.c.l.bf16 %v503
      %v512 = vunpack.c.l.bf16 %v504
      %v513 = vunpack.c.l.bf16 %v505
      %v514 = vunpack.c.l.bf16 %v506
      %v515 = vunpack.c.l.bf16 %v507
      %v516 = vunpack.c.l.bf16 %v508
      %517 = vst.msk [vmem:[#allocation2 + $0x12] sm:$0xff] %vm493, %v509
      %518 = vst.msk [vmem:[#allocation2 + $0x1a] sm:$0xff] %vm493, %v510
      %519 = vst.msk [vmem:[#allocation2 + $0x22] sm:$0xff] %vm493, %v511
      %520 = vst.msk [vmem:[#allocation2 + $0x2a] sm:$0xff] %vm493, %v512
      %521 = vst.msk [vmem:[#allocation2 + $0x32] sm:$0xff] %vm493, %v513
      %522 = vst.msk [vmem:[#allocation2 + $0x3a] sm:$0xff] %vm493, %v514
      %523 = vst.msk [vmem:[#allocation2 + $0x42] sm:$0xff] %vm493, %v515
      %524 = vst.msk [vmem:[#allocation2 + $0x4a] sm:$0xff] %vm493, %v516
      %v525 = vld [vmem:[#allocation2 + $0x9] sm:$0xff]
      %v526 = vld [vmem:[#allocation2 + $0x11] sm:$0xff]
      %v527 = vld [vmem:[#allocation2 + $0x19] sm:$0xff]
      %v528 = vld [vmem:[#allocation2 + $0x21] sm:$0xff]
      %v529 = vld [vmem:[#allocation2 + $0x29] sm:$0xff]
      %v530 = vld [vmem:[#allocation2 + $0x31] sm:$0xff]
      %v531 = vld [vmem:[#allocation2 + $0x39] sm:$0xff]
      %v532 = vld [vmem:[#allocation2 + $0x41] sm:$0xff]
      %v533 = vld [vmem:[%s2] sm:$0xff]
      %v534 = vld [vmem:[%s2 + $0x8] sm:$0xff]
      %v535 = vld [vmem:[%s2 + $0x10] sm:$0xff]
      %v536 = vld [vmem:[%s2 + $0x18] sm:$0xff]
      %v537 = vld [vmem:[%s2 + $0x20] sm:$0xff]
      %v538 = vld [vmem:[%s2 + $0x28] sm:$0xff]
      %v539 = vld [vmem:[%s2 + $0x30] sm:$0xff]
      %v540 = vld [vmem:[%s2 + $0x38] sm:$0xff]
      %542 = vset.pattern.permute.xlu0 1
      %543 = vperm.xlu0 %542, %v533
      %v544 = vpop.permute.xlu0 %543
      %547 = vset.pattern.permute.xlu0 1
      %548 = vperm.xlu0 %547, %v534
      %v549 = vpop.permute.xlu0 %548
      %552 = vset.pattern.permute.xlu0 1
      %553 = vperm.xlu0 %552, %v535
      %v554 = vpop.permute.xlu0 %553
      %557 = vset.pattern.permute.xlu0 1
      %558 = vperm.xlu0 %557, %v536
      %v559 = vpop.permute.xlu0 %558
      %562 = vset.pattern.permute.xlu0 1
      %563 = vperm.xlu0 %562, %v537
      %v564 = vpop.permute.xlu0 %563
      %567 = vset.pattern.permute.xlu0 1
      %568 = vperm.xlu0 %567, %v538
      %v569 = vpop.permute.xlu0 %568
      %572 = vset.pattern.permute.xlu0 1
      %573 = vperm.xlu0 %572, %v539
      %v574 = vpop.permute.xlu0 %573
      %577 = vset.pattern.permute.xlu0 1
      %578 = vperm.xlu0 %577, %v540
      %v579 = vpop.permute.xlu0 %578
      %v581 = vmul.f32 %v525, %v544
      %v582 = vmul.f32 %v526, %v549
      %v583 = vmul.f32 %v527, %v554
      %v584 = vmul.f32 %v528, %v559
      %v585 = vmul.f32 %v529, %v564
      %v586 = vmul.f32 %v530, %v569
      %v587 = vmul.f32 %v531, %v574
      %v588 = vmul.f32 %v532, %v579
      %v589 = vld [vmem:[%s4] sm:$0xff]
      %v590 = vld [vmem:[#allocation2] sm:$0xff]
      %v591 = vld [vmem:[#allocation2 + $0x8] sm:$0xff]
      %v592 = vld [vmem:[#allocation2 + $0x10] sm:$0xff]
      %v593 = vld [vmem:[#allocation2 + $0x18] sm:$0xff]
      %v594 = vld [vmem:[#allocation2 + $0x20] sm:$0xff]
      %v595 = vld [vmem:[#allocation2 + $0x28] sm:$0xff]
      %v596 = vld [vmem:[#allocation2 + $0x30] sm:$0xff]
      %v597 = vld [vmem:[#allocation2 + $0x38] sm:$0xff]
      %598 = vset.pattern.permute.xlu0 0
      %599 = vperm.xlu0 %598, %v533
      %v600 = vpop.permute.xlu0 %599
      %602 = vset.pattern.permute.xlu0 0
      %603 = vperm.xlu0 %602, %v534
      %v604 = vpop.permute.xlu0 %603
      %606 = vset.pattern.permute.xlu0 0
      %607 = vperm.xlu0 %606, %v535
      %v608 = vpop.permute.xlu0 %607
      %610 = vset.pattern.permute.xlu0 0
      %611 = vperm.xlu0 %610, %v536
      %v612 = vpop.permute.xlu0 %611
      %614 = vset.pattern.permute.xlu0 0
      %615 = vperm.xlu0 %614, %v537
      %v616 = vpop.permute.xlu0 %615
      %618 = vset.pattern.permute.xlu0 0
      %619 = vperm.xlu0 %618, %v538
      %v620 = vpop.permute.xlu0 %619
      %622 = vset.pattern.permute.xlu0 0
      %623 = vperm.xlu0 %622, %v539
      %v624 = vpop.permute.xlu0 %623
      %626 = vset.pattern.permute.xlu0 0
      %627 = vperm.xlu0 %626, %v540
      %v628 = vpop.permute.xlu0 %627
      %v630 = vmul.f32 %v590, %v600
      %v631 = vmul.f32 %v591, %v604
      %v632 = vmul.f32 %v592, %v608
      %v633 = vmul.f32 %v593, %v612
      %v634 = vmul.f32 %v594, %v616
      %v635 = vmul.f32 %v595, %v620
      %v636 = vmul.f32 %v596, %v624
      %v637 = vmul.f32 %v597, %v628
      %s638 = scalar_lea.vmem %s4, 72
      %v639 = vld [vmem:[%s638] sm:$0xff]
      %648 = vrot.lane.b32.xlu0 %v630, 120
      %v649 = vpop.permute.xlu0 %648
      %650 = vrot.lane.b32.xlu0 %v631, 120
      %v651 = vpop.permute.xlu0 %650
      %652 = vrot.lane.b32.xlu0 %v632, 120
      %v653 = vpop.permute.xlu0 %652
      %654 = vrot.lane.b32.xlu0 %v633, 120
      %v655 = vpop.permute.xlu0 %654
      %656 = vrot.lane.b32.xlu0 %v634, 120
      %v657 = vpop.permute.xlu0 %656
      %658 = vrot.lane.b32.xlu0 %v635, 120
      %v659 = vpop.permute.xlu0 %658
      %660 = vrot.lane.b32.xlu0 %v636, 120
      %v661 = vpop.permute.xlu0 %660
      %662 = vrot.lane.b32.xlu0 %v637, 120
      %v663 = vpop.permute.xlu0 %662
      %vm664 = vcmask 64512
      %v665 = vsel %vm664, %v649, 0
      %v667 = vsel %vm664, %v651, 0
      %v669 = vsel %vm664, %v653, 0
      %v671 = vsel %vm664, %v655, 0
      %v673 = vsel %vm664, %v657, 0
      %v675 = vsel %vm664, %v659, 0
      %v677 = vsel %vm664, %v661, 0
      %v679 = vsel %vm664, %v663, 0
      %681 = vmatprep.subr.mxu0 0.0
      %682 = vmatpush1.msra.mxu0 %v639
      %683 = vmatprep.subr.mxu0 0.0
      %684 = vmatpush1.msra.mxu0 0.0
      %685 = vmatprep.subr.mxu0 0.0
      %686 = vmatpush1.msra.mxu0 0.0
      %687 = vmatprep.subr.mxu0 0.0
      %688 = vmatpush1.msra.mxu0 0.0
      %689 = vmatprep.subr.mxu0 0.0
      %690 = vmatpush1.msra.mxu0 0.0
      %691 = vmatprep.subr.mxu0 0.0
      %692 = vmatpush1.msra.mxu0 0.0
      %693 = vmatprep.subr.mxu0 0.0
      %694 = vmatpush1.msra.mxu0 0.0
      %695 = vmatprep.subr.mxu0 0.0
      %696 = vmatpush1.msra.mxu0 0.0
      %697 = vmatprep.subr.mxu0 0.0
      %698 = vmatpush1.msra.mxu0 0.0
      %699 = vmatprep.subr.mxu0 0.0
      %700 = vmatpush1.msra.mxu0 0.0
      %701 = vmatprep.subr.mxu0 0.0
      %702 = vmatpush1.msra.mxu0 0.0
      %703 = vmatprep.subr.mxu0 0.0
      %704 = vmatpush1.msra.mxu0 0.0
      %705 = vmatprep.subr.mxu0 0.0
      %706 = vmatpush1.msra.mxu0 0.0
      %707 = vmatprep.subr.mxu0 0.0
      %708 = vmatpush1.msra.mxu0 0.0
      %709 = vmatprep.subr.mxu0 0.0
      %710 = vmatpush1.msra.mxu0 0.0
      %711 = vmatprep.subr.mxu0 0.0
      %712 = vmatpush1.msra.mxu0 0.0
      %713 = vmatprep.subr.mxu0 0.0
      %714 = vmatpush1.msra.mxu0 0.0
      %715 = vmatprep.subr.mxu0 0.0
      %716 = vmatpush1.msra.mxu0 0.0
      %717 = vmatprep.subr.mxu0 0.0
      %718 = vmatpush1.msra.mxu0 0.0
      %719 = vmatprep.subr.mxu0 0.0
      %720 = vmatpush1.msra.mxu0 0.0
      %721 = vmatprep.subr.mxu0 0.0
      %722 = vmatpush1.msra.mxu0 0.0
      %723 = vmatprep.subr.mxu0 0.0
      %724 = vmatpush1.msra.mxu0 0.0
      %725 = vmatprep.subr.mxu0 0.0
      %726 = vmatpush1.msra.mxu0 0.0
      %727 = vmatprep.subr.mxu0 0.0
      %728 = vmatpush1.msra.mxu0 0.0
      %729 = vmatprep.subr.mxu0 0.0
      %730 = vmatpush1.msra.mxu0 0.0
      %731 = vmatprep.subr.mxu0 0.0
      %732 = vmatpush1.msra.mxu0 0.0
      %733 = vmatprep.subr.mxu0 0.0
      %734 = vmatpush1.msra.mxu0 0.0
      %735 = vmatprep.subr.mxu0 0.0
      %736 = vmatpush1.msra.mxu0 0.0
      %737 = vmatprep.subr.mxu0 0.0
      %738 = vmatpush1.msra.mxu0 0.0
      %739 = vmatprep.subr.mxu0 0.0
      %740 = vmatpush1.msra.mxu0 0.0
      %741 = vmatprep.subr.mxu0 0.0
      %742 = vmatpush1.msra.mxu0 0.0
      %743 = vmatprep.subr.mxu0 0.0
      %744 = vmatpush1.msra.mxu0 0.0
      %745 = vmatprep.mubr.f32.mxu0 0.0
      %746 = vmatmul.mubr.f32.gmra.mrb[0].mxu0 %v665
      %v747 = vpop.f32.mrb[0].mxu0
      %v748 = vadd.f32 0.0, %v747
      %v749 = vpop.f32.mrb[0].mxu0
      %750 = vmatprep.mubr.f32.mxu0 0.0
      %751 = vmatmul.mubr.f32.gmra.mrb[0].mxu0 %v667
      %v752 = vpop.f32.mrb[0].mxu0
      %v753 = vadd.f32 0.0, %v752
      %v754 = vpop.f32.mrb[0].mxu0
      %755 = vmatprep.mubr.f32.mxu0 0.0
      %756 = vmatmul.mubr.f32.gmra.mrb[0].mxu0 %v669
      %v757 = vpop.f32.mrb[0].mxu0
      %v758 = vadd.f32 0.0, %v757
      %v759 = vpop.f32.mrb[0].mxu0
      %760 = vmatprep.mubr.f32.mxu0 0.0
      %761 = vmatmul.mubr.f32.gmra.mrb[0].mxu0 %v671
      %v762 = vpop.f32.mrb[0].mxu0
      %v763 = vadd.f32 0.0, %v762
      %v764 = vpop.f32.mrb[0].mxu0
      %765 = vmatprep.mubr.f32.mxu0 0.0
      %766 = vmatmul.mubr.f32.gmra.mrb[0].mxu0 %v673
      %v767 = vpop.f32.mrb[0].mxu0
      %v768 = vadd.f32 0.0, %v767
      %v769 = vpop.f32.mrb[0].mxu0
      %770 = vmatprep.mubr.f32.mxu0 0.0
      %771 = vmatmul.mubr.f32.gmra.mrb[0].mxu0 %v675
      %v772 = vpop.f32.mrb[0].mxu0
      %v773 = vadd.f32 0.0, %v772
      %v774 = vpop.f32.mrb[0].mxu0
      %775 = vmatprep.mubr.f32.mxu0 0.0
      %776 = vmatmul.mubr.f32.gmra.mrb[0].mxu0 %v677
      %v777 = vpop.f32.mrb[0].mxu0
      %v778 = vadd.f32 0.0, %v777
      %v779 = vpop.f32.mrb[0].mxu0
      %780 = vmatprep.mubr.f32.mxu0 0.0
      %781 = vmatmul.mubr.f32.gmra.mrb[0].mxu0 %v679
      %v782 = vpop.f32.mrb[0].mxu0
      %v783 = vadd.f32 0.0, %v782
      %v784 = vpop.f32.mrb[0].mxu0
      %785 = vdwg.mxu0
      %v787 = vsel %vm664, %v581, 0
      %v790 = vsel %vm664, %v582, 0
      %v793 = vsel %vm664, %v583, 0
      %v796 = vsel %vm664, %v584, 0
      %v799 = vsel %vm664, %v585, 0
      %v802 = vsel %vm664, %v586, 0
      %v805 = vsel %vm664, %v587, 0
      %v808 = vsel %vm664, %v588, 0
      %810 = vmatprep.subr.mxu0 0.0
      %811 = vmatpush1.msra.mxu0 %v589
      %812 = vmatprep.subr.mxu0 0.0
      %813 = vmatpush1.msra.mxu0 0.0
      %814 = vmatprep.subr.mxu0 0.0
      %815 = vmatpush1.msra.mxu0 0.0
      %816 = vmatprep.subr.mxu0 0.0
      %817 = vmatpush1.msra.mxu0 0.0
      %818 = vmatprep.subr.mxu0 0.0
      %819 = vmatpush1.msra.mxu0 0.0
      %820 = vmatprep.subr.mxu0 0.0
      %821 = vmatpush1.msra.mxu0 0.0
      %822 = vmatprep.subr.mxu0 0.0
      %823 = vmatpush1.msra.mxu0 0.0
      %824 = vmatprep.subr.mxu0 0.0
      %825 = vmatpush1.msra.mxu0 0.0
      %826 = vmatprep.subr.mxu0 0.0
      %827 = vmatpush1.msra.mxu0 0.0
      %828 = vmatprep.subr.mxu0 0.0
      %829 = vmatpush1.msra.mxu0 0.0
      %830 = vmatprep.subr.mxu0 0.0
      %831 = vmatpush1.msra.mxu0 0.0
      %832 = vmatprep.subr.mxu0 0.0
      %833 = vmatpush1.msra.mxu0 0.0
      %834 = vmatprep.subr.mxu0 0.0
      %835 = vmatpush1.msra.mxu0 0.0
      %836 = vmatprep.subr.mxu0 0.0
      %837 = vmatpush1.msra.mxu0 0.0
      %838 = vmatprep.subr.mxu0 0.0
      %839 = vmatpush1.msra.mxu0 0.0
      %840 = vmatprep.subr.mxu0 0.0
      %841 = vmatpush1.msra.mxu0 0.0
      %842 = vmatprep.subr.mxu0 0.0
      %843 = vmatpush1.msra.mxu0 0.0
      %844 = vmatprep.subr.mxu0 0.0
      %845 = vmatpush1.msra.mxu0 0.0
      %846 = vmatprep.subr.mxu0 0.0
      %847 = vmatpush1.msra.mxu0 0.0
      %848 = vmatprep.subr.mxu0 0.0
      %849 = vmatpush1.msra.mxu0 0.0
      %850 = vmatprep.subr.mxu0 0.0
      %851 = vmatpush1.msra.mxu0 0.0
      %852 = vmatprep.subr.mxu0 0.0
      %853 = vmatpush1.msra.mxu0 0.0
      %854 = vmatprep.subr.mxu0 0.0
      %855 = vmatpush1.msra.mxu0 0.0
      %856 = vmatprep.subr.mxu0 0.0
      %857 = vmatpush1.msra.mxu0 0.0
      %858 = vmatprep.subr.mxu0 0.0
      %859 = vmatpush1.msra.mxu0 0.0
      %860 = vmatprep.subr.mxu0 0.0
      %861 = vmatpush1.msra.mxu0 0.0
      %862 = vmatprep.subr.mxu0 0.0
      %863 = vmatpush1.msra.mxu0 0.0
      %864 = vmatprep.subr.mxu0 0.0
      %865 = vmatpush1.msra.mxu0 0.0
      %866 = vmatprep.subr.mxu0 0.0
      %867 = vmatpush1.msra.mxu0 0.0
      %868 = vmatprep.subr.mxu0 0.0
      %869 = vmatpush1.msra.mxu0 0.0
      %870 = vmatprep.subr.mxu0 0.0
      %871 = vmatpush1.msra.mxu0 0.0
      %872 = vmatprep.subr.mxu0 0.0
      %873 = vmatpush1.msra.mxu0 0.0
      %874 = vmatprep.mubr.f32.mxu0 0.0
      %875 = vmatmul.mubr.f32.gmra.mrb[0].mxu0 %v787
      %v876 = vpop.f32.mrb[0].mxu0
      %v877 = vadd.f32 %v748, %v876
      %v878 = vpop.f32.mrb[0].mxu0
      %879 = vmatprep.mubr.f32.mxu0 0.0
      %880 = vmatmul.mubr.f32.gmra.mrb[0].mxu0 %v790
      %v881 = vpop.f32.mrb[0].mxu0
      %v882 = vadd.f32 %v753, %v881
      %v883 = vpop.f32.mrb[0].mxu0
      %884 = vmatprep.mubr.f32.mxu0 0.0
      %885 = vmatmul.mubr.f32.gmra.mrb[0].mxu0 %v793
      %v886 = vpop.f32.mrb[0].mxu0
      %v887 = vadd.f32 %v758, %v886
      %v888 = vpop.f32.mrb[0].mxu0
      %889 = vmatprep.mubr.f32.mxu0 0.0
      %890 = vmatmul.mubr.f32.gmra.mrb[0].mxu0 %v796
      %v891 = vpop.f32.mrb[0].mxu0
      %v892 = vadd.f32 %v763, %v891
      %v893 = vpop.f32.mrb[0].mxu0
      %894 = vmatprep.mubr.f32.mxu0 0.0
      %895 = vmatmul.mubr.f32.gmra.mrb[0].mxu0 %v799
      %v896 = vpop.f32.mrb[0].mxu0
      %v897 = vadd.f32 %v768, %v896
      %v898 = vpop.f32.mrb[0].mxu0
      %899 = vmatprep.mubr.f32.mxu0 0.0
      %900 = vmatmul.mubr.f32.gmra.mrb[0].mxu0 %v802
      %v901 = vpop.f32.mrb[0].mxu0
      %v902 = vadd.f32 %v773, %v901
      %v903 = vpop.f32.mrb[0].mxu0
      %904 = vmatprep.mubr.f32.mxu0 0.0
      %905 = vmatmul.mubr.f32.gmra.mrb[0].mxu0 %v805
      %v906 = vpop.f32.mrb[0].mxu0
      %v907 = vadd.f32 %v778, %v906
      %v908 = vpop.f32.mrb[0].mxu0
      %909 = vmatprep.mubr.f32.mxu0 0.0
      %910 = vmatmul.mubr.f32.gmra.mrb[0].mxu0 %v808
      %v911 = vpop.f32.mrb[0].mxu0
      %v912 = vadd.f32 %v783, %v911
      %v913 = vpop.f32.mrb[0].mxu0
      %914 = vdwg.mxu0
      %v915 = vld [vmem:[#allocation2 + $0xa] sm:$0xff]
      %v916 = vld [vmem:[#allocation2 + $0x12] sm:$0xff]
      %v917 = vld [vmem:[#allocation2 + $0x1a] sm:$0xff]
      %v918 = vld [vmem:[#allocation2 + $0x22] sm:$0xff]
      %v919 = vld [vmem:[#allocation2 + $0x2a] sm:$0xff]
      %v920 = vld [vmem:[#allocation2 + $0x32] sm:$0xff]
      %v921 = vld [vmem:[#allocation2 + $0x3a] sm:$0xff]
      %v922 = vld [vmem:[#allocation2 + $0x42] sm:$0xff]
      %s923 = scalar_lea.vmem %s4, 8
      %v924 = vld [vmem:[%s923] sm:$0xff]
      %v926 = vsel %vm664, %v915, 0
      %v929 = vsel %vm664, %v916, 0
      %v932 = vsel %vm664, %v917, 0
      %v935 = vsel %vm664, %v918, 0
      %v938 = vsel %vm664, %v919, 0
      %v941 = vsel %vm664, %v920, 0
      %v944 = vsel %vm664, %v921, 0
      %v947 = vsel %vm664, %v922, 0
      %949 = vmatprep.subr.mxu0 0.0
      %950 = vmatpush1.msra.mxu0 %v924
      %951 = vmatprep.subr.mxu0 0.0
      %952 = vmatpush1.msra.mxu0 0.0
      %953 = vmatprep.subr.mxu0 0.0
      %954 = vmatpush1.msra.mxu0 0.0
      %955 = vmatprep.subr.mxu0 0.0
      %956 = vmatpush1.msra.mxu0 0.0
      %957 = vmatprep.subr.mxu0 0.0
      %958 = vmatpush1.msra.mxu0 0.0
      %959 = vmatprep.subr.mxu0 0.0
      %960 = vmatpush1.msra.mxu0 0.0
      %961 = vmatprep.subr.mxu0 0.0
      %962 = vmatpush1.msra.mxu0 0.0
      %963 = vmatprep.subr.mxu0 0.0
      %964 = vmatpush1.msra.mxu0 0.0
      %965 = vmatprep.subr.mxu0 0.0
      %966 = vmatpush1.msra.mxu0 0.0
      %967 = vmatprep.subr.mxu0 0.0
      %968 = vmatpush1.msra.mxu0 0.0
      %969 = vmatprep.subr.mxu0 0.0
      %970 = vmatpush1.msra.mxu0 0.0
      %971 = vmatprep.subr.mxu0 0.0
      %972 = vmatpush1.msra.mxu0 0.0
      %973 = vmatprep.subr.mxu0 0.0
      %974 = vmatpush1.msra.mxu0 0.0
      %975 = vmatprep.subr.mxu0 0.0
      %976 = vmatpush1.msra.mxu0 0.0
      %977 = vmatprep.subr.mxu0 0.0
      %978 = vmatpush1.msra.mxu0 0.0
      %979 = vmatprep.subr.mxu0 0.0
      %980 = vmatpush1.msra.mxu0 0.0
      %981 = vmatprep.subr.mxu0 0.0
      %982 = vmatpush1.msra.mxu0 0.0
      %983 = vmatprep.subr.mxu0 0.0
      %984 = vmatpush1.msra.mxu0 0.0
      %985 = vmatprep.subr.mxu0 0.0
      %986 = vmatpush1.msra.mxu0 0.0
      %987 = vmatprep.subr.mxu0 0.0
      %988 = vmatpush1.msra.mxu0 0.0
      %989 = vmatprep.subr.mxu0 0.0
      %990 = vmatpush1.msra.mxu0 0.0
      %991 = vmatprep.subr.mxu0 0.0
      %992 = vmatpush1.msra.mxu0 0.0
      %993 = vmatprep.subr.mxu0 0.0
      %994 = vmatpush1.msra.mxu0 0.0
      %995 = vmatprep.subr.mxu0 0.0
      %996 = vmatpush1.msra.mxu0 0.0
      %997 = vmatprep.subr.mxu0 0.0
      %998 = vmatpush1.msra.mxu0 0.0
      %999 = vmatprep.subr.mxu0 0.0
      %1000 = vmatpush1.msra.mxu0 0.0
      %1001 = vmatprep.subr.mxu0 0.0
      %1002 = vmatpush1.msra.mxu0 0.0
      %1003 = vmatprep.subr.mxu0 0.0
      %1004 = vmatpush1.msra.mxu0 0.0
      %1005 = vmatprep.subr.mxu0 0.0
      %1006 = vmatpush1.msra.mxu0 0.0
      %1007 = vmatprep.subr.mxu0 0.0
      %1008 = vmatpush1.msra.mxu0 0.0
      %1009 = vmatprep.subr.mxu0 0.0
      %1010 = vmatpush1.msra.mxu0 0.0
      %1011 = vmatprep.subr.mxu0 0.0
      %1012 = vmatpush1.msra.mxu0 0.0
      %1013 = vmatprep.mubr.f32.mxu0 0.0
      %1014 = vmatmul.mubr.f32.gmra.mrb[0].mxu0 %v926
      %v1015 = vpop.f32.mrb[0].mxu0
      %v1016 = vadd.f32 0.0, %v1015
      %v1017 = vpop.f32.mrb[0].mxu0
      %1018 = vmatprep.mubr.f32.mxu0 0.0
      %1019 = vmatmul.mubr.f32.gmra.mrb[0].mxu0 %v929
      %v1020 = vpop.f32.mrb[0].mxu0
      %v1021 = vadd.f32 0.0, %v1020
      %v1022 = vpop.f32.mrb[0].mxu0
      %1023 = vmatprep.mubr.f32.mxu0 0.0
      %1024 = vmatmul.mubr.f32.gmra.mrb[0].mxu0 %v932
      %v1025 = vpop.f32.mrb[0].mxu0
      %v1026 = vadd.f32 0.0, %v1025
      %v1027 = vpop.f32.mrb[0].mxu0
      %1028 = vmatprep.mubr.f32.mxu0 0.0
      %1029 = vmatmul.mubr.f32.gmra.mrb[0].mxu0 %v935
      %v1030 = vpop.f32.mrb[0].mxu0
      %v1031 = vadd.f32 0.0, %v1030
      %v1032 = vpop.f32.mrb[0].mxu0
      %1033 = vmatprep.mubr.f32.mxu0 0.0
      %1034 = vmatmul.mubr.f32.gmra.mrb[0].mxu0 %v938
      %v1035 = vpop.f32.mrb[0].mxu0
      %v1036 = vadd.f32 0.0, %v1035
      %v1037 = vpop.f32.mrb[0].mxu0
      %1038 = vmatprep.mubr.f32.mxu0 0.0
      %1039 = vmatmul.mubr.f32.gmra.mrb[0].mxu0 %v941
      %v1040 = vpop.f32.mrb[0].mxu0
      %v1041 = vadd.f32 0.0, %v1040
      %v1042 = vpop.f32.mrb[0].mxu0
      %1043 = vmatprep.mubr.f32.mxu0 0.0
      %1044 = vmatmul.mubr.f32.gmra.mrb[0].mxu0 %v944
      %v1045 = vpop.f32.mrb[0].mxu0
      %v1046 = vadd.f32 0.0, %v1045
      %v1047 = vpop.f32.mrb[0].mxu0
      %1048 = vmatprep.mubr.f32.mxu0 0.0
      %1049 = vmatmul.mubr.f32.gmra.mrb[0].mxu0 %v947
      %v1050 = vpop.f32.mrb[0].mxu0
      %v1051 = vadd.f32 0.0, %v1050
      %v1052 = vpop.f32.mrb[0].mxu0
      %1053 = vdwg.mxu0
      %v1054 = vadd.f32 %v877, %v1016
      %v1055 = vadd.f32 %v882, %v1021
      %v1056 = vadd.f32 %v887, %v1026
      %v1057 = vadd.f32 %v892, %v1031
      %v1058 = vadd.f32 %v897, %v1036
      %v1059 = vadd.f32 %v902, %v1041
      %v1060 = vadd.f32 %v907, %v1046
      %v1061 = vadd.f32 %v912, %v1051
      %v1062 = vld [vmem:[#allocation2 + $0x2] sm:$0xff]
      %v1063 = vld [vmem:[#allocation2 + $0xa] sm:$0xff]
      %v1064 = vld [vmem:[#allocation2 + $0x12] sm:$0xff]
      %v1065 = vld [vmem:[#allocation2 + $0x1a] sm:$0xff]
      %v1066 = vld [vmem:[#allocation2 + $0x22] sm:$0xff]
      %v1067 = vld [vmem:[#allocation2 + $0x2a] sm:$0xff]
      %v1068 = vld [vmem:[#allocation2 + $0x32] sm:$0xff]
      %v1069 = vld [vmem:[#allocation2 + $0x3a] sm:$0xff]
      %s1070 = scalar_lea.vmem %s4, 80
      %v1071 = vld [vmem:[%s1070] sm:$0xff]
      %1080 = vrot.lane.b32.xlu0 %v1062, 120
      %v1081 = vpop.permute.xlu0 %1080
      %1082 = vrot.lane.b32.xlu0 %v1063, 120
      %v1083 = vpop.permute.xlu0 %1082
      %1084 = vrot.lane.b32.xlu0 %v1064, 120
      %v1085 = vpop.permute.xlu0 %1084
      %1086 = vrot.lane.b32.xlu0 %v1065, 120
      %v1087 = vpop.permute.xlu0 %1086
      %1088 = vrot.lane.b32.xlu0 %v1066, 120
      %v1089 = vpop.permute.xlu0 %1088
      %1090 = vrot.lane.b32.xlu0 %v1067, 120
      %v1091 = vpop.permute.xlu0 %1090
      %1092 = vrot.lane.b32.xlu0 %v1068, 120
      %v1093 = vpop.permute.xlu0 %1092
      %1094 = vrot.lane.b32.xlu0 %v1069, 120
      %v1095 = vpop.permute.xlu0 %1094
      %v1096 = vsel %vm664, %v1081, 0
      %v1098 = vsel %vm664, %v1083, 0
      %v1100 = vsel %vm664, %v1085, 0
      %v1102 = vsel %vm664, %v1087, 0
      %v1104 = vsel %vm664, %v1089, 0
      %v1106 = vsel %vm664, %v1091, 0
      %v1108 = vsel %vm664, %v1093, 0
      %v1110 = vsel %vm664, %v1095, 0
      %1112 = vmatprep.subr.mxu0 0.0
      %1113 = vmatpush1.msra.mxu0 %v1071
      %1114 = vmatprep.subr.mxu0 0.0
      %1115 = vmatpush1.msra.mxu0 0.0
      %1116 = vmatprep.subr.mxu0 0.0
      %1117 = vmatpush1.msra.mxu0 0.0
      %1118 = vmatprep.subr.mxu0 0.0
      %1119 = vmatpush1.msra.mxu0 0.0
      %1120 = vmatprep.subr.mxu0 0.0
      %1121 = vmatpush1.msra.mxu0 0.0
      %1122 = vmatprep.subr.mxu0 0.0
      %1123 = vmatpush1.msra.mxu0 0.0
      %1124 = vmatprep.subr.mxu0 0.0
      %1125 = vmatpush1.msra.mxu0 0.0
      %1126 = vmatprep.subr.mxu0 0.0
      %1127 = vmatpush1.msra.mxu0 0.0
      %1128 = vmatprep.subr.mxu0 0.0
      %1129 = vmatpush1.msra.mxu0 0.0
      %1130 = vmatprep.subr.mxu0 0.0
      %1131 = vmatpush1.msra.mxu0 0.0
      %1132 = vmatprep.subr.mxu0 0.0
      %1133 = vmatpush1.msra.mxu0 0.0
      %1134 = vmatprep.subr.mxu0 0.0
      %1135 = vmatpush1.msra.mxu0 0.0
      %1136 = vmatprep.subr.mxu0 0.0
      %1137 = vmatpush1.msra.mxu0 0.0
      %1138 = vmatprep.subr.mxu0 0.0
      %1139 = vmatpush1.msra.mxu0 0.0
      %1140 = vmatprep.subr.mxu0 0.0
      %1141 = vmatpush1.msra.mxu0 0.0
      %1142 = vmatprep.subr.mxu0 0.0
      %1143 = vmatpush1.msra.mxu0 0.0
      %1144 = vmatprep.subr.mxu0 0.0
      %1145 = vmatpush1.msra.mxu0 0.0
      %1146 = vmatprep.subr.mxu0 0.0
      %1147 = vmatpush1.msra.mxu0 0.0
      %1148 = vmatprep.subr.mxu0 0.0
      %1149 = vmatpush1.msra.mxu0 0.0
      %1150 = vmatprep.subr.mxu0 0.0
      %1151 = vmatpush1.msra.mxu0 0.0
      %1152 = vmatprep.subr.mxu0 0.0
      %1153 = vmatpush1.msra.mxu0 0.0
      %1154 = vmatprep.subr.mxu0 0.0
      %1155 = vmatpush1.msra.mxu0 0.0
      %1156 = vmatprep.subr.mxu0 0.0
      %1157 = vmatpush1.msra.mxu0 0.0
      %1158 = vmatprep.subr.mxu0 0.0
      %1159 = vmatpush1.msra.mxu0 0.0
      %1160 = vmatprep.subr.mxu0 0.0
      %1161 = vmatpush1.msra.mxu0 0.0
      %1162 = vmatprep.subr.mxu0 0.0
      %1163 = vmatpush1.msra.mxu0 0.0
      %1164 = vmatprep.subr.mxu0 0.0
      %1165 = vmatpush1.msra.mxu0 0.0
      %1166 = vmatprep.subr.mxu0 0.0
      %1167 = vmatpush1.msra.mxu0 0.0
      %1168 = vmatprep.subr.mxu0 0.0
      %1169 = vmatpush1.msra.mxu0 0.0
      %1170 = vmatprep.subr.mxu0 0.0
      %1171 = vmatpush1.msra.mxu0 0.0
      %1172 = vmatprep.subr.mxu0 0.0
      %1173 = vmatpush1.msra.mxu0 0.0
      %1174 = vmatprep.subr.mxu0 0.0
      %1175 = vmatpush1.msra.mxu0 0.0
      %1176 = vmatprep.mubr.f32.mxu0 0.0
      %1177 = vmatmul.mubr.f32.gmra.mrb[0].mxu0 %v1096
      %v1178 = vpop.f32.mrb[0].mxu0
      %v1179 = vadd.f32 0.0, %v1178
      %v1180 = vpop.f32.mrb[0].mxu0
      %1181 = vmatprep.mubr.f32.mxu0 0.0
      %1182 = vmatmul.mubr.f32.gmra.mrb[0].mxu0 %v1098
      %v1183 = vpop.f32.mrb[0].mxu0
      %v1184 = vadd.f32 0.0, %v1183
      %v1185 = vpop.f32.mrb[0].mxu0
      %1186 = vmatprep.mubr.f32.mxu0 0.0
      %1187 = vmatmul.mubr.f32.gmra.mrb[0].mxu0 %v1100
      %v1188 = vpop.f32.mrb[0].mxu0
      %v1189 = vadd.f32 0.0, %v1188
      %v1190 = vpop.f32.mrb[0].mxu0
      %1191 = vmatprep.mubr.f32.mxu0 0.0
      %1192 = vmatmul.mubr.f32.gmra.mrb[0].mxu0 %v1102
      %v1193 = vpop.f32.mrb[0].mxu0
      %v1194 = vadd.f32 0.0, %v1193
      %v1195 = vpop.f32.mrb[0].mxu0
      %1196 = vmatprep.mubr.f32.mxu0 0.0
      %1197 = vmatmul.mubr.f32.gmra.mrb[0].mxu0 %v1104
      %v1198 = vpop.f32.mrb[0].mxu0
      %v1199 = vadd.f32 0.0, %v1198
      %v1200 = vpop.f32.mrb[0].mxu0
      %1201 = vmatprep.mubr.f32.mxu0 0.0
      %1202 = vmatmul.mubr.f32.gmra.mrb[0].mxu0 %v1106
      %v1203 = vpop.f32.mrb[0].mxu0
      %v1204 = vadd.f32 0.0, %v1203
      %v1205 = vpop.f32.mrb[0].mxu0
      %1206 = vmatprep.mubr.f32.mxu0 0.0
      %1207 = vmatmul.mubr.f32.gmra.mrb[0].mxu0 %v1108
      %v1208 = vpop.f32.mrb[0].mxu0
      %v1209 = vadd.f32 0.0, %v1208
      %v1210 = vpop.f32.mrb[0].mxu0
      %1211 = vmatprep.mubr.f32.mxu0 0.0
      %1212 = vmatmul.mubr.f32.gmra.mrb[0].mxu0 %v1110
      %v1213 = vpop.f32.mrb[0].mxu0
      %v1214 = vadd.f32 0.0, %v1213
      %v1215 = vpop.f32.mrb[0].mxu0
      %1216 = vdwg.mxu0
      %v1217 = vadd.f32 %v1054, %v1179
      %v1218 = vadd.f32 %v1055, %v1184
      %v1219 = vadd.f32 %v1056, %v1189
      %v1220 = vadd.f32 %v1057, %v1194
      %v1221 = vadd.f32 %v1058, %v1199
      %v1222 = vadd.f32 %v1059, %v1204
      %v1223 = vadd.f32 %v1060, %v1209
      %v1224 = vadd.f32 %v1061, %v1214
      %v1225 = vld [vmem:[#allocation2 + $0xb] sm:$0xff]
      %v1226 = vld [vmem:[#allocation2 + $0x13] sm:$0xff]
      %v1227 = vld [vmem:[#allocation2 + $0x1b] sm:$0xff]
      %v1228 = vld [vmem:[#allocation2 + $0x23] sm:$0xff]
      %v1229 = vld [vmem:[#allocation2 + $0x2b] sm:$0xff]
      %v1230 = vld [vmem:[#allocation2 + $0x33] sm:$0xff]
      %v1231 = vld [vmem:[#allocation2 + $0x3b] sm:$0xff]
      %v1232 = vld [vmem:[#allocation2 + $0x43] sm:$0xff]
      %1233 = vset.pattern.permute.xlu0 3
      %1234 = vperm.xlu0 %1233, %v533
      %v1235 = vpop.permute.xlu0 %1234
      %1237 = vset.pattern.permute.xlu0 3
      %1238 = vperm.xlu0 %1237, %v534
      %v1239 = vpop.permute.xlu0 %1238
      %1241 = vset.pattern.permute.xlu0 3
      %1242 = vperm.xlu0 %1241, %v535
      %v1243 = vpop.permute.xlu0 %1242
      %1245 = vset.pattern.permute.xlu0 3
      %1246 = vperm.xlu0 %1245, %v536
      %v1247 = vpop.permute.xlu0 %1246
      %1249 = vset.pattern.permute.xlu0 3
      %1250 = vperm.xlu0 %1249, %v537
      %v1251 = vpop.permute.xlu0 %1250
      %1253 = vset.pattern.permute.xlu0 3
      %1254 = vperm.xlu0 %1253, %v538
      %v1255 = vpop.permute.xlu0 %1254
      %1257 = vset.pattern.permute.xlu0 3
      %1258 = vperm.xlu0 %1257, %v539
      %v1259 = vpop.permute.xlu0 %1258
      %1261 = vset.pattern.permute.xlu0 3
      %1262 = vperm.xlu0 %1261, %v540
      %v1263 = vpop.permute.xlu0 %1262
      %v1265 = vmul.f32 %v1225, %v1235
      %v1266 = vmul.f32 %v1226, %v1239
      %v1267 = vmul.f32 %v1227, %v1243
      %v1268 = vmul.f32 %v1228, %v1247
      %v1269 = vmul.f32 %v1229, %v1251
      %v1270 = vmul.f32 %v1230, %v1255
      %v1271 = vmul.f32 %v1231, %v1259
      %v1272 = vmul.f32 %v1232, %v1263
      %s1273 = scalar_lea.vmem %s4, 16
      %v1274 = vld [vmem:[%s1273] sm:$0xff]
      %v1276 = vsel %vm664, %v1265, 0
      %v1279 = vsel %vm664, %v1266, 0
      %v1282 = vsel %vm664, %v1267, 0
      %v1285 = vsel %vm664, %v1268, 0
      %v1288 = vsel %vm664, %v1269, 0
      %v1291 = vsel %vm664, %v1270, 0
      %v1294 = vsel %vm664, %v1271, 0
      %v1297 = vsel %vm664, %v1272, 0
      %1299 = vmatprep.subr.mxu0 0.0
      %1300 = vmatpush1.msra.mxu0 %v1274
      %1301 = vmatprep.subr.mxu0 0.0
      %1302 = vmatpush1.msra.mxu0 0.0
      %1303 = vmatprep.subr.mxu0 0.0
      %1304 = vmatpush1.msra.mxu0 0.0
      %1305 = vmatprep.subr.mxu0 0.0
      %1306 = vmatpush1.msra.mxu0 0.0
      %1307 = vmatprep.subr.mxu0 0.0
      %1308 = vmatpush1.msra.mxu0 0.0
      %1309 = vmatprep.subr.mxu0 0.0
      %1310 = vmatpush1.msra.mxu0 0.0
      %1311 = vmatprep.subr.mxu0 0.0
      %1312 = vmatpush1.msra.mxu0 0.0
      %1313 = vmatprep.subr.mxu0 0.0
      %1314 = vmatpush1.msra.mxu0 0.0
      %1315 = vmatprep.subr.mxu0 0.0
      %1316 = vmatpush1.msra.mxu0 0.0
      %1317 = vmatprep.subr.mxu0 0.0
      %1318 = vmatpush1.msra.mxu0 0.0
      %1319 = vmatprep.subr.mxu0 0.0
      %1320 = vmatpush1.msra.mxu0 0.0
      %1321 = vmatprep.subr.mxu0 0.0
      %1322 = vmatpush1.msra.mxu0 0.0
      %1323 = vmatprep.subr.mxu0 0.0
      %1324 = vmatpush1.msra.mxu0 0.0
      %1325 = vmatprep.subr.mxu0 0.0
      %1326 = vmatpush1.msra.mxu0 0.0
      %1327 = vmatprep.subr.mxu0 0.0
      %1328 = vmatpush1.msra.mxu0 0.0
      %1329 = vmatprep.subr.mxu0 0.0
      %1330 = vmatpush1.msra.mxu0 0.0
      %1331 = vmatprep.subr.mxu0 0.0
      %1332 = vmatpush1.msra.mxu0 0.0
      %1333 = vmatprep.subr.mxu0 0.0
      %1334 = vmatpush1.msra.mxu0 0.0
      %1335 = vmatprep.subr.mxu0 0.0
      %1336 = vmatpush1.msra.mxu0 0.0
      %1337 = vmatprep.subr.mxu0 0.0
      %1338 = vmatpush1.msra.mxu0 0.0
      %1339 = vmatprep.subr.mxu0 0.0
      %1340 = vmatpush1.msra.mxu0 0.0
      %1341 = vmatprep.subr.mxu0 0.0
      %1342 = vmatpush1.msra.mxu0 0.0
      %1343 = vmatprep.subr.mxu0 0.0
      %1344 = vmatpush1.msra.mxu0 0.0
      %1345 = vmatprep.subr.mxu0 0.0
      %1346 = vmatpush1.msra.mxu0 0.0
      %1347 = vmatprep.subr.mxu0 0.0
      %1348 = vmatpush1.msra.mxu0 0.0
      %1349 = vmatprep.subr.mxu0 0.0
      %1350 = vmatpush1.msra.mxu0 0.0
      %1351 = vmatprep.subr.mxu0 0.0
      %1352 = vmatpush1.msra.mxu0 0.0
      %1353 = vmatprep.subr.mxu0 0.0
      %1354 = vmatpush1.msra.mxu0 0.0
      %1355 = vmatprep.subr.mxu0 0.0
      %1356 = vmatpush1.msra.mxu0 0.0
      %1357 = vmatprep.subr.mxu0 0.0
      %1358 = vmatpush1.msra.mxu0 0.0
      %1359 = vmatprep.subr.mxu0 0.0
      %1360 = vmatpush1.msra.mxu0 0.0
      %1361 = vmatprep.subr.mxu0 0.0
      %1362 = vmatpush1.msra.mxu0 0.0
      %1363 = vmatprep.mubr.f32.mxu0 0.0
      %1364 = vmatmul.mubr.f32.gmra.mrb[0].mxu0 %v1276
      %v1365 = vpop.f32.mrb[0].mxu0
      %v1366 = vadd.f32 0.0, %v1365
      %v1367 = vpop.f32.mrb[0].mxu0
      %1368 = vmatprep.mubr.f32.mxu0 0.0
      %1369 = vmatmul.mubr.f32.gmra.mrb[0].mxu0 %v1279
      %v1370 = vpop.f32.mrb[0].mxu0
      %v1371 = vadd.f32 0.0, %v1370
      %v1372 = vpop.f32.mrb[0].mxu0
      %1373 = vmatprep.mubr.f32.mxu0 0.0
      %1374 = vmatmul.mubr.f32.gmra.mrb[0].mxu0 %v1282
      %v1375 = vpop.f32.mrb[0].mxu0
      %v1376 = vadd.f32 0.0, %v1375
      %v1377 = vpop.f32.mrb[0].mxu0
      %1378 = vmatprep.mubr.f32.mxu0 0.0
      %1379 = vmatmul.mubr.f32.gmra.mrb[0].mxu0 %v1285
      %v1380 = vpop.f32.mrb[0].mxu0
      %v1381 = vadd.f32 0.0, %v1380
      %v1382 = vpop.f32.mrb[0].mxu0
      %1383 = vmatprep.mubr.f32.mxu0 0.0
      %1384 = vmatmul.mubr.f32.gmra.mrb[0].mxu0 %v1288
      %v1385 = vpop.f32.mrb[0].mxu0
      %v1386 = vadd.f32 0.0, %v1385
      %v1387 = vpop.f32.mrb[0].mxu0
      %1388 = vmatprep.mubr.f32.mxu0 0.0
      %1389 = vmatmul.mubr.f32.gmra.mrb[0].mxu0 %v1291
      %v1390 = vpop.f32.mrb[0].mxu0
      %v1391 = vadd.f32 0.0, %v1390
      %v1392 = vpop.f32.mrb[0].mxu0
      %1393 = vmatprep.mubr.f32.mxu0 0.0
      %1394 = vmatmul.mubr.f32.gmra.mrb[0].mxu0 %v1294
      %v1395 = vpop.f32.mrb[0].mxu0
      %v1396 = vadd.f32 0.0, %v1395
      %v1397 = vpop.f32.mrb[0].mxu0
      %1398 = vmatprep.mubr.f32.mxu0 0.0
      %1399 = vmatmul.mubr.f32.gmra.mrb[0].mxu0 %v1297
      %v1400 = vpop.f32.mrb[0].mxu0
      %v1401 = vadd.f32 0.0, %v1400
      %v1402 = vpop.f32.mrb[0].mxu0
      %1403 = vdwg.mxu0
      %v1404 = vadd.f32 %v1217, %v1366
      %v1405 = vadd.f32 %v1218, %v1371
      %v1406 = vadd.f32 %v1219, %v1376
      %v1407 = vadd.f32 %v1220, %v1381
      %v1408 = vadd.f32 %v1221, %v1386
      %v1409 = vadd.f32 %v1222, %v1391
      %v1410 = vadd.f32 %v1223, %v1396
      %v1411 = vadd.f32 %v1224, %v1401
      %v1412 = vld [vmem:[#allocation2 + $0x4] sm:$0xff]
      %v1413 = vld [vmem:[#allocation2 + $0xc] sm:$0xff]
      %v1414 = vld [vmem:[#allocation2 + $0x14] sm:$0xff]
      %v1415 = vld [vmem:[#allocation2 + $0x1c] sm:$0xff]
      %v1416 = vld [vmem:[#allocation2 + $0x24] sm:$0xff]
      %v1417 = vld [vmem:[#allocation2 + $0x2c] sm:$0xff]
      %v1418 = vld [vmem:[#allocation2 + $0x34] sm:$0xff]
      %v1419 = vld [vmem:[#allocation2 + $0x3c] sm:$0xff]
      %1420 = vset.pattern.permute.xlu0 4
      %1421 = vperm.xlu0 %1420, %v533
      %v1422 = vpop.permute.xlu0 %1421
      %1424 = vset.pattern.permute.xlu0 4
      %1425 = vperm.xlu0 %1424, %v534
      %v1426 = vpop.permute.xlu0 %1425
      %1428 = vset.pattern.permute.xlu0 4
      %1429 = vperm.xlu0 %1428, %v535
      %v1430 = vpop.permute.xlu0 %1429
      %1432 = vset.pattern.permute.xlu0 4
      %1433 = vperm.xlu0 %1432, %v536
      %v1434 = vpop.permute.xlu0 %1433
      %1436 = vset.pattern.permute.xlu0 4
      %1437 = vperm.xlu0 %1436, %v537
      %v1438 = vpop.permute.xlu0 %1437
      %1440 = vset.pattern.permute.xlu0 4
      %1441 = vperm.xlu0 %1440, %v538
      %v1442 = vpop.permute.xlu0 %1441
      %1444 = vset.pattern.permute.xlu0 4
      %1445 = vperm.xlu0 %1444, %v539
      %v1446 = vpop.permute.xlu0 %1445
      %1448 = vset.pattern.permute.xlu0 4
      %1449 = vperm.xlu0 %1448, %v540
      %v1450 = vpop.permute.xlu0 %1449
      %v1452 = vmul.f32 %v1412, %v1422
      %v1453 = vmul.f32 %v1413, %v1426
      %v1454 = vmul.f32 %v1414, %v1430
      %v1455 = vmul.f32 %v1415, %v1434
      %v1456 = vmul.f32 %v1416, %v1438
      %v1457 = vmul.f32 %v1417, %v1442
      %v1458 = vmul.f32 %v1418, %v1446
      %v1459 = vmul.f32 %v1419, %v1450
      %s1460 = scalar_lea.vmem %s4, 88
      %v1461 = vld [vmem:[%s1460] sm:$0xff]
      %1470 = vrot.lane.b32.xlu0 %v1452, 120
      %v1471 = vpop.permute.xlu0 %1470
      %1472 = vrot.lane.b32.xlu0 %v1453, 120
      %v1473 = vpop.permute.xlu0 %1472
      %1474 = vrot.lane.b32.xlu0 %v1454, 120
      %v1475 = vpop.permute.xlu0 %1474
      %1476 = vrot.lane.b32.xlu0 %v1455, 120
      %v1477 = vpop.permute.xlu0 %1476
      %1478 = vrot.lane.b32.xlu0 %v1456, 120
      %v1479 = vpop.permute.xlu0 %1478
      %1480 = vrot.lane.b32.xlu0 %v1457, 120
      %v1481 = vpop.permute.xlu0 %1480
      %1482 = vrot.lane.b32.xlu0 %v1458, 120
      %v1483 = vpop.permute.xlu0 %1482
      %1484 = vrot.lane.b32.xlu0 %v1459, 120
      %v1485 = vpop.permute.xlu0 %1484
      %v1486 = vsel %vm664, %v1471, 0
      %v1488 = vsel %vm664, %v1473, 0
      %v1490 = vsel %vm664, %v1475, 0
      %v1492 = vsel %vm664, %v1477, 0
      %v1494 = vsel %vm664, %v1479, 0
      %v1496 = vsel %vm664, %v1481, 0
      %v1498 = vsel %vm664, %v1483, 0
      %v1500 = vsel %vm664, %v1485, 0
      %1502 = vmatprep.subr.mxu0 0.0
      %1503 = vmatpush1.msra.mxu0 %v1461
      %1504 = vmatprep.subr.mxu0 0.0
      %1505 = vmatpush1.msra.mxu0 0.0
      %1506 = vmatprep.subr.mxu0 0.0
      %1507 = vmatpush1.msra.mxu0 0.0
      %1508 = vmatprep.subr.mxu0 0.0
      %1509 = vmatpush1.msra.mxu0 0.0
      %1510 = vmatprep.subr.mxu0 0.0
      %1511 = vmatpush1.msra.mxu0 0.0
      %1512 = vmatprep.subr.mxu0 0.0
      %1513 = vmatpush1.msra.mxu0 0.0
      %1514 = vmatprep.subr.mxu0 0.0
      %1515 = vmatpush1.msra.mxu0 0.0
      %1516 = vmatprep.subr.mxu0 0.0
      %1517 = vmatpush1.msra.mxu0 0.0
      %1518 = vmatprep.subr.mxu0 0.0
      %1519 = vmatpush1.msra.mxu0 0.0
      %1520 = vmatprep.subr.mxu0 0.0
      %1521 = vmatpush1.msra.mxu0 0.0
      %1522 = vmatprep.subr.mxu0 0.0
      %1523 = vmatpush1.msra.mxu0 0.0
      %1524 = vmatprep.subr.mxu0 0.0
      %1525 = vmatpush1.msra.mxu0 0.0
      %1526 = vmatprep.subr.mxu0 0.0
      %1527 = vmatpush1.msra.mxu0 0.0
      %1528 = vmatprep.subr.mxu0 0.0
      %1529 = vmatpush1.msra.mxu0 0.0
      %1530 = vmatprep.subr.mxu0 0.0
      %1531 = vmatpush1.msra.mxu0 0.0
      %1532 = vmatprep.subr.mxu0 0.0
      %1533 = vmatpush1.msra.mxu0 0.0
      %1534 = vmatprep.subr.mxu0 0.0
      %1535 = vmatpush1.msra.mxu0 0.0
      %1536 = vmatprep.subr.mxu0 0.0
      %1537 = vmatpush1.msra.mxu0 0.0
      %1538 = vmatprep.subr.mxu0 0.0
      %1539 = vmatpush1.msra.mxu0 0.0
      %1540 = vmatprep.subr.mxu0 0.0
      %1541 = vmatpush1.msra.mxu0 0.0
      %1542 = vmatprep.subr.mxu0 0.0
      %1543 = vmatpush1.msra.mxu0 0.0
      %1544 = vmatprep.subr.mxu0 0.0
      %1545 = vmatpush1.msra.mxu0 0.0
      %1546 = vmatprep.subr.mxu0 0.0
      %1547 = vmatpush1.msra.mxu0 0.0
      %1548 = vmatprep.subr.mxu0 0.0
      %1549 = vmatpush1.msra.mxu0 0.0
      %1550 = vmatprep.subr.mxu0 0.0
      %1551 = vmatpush1.msra.mxu0 0.0
      %1552 = vmatprep.subr.mxu0 0.0
      %1553 = vmatpush1.msra.mxu0 0.0
      %1554 = vmatprep.subr.mxu0 0.0
      %1555 = vmatpush1.msra.mxu0 0.0
      %1556 = vmatprep.subr.mxu0 0.0
      %1557 = vmatpush1.msra.mxu0 0.0
      %1558 = vmatprep.subr.mxu0 0.0
      %1559 = vmatpush1.msra.mxu0 0.0
      %1560 = vmatprep.subr.mxu0 0.0
      %1561 = vmatpush1.msra.mxu0 0.0
      %1562 = vmatprep.subr.mxu0 0.0
      %1563 = vmatpush1.msra.mxu0 0.0
      %1564 = vmatprep.subr.mxu0 0.0
      %1565 = vmatpush1.msra.mxu0 0.0
      %1566 = vmatprep.mubr.f32.mxu0 0.0
      %1567 = vmatmul.mubr.f32.gmra.mrb[0].mxu0 %v1486
      %v1568 = vpop.f32.mrb[0].mxu0
      %v1569 = vadd.f32 0.0, %v1568
      %v1570 = vpop.f32.mrb[0].mxu0
      %1571 = vmatprep.mubr.f32.mxu0 0.0
      %1572 = vmatmul.mubr.f32.gmra.mrb[0].mxu0 %v1488
      %v1573 = vpop.f32.mrb[0].mxu0
      %v1574 = vadd.f32 0.0, %v1573
      %v1575 = vpop.f32.mrb[0].mxu0
      %1576 = vmatprep.mubr.f32.mxu0 0.0
      %1577 = vmatmul.mubr.f32.gmra.mrb[0].mxu0 %v1490
      %v1578 = vpop.f32.mrb[0].mxu0
      %v1579 = vadd.f32 0.0, %v1578
      %v1580 = vpop.f32.mrb[0].mxu0
      %1581 = vmatprep.mubr.f32.mxu0 0.0
      %1582 = vmatmul.mubr.f32.gmra.mrb[0].mxu0 %v1492
      %v1583 = vpop.f32.mrb[0].mxu0
      %v1584 = vadd.f32 0.0, %v1583
      %v1585 = vpop.f32.mrb[0].mxu0
      %1586 = vmatprep.mubr.f32.mxu0 0.0
      %1587 = vmatmul.mubr.f32.gmra.mrb[0].mxu0 %v1494
      %v1588 = vpop.f32.mrb[0].mxu0
      %v1589 = vadd.f32 0.0, %v1588
      %v1590 = vpop.f32.mrb[0].mxu0
      %1591 = vmatprep.mubr.f32.mxu0 0.0
      %1592 = vmatmul.mubr.f32.gmra.mrb[0].mxu0 %v1496
      %v1593 = vpop.f32.mrb[0].mxu0
      %v1594 = vadd.f32 0.0, %v1593
      %v1595 = vpop.f32.mrb[0].mxu0
      %1596 = vmatprep.mubr.f32.mxu0 0.0
      %1597 = vmatmul.mubr.f32.gmra.mrb[0].mxu0 %v1498
      %v1598 = vpop.f32.mrb[0].mxu0
      %v1599 = vadd.f32 0.0, %v1598
      %v1600 = vpop.f32.mrb[0].mxu0
      %1601 = vmatprep.mubr.f32.mxu0 0.0
      %1602 = vmatmul.mubr.f32.gmra.mrb[0].mxu0 %v1500
      %v1603 = vpop.f32.mrb[0].mxu0
      %v1604 = vadd.f32 0.0, %v1603
      %v1605 = vpop.f32.mrb[0].mxu0
      %1606 = vdwg.mxu0
      %v1607 = vadd.f32 %v1404, %v1569
      %v1608 = vadd.f32 %v1405, %v1574
      %v1609 = vadd.f32 %v1406, %v1579
      %v1610 = vadd.f32 %v1407, %v1584
      %v1611 = vadd.f32 %v1408, %v1589
      %v1612 = vadd.f32 %v1409, %v1594
      %v1613 = vadd.f32 %v1410, %v1599
      %v1614 = vadd.f32 %v1411, %v1604
      %v1615 = vld [vmem:[#allocation2 + $0x11] sm:$0xff]
      %v1616 = vld [vmem:[#allocation2 + $0x19] sm:$0xff]
      %v1617 = vld [vmem:[#allocation2 + $0x21] sm:$0xff]
      %v1618 = vld [vmem:[#allocation2 + $0x29] sm:$0xff]
      %v1619 = vld [vmem:[#allocation2 + $0x31] sm:$0xff]
      %v1620 = vld [vmem:[#allocation2 + $0x39] sm:$0xff]
      %v1621 = vld [vmem:[#allocation2 + $0x41] sm:$0xff]
      %v1622 = vld [vmem:[#allocation2 + $0x49] sm:$0xff]
      %v1623 = vmul.f32 %v1615, %v544
      %v1624 = vmul.f32 %v1616, %v549
      %v1625 = vmul.f32 %v1617, %v554
      %v1626 = vmul.f32 %v1618, %v559
      %v1627 = vmul.f32 %v1619, %v564
      %v1628 = vmul.f32 %v1620, %v569
      %v1629 = vmul.f32 %v1621, %v574
      %v1630 = vmul.f32 %v1622, %v579
      %s1631 = scalar_lea.vmem %s4, 24
      %v1632 = vld [vmem:[%s1631] sm:$0xff]
      %v1634 = vsel %vm664, %v1623, 0
      %v1637 = vsel %vm664, %v1624, 0
      %v1640 = vsel %vm664, %v1625, 0
      %v1643 = vsel %vm664, %v1626, 0
      %v1646 = vsel %vm664, %v1627, 0
      %v1649 = vsel %vm664, %v1628, 0
      %v1652 = vsel %vm664, %v1629, 0
      %v1655 = vsel %vm664, %v1630, 0
      %1657 = vmatprep.subr.mxu0 0.0
      %1658 = vmatpush1.msra.mxu0 %v1632
      %1659 = vmatprep.subr.mxu0 0.0
      %1660 = vmatpush1.msra.mxu0 0.0
      %1661 = vmatprep.subr.mxu0 0.0
      %1662 = vmatpush1.msra.mxu0 0.0
      %1663 = vmatprep.subr.mxu0 0.0
      %1664 = vmatpush1.msra.mxu0 0.0
      %1665 = vmatprep.subr.mxu0 0.0
      %1666 = vmatpush1.msra.mxu0 0.0
      %1667 = vmatprep.subr.mxu0 0.0
      %1668 = vmatpush1.msra.mxu0 0.0
      %1669 = vmatprep.subr.mxu0 0.0
      %1670 = vmatpush1.msra.mxu0 0.0
      %1671 = vmatprep.subr.mxu0 0.0
      %1672 = vmatpush1.msra.mxu0 0.0
      %1673 = vmatprep.subr.mxu0 0.0
      %1674 = vmatpush1.msra.mxu0 0.0
      %1675 = vmatprep.subr.mxu0 0.0
      %1676 = vmatpush1.msra.mxu0 0.0
      %1677 = vmatprep.subr.mxu0 0.0
      %1678 = vmatpush1.msra.mxu0 0.0
      %1679 = vmatprep.subr.mxu0 0.0
      %1680 = vmatpush1.msra.mxu0 0.0
      %1681 = vmatprep.subr.mxu0 0.0
      %1682 = vmatpush1.msra.mxu0 0.0
      %1683 = vmatprep.subr.mxu0 0.0
      %1684 = vmatpush1.msra.mxu0 0.0
      %1685 = vmatprep.subr.mxu0 0.0
      %1686 = vmatpush1.msra.mxu0 0.0
      %1687 = vmatprep.subr.mxu0 0.0
      %1688 = vmatpush1.msra.mxu0 0.0
      %1689 = vmatprep.subr.mxu0 0.0
      %1690 = vmatpush1.msra.mxu0 0.0
      %1691 = vmatprep.subr.mxu0 0.0
      %1692 = vmatpush1.msra.mxu0 0.0
      %1693 = vmatprep.subr.mxu0 0.0
      %1694 = vmatpush1.msra.mxu0 0.0
      %1695 = vmatprep.subr.mxu0 0.0
      %1696 = vmatpush1.msra.mxu0 0.0
      %1697 = vmatprep.subr.mxu0 0.0
      %1698 = vmatpush1.msra.mxu0 0.0
      %1699 = vmatprep.subr.mxu0 0.0
      %1700 = vmatpush1.msra.mxu0 0.0
      %1701 = vmatprep.subr.mxu0 0.0
      %1702 = vmatpush1.msra.mxu0 0.0
      %1703 = vmatprep.subr.mxu0 0.0
      %1704 = vmatpush1.msra.mxu0 0.0
      %1705 = vmatprep.subr.mxu0 0.0
      %1706 = vmatpush1.msra.mxu0 0.0
      %1707 = vmatprep.subr.mxu0 0.0
      %1708 = vmatpush1.msra.mxu0 0.0
      %1709 = vmatprep.subr.mxu0 0.0
      %1710 = vmatpush1.msra.mxu0 0.0
      %1711 = vmatprep.subr.mxu0 0.0
      %1712 = vmatpush1.msra.mxu0 0.0
      %1713 = vmatprep.subr.mxu0 0.0
      %1714 = vmatpush1.msra.mxu0 0.0
      %1715 = vmatprep.subr.mxu0 0.0
      %1716 = vmatpush1.msra.mxu0 0.0
      %1717 = vmatprep.subr.mxu0 0.0
      %1718 = vmatpush1.msra.mxu0 0.0
      %1719 = vmatprep.subr.mxu0 0.0
      %1720 = vmatpush1.msra.mxu0 0.0
      %1721 = vmatprep.mubr.f32.mxu0 0.0
      %1722 = vmatmul.mubr.f32.gmra.mrb[0].mxu0 %v1634
      %v1723 = vpop.f32.mrb[0].mxu0
      %v1724 = vadd.f32 0.0, %v1723
      %v1725 = vpop.f32.mrb[0].mxu0
      %1726 = vmatprep.mubr.f32.mxu0 0.0
      %1727 = vmatmul.mubr.f32.gmra.mrb[0].mxu0 %v1637
      %v1728 = vpop.f32.mrb[0].mxu0
      %v1729 = vadd.f32 0.0, %v1728
      %v1730 = vpop.f32.mrb[0].mxu0
      %1731 = vmatprep.mubr.f32.mxu0 0.0
      %1732 = vmatmul.mubr.f32.gmra.mrb[0].mxu0 %v1640
      %v1733 = vpop.f32.mrb[0].mxu0
      %v1734 = vadd.f32 0.0, %v1733
      %v1735 = vpop.f32.mrb[0].mxu0
      %1736 = vmatprep.mubr.f32.mxu0 0.0
      %1737 = vmatmul.mubr.f32.gmra.mrb[0].mxu0 %v1643
      %v1738 = vpop.f32.mrb[0].mxu0
      %v1739 = vadd.f32 0.0, %v1738
      %v1740 = vpop.f32.mrb[0].mxu0
      %1741 = vmatprep.mubr.f32.mxu0 0.0
      %1742 = vmatmul.mubr.f32.gmra.mrb[0].mxu0 %v1646
      %v1743 = vpop.f32.mrb[0].mxu0
      %v1744 = vadd.f32 0.0, %v1743
      %v1745 = vpop.f32.mrb[0].mxu0
      %1746 = vmatprep.mubr.f32.mxu0 0.0
      %1747 = vmatmul.mubr.f32.gmra.mrb[0].mxu0 %v1649
      %v1748 = vpop.f32.mrb[0].mxu0
      %v1749 = vadd.f32 0.0, %v1748
      %v1750 = vpop.f32.mrb[0].mxu0
      %1751 = vmatprep.mubr.f32.mxu0 0.0
      %1752 = vmatmul.mubr.f32.gmra.mrb[0].mxu0 %v1652
      %v1753 = vpop.f32.mrb[0].mxu0
      %v1754 = vadd.f32 0.0, %v1753
      %v1755 = vpop.f32.mrb[0].mxu0
      %1756 = vmatprep.mubr.f32.mxu0 0.0
      %1757 = vmatmul.mubr.f32.gmra.mrb[0].mxu0 %v1655
      %v1758 = vpop.f32.mrb[0].mxu0
      %v1759 = vadd.f32 0.0, %v1758
      %v1760 = vpop.f32.mrb[0].mxu0
      %1761 = vdwg.mxu0
      %v1762 = vadd.f32 %v1607, %v1724
      %v1763 = vadd.f32 %v1608, %v1729
      %v1764 = vadd.f32 %v1609, %v1734
      %v1765 = vadd.f32 %v1610, %v1739
      %v1766 = vadd.f32 %v1611, %v1744
      %v1767 = vadd.f32 %v1612, %v1749
      %v1768 = vadd.f32 %v1613, %v1754
      %v1769 = vadd.f32 %v1614, %v1759
      %v1770 = vld [vmem:[#allocation2 + $0x10] sm:$0xff]
      %v1771 = vld [vmem:[#allocation2 + $0x18] sm:$0xff]
      %v1772 = vld [vmem:[#allocation2 + $0x20] sm:$0xff]
      %v1773 = vld [vmem:[#allocation2 + $0x28] sm:$0xff]
      %v1774 = vld [vmem:[#allocation2 + $0x30] sm:$0xff]
      %v1775 = vld [vmem:[#allocation2 + $0x38] sm:$0xff]
      %v1776 = vld [vmem:[#allocation2 + $0x40] sm:$0xff]
      %v1777 = vld [vmem:[#allocation2 + $0x48] sm:$0xff]
      %v1778 = vmul.f32 %v1770, %v600
      %v1779 = vmul.f32 %v1771, %v604
      %v1780 = vmul.f32 %v1772, %v608
      %v1781 = vmul.f32 %v1773, %v612
      %v1782 = vmul.f32 %v1774, %v616
      %v1783 = vmul.f32 %v1775, %v620
      %v1784 = vmul.f32 %v1776, %v624
      %v1785 = vmul.f32 %v1777, %v628
      %s1786 = scalar_lea.vmem %s4, 96
      %v1787 = vld [vmem:[%s1786] sm:$0xff]
      %1796 = vrot.lane.b32.xlu0 %v1778, 120
      %v1797 = vpop.permute.xlu0 %1796
      %1798 = vrot.lane.b32.xlu0 %v1779, 120
      %v1799 = vpop.permute.xlu0 %1798
      %1800 = vrot.lane.b32.xlu0 %v1780, 120
      %v1801 = vpop.permute.xlu0 %1800
      %1802 = vrot.lane.b32.xlu0 %v1781, 120
      %v1803 = vpop.permute.xlu0 %1802
      %1804 = vrot.lane.b32.xlu0 %v1782, 120
      %v1805 = vpop.permute.xlu0 %1804
      %1806 = vrot.lane.b32.xlu0 %v1783, 120
      %v1807 = vpop.permute.xlu0 %1806
      %1808 = vrot.lane.b32.xlu0 %v1784, 120
      %v1809 = vpop.permute.xlu0 %1808
      %1810 = vrot.lane.b32.xlu0 %v1785, 120
      %v1811 = vpop.permute.xlu0 %1810
      %v1812 = vsel %vm664, %v1797, 0
      %v1814 = vsel %vm664, %v1799, 0
      %v1816 = vsel %vm664, %v1801, 0
      %v1818 = vsel %vm664, %v1803, 0
      %v1820 = vsel %vm664, %v1805, 0
      %v1822 = vsel %vm664, %v1807, 0
      %v1824 = vsel %vm664, %v1809, 0
      %v1826 = vsel %vm664, %v1811, 0
      %1828 = vmatprep.subr.mxu0 0.0
      %1829 = vmatpush1.msra.mxu0 %v1787
      %1830 = vmatprep.subr.mxu0 0.0
      %1831 = vmatpush1.msra.mxu0 0.0
      %1832 = vmatprep.subr.mxu0 0.0
      %1833 = vmatpush1.msra.mxu0 0.0
      %1834 = vmatprep.subr.mxu0 0.0
      %1835 = vmatpush1.msra.mxu0 0.0
      %1836 = vmatprep.subr.mxu0 0.0
      %1837 = vmatpush1.msra.mxu0 0.0
      %1838 = vmatprep.subr.mxu0 0.0
      %1839 = vmatpush1.msra.mxu0 0.0
      %1840 = vmatprep.subr.mxu0 0.0
      %1841 = vmatpush1.msra.mxu0 0.0
      %1842 = vmatprep.subr.mxu0 0.0
      %1843 = vmatpush1.msra.mxu0 0.0
      %1844 = vmatprep.subr.mxu0 0.0
      %1845 = vmatpush1.msra.mxu0 0.0
      %1846 = vmatprep.subr.mxu0 0.0
      %1847 = vmatpush1.msra.mxu0 0.0
      %1848 = vmatprep.subr.mxu0 0.0
      %1849 = vmatpush1.msra.mxu0 0.0
      %1850 = vmatprep.subr.mxu0 0.0
      %1851 = vmatpush1.msra.mxu0 0.0
      %1852 = vmatprep.subr.mxu0 0.0
      %1853 = vmatpush1.msra.mxu0 0.0
      %1854 = vmatprep.subr.mxu0 0.0
      %1855 = vmatpush1.msra.mxu0 0.0
      %1856 = vmatprep.subr.mxu0 0.0
      %1857 = vmatpush1.msra.mxu0 0.0
      %1858 = vmatprep.subr.mxu0 0.0
      %1859 = vmatpush1.msra.mxu0 0.0
      %1860 = vmatprep.subr.mxu0 0.0
      %1861 = vmatpush1.msra.mxu0 0.0
      %1862 = vmatprep.subr.mxu0 0.0
      %1863 = vmatpush1.msra.mxu0 0.0
      %1864 = vmatprep.subr.mxu0 0.0
      %1865 = vmatpush1.msra.mxu0 0.0
      %1866 = vmatprep.subr.mxu0 0.0
      %1867 = vmatpush1.msra.mxu0 0.0
      %1868 = vmatprep.subr.mxu0 0.0
      %1869 = vmatpush1.msra.mxu0 0.0
      %1870 = vmatprep.subr.mxu0 0.0
      %1871 = vmatpush1.msra.mxu0 0.0
      %1872 = vmatprep.subr.mxu0 0.0
      %1873 = vmatpush1.msra.mxu0 0.0
      %1874 = vmatprep.subr.mxu0 0.0
      %1875 = vmatpush1.msra.mxu0 0.0
      %1876 = vmatprep.subr.mxu0 0.0
      %1877 = vmatpush1.msra.mxu0 0.0
      %1878 = vmatprep.subr.mxu0 0.0
      %1879 = vmatpush1.msra.mxu0 0.0
      %1880 = vmatprep.subr.mxu0 0.0
      %1881 = vmatpush1.msra.mxu0 0.0
      %1882 = vmatprep.subr.mxu0 0.0
      %1883 = vmatpush1.msra.mxu0 0.0
      %1884 = vmatprep.subr.mxu0 0.0
      %1885 = vmatpush1.msra.mxu0 0.0
      %1886 = vmatprep.subr.mxu0 0.0
      %1887 = vmatpush1.msra.mxu0 0.0
      %1888 = vmatprep.subr.mxu0 0.0
      %1889 = vmatpush1.msra.mxu0 0.0
      %1890 = vmatprep.subr.mxu0 0.0
      %1891 = vmatpush1.msra.mxu0 0.0
      %1892 = vmatprep.mubr.f32.mxu0 0.0
      %1893 = vmatmul.mubr.f32.gmra.mrb[0].mxu0 %v1812
      %v1894 = vpop.f32.mrb[0].mxu0
      %v1895 = vadd.f32 0.0, %v1894
      %v1896 = vpop.f32.mrb[0].mxu0
      %1897 = vmatprep.mubr.f32.mxu0 0.0
      %1898 = vmatmul.mubr.f32.gmra.mrb[0].mxu0 %v1814
      %v1899 = vpop.f32.mrb[0].mxu0
      %v1900 = vadd.f32 0.0, %v1899
      %v1901 = vpop.f32.mrb[0].mxu0
      %1902 = vmatprep.mubr.f32.mxu0 0.0
      %1903 = vmatmul.mubr.f32.gmra.mrb[0].mxu0 %v1816
      %v1904 = vpop.f32.mrb[0].mxu0
      %v1905 = vadd.f32 0.0, %v1904
      %v1906 = vpop.f32.mrb[0].mxu0
      %1907 = vmatprep.mubr.f32.mxu0 0.0
      %1908 = vmatmul.mubr.f32.gmra.mrb[0].mxu0 %v1818
      %v1909 = vpop.f32.mrb[0].mxu0
      %v1910 = vadd.f32 0.0, %v1909
      %v1911 = vpop.f32.mrb[0].mxu0
      %1912 = vmatprep.mubr.f32.mxu0 0.0
      %1913 = vmatmul.mubr.f32.gmra.mrb[0].mxu0 %v1820
      %v1914 = vpop.f32.mrb[0].mxu0
      %v1915 = vadd.f32 0.0, %v1914
      %v1916 = vpop.f32.mrb[0].mxu0
      %1917 = vmatprep.mubr.f32.mxu0 0.0
      %1918 = vmatmul.mubr.f32.gmra.mrb[0].mxu0 %v1822
      %v1919 = vpop.f32.mrb[0].mxu0
      %v1920 = vadd.f32 0.0, %v1919
      %v1921 = vpop.f32.mrb[0].mxu0
      %1922 = vmatprep.mubr.f32.mxu0 0.0
      %1923 = vmatmul.mubr.f32.gmra.mrb[0].mxu0 %v1824
      %v1924 = vpop.f32.mrb[0].mxu0
      %v1925 = vadd.f32 0.0, %v1924
      %v1926 = vpop.f32.mrb[0].mxu0
      %1927 = vmatprep.mubr.f32.mxu0 0.0
      %1928 = vmatmul.mubr.f32.gmra.mrb[0].mxu0 %v1826
      %v1929 = vpop.f32.mrb[0].mxu0
      %v1930 = vadd.f32 0.0, %v1929
      %v1931 = vpop.f32.mrb[0].mxu0
      %1932 = vdwg.mxu0
      %v1933 = vadd.f32 %v1762, %v1895
      %v1934 = vadd.f32 %v1763, %v1900
      %v1935 = vadd.f32 %v1764, %v1905
      %v1936 = vadd.f32 %v1765, %v1910
      %v1937 = vadd.f32 %v1766, %v1915
      %v1938 = vadd.f32 %v1767, %v1920
      %v1939 = vadd.f32 %v1768, %v1925
      %v1940 = vadd.f32 %v1769, %v1930
      %v1941 = vld [vmem:[#allocation2 + $0x12] sm:$0xff]
      %v1942 = vld [vmem:[#allocation2 + $0x1a] sm:$0xff]
      %v1943 = vld [vmem:[#allocation2 + $0x22] sm:$0xff]
      %v1944 = vld [vmem:[#allocation2 + $0x2a] sm:$0xff]
      %v1945 = vld [vmem:[#allocation2 + $0x32] sm:$0xff]
      %v1946 = vld [vmem:[#allocation2 + $0x3a] sm:$0xff]
      %v1947 = vld [vmem:[#allocation2 + $0x42] sm:$0xff]
      %v1948 = vld [vmem:[#allocation2 + $0x4a] sm:$0xff]
      %s1949 = scalar_lea.vmem %s4, 32
      %v1950 = vld [vmem:[%s1949] sm:$0xff]
      %v1952 = vsel %vm664, %v1941, 0
      %v1955 = vsel %vm664, %v1942, 0
      %v1958 = vsel %vm664, %v1943, 0
      %v1961 = vsel %vm664, %v1944, 0
      %v1964 = vsel %vm664, %v1945, 0
      %v1967 = vsel %vm664, %v1946, 0
      %v1970 = vsel %vm664, %v1947, 0
      %v1973 = vsel %vm664, %v1948, 0
      %1975 = vmatprep.subr.mxu0 0.0
      %1976 = vmatpush1.msra.mxu0 %v1950
      %1977 = vmatprep.subr.mxu0 0.0
      %1978 = vmatpush1.msra.mxu0 0.0
      %1979 = vmatprep.subr.mxu0 0.0
      %1980 = vmatpush1.msra.mxu0 0.0
      %1981 = vmatprep.subr.mxu0 0.0
      %1982 = vmatpush1.msra.mxu0 0.0
      %1983 = vmatprep.subr.mxu0 0.0
      %1984 = vmatpush1.msra.mxu0 0.0
      %1985 = vmatprep.subr.mxu0 0.0
      %1986 = vmatpush1.msra.mxu0 0.0
      %1987 = vmatprep.subr.mxu0 0.0
      %1988 = vmatpush1.msra.mxu0 0.0
      %1989 = vmatprep.subr.mxu0 0.0
      %1990 = vmatpush1.msra.mxu0 0.0
      %1991 = vmatprep.subr.mxu0 0.0
      %1992 = vmatpush1.msra.mxu0 0.0
      %1993 = vmatprep.subr.mxu0 0.0
      %1994 = vmatpush1.msra.mxu0 0.0
      %1995 = vmatprep.subr.mxu0 0.0
      %1996 = vmatpush1.msra.mxu0 0.0
      %1997 = vmatprep.subr.mxu0 0.0
      %1998 = vmatpush1.msra.mxu0 0.0
      %1999 = vmatprep.subr.mxu0 0.0
      %2000 = vmatpush1.msra.mxu0 0.0
      %2001 = vmatprep.subr.mxu0 0.0
      %2002 = vmatpush1.msra.mxu0 0.0
      %2003 = vmatprep.subr.mxu0 0.0
      %2004 = vmatpush1.msra.mxu0 0.0
      %2005 = vmatprep.subr.mxu0 0.0
      %2006 = vmatpush1.msra.mxu0 0.0
      %2007 = vmatprep.subr.mxu0 0.0
      %2008 = vmatpush1.msra.mxu0 0.0
      %2009 = vmatprep.subr.mxu0 0.0
      %2010 = vmatpush1.msra.mxu0 0.0
      %2011 = vmatprep.subr.mxu0 0.0
      %2012 = vmatpush1.msra.mxu0 0.0
      %2013 = vmatprep.subr.mxu0 0.0
      %2014 = vmatpush1.msra.mxu0 0.0
      %2015 = vmatprep.subr.mxu0 0.0
      %2016 = vmatpush1.msra.mxu0 0.0
      %2017 = vmatprep.subr.mxu0 0.0
      %2018 = vmatpush1.msra.mxu0 0.0
      %2019 = vmatprep.subr.mxu0 0.0
      %2020 = vmatpush1.msra.mxu0 0.0
      %2021 = vmatprep.subr.mxu0 0.0
      %2022 = vmatpush1.msra.mxu0 0.0
      %2023 = vmatprep.subr.mxu0 0.0
      %2024 = vmatpush1.msra.mxu0 0.0
      %2025 = vmatprep.subr.mxu0 0.0
      %2026 = vmatpush1.msra.mxu0 0.0
      %2027 = vmatprep.subr.mxu0 0.0
      %2028 = vmatpush1.msra.mxu0 0.0
      %2029 = vmatprep.subr.mxu0 0.0
      %2030 = vmatpush1.msra.mxu0 0.0
      %2031 = vmatprep.subr.mxu0 0.0
      %2032 = vmatpush1.msra.mxu0 0.0
      %2033 = vmatprep.subr.mxu0 0.0
      %2034 = vmatpush1.msra.mxu0 0.0
      %2035 = vmatprep.subr.mxu0 0.0
      %2036 = vmatpush1.msra.mxu0 0.0
      %2037 = vmatprep.subr.mxu0 0.0
      %2038 = vmatpush1.msra.mxu0 0.0
      %2039 = vmatprep.mubr.f32.mxu0 0.0
      %2040 = vmatmul.mubr.f32.gmra.mrb[0].mxu0 %v1952
      %v2041 = vpop.f32.mrb[0].mxu0
      %v2042 = vadd.f32 0.0, %v2041
      %v2043 = vpop.f32.mrb[0].mxu0
      %2044 = vmatprep.mubr.f32.mxu0 0.0
      %2045 = vmatmul.mubr.f32.gmra.mrb[0].mxu0 %v1955
      %v2046 = vpop.f32.mrb[0].mxu0
      %v2047 = vadd.f32 0.0, %v2046
      %v2048 = vpop.f32.mrb[0].mxu0
      %2049 = vmatprep.mubr.f32.mxu0 0.0
      %2050 = vmatmul.mubr.f32.gmra.mrb[0].mxu0 %v1958
      %v2051 = vpop.f32.mrb[0].mxu0
      %v2052 = vadd.f32 0.0, %v2051
      %v2053 = vpop.f32.mrb[0].mxu0
      %2054 = vmatprep.mubr.f32.mxu0 0.0
      %2055 = vmatmul.mubr.f32.gmra.mrb[0].mxu0 %v1961
      %v2056 = vpop.f32.mrb[0].mxu0
      %v2057 = vadd.f32 0.0, %v2056
      %v2058 = vpop.f32.mrb[0].mxu0
      %2059 = vmatprep.mubr.f32.mxu0 0.0
      %2060 = vmatmul.mubr.f32.gmra.mrb[0].mxu0 %v1964
      %v2061 = vpop.f32.mrb[0].mxu0
      %v2062 = vadd.f32 0.0, %v2061
      %v2063 = vpop.f32.mrb[0].mxu0
      %2064 = vmatprep.mubr.f32.mxu0 0.0
      %2065 = vmatmul.mubr.f32.gmra.mrb[0].mxu0 %v1967
      %v2066 = vpop.f32.mrb[0].mxu0
      %v2067 = vadd.f32 0.0, %v2066
      %v2068 = vpop.f32.mrb[0].mxu0
      %2069 = vmatprep.mubr.f32.mxu0 0.0
      %2070 = vmatmul.mubr.f32.gmra.mrb[0].mxu0 %v1970
      %v2071 = vpop.f32.mrb[0].mxu0
      %v2072 = vadd.f32 0.0, %v2071
      %v2073 = vpop.f32.mrb[0].mxu0
      %2074 = vmatprep.mubr.f32.mxu0 0.0
      %2075 = vmatmul.mubr.f32.gmra.mrb[0].mxu0 %v1973
      %v2076 = vpop.f32.mrb[0].mxu0
      %v2077 = vadd.f32 0.0, %v2076
      %v2078 = vpop.f32.mrb[0].mxu0
      %2079 = vdwg.mxu0
      %v2080 = vadd.f32 %v1933, %v2042
      %v2081 = vadd.f32 %v1934, %v2047
      %v2082 = vadd.f32 %v1935, %v2052
      %v2083 = vadd.f32 %v1936, %v2057
      %v2084 = vadd.f32 %v1937, %v2062
      %v2085 = vadd.f32 %v1938, %v2067
      %v2086 = vadd.f32 %v1939, %v2072
      %v2087 = vadd.f32 %v1940, %v2077
      %s2088 = scalar_lea.vmem %s4, 104
      %v2089 = vld [vmem:[%s2088] sm:$0xff]
      %2090 = vrot.lane.b32.xlu0 %v1941, 120
      %v2091 = vpop.permute.xlu0 %2090
      %2092 = vrot.lane.b32.xlu0 %v1942, 120
      %v2093 = vpop.permute.xlu0 %2092
      %2094 = vrot.lane.b32.xlu0 %v1943, 120
      %v2095 = vpop.permute.xlu0 %2094
      %2096 = vrot.lane.b32.xlu0 %v1944, 120
      %v2097 = vpop.permute.xlu0 %2096
      %2098 = vrot.lane.b32.xlu0 %v1945, 120
      %v2099 = vpop.permute.xlu0 %2098
      %2100 = vrot.lane.b32.xlu0 %v1946, 120
      %v2101 = vpop.permute.xlu0 %2100
      %2102 = vrot.lane.b32.xlu0 %v1947, 120
      %v2103 = vpop.permute.xlu0 %2102
      %2104 = vrot.lane.b32.xlu0 %v1948, 120
      %v2105 = vpop.permute.xlu0 %2104
      %v2106 = vsel %vm664, %v2091, 0
      %v2108 = vsel %vm664, %v2093, 0
      %v2110 = vsel %vm664, %v2095, 0
      %v2112 = vsel %vm664, %v2097, 0
      %v2114 = vsel %vm664, %v2099, 0
      %v2116 = vsel %vm664, %v2101, 0
      %v2118 = vsel %vm664, %v2103, 0
      %v2120 = vsel %vm664, %v2105, 0
      %2122 = vmatprep.subr.mxu0 0.0
      %2123 = vmatpush1.msra.mxu0 %v2089
      %2124 = vmatprep.subr.mxu0 0.0
      %2125 = vmatpush1.msra.mxu0 0.0
      %2126 = vmatprep.subr.mxu0 0.0
      %2127 = vmatpush1.msra.mxu0 0.0
      %2128 = vmatprep.subr.mxu0 0.0
      %2129 = vmatpush1.msra.mxu0 0.0
      %2130 = vmatprep.subr.mxu0 0.0
      %2131 = vmatpush1.msra.mxu0 0.0
      %2132 = vmatprep.subr.mxu0 0.0
      %2133 = vmatpush1.msra.mxu0 0.0
      %2134 = vmatprep.subr.mxu0 0.0
      %2135 = vmatpush1.msra.mxu0 0.0
      %2136 = vmatprep.subr.mxu0 0.0
      %2137 = vmatpush1.msra.mxu0 0.0
      %2138 = vmatprep.subr.mxu0 0.0
      %2139 = vmatpush1.msra.mxu0 0.0
      %2140 = vmatprep.subr.mxu0 0.0
      %2141 = vmatpush1.msra.mxu0 0.0
      %2142 = vmatprep.subr.mxu0 0.0
      %2143 = vmatpush1.msra.mxu0 0.0
      %2144 = vmatprep.subr.mxu0 0.0
      %2145 = vmatpush1.msra.mxu0 0.0
      %2146 = vmatprep.subr.mxu0 0.0
      %2147 = vmatpush1.msra.mxu0 0.0
      %2148 = vmatprep.subr.mxu0 0.0
      %2149 = vmatpush1.msra.mxu0 0.0
      %2150 = vmatprep.subr.mxu0 0.0
      %2151 = vmatpush1.msra.mxu0 0.0
      %2152 = vmatprep.subr.mxu0 0.0
      %2153 = vmatpush1.msra.mxu0 0.0
      %2154 = vmatprep.subr.mxu0 0.0
      %2155 = vmatpush1.msra.mxu0 0.0
      %2156 = vmatprep.subr.mxu0 0.0
      %2157 = vmatpush1.msra.mxu0 0.0
      %2158 = vmatprep.subr.mxu0 0.0
      %2159 = vmatpush1.msra.mxu0 0.0
      %2160 = vmatprep.subr.mxu0 0.0
      %2161 = vmatpush1.msra.mxu0 0.0
      %2162 = vmatprep.subr.mxu0 0.0
      %2163 = vmatpush1.msra.mxu0 0.0
      %2164 = vmatprep.subr.mxu0 0.0
      %2165 = vmatpush1.msra.mxu0 0.0
      %2166 = vmatprep.subr.mxu0 0.0
      %2167 = vmatpush1.msra.mxu0 0.0
      %2168 = vmatprep.subr.mxu0 0.0
      %2169 = vmatpush1.msra.mxu0 0.0
      %2170 = vmatprep.subr.mxu0 0.0
      %2171 = vmatpush1.msra.mxu0 0.0
      %2172 = vmatprep.subr.mxu0 0.0
      %2173 = vmatpush1.msra.mxu0 0.0
      %2174 = vmatprep.subr.mxu0 0.0
      %2175 = vmatpush1.msra.mxu0 0.0
      %2176 = vmatprep.subr.mxu0 0.0
      %2177 = vmatpush1.msra.mxu0 0.0
      %2178 = vmatprep.subr.mxu0 0.0
      %2179 = vmatpush1.msra.mxu0 0.0
      %2180 = vmatprep.subr.mxu0 0.0
      %2181 = vmatpush1.msra.mxu0 0.0
      %2182 = vmatprep.subr.mxu0 0.0
      %2183 = vmatpush1.msra.mxu0 0.0
      %2184 = vmatprep.subr.mxu0 0.0
      %2185 = vmatpush1.msra.mxu0 0.0
      %2186 = vmatprep.mubr.f32.mxu0 0.0
      %2187 = vmatmul.mubr.f32.gmra.mrb[0].mxu0 %v2106
      %v2188 = vpop.f32.mrb[0].mxu0
      %v2189 = vadd.f32 0.0, %v2188
      %v2190 = vpop.f32.mrb[0].mxu0
      %2191 = vmatprep.mubr.f32.mxu0 0.0
      %2192 = vmatmul.mubr.f32.gmra.mrb[0].mxu0 %v2108
      %v2193 = vpop.f32.mrb[0].mxu0
      %v2194 = vadd.f32 0.0, %v2193
      %v2195 = vpop.f32.mrb[0].mxu0
      %2196 = vmatprep.mubr.f32.mxu0 0.0
      %2197 = vmatmul.mubr.f32.gmra.mrb[0].mxu0 %v2110
      %v2198 = vpop.f32.mrb[0].mxu0
      %v2199 = vadd.f32 0.0, %v2198
      %v2200 = vpop.f32.mrb[0].mxu0
      %2201 = vmatprep.mubr.f32.mxu0 0.0
      %2202 = vmatmul.mubr.f32.gmra.mrb[0].mxu0 %v2112
      %v2203 = vpop.f32.mrb[0].mxu0
      %v2204 = vadd.f32 0.0, %v2203
      %v2205 = vpop.f32.mrb[0].mxu0
      %2206 = vmatprep.mubr.f32.mxu0 0.0
      %2207 = vmatmul.mubr.f32.gmra.mrb[0].mxu0 %v2114
      %v2208 = vpop.f32.mrb[0].mxu0
      %v2209 = vadd.f32 0.0, %v2208
      %v2210 = vpop.f32.mrb[0].mxu0
      %2211 = vmatprep.mubr.f32.mxu0 0.0
      %2212 = vmatmul.mubr.f32.gmra.mrb[0].mxu0 %v2116
      %v2213 = vpop.f32.mrb[0].mxu0
      %v2214 = vadd.f32 0.0, %v2213
      %v2215 = vpop.f32.mrb[0].mxu0
      %2216 = vmatprep.mubr.f32.mxu0 0.0
      %2217 = vmatmul.mubr.f32.gmra.mrb[0].mxu0 %v2118
      %v2218 = vpop.f32.mrb[0].mxu0
      %v2219 = vadd.f32 0.0, %v2218
      %v2220 = vpop.f32.mrb[0].mxu0
      %2221 = vmatprep.mubr.f32.mxu0 0.0
      %2222 = vmatmul.mubr.f32.gmra.mrb[0].mxu0 %v2120
      %v2223 = vpop.f32.mrb[0].mxu0
      %v2224 = vadd.f32 0.0, %v2223
      %v2225 = vpop.f32.mrb[0].mxu0
      %2226 = vdwg.mxu0
      %v2227 = vadd.f32 %v2080, %v2189
      %v2228 = vadd.f32 %v2081, %v2194
      %v2229 = vadd.f32 %v2082, %v2199
      %v2230 = vadd.f32 %v2083, %v2204
      %v2231 = vadd.f32 %v2084, %v2209
      %v2232 = vadd.f32 %v2085, %v2214
      %v2233 = vadd.f32 %v2086, %v2219
      %v2234 = vadd.f32 %v2087, %v2224
      %v2235 = vld [vmem:[#allocation2 + $0x13] sm:$0xff]
      %v2236 = vld [vmem:[#allocation2 + $0x1b] sm:$0xff]
      %v2237 = vld [vmem:[#allocation2 + $0x23] sm:$0xff]
      %v2238 = vld [vmem:[#allocation2 + $0x2b] sm:$0xff]
      %v2239 = vld [vmem:[#allocation2 + $0x33] sm:$0xff]
      %v2240 = vld [vmem:[#allocation2 + $0x3b] sm:$0xff]
      %v2241 = vld [vmem:[#allocation2 + $0x43] sm:$0xff]
      %v2242 = vld [vmem:[#allocation2 + $0x4b] sm:$0xff]
      %v2243 = vmul.f32 %v2235, %v1235
      %v2244 = vmul.f32 %v2236, %v1239
      %v2245 = vmul.f32 %v2237, %v1243
      %v2246 = vmul.f32 %v2238, %v1247
      %v2247 = vmul.f32 %v2239, %v1251
      %v2248 = vmul.f32 %v2240, %v1255
      %v2249 = vmul.f32 %v2241, %v1259
      %v2250 = vmul.f32 %v2242, %v1263
      %s2251 = scalar_lea.vmem %s4, 40
      %v2252 = vld [vmem:[%s2251] sm:$0xff]
      %v2254 = vsel %vm664, %v2243, 0
      %v2257 = vsel %vm664, %v2244, 0
      %v2260 = vsel %vm664, %v2245, 0
      %v2263 = vsel %vm664, %v2246, 0
      %v2266 = vsel %vm664, %v2247, 0
      %v2269 = vsel %vm664, %v2248, 0
      %v2272 = vsel %vm664, %v2249, 0
      %v2275 = vsel %vm664, %v2250, 0
      %2277 = vmatprep.subr.mxu0 0.0
      %2278 = vmatpush1.msra.mxu0 %v2252
      %2279 = vmatprep.subr.mxu0 0.0
      %2280 = vmatpush1.msra.mxu0 0.0
      %2281 = vmatprep.subr.mxu0 0.0
      %2282 = vmatpush1.msra.mxu0 0.0
      %2283 = vmatprep.subr.mxu0 0.0
      %2284 = vmatpush1.msra.mxu0 0.0
      %2285 = vmatprep.subr.mxu0 0.0
      %2286 = vmatpush1.msra.mxu0 0.0
      %2287 = vmatprep.subr.mxu0 0.0
      %2288 = vmatpush1.msra.mxu0 0.0
      %2289 = vmatprep.subr.mxu0 0.0
      %2290 = vmatpush1.msra.mxu0 0.0
      %2291 = vmatprep.subr.mxu0 0.0
      %2292 = vmatpush1.msra.mxu0 0.0
      %2293 = vmatprep.subr.mxu0 0.0
      %2294 = vmatpush1.msra.mxu0 0.0
      %2295 = vmatprep.subr.mxu0 0.0
      %2296 = vmatpush1.msra.mxu0 0.0
      %2297 = vmatprep.subr.mxu0 0.0
      %2298 = vmatpush1.msra.mxu0 0.0
      %2299 = vmatprep.subr.mxu0 0.0
      %2300 = vmatpush1.msra.mxu0 0.0
      %2301 = vmatprep.subr.mxu0 0.0
      %2302 = vmatpush1.msra.mxu0 0.0
      %2303 = vmatprep.subr.mxu0 0.0
      %2304 = vmatpush1.msra.mxu0 0.0
      %2305 = vmatprep.subr.mxu0 0.0
      %2306 = vmatpush1.msra.mxu0 0.0
      %2307 = vmatprep.subr.mxu0 0.0
      %2308 = vmatpush1.msra.mxu0 0.0
      %2309 = vmatprep.subr.mxu0 0.0
      %2310 = vmatpush1.msra.mxu0 0.0
      %2311 = vmatprep.subr.mxu0 0.0
      %2312 = vmatpush1.msra.mxu0 0.0
      %2313 = vmatprep.subr.mxu0 0.0
      %2314 = vmatpush1.msra.mxu0 0.0
      %2315 = vmatprep.subr.mxu0 0.0
      %2316 = vmatpush1.msra.mxu0 0.0
      %2317 = vmatprep.subr.mxu0 0.0
      %2318 = vmatpush1.msra.mxu0 0.0
      %2319 = vmatprep.subr.mxu0 0.0
      %2320 = vmatpush1.msra.mxu0 0.0
      %2321 = vmatprep.subr.mxu0 0.0
      %2322 = vmatpush1.msra.mxu0 0.0
      %2323 = vmatprep.subr.mxu0 0.0
      %2324 = vmatpush1.msra.mxu0 0.0
      %2325 = vmatprep.subr.mxu0 0.0
      %2326 = vmatpush1.msra.mxu0 0.0
      %2327 = vmatprep.subr.mxu0 0.0
      %2328 = vmatpush1.msra.mxu0 0.0
      %2329 = vmatprep.subr.mxu0 0.0
      %2330 = vmatpush1.msra.mxu0 0.0
      %2331 = vmatprep.subr.mxu0 0.0
      %2332 = vmatpush1.msra.mxu0 0.0
      %2333 = vmatprep.subr.mxu0 0.0
      %2334 = vmatpush1.msra.mxu0 0.0
      %2335 = vmatprep.subr.mxu0 0.0
      %2336 = vmatpush1.msra.mxu0 0.0
      %2337 = vmatprep.subr.mxu0 0.0
      %2338 = vmatpush1.msra.mxu0 0.0
      %2339 = vmatprep.subr.mxu0 0.0
      %2340 = vmatpush1.msra.mxu0 0.0
      %2341 = vmatprep.mubr.f32.mxu0 0.0
      %2342 = vmatmul.mubr.f32.gmra.mrb[0].mxu0 %v2254
      %v2343 = vpop.f32.mrb[0].mxu0
      %v2344 = vadd.f32 0.0, %v2343
      %v2345 = vpop.f32.mrb[0].mxu0
      %2346 = vmatprep.mubr.f32.mxu0 0.0
      %2347 = vmatmul.mubr.f32.gmra.mrb[0].mxu0 %v2257
      %v2348 = vpop.f32.mrb[0].mxu0
      %v2349 = vadd.f32 0.0, %v2348
      %v2350 = vpop.f32.mrb[0].mxu0
      %2351 = vmatprep.mubr.f32.mxu0 0.0
      %2352 = vmatmul.mubr.f32.gmra.mrb[0].mxu0 %v2260
      %v2353 = vpop.f32.mrb[0].mxu0
      %v2354 = vadd.f32 0.0, %v2353
      %v2355 = vpop.f32.mrb[0].mxu0
      %2356 = vmatprep.mubr.f32.mxu0 0.0
      %2357 = vmatmul.mubr.f32.gmra.mrb[0].mxu0 %v2263
      %v2358 = vpop.f32.mrb[0].mxu0
      %v2359 = vadd.f32 0.0, %v2358
      %v2360 = vpop.f32.mrb[0].mxu0
      %2361 = vmatprep.mubr.f32.mxu0 0.0
      %2362 = vmatmul.mubr.f32.gmra.mrb[0].mxu0 %v2266
      %v2363 = vpop.f32.mrb[0].mxu0
      %v2364 = vadd.f32 0.0, %v2363
      %v2365 = vpop.f32.mrb[0].mxu0
      %2366 = vmatprep.mubr.f32.mxu0 0.0
      %2367 = vmatmul.mubr.f32.gmra.mrb[0].mxu0 %v2269
      %v2368 = vpop.f32.mrb[0].mxu0
      %v2369 = vadd.f32 0.0, %v2368
      %v2370 = vpop.f32.mrb[0].mxu0
      %2371 = vmatprep.mubr.f32.mxu0 0.0
      %2372 = vmatmul.mubr.f32.gmra.mrb[0].mxu0 %v2272
      %v2373 = vpop.f32.mrb[0].mxu0
      %v2374 = vadd.f32 0.0, %v2373
      %v2375 = vpop.f32.mrb[0].mxu0
      %2376 = vmatprep.mubr.f32.mxu0 0.0
      %2377 = vmatmul.mubr.f32.gmra.mrb[0].mxu0 %v2275
      %v2378 = vpop.f32.mrb[0].mxu0
      %v2379 = vadd.f32 0.0, %v2378
      %v2380 = vpop.f32.mrb[0].mxu0
      %2381 = vdwg.mxu0
      %v2382 = vadd.f32 %v2227, %v2344
      %v2383 = vadd.f32 %v2228, %v2349
      %v2384 = vadd.f32 %v2229, %v2354
      %v2385 = vadd.f32 %v2230, %v2359
      %v2386 = vadd.f32 %v2231, %v2364
      %v2387 = vadd.f32 %v2232, %v2369
      %v2388 = vadd.f32 %v2233, %v2374
      %v2389 = vadd.f32 %v2234, %v2379
      %v2390 = vld [vmem:[#allocation2 + $0x14] sm:$0xff]
      %v2391 = vld [vmem:[#allocation2 + $0x1c] sm:$0xff]
      %v2392 = vld [vmem:[#allocation2 + $0x24] sm:$0xff]
      %v2393 = vld [vmem:[#allocation2 + $0x2c] sm:$0xff]
      %v2394 = vld [vmem:[#allocation2 + $0x34] sm:$0xff]
      %v2395 = vld [vmem:[#allocation2 + $0x3c] sm:$0xff]
      %v2396 = vld [vmem:[#allocation2 + $0x44] sm:$0xff]
      %v2397 = vld [vmem:[#allocation2 + $0x4c] sm:$0xff]
      %v2398 = vmul.f32 %v2390, %v1422
      %v2399 = vmul.f32 %v2391, %v1426
      %v2400 = vmul.f32 %v2392, %v1430
      %v2401 = vmul.f32 %v2393, %v1434
      %v2402 = vmul.f32 %v2394, %v1438
      %v2403 = vmul.f32 %v2395, %v1442
      %v2404 = vmul.f32 %v2396, %v1446
      %v2405 = vmul.f32 %v2397, %v1450
      %s2406 = scalar_lea.vmem %s4, 112
      %v2407 = vld [vmem:[%s2406] sm:$0xff]
      %2416 = vrot.lane.b32.xlu0 %v2398, 120
      %v2417 = vpop.permute.xlu0 %2416
      %2418 = vrot.lane.b32.xlu0 %v2399, 120
      %v2419 = vpop.permute.xlu0 %2418
      %2420 = vrot.lane.b32.xlu0 %v2400, 120
      %v2421 = vpop.permute.xlu0 %2420
      %2422 = vrot.lane.b32.xlu0 %v2401, 120
      %v2423 = vpop.permute.xlu0 %2422
      %2424 = vrot.lane.b32.xlu0 %v2402, 120
      %v2425 = vpop.permute.xlu0 %2424
      %2426 = vrot.lane.b32.xlu0 %v2403, 120
      %v2427 = vpop.permute.xlu0 %2426
      %2428 = vrot.lane.b32.xlu0 %v2404, 120
      %v2429 = vpop.permute.xlu0 %2428
      %2430 = vrot.lane.b32.xlu0 %v2405, 120
      %v2431 = vpop.permute.xlu0 %2430
      %v2432 = vsel %vm664, %v2417, 0
      %v2434 = vsel %vm664, %v2419, 0
      %v2436 = vsel %vm664, %v2421, 0
      %v2438 = vsel %vm664, %v2423, 0
      %v2440 = vsel %vm664, %v2425, 0
      %v2442 = vsel %vm664, %v2427, 0
      %v2444 = vsel %vm664, %v2429, 0
      %v2446 = vsel %vm664, %v2431, 0
      %2448 = vmatprep.subr.mxu0 0.0
      %2449 = vmatpush1.msra.mxu0 %v2407
      %2450 = vmatprep.subr.mxu0 0.0
      %2451 = vmatpush1.msra.mxu0 0.0
      %2452 = vmatprep.subr.mxu0 0.0
      %2453 = vmatpush1.msra.mxu0 0.0
      %2454 = vmatprep.subr.mxu0 0.0
      %2455 = vmatpush1.msra.mxu0 0.0
      %2456 = vmatprep.subr.mxu0 0.0
      %2457 = vmatpush1.msra.mxu0 0.0
      %2458 = vmatprep.subr.mxu0 0.0
      %2459 = vmatpush1.msra.mxu0 0.0
      %2460 = vmatprep.subr.mxu0 0.0
      %2461 = vmatpush1.msra.mxu0 0.0
      %2462 = vmatprep.subr.mxu0 0.0
      %2463 = vmatpush1.msra.mxu0 0.0
      %2464 = vmatprep.subr.mxu0 0.0
      %2465 = vmatpush1.msra.mxu0 0.0
      %2466 = vmatprep.subr.mxu0 0.0
      %2467 = vmatpush1.msra.mxu0 0.0
      %2468 = vmatprep.subr.mxu0 0.0
      %2469 = vmatpush1.msra.mxu0 0.0
      %2470 = vmatprep.subr.mxu0 0.0
      %2471 = vmatpush1.msra.mxu0 0.0
      %2472 = vmatprep.subr.mxu0 0.0
      %2473 = vmatpush1.msra.mxu0 0.0
      %2474 = vmatprep.subr.mxu0 0.0
      %2475 = vmatpush1.msra.mxu0 0.0
      %2476 = vmatprep.subr.mxu0 0.0
      %2477 = vmatpush1.msra.mxu0 0.0
      %2478 = vmatprep.subr.mxu0 0.0
      %2479 = vmatpush1.msra.mxu0 0.0
      %2480 = vmatprep.subr.mxu0 0.0
      %2481 = vmatpush1.msra.mxu0 0.0
      %2482 = vmatprep.subr.mxu0 0.0
      %2483 = vmatpush1.msra.mxu0 0.0
      %2484 = vmatprep.subr.mxu0 0.0
      %2485 = vmatpush1.msra.mxu0 0.0
      %2486 = vmatprep.subr.mxu0 0.0
      %2487 = vmatpush1.msra.mxu0 0.0
      %2488 = vmatprep.subr.mxu0 0.0
      %2489 = vmatpush1.msra.mxu0 0.0
      %2490 = vmatprep.subr.mxu0 0.0
      %2491 = vmatpush1.msra.mxu0 0.0
      %2492 = vmatprep.subr.mxu0 0.0
      %2493 = vmatpush1.msra.mxu0 0.0
      %2494 = vmatprep.subr.mxu0 0.0
      %2495 = vmatpush1.msra.mxu0 0.0
      %2496 = vmatprep.subr.mxu0 0.0
      %2497 = vmatpush1.msra.mxu0 0.0
      %2498 = vmatprep.subr.mxu0 0.0
      %2499 = vmatpush1.msra.mxu0 0.0
      %2500 = vmatprep.subr.mxu0 0.0
      %2501 = vmatpush1.msra.mxu0 0.0
      %2502 = vmatprep.subr.mxu0 0.0
      %2503 = vmatpush1.msra.mxu0 0.0
      %2504 = vmatprep.subr.mxu0 0.0
      %2505 = vmatpush1.msra.mxu0 0.0
      %2506 = vmatprep.subr.mxu0 0.0
      %2507 = vmatpush1.msra.mxu0 0.0
      %2508 = vmatprep.subr.mxu0 0.0
      %2509 = vmatpush1.msra.mxu0 0.0
      %2510 = vmatprep.subr.mxu0 0.0
      %2511 = vmatpush1.msra.mxu0 0.0
      %2512 = vmatprep.mubr.f32.mxu0 0.0
      %2513 = vmatmul.mubr.f32.gmra.mrb[0].mxu0 %v2432
      %v2514 = vpop.f32.mrb[0].mxu0
      %v2515 = vadd.f32 0.0, %v2514
      %v2516 = vpop.f32.mrb[0].mxu0
      %2517 = vmatprep.mubr.f32.mxu0 0.0
      %2518 = vmatmul.mubr.f32.gmra.mrb[0].mxu0 %v2434
      %v2519 = vpop.f32.mrb[0].mxu0
      %v2520 = vadd.f32 0.0, %v2519
      %v2521 = vpop.f32.mrb[0].mxu0
      %2522 = vmatprep.mubr.f32.mxu0 0.0
      %2523 = vmatmul.mubr.f32.gmra.mrb[0].mxu0 %v2436
      %v2524 = vpop.f32.mrb[0].mxu0
      %v2525 = vadd.f32 0.0, %v2524
      %v2526 = vpop.f32.mrb[0].mxu0
      %2527 = vmatprep.mubr.f32.mxu0 0.0
      %2528 = vmatmul.mubr.f32.gmra.mrb[0].mxu0 %v2438
      %v2529 = vpop.f32.mrb[0].mxu0
      %v2530 = vadd.f32 0.0, %v2529
      %v2531 = vpop.f32.mrb[0].mxu0
      %2532 = vmatprep.mubr.f32.mxu0 0.0
      %2533 = vmatmul.mubr.f32.gmra.mrb[0].mxu0 %v2440
      %v2534 = vpop.f32.mrb[0].mxu0
      %v2535 = vadd.f32 0.0, %v2534
      %v2536 = vpop.f32.mrb[0].mxu0
      %2537 = vmatprep.mubr.f32.mxu0 0.0
      %2538 = vmatmul.mubr.f32.gmra.mrb[0].mxu0 %v2442
      %v2539 = vpop.f32.mrb[0].mxu0
      %v2540 = vadd.f32 0.0, %v2539
      %v2541 = vpop.f32.mrb[0].mxu0
      %2542 = vmatprep.mubr.f32.mxu0 0.0
      %2543 = vmatmul.mubr.f32.gmra.mrb[0].mxu0 %v2444
      %v2544 = vpop.f32.mrb[0].mxu0
      %v2545 = vadd.f32 0.0, %v2544
      %v2546 = vpop.f32.mrb[0].mxu0
      %2547 = vmatprep.mubr.f32.mxu0 0.0
      %2548 = vmatmul.mubr.f32.gmra.mrb[0].mxu0 %v2446
      %v2549 = vpop.f32.mrb[0].mxu0
      %v2550 = vadd.f32 0.0, %v2549
      %v2551 = vpop.f32.mrb[0].mxu0
      %2552 = vdwg.mxu0
      %v2553 = vadd.f32 %v2382, %v2515
      %v2554 = vadd.f32 %v2383, %v2520
      %v2555 = vadd.f32 %v2384, %v2525
      %v2556 = vadd.f32 %v2385, %v2530
      %v2557 = vadd.f32 %v2386, %v2535
      %v2558 = vadd.f32 %v2387, %v2540
      %v2559 = vadd.f32 %v2388, %v2545
      %v2560 = vadd.f32 %v2389, %v2550
      %v2561 = vld [vmem:[#allocation2 + $0x19] sm:$0xff]
      %v2562 = vld [vmem:[#allocation2 + $0x21] sm:$0xff]
      %v2563 = vld [vmem:[#allocation2 + $0x29] sm:$0xff]
      %v2564 = vld [vmem:[#allocation2 + $0x31] sm:$0xff]
      %v2565 = vld [vmem:[#allocation2 + $0x39] sm:$0xff]
      %v2566 = vld [vmem:[#allocation2 + $0x41] sm:$0xff]
      %v2567 = vld [vmem:[#allocation2 + $0x49] sm:$0xff]
      %v2568 = vld [vmem:[#allocation2 + $0x51] sm:$0xff]
      %v2569 = vmul.f32 %v2561, %v544
      %v2570 = vmul.f32 %v2562, %v549
      %v2571 = vmul.f32 %v2563, %v554
      %v2572 = vmul.f32 %v2564, %v559
      %v2573 = vmul.f32 %v2565, %v564
      %v2574 = vmul.f32 %v2566, %v569
      %v2575 = vmul.f32 %v2567, %v574
      %v2576 = vmul.f32 %v2568, %v579
      %s2577 = scalar_lea.vmem %s4, 48
      %v2578 = vld [vmem:[%s2577] sm:$0xff]
      %v2580 = vsel %vm664, %v2569, 0
      %v2583 = vsel %vm664, %v2570, 0
      %v2586 = vsel %vm664, %v2571, 0
      %v2589 = vsel %vm664, %v2572, 0
      %v2592 = vsel %vm664, %v2573, 0
      %v2595 = vsel %vm664, %v2574, 0
      %v2598 = vsel %vm664, %v2575, 0
      %v2601 = vsel %vm664, %v2576, 0
      %2603 = vmatprep.subr.mxu0 0.0
      %2604 = vmatpush1.msra.mxu0 %v2578
      %2605 = vmatprep.subr.mxu0 0.0
      %2606 = vmatpush1.msra.mxu0 0.0
      %2607 = vmatprep.subr.mxu0 0.0
      %2608 = vmatpush1.msra.mxu0 0.0
      %2609 = vmatprep.subr.mxu0 0.0
      %2610 = vmatpush1.msra.mxu0 0.0
      %2611 = vmatprep.subr.mxu0 0.0
      %2612 = vmatpush1.msra.mxu0 0.0
      %2613 = vmatprep.subr.mxu0 0.0
      %2614 = vmatpush1.msra.mxu0 0.0
      %2615 = vmatprep.subr.mxu0 0.0
      %2616 = vmatpush1.msra.mxu0 0.0
      %2617 = vmatprep.subr.mxu0 0.0
      %2618 = vmatpush1.msra.mxu0 0.0
      %2619 = vmatprep.subr.mxu0 0.0
      %2620 = vmatpush1.msra.mxu0 0.0
      %2621 = vmatprep.subr.mxu0 0.0
      %2622 = vmatpush1.msra.mxu0 0.0
      %2623 = vmatprep.subr.mxu0 0.0
      %2624 = vmatpush1.msra.mxu0 0.0
      %2625 = vmatprep.subr.mxu0 0.0
      %2626 = vmatpush1.msra.mxu0 0.0
      %2627 = vmatprep.subr.mxu0 0.0
      %2628 = vmatpush1.msra.mxu0 0.0
      %2629 = vmatprep.subr.mxu0 0.0
      %2630 = vmatpush1.msra.mxu0 0.0
      %2631 = vmatprep.subr.mxu0 0.0
      %2632 = vmatpush1.msra.mxu0 0.0
      %2633 = vmatprep.subr.mxu0 0.0
      %2634 = vmatpush1.msra.mxu0 0.0
      %2635 = vmatprep.subr.mxu0 0.0
      %2636 = vmatpush1.msra.mxu0 0.0
      %2637 = vmatprep.subr.mxu0 0.0
      %2638 = vmatpush1.msra.mxu0 0.0
      %2639 = vmatprep.subr.mxu0 0.0
      %2640 = vmatpush1.msra.mxu0 0.0
      %2641 = vmatprep.subr.mxu0 0.0
      %2642 = vmatpush1.msra.mxu0 0.0
      %2643 = vmatprep.subr.mxu0 0.0
      %2644 = vmatpush1.msra.mxu0 0.0
      %2645 = vmatprep.subr.mxu0 0.0
      %2646 = vmatpush1.msra.mxu0 0.0
      %2647 = vmatprep.subr.mxu0 0.0
      %2648 = vmatpush1.msra.mxu0 0.0
      %2649 = vmatprep.subr.mxu0 0.0
      %2650 = vmatpush1.msra.mxu0 0.0
      %2651 = vmatprep.subr.mxu0 0.0
      %2652 = vmatpush1.msra.mxu0 0.0
      %2653 = vmatprep.subr.mxu0 0.0
      %2654 = vmatpush1.msra.mxu0 0.0
      %2655 = vmatprep.subr.mxu0 0.0
      %2656 = vmatpush1.msra.mxu0 0.0
      %2657 = vmatprep.subr.mxu0 0.0
      %2658 = vmatpush1.msra.mxu0 0.0
      %2659 = vmatprep.subr.mxu0 0.0
      %2660 = vmatpush1.msra.mxu0 0.0
      %2661 = vmatprep.subr.mxu0 0.0
      %2662 = vmatpush1.msra.mxu0 0.0
      %2663 = vmatprep.subr.mxu0 0.0
      %2664 = vmatpush1.msra.mxu0 0.0
      %2665 = vmatprep.subr.mxu0 0.0
      %2666 = vmatpush1.msra.mxu0 0.0
      %2667 = vmatprep.mubr.f32.mxu0 0.0
      %2668 = vmatmul.mubr.f32.gmra.mrb[0].mxu0 %v2580
      %v2669 = vpop.f32.mrb[0].mxu0
      %v2670 = vadd.f32 0.0, %v2669
      %v2671 = vpop.f32.mrb[0].mxu0
      %2672 = vmatprep.mubr.f32.mxu0 0.0
      %2673 = vmatmul.mubr.f32.gmra.mrb[0].mxu0 %v2583
      %v2674 = vpop.f32.mrb[0].mxu0
      %v2675 = vadd.f32 0.0, %v2674
      %v2676 = vpop.f32.mrb[0].mxu0
      %2677 = vmatprep.mubr.f32.mxu0 0.0
      %2678 = vmatmul.mubr.f32.gmra.mrb[0].mxu0 %v2586
      %v2679 = vpop.f32.mrb[0].mxu0
      %v2680 = vadd.f32 0.0, %v2679
      %v2681 = vpop.f32.mrb[0].mxu0
      %2682 = vmatprep.mubr.f32.mxu0 0.0
      %2683 = vmatmul.mubr.f32.gmra.mrb[0].mxu0 %v2589
      %v2684 = vpop.f32.mrb[0].mxu0
      %v2685 = vadd.f32 0.0, %v2684
      %v2686 = vpop.f32.mrb[0].mxu0
      %2687 = vmatprep.mubr.f32.mxu0 0.0
      %2688 = vmatmul.mubr.f32.gmra.mrb[0].mxu0 %v2592
      %v2689 = vpop.f32.mrb[0].mxu0
      %v2690 = vadd.f32 0.0, %v2689
      %v2691 = vpop.f32.mrb[0].mxu0
      %2692 = vmatprep.mubr.f32.mxu0 0.0
      %2693 = vmatmul.mubr.f32.gmra.mrb[0].mxu0 %v2595
      %v2694 = vpop.f32.mrb[0].mxu0
      %v2695 = vadd.f32 0.0, %v2694
      %v2696 = vpop.f32.mrb[0].mxu0
      %2697 = vmatprep.mubr.f32.mxu0 0.0
      %2698 = vmatmul.mubr.f32.gmra.mrb[0].mxu0 %v2598
      %v2699 = vpop.f32.mrb[0].mxu0
      %v2700 = vadd.f32 0.0, %v2699
      %v2701 = vpop.f32.mrb[0].mxu0
      %2702 = vmatprep.mubr.f32.mxu0 0.0
      %2703 = vmatmul.mubr.f32.gmra.mrb[0].mxu0 %v2601
      %v2704 = vpop.f32.mrb[0].mxu0
      %v2705 = vadd.f32 0.0, %v2704
      %v2706 = vpop.f32.mrb[0].mxu0
      %2707 = vdwg.mxu0
      %v2708 = vadd.f32 %v2553, %v2670
      %v2709 = vadd.f32 %v2554, %v2675
      %v2710 = vadd.f32 %v2555, %v2680
      %v2711 = vadd.f32 %v2556, %v2685
      %v2712 = vadd.f32 %v2557, %v2690
      %v2713 = vadd.f32 %v2558, %v2695
      %v2714 = vadd.f32 %v2559, %v2700
      %v2715 = vadd.f32 %v2560, %v2705
      %v2716 = vld [vmem:[#allocation2 + $0x20] sm:$0xff]
      %v2717 = vld [vmem:[#allocation2 + $0x28] sm:$0xff]
      %v2718 = vld [vmem:[#allocation2 + $0x30] sm:$0xff]
      %v2719 = vld [vmem:[#allocation2 + $0x38] sm:$0xff]
      %v2720 = vld [vmem:[#allocation2 + $0x40] sm:$0xff]
      %v2721 = vld [vmem:[#allocation2 + $0x48] sm:$0xff]
      %v2722 = vld [vmem:[#allocation2 + $0x50] sm:$0xff]
      %v2723 = vld [vmem:[#allocation2 + $0x58] sm:$0xff]
      %v2724 = vmul.f32 %v2716, %v600
      %v2725 = vmul.f32 %v2717, %v604
      %v2726 = vmul.f32 %v2718, %v608
      %v2727 = vmul.f32 %v2719, %v612
      %v2728 = vmul.f32 %v2720, %v616
      %v2729 = vmul.f32 %v2721, %v620
      %v2730 = vmul.f32 %v2722, %v624
      %v2731 = vmul.f32 %v2723, %v628
      %s2732 = scalar_lea.vmem %s4, 120
      %v2733 = vld [vmem:[%s2732] sm:$0xff]
      %2742 = vrot.lane.b32.xlu0 %v2724, 120
      %v2743 = vpop.permute.xlu0 %2742
      %2744 = vrot.lane.b32.xlu0 %v2725, 120
      %v2745 = vpop.permute.xlu0 %2744
      %2746 = vrot.lane.b32.xlu0 %v2726, 120
      %v2747 = vpop.permute.xlu0 %2746
      %2748 = vrot.lane.b32.xlu0 %v2727, 120
      %v2749 = vpop.permute.xlu0 %2748
      %2750 = vrot.lane.b32.xlu0 %v2728, 120
      %v2751 = vpop.permute.xlu0 %2750
      %2752 = vrot.lane.b32.xlu0 %v2729, 120
      %v2753 = vpop.permute.xlu0 %2752
      %2754 = vrot.lane.b32.xlu0 %v2730, 120
      %v2755 = vpop.permute.xlu0 %2754
      %2756 = vrot.lane.b32.xlu0 %v2731, 120
      %v2757 = vpop.permute.xlu0 %2756
      %v2758 = vsel %vm664, %v2743, 0
      %v2760 = vsel %vm664, %v2745, 0
      %v2762 = vsel %vm664, %v2747, 0
      %v2764 = vsel %vm664, %v2749, 0
      %v2766 = vsel %vm664, %v2751, 0
      %v2768 = vsel %vm664, %v2753, 0
      %v2770 = vsel %vm664, %v2755, 0
      %v2772 = vsel %vm664, %v2757, 0
      %2774 = vmatprep.subr.mxu0 0.0
      %2775 = vmatpush1.msra.mxu0 %v2733
      %2776 = vmatprep.subr.mxu0 0.0
      %2777 = vmatpush1.msra.mxu0 0.0
      %2778 = vmatprep.subr.mxu0 0.0
      %2779 = vmatpush1.msra.mxu0 0.0
      %2780 = vmatprep.subr.mxu0 0.0
      %2781 = vmatpush1.msra.mxu0 0.0
      %2782 = vmatprep.subr.mxu0 0.0
      %2783 = vmatpush1.msra.mxu0 0.0
      %2784 = vmatprep.subr.mxu0 0.0
      %2785 = vmatpush1.msra.mxu0 0.0
      %2786 = vmatprep.subr.mxu0 0.0
      %2787 = vmatpush1.msra.mxu0 0.0
      %2788 = vmatprep.subr.mxu0 0.0
      %2789 = vmatpush1.msra.mxu0 0.0
      %2790 = vmatprep.subr.mxu0 0.0
      %2791 = vmatpush1.msra.mxu0 0.0
      %2792 = vmatprep.subr.mxu0 0.0
      %2793 = vmatpush1.msra.mxu0 0.0
      %2794 = vmatprep.subr.mxu0 0.0
      %2795 = vmatpush1.msra.mxu0 0.0
      %2796 = vmatprep.subr.mxu0 0.0
      %2797 = vmatpush1.msra.mxu0 0.0
      %2798 = vmatprep.subr.mxu0 0.0
      %2799 = vmatpush1.msra.mxu0 0.0
      %2800 = vmatprep.subr.mxu0 0.0
      %2801 = vmatpush1.msra.mxu0 0.0
      %2802 = vmatprep.subr.mxu0 0.0
      %2803 = vmatpush1.msra.mxu0 0.0
      %2804 = vmatprep.subr.mxu0 0.0
      %2805 = vmatpush1.msra.mxu0 0.0
      %2806 = vmatprep.subr.mxu0 0.0
      %2807 = vmatpush1.msra.mxu0 0.0
      %2808 = vmatprep.subr.mxu0 0.0
      %2809 = vmatpush1.msra.mxu0 0.0
      %2810 = vmatprep.subr.mxu0 0.0
      %2811 = vmatpush1.msra.mxu0 0.0
      %2812 = vmatprep.subr.mxu0 0.0
      %2813 = vmatpush1.msra.mxu0 0.0
      %2814 = vmatprep.subr.mxu0 0.0
      %2815 = vmatpush1.msra.mxu0 0.0
      %2816 = vmatprep.subr.mxu0 0.0
      %2817 = vmatpush1.msra.mxu0 0.0
      %2818 = vmatprep.subr.mxu0 0.0
      %2819 = vmatpush1.msra.mxu0 0.0
      %2820 = vmatprep.subr.mxu0 0.0
      %2821 = vmatpush1.msra.mxu0 0.0
      %2822 = vmatprep.subr.mxu0 0.0
      %2823 = vmatpush1.msra.mxu0 0.0
      %2824 = vmatprep.subr.mxu0 0.0
      %2825 = vmatpush1.msra.mxu0 0.0
      %2826 = vmatprep.subr.mxu0 0.0
      %2827 = vmatpush1.msra.mxu0 0.0
      %2828 = vmatprep.subr.mxu0 0.0
      %2829 = vmatpush1.msra.mxu0 0.0
      %2830 = vmatprep.subr.mxu0 0.0
      %2831 = vmatpush1.msra.mxu0 0.0
      %2832 = vmatprep.subr.mxu0 0.0
      %2833 = vmatpush1.msra.mxu0 0.0
      %2834 = vmatprep.subr.mxu0 0.0
      %2835 = vmatpush1.msra.mxu0 0.0
      %2836 = vmatprep.subr.mxu0 0.0
      %2837 = vmatpush1.msra.mxu0 0.0
      %2838 = vmatprep.mubr.f32.mxu0 0.0
      %2839 = vmatmul.mubr.f32.gmra.mrb[0].mxu0 %v2758
      %v2840 = vpop.f32.mrb[0].mxu0
      %v2841 = vadd.f32 0.0, %v2840
      %v2842 = vpop.f32.mrb[0].mxu0
      %2843 = vmatprep.mubr.f32.mxu0 0.0
      %2844 = vmatmul.mubr.f32.gmra.mrb[0].mxu0 %v2760
      %v2845 = vpop.f32.mrb[0].mxu0
      %v2846 = vadd.f32 0.0, %v2845
      %v2847 = vpop.f32.mrb[0].mxu0
      %2848 = vmatprep.mubr.f32.mxu0 0.0
      %2849 = vmatmul.mubr.f32.gmra.mrb[0].mxu0 %v2762
      %v2850 = vpop.f32.mrb[0].mxu0
      %v2851 = vadd.f32 0.0, %v2850
      %v2852 = vpop.f32.mrb[0].mxu0
      %2853 = vmatprep.mubr.f32.mxu0 0.0
      %2854 = vmatmul.mubr.f32.gmra.mrb[0].mxu0 %v2764
      %v2855 = vpop.f32.mrb[0].mxu0
      %v2856 = vadd.f32 0.0, %v2855
      %v2857 = vpop.f32.mrb[0].mxu0
      %2858 = vmatprep.mubr.f32.mxu0 0.0
      %2859 = vmatmul.mubr.f32.gmra.mrb[0].mxu0 %v2766
      %v2860 = vpop.f32.mrb[0].mxu0
      %v2861 = vadd.f32 0.0, %v2860
      %v2862 = vpop.f32.mrb[0].mxu0
      %2863 = vmatprep.mubr.f32.mxu0 0.0
      %2864 = vmatmul.mubr.f32.gmra.mrb[0].mxu0 %v2768
      %v2865 = vpop.f32.mrb[0].mxu0
      %v2866 = vadd.f32 0.0, %v2865
      %v2867 = vpop.f32.mrb[0].mxu0
      %2868 = vmatprep.mubr.f32.mxu0 0.0
      %2869 = vmatmul.mubr.f32.gmra.mrb[0].mxu0 %v2770
      %v2870 = vpop.f32.mrb[0].mxu0
      %v2871 = vadd.f32 0.0, %v2870
      %v2872 = vpop.f32.mrb[0].mxu0
      %2873 = vmatprep.mubr.f32.mxu0 0.0
      %2874 = vmatmul.mubr.f32.gmra.mrb[0].mxu0 %v2772
      %v2875 = vpop.f32.mrb[0].mxu0
      %v2876 = vadd.f32 0.0, %v2875
      %v2877 = vpop.f32.mrb[0].mxu0
      %2878 = vdwg.mxu0
      %v2879 = vadd.f32 %v2708, %v2841
      %v2880 = vadd.f32 %v2709, %v2846
      %v2881 = vadd.f32 %v2710, %v2851
      %v2882 = vadd.f32 %v2711, %v2856
      %v2883 = vadd.f32 %v2712, %v2861
      %v2884 = vadd.f32 %v2713, %v2866
      %v2885 = vadd.f32 %v2714, %v2871
      %v2886 = vadd.f32 %v2715, %v2876
      %v2887 = vld [vmem:[#allocation2 + $0x1a] sm:$0xff]
      %v2888 = vld [vmem:[#allocation2 + $0x22] sm:$0xff]
      %v2889 = vld [vmem:[#allocation2 + $0x2a] sm:$0xff]
      %v2890 = vld [vmem:[#allocation2 + $0x32] sm:$0xff]
      %v2891 = vld [vmem:[#allocation2 + $0x3a] sm:$0xff]
      %v2892 = vld [vmem:[#allocation2 + $0x42] sm:$0xff]
      %v2893 = vld [vmem:[#allocation2 + $0x4a] sm:$0xff]
      %v2894 = vld [vmem:[#allocation2 + $0x52] sm:$0xff]
      %s2895 = scalar_lea.vmem %s4, 56
      %v2896 = vld [vmem:[%s2895] sm:$0xff]
      %v2898 = vsel %vm664, %v2887, 0
      %v2901 = vsel %vm664, %v2888, 0
      %v2904 = vsel %vm664, %v2889, 0
      %v2907 = vsel %vm664, %v2890, 0
      %v2910 = vsel %vm664, %v2891, 0
      %v2913 = vsel %vm664, %v2892, 0
      %v2916 = vsel %vm664, %v2893, 0
      %v2919 = vsel %vm664, %v2894, 0
      %2921 = vmatprep.subr.mxu0 0.0
      %2922 = vmatpush1.msra.mxu0 %v2896
      %2923 = vmatprep.subr.mxu0 0.0
      %2924 = vmatpush1.msra.mxu0 0.0
      %2925 = vmatprep.subr.mxu0 0.0
      %2926 = vmatpush1.msra.mxu0 0.0
      %2927 = vmatprep.subr.mxu0 0.0
      %2928 = vmatpush1.msra.mxu0 0.0
      %2929 = vmatprep.subr.mxu0 0.0
      %2930 = vmatpush1.msra.mxu0 0.0
      %2931 = vmatprep.subr.mxu0 0.0
      %2932 = vmatpush1.msra.mxu0 0.0
      %2933 = vmatprep.subr.mxu0 0.0
      %2934 = vmatpush1.msra.mxu0 0.0
      %2935 = vmatprep.subr.mxu0 0.0
      %2936 = vmatpush1.msra.mxu0 0.0
      %2937 = vmatprep.subr.mxu0 0.0
      %2938 = vmatpush1.msra.mxu0 0.0
      %2939 = vmatprep.subr.mxu0 0.0
      %2940 = vmatpush1.msra.mxu0 0.0
      %2941 = vmatprep.subr.mxu0 0.0
      %2942 = vmatpush1.msra.mxu0 0.0
      %2943 = vmatprep.subr.mxu0 0.0
      %2944 = vmatpush1.msra.mxu0 0.0
      %2945 = vmatprep.subr.mxu0 0.0
      %2946 = vmatpush1.msra.mxu0 0.0
      %2947 = vmatprep.subr.mxu0 0.0
      %2948 = vmatpush1.msra.mxu0 0.0
      %2949 = vmatprep.subr.mxu0 0.0
      %2950 = vmatpush1.msra.mxu0 0.0
      %2951 = vmatprep.subr.mxu0 0.0
      %2952 = vmatpush1.msra.mxu0 0.0
      %2953 = vmatprep.subr.mxu0 0.0
      %2954 = vmatpush1.msra.mxu0 0.0
      %2955 = vmatprep.subr.mxu0 0.0
      %2956 = vmatpush1.msra.mxu0 0.0
      %2957 = vmatprep.subr.mxu0 0.0
      %2958 = vmatpush1.msra.mxu0 0.0
      %2959 = vmatprep.subr.mxu0 0.0
      %2960 = vmatpush1.msra.mxu0 0.0
      %2961 = vmatprep.subr.mxu0 0.0
      %2962 = vmatpush1.msra.mxu0 0.0
      %2963 = vmatprep.subr.mxu0 0.0
      %2964 = vmatpush1.msra.mxu0 0.0
      %2965 = vmatprep.subr.mxu0 0.0
      %2966 = vmatpush1.msra.mxu0 0.0
      %2967 = vmatprep.subr.mxu0 0.0
      %2968 = vmatpush1.msra.mxu0 0.0
      %2969 = vmatprep.subr.mxu0 0.0
      %2970 = vmatpush1.msra.mxu0 0.0
      %2971 = vmatprep.subr.mxu0 0.0
      %2972 = vmatpush1.msra.mxu0 0.0
      %2973 = vmatprep.subr.mxu0 0.0
      %2974 = vmatpush1.msra.mxu0 0.0
      %2975 = vmatprep.subr.mxu0 0.0
      %2976 = vmatpush1.msra.mxu0 0.0
      %2977 = vmatprep.subr.mxu0 0.0
      %2978 = vmatpush1.msra.mxu0 0.0
      %2979 = vmatprep.subr.mxu0 0.0
      %2980 = vmatpush1.msra.mxu0 0.0
      %2981 = vmatprep.subr.mxu0 0.0
      %2982 = vmatpush1.msra.mxu0 0.0
      %2983 = vmatprep.subr.mxu0 0.0
      %2984 = vmatpush1.msra.mxu0 0.0
      %2985 = vmatprep.mubr.f32.mxu0 0.0
      %2986 = vmatmul.mubr.f32.gmra.mrb[0].mxu0 %v2898
      %v2987 = vpop.f32.mrb[0].mxu0
      %v2988 = vadd.f32 0.0, %v2987
      %v2989 = vpop.f32.mrb[0].mxu0
      %2990 = vmatprep.mubr.f32.mxu0 0.0
      %2991 = vmatmul.mubr.f32.gmra.mrb[0].mxu0 %v2901
      %v2992 = vpop.f32.mrb[0].mxu0
      %v2993 = vadd.f32 0.0, %v2992
      %v2994 = vpop.f32.mrb[0].mxu0
      %2995 = vmatprep.mubr.f32.mxu0 0.0
      %2996 = vmatmul.mubr.f32.gmra.mrb[0].mxu0 %v2904
      %v2997 = vpop.f32.mrb[0].mxu0
      %v2998 = vadd.f32 0.0, %v2997
      %v2999 = vpop.f32.mrb[0].mxu0
      %3000 = vmatprep.mubr.f32.mxu0 0.0
      %3001 = vmatmul.mubr.f32.gmra.mrb[0].mxu0 %v2907
      %v3002 = vpop.f32.mrb[0].mxu0
      %v3003 = vadd.f32 0.0, %v3002
      %v3004 = vpop.f32.mrb[0].mxu0
      %3005 = vmatprep.mubr.f32.mxu0 0.0
      %3006 = vmatmul.mubr.f32.gmra.mrb[0].mxu0 %v2910
      %v3007 = vpop.f32.mrb[0].mxu0
      %v3008 = vadd.f32 0.0, %v3007
      %v3009 = vpop.f32.mrb[0].mxu0
      %3010 = vmatprep.mubr.f32.mxu0 0.0
      %3011 = vmatmul.mubr.f32.gmra.mrb[0].mxu0 %v2913
      %v3012 = vpop.f32.mrb[0].mxu0
      %v3013 = vadd.f32 0.0, %v3012
      %v3014 = vpop.f32.mrb[0].mxu0
      %3015 = vmatprep.mubr.f32.mxu0 0.0
      %3016 = vmatmul.mubr.f32.gmra.mrb[0].mxu0 %v2916
      %v3017 = vpop.f32.mrb[0].mxu0
      %v3018 = vadd.f32 0.0, %v3017
      %v3019 = vpop.f32.mrb[0].mxu0
      %3020 = vmatprep.mubr.f32.mxu0 0.0
      %3021 = vmatmul.mubr.f32.gmra.mrb[0].mxu0 %v2919
      %v3022 = vpop.f32.mrb[0].mxu0
      %v3023 = vadd.f32 0.0, %v3022
      %v3024 = vpop.f32.mrb[0].mxu0
      %3025 = vdwg.mxu0
      %v3026 = vadd.f32 %v2879, %v2988
      %v3027 = vadd.f32 %v2880, %v2993
      %v3028 = vadd.f32 %v2881, %v2998
      %v3029 = vadd.f32 %v2882, %v3003
      %v3030 = vadd.f32 %v2883, %v3008
      %v3031 = vadd.f32 %v2884, %v3013
      %v3032 = vadd.f32 %v2885, %v3018
      %v3033 = vadd.f32 %v2886, %v3023
      %v3034 = vld [vmem:[#allocation2 + $0x22] sm:$0xff]
      %v3035 = vld [vmem:[#allocation2 + $0x2a] sm:$0xff]
      %v3036 = vld [vmem:[#allocation2 + $0x32] sm:$0xff]
      %v3037 = vld [vmem:[#allocation2 + $0x3a] sm:$0xff]
      %v3038 = vld [vmem:[#allocation2 + $0x42] sm:$0xff]
      %v3039 = vld [vmem:[#allocation2 + $0x4a] sm:$0xff]
      %v3040 = vld [vmem:[#allocation2 + $0x52] sm:$0xff]
      %v3041 = vld [vmem:[#allocation2 + $0x5a] sm:$0xff]
      %s3042 = scalar_lea.vmem %s4, 128
      %v3043 = vld [vmem:[%s3042] sm:$0xff]
      %3052 = vrot.lane.b32.xlu0 %v3034, 120
      %v3053 = vpop.permute.xlu0 %3052
      %3054 = vrot.lane.b32.xlu0 %v3035, 120
      %v3055 = vpop.permute.xlu0 %3054
      %3056 = vrot.lane.b32.xlu0 %v3036, 120
      %v3057 = vpop.permute.xlu0 %3056
      %3058 = vrot.lane.b32.xlu0 %v3037, 120
      %v3059 = vpop.permute.xlu0 %3058
      %3060 = vrot.lane.b32.xlu0 %v3038, 120
      %v3061 = vpop.permute.xlu0 %3060
      %3062 = vrot.lane.b32.xlu0 %v3039, 120
      %v3063 = vpop.permute.xlu0 %3062
      %3064 = vrot.lane.b32.xlu0 %v3040, 120
      %v3065 = vpop.permute.xlu0 %3064
      %3066 = vrot.lane.b32.xlu0 %v3041, 120
      %v3067 = vpop.permute.xlu0 %3066
      %v3068 = vsel %vm664, %v3053, 0
      %v3070 = vsel %vm664, %v3055, 0
      %v3072 = vsel %vm664, %v3057, 0
      %v3074 = vsel %vm664, %v3059, 0
      %v3076 = vsel %vm664, %v3061, 0
      %v3078 = vsel %vm664, %v3063, 0
      %v3080 = vsel %vm664, %v3065, 0
      %v3082 = vsel %vm664, %v3067, 0
      %3084 = vmatprep.subr.mxu0 0.0
      %3085 = vmatpush1.msra.mxu0 %v3043
      %3086 = vmatprep.subr.mxu0 0.0
      %3087 = vmatpush1.msra.mxu0 0.0
      %3088 = vmatprep.subr.mxu0 0.0
      %3089 = vmatpush1.msra.mxu0 0.0
      %3090 = vmatprep.subr.mxu0 0.0
      %3091 = vmatpush1.msra.mxu0 0.0
      %3092 = vmatprep.subr.mxu0 0.0
      %3093 = vmatpush1.msra.mxu0 0.0
      %3094 = vmatprep.subr.mxu0 0.0
      %3095 = vmatpush1.msra.mxu0 0.0
      %3096 = vmatprep.subr.mxu0 0.0
      %3097 = vmatpush1.msra.mxu0 0.0
      %3098 = vmatprep.subr.mxu0 0.0
      %3099 = vmatpush1.msra.mxu0 0.0
      %3100 = vmatprep.subr.mxu0 0.0
      %3101 = vmatpush1.msra.mxu0 0.0
      %3102 = vmatprep.subr.mxu0 0.0
      %3103 = vmatpush1.msra.mxu0 0.0
      %3104 = vmatprep.subr.mxu0 0.0
      %3105 = vmatpush1.msra.mxu0 0.0
      %3106 = vmatprep.subr.mxu0 0.0
      %3107 = vmatpush1.msra.mxu0 0.0
      %3108 = vmatprep.subr.mxu0 0.0
      %3109 = vmatpush1.msra.mxu0 0.0
      %3110 = vmatprep.subr.mxu0 0.0
      %3111 = vmatpush1.msra.mxu0 0.0
      %3112 = vmatprep.subr.mxu0 0.0
      %3113 = vmatpush1.msra.mxu0 0.0
      %3114 = vmatprep.subr.mxu0 0.0
      %3115 = vmatpush1.msra.mxu0 0.0
      %3116 = vmatprep.subr.mxu0 0.0
      %3117 = vmatpush1.msra.mxu0 0.0
      %3118 = vmatprep.subr.mxu0 0.0
      %3119 = vmatpush1.msra.mxu0 0.0
      %3120 = vmatprep.subr.mxu0 0.0
      %3121 = vmatpush1.msra.mxu0 0.0
      %3122 = vmatprep.subr.mxu0 0.0
      %3123 = vmatpush1.msra.mxu0 0.0
      %3124 = vmatprep.subr.mxu0 0.0
      %3125 = vmatpush1.msra.mxu0 0.0
      %3126 = vmatprep.subr.mxu0 0.0
      %3127 = vmatpush1.msra.mxu0 0.0
      %3128 = vmatprep.subr.mxu0 0.0
      %3129 = vmatpush1.msra.mxu0 0.0
      %3130 = vmatprep.subr.mxu0 0.0
      %3131 = vmatpush1.msra.mxu0 0.0
      %3132 = vmatprep.subr.mxu0 0.0
      %3133 = vmatpush1.msra.mxu0 0.0
      %3134 = vmatprep.subr.mxu0 0.0
      %3135 = vmatpush1.msra.mxu0 0.0
      %3136 = vmatprep.subr.mxu0 0.0
      %3137 = vmatpush1.msra.mxu0 0.0
      %3138 = vmatprep.subr.mxu0 0.0
      %3139 = vmatpush1.msra.mxu0 0.0
      %3140 = vmatprep.subr.mxu0 0.0
      %3141 = vmatpush1.msra.mxu0 0.0
      %3142 = vmatprep.subr.mxu0 0.0
      %3143 = vmatpush1.msra.mxu0 0.0
      %3144 = vmatprep.subr.mxu0 0.0
      %3145 = vmatpush1.msra.mxu0 0.0
      %3146 = vmatprep.subr.mxu0 0.0
      %3147 = vmatpush1.msra.mxu0 0.0
      %3148 = vmatprep.mubr.f32.mxu0 0.0
      %3149 = vmatmul.mubr.f32.gmra.mrb[0].mxu0 %v3068
      %v3150 = vpop.f32.mrb[0].mxu0
      %v3151 = vadd.f32 0.0, %v3150
      %v3152 = vpop.f32.mrb[0].mxu0
      %3153 = vmatprep.mubr.f32.mxu0 0.0
      %3154 = vmatmul.mubr.f32.gmra.mrb[0].mxu0 %v3070
      %v3155 = vpop.f32.mrb[0].mxu0
      %v3156 = vadd.f32 0.0, %v3155
      %v3157 = vpop.f32.mrb[0].mxu0
      %3158 = vmatprep.mubr.f32.mxu0 0.0
      %3159 = vmatmul.mubr.f32.gmra.mrb[0].mxu0 %v3072
      %v3160 = vpop.f32.mrb[0].mxu0
      %v3161 = vadd.f32 0.0, %v3160
      %v3162 = vpop.f32.mrb[0].mxu0
      %3163 = vmatprep.mubr.f32.mxu0 0.0
      %3164 = vmatmul.mubr.f32.gmra.mrb[0].mxu0 %v3074
      %v3165 = vpop.f32.mrb[0].mxu0
      %v3166 = vadd.f32 0.0, %v3165
      %v3167 = vpop.f32.mrb[0].mxu0
      %3168 = vmatprep.mubr.f32.mxu0 0.0
      %3169 = vmatmul.mubr.f32.gmra.mrb[0].mxu0 %v3076
      %v3170 = vpop.f32.mrb[0].mxu0
      %v3171 = vadd.f32 0.0, %v3170
      %v3172 = vpop.f32.mrb[0].mxu0
      %3173 = vmatprep.mubr.f32.mxu0 0.0
      %3174 = vmatmul.mubr.f32.gmra.mrb[0].mxu0 %v3078
      %v3175 = vpop.f32.mrb[0].mxu0
      %v3176 = vadd.f32 0.0, %v3175
      %v3177 = vpop.f32.mrb[0].mxu0
      %3178 = vmatprep.mubr.f32.mxu0 0.0
      %3179 = vmatmul.mubr.f32.gmra.mrb[0].mxu0 %v3080
      %v3180 = vpop.f32.mrb[0].mxu0
      %v3181 = vadd.f32 0.0, %v3180
      %v3182 = vpop.f32.mrb[0].mxu0
      %3183 = vmatprep.mubr.f32.mxu0 0.0
      %3184 = vmatmul.mubr.f32.gmra.mrb[0].mxu0 %v3082
      %v3185 = vpop.f32.mrb[0].mxu0
      %v3186 = vadd.f32 0.0, %v3185
      %v3187 = vpop.f32.mrb[0].mxu0
      %3188 = vdwg.mxu0
      %v3189 = vadd.f32 %v3026, %v3151
      %v3190 = vadd.f32 %v3027, %v3156
      %v3191 = vadd.f32 %v3028, %v3161
      %v3192 = vadd.f32 %v3029, %v3166
      %v3193 = vadd.f32 %v3030, %v3171
      %v3194 = vadd.f32 %v3031, %v3176
      %v3195 = vadd.f32 %v3032, %v3181
      %v3196 = vadd.f32 %v3033, %v3186
      %v3197 = vld [vmem:[#allocation2 + $0x1b] sm:$0xff]
      %v3198 = vld [vmem:[#allocation2 + $0x23] sm:$0xff]
      %v3199 = vld [vmem:[#allocation2 + $0x2b] sm:$0xff]
      %v3200 = vld [vmem:[#allocation2 + $0x33] sm:$0xff]
      %v3201 = vld [vmem:[#allocation2 + $0x3b] sm:$0xff]
      %v3202 = vld [vmem:[#allocation2 + $0x43] sm:$0xff]
      %v3203 = vld [vmem:[#allocation2 + $0x4b] sm:$0xff]
      %v3204 = vld [vmem:[#allocation2 + $0x53] sm:$0xff]
      %v3205 = vmul.f32 %v3197, %v1235
      %v3206 = vmul.f32 %v3198, %v1239
      %v3207 = vmul.f32 %v3199, %v1243
      %v3208 = vmul.f32 %v3200, %v1247
      %v3209 = vmul.f32 %v3201, %v1251
      %v3210 = vmul.f32 %v3202, %v1255
      %v3211 = vmul.f32 %v3203, %v1259
      %v3212 = vmul.f32 %v3204, %v1263
      %s3213 = scalar_lea.vmem %s4, 64
      %v3214 = vld [vmem:[%s3213] sm:$0xff]
      %v3216 = vsel %vm664, %v3205, 0
      %v3219 = vsel %vm664, %v3206, 0
      %v3222 = vsel %vm664, %v3207, 0
      %v3225 = vsel %vm664, %v3208, 0
      %v3228 = vsel %vm664, %v3209, 0
      %v3231 = vsel %vm664, %v3210, 0
      %v3234 = vsel %vm664, %v3211, 0
      %v3237 = vsel %vm664, %v3212, 0
      %3239 = vmatprep.subr.mxu0 0.0
      %3240 = vmatpush1.msra.mxu0 %v3214
      %3241 = vmatprep.subr.mxu0 0.0
      %3242 = vmatpush1.msra.mxu0 0.0
      %3243 = vmatprep.subr.mxu0 0.0
      %3244 = vmatpush1.msra.mxu0 0.0
      %3245 = vmatprep.subr.mxu0 0.0
      %3246 = vmatpush1.msra.mxu0 0.0
      %3247 = vmatprep.subr.mxu0 0.0
      %3248 = vmatpush1.msra.mxu0 0.0
      %3249 = vmatprep.subr.mxu0 0.0
      %3250 = vmatpush1.msra.mxu0 0.0
      %3251 = vmatprep.subr.mxu0 0.0
      %3252 = vmatpush1.msra.mxu0 0.0
      %3253 = vmatprep.subr.mxu0 0.0
      %3254 = vmatpush1.msra.mxu0 0.0
      %3255 = vmatprep.subr.mxu0 0.0
      %3256 = vmatpush1.msra.mxu0 0.0
      %3257 = vmatprep.subr.mxu0 0.0
      %3258 = vmatpush1.msra.mxu0 0.0
      %3259 = vmatprep.subr.mxu0 0.0
      %3260 = vmatpush1.msra.mxu0 0.0
      %3261 = vmatprep.subr.mxu0 0.0
      %3262 = vmatpush1.msra.mxu0 0.0
      %3263 = vmatprep.subr.mxu0 0.0
      %3264 = vmatpush1.msra.mxu0 0.0
      %3265 = vmatprep.subr.mxu0 0.0
      %3266 = vmatpush1.msra.mxu0 0.0
      %3267 = vmatprep.subr.mxu0 0.0
      %3268 = vmatpush1.msra.mxu0 0.0
      %3269 = vmatprep.subr.mxu0 0.0
      %3270 = vmatpush1.msra.mxu0 0.0
      %3271 = vmatprep.subr.mxu0 0.0
      %3272 = vmatpush1.msra.mxu0 0.0
      %3273 = vmatprep.subr.mxu0 0.0
      %3274 = vmatpush1.msra.mxu0 0.0
      %3275 = vmatprep.subr.mxu0 0.0
      %3276 = vmatpush1.msra.mxu0 0.0
      %3277 = vmatprep.subr.mxu0 0.0
      %3278 = vmatpush1.msra.mxu0 0.0
      %3279 = vmatprep.subr.mxu0 0.0
      %3280 = vmatpush1.msra.mxu0 0.0
      %3281 = vmatprep.subr.mxu0 0.0
      %3282 = vmatpush1.msra.mxu0 0.0
      %3283 = vmatprep.subr.mxu0 0.0
      %3284 = vmatpush1.msra.mxu0 0.0
      %3285 = vmatprep.subr.mxu0 0.0
      %3286 = vmatpush1.msra.mxu0 0.0
      %3287 = vmatprep.subr.mxu0 0.0
      %3288 = vmatpush1.msra.mxu0 0.0
      %3289 = vmatprep.subr.mxu0 0.0
      %3290 = vmatpush1.msra.mxu0 0.0
      %3291 = vmatprep.subr.mxu0 0.0
      %3292 = vmatpush1.msra.mxu0 0.0
      %3293 = vmatprep.subr.mxu0 0.0
      %3294 = vmatpush1.msra.mxu0 0.0
      %3295 = vmatprep.subr.mxu0 0.0
      %3296 = vmatpush1.msra.mxu0 0.0
      %3297 = vmatprep.subr.mxu0 0.0
      %3298 = vmatpush1.msra.mxu0 0.0
      %3299 = vmatprep.subr.mxu0 0.0
      %3300 = vmatpush1.msra.mxu0 0.0
      %3301 = vmatprep.subr.mxu0 0.0
      %3302 = vmatpush1.msra.mxu0 0.0
      %3303 = vmatprep.mubr.f32.mxu0 0.0
      %3304 = vmatmul.mubr.f32.gmra.mrb[0].mxu0 %v3216
      %v3305 = vpop.f32.mrb[0].mxu0
      %v3306 = vadd.f32 0.0, %v3305
      %v3307 = vpop.f32.mrb[0].mxu0
      %3308 = vmatprep.mubr.f32.mxu0 0.0
      %3309 = vmatmul.mubr.f32.gmra.mrb[0].mxu0 %v3219
      %v3310 = vpop.f32.mrb[0].mxu0
      %v3311 = vadd.f32 0.0, %v3310
      %v3312 = vpop.f32.mrb[0].mxu0
      %3313 = vmatprep.mubr.f32.mxu0 0.0
      %3314 = vmatmul.mubr.f32.gmra.mrb[0].mxu0 %v3222
      %v3315 = vpop.f32.mrb[0].mxu0
      %v3316 = vadd.f32 0.0, %v3315
      %v3317 = vpop.f32.mrb[0].mxu0
      %3318 = vmatprep.mubr.f32.mxu0 0.0
      %3319 = vmatmul.mubr.f32.gmra.mrb[0].mxu0 %v3225
      %v3320 = vpop.f32.mrb[0].mxu0
      %v3321 = vadd.f32 0.0, %v3320
      %v3322 = vpop.f32.mrb[0].mxu0
      %3323 = vmatprep.mubr.f32.mxu0 0.0
      %3324 = vmatmul.mubr.f32.gmra.mrb[0].mxu0 %v3228
      %v3325 = vpop.f32.mrb[0].mxu0
      %v3326 = vadd.f32 0.0, %v3325
      %v3327 = vpop.f32.mrb[0].mxu0
      %3328 = vmatprep.mubr.f32.mxu0 0.0
      %3329 = vmatmul.mubr.f32.gmra.mrb[0].mxu0 %v3231
      %v3330 = vpop.f32.mrb[0].mxu0
      %v3331 = vadd.f32 0.0, %v3330
      %v3332 = vpop.f32.mrb[0].mxu0
      %3333 = vmatprep.mubr.f32.mxu0 0.0
      %3334 = vmatmul.mubr.f32.gmra.mrb[0].mxu0 %v3234
      %v3335 = vpop.f32.mrb[0].mxu0
      %v3336 = vadd.f32 0.0, %v3335
      %v3337 = vpop.f32.mrb[0].mxu0
      %3338 = vmatprep.mubr.f32.mxu0 0.0
      %3339 = vmatmul.mubr.f32.gmra.mrb[0].mxu0 %v3237
      %v3340 = vpop.f32.mrb[0].mxu0
      %v3341 = vadd.f32 0.0, %v3340
      %v3342 = vpop.f32.mrb[0].mxu0
      %3343 = vdwg.mxu0
      %v3344 = vadd.f32 %v3189, %v3306
      %v3345 = vadd.f32 %v3190, %v3311
      %v3346 = vadd.f32 %v3191, %v3316
      %v3347 = vadd.f32 %v3192, %v3321
      %v3348 = vadd.f32 %v3193, %v3326
      %v3349 = vadd.f32 %v3194, %v3331
      %v3350 = vadd.f32 %v3195, %v3336
      %v3351 = vadd.f32 %v3196, %v3341
      %v3352 = vld [vmem:[#allocation2 + $0x24] sm:$0xff]
      %v3353 = vld [vmem:[#allocation2 + $0x2c] sm:$0xff]
      %v3354 = vld [vmem:[#allocation2 + $0x34] sm:$0xff]
      %v3355 = vld [vmem:[#allocation2 + $0x3c] sm:$0xff]
      %v3356 = vld [vmem:[#allocation2 + $0x44] sm:$0xff]
      %v3357 = vld [vmem:[#allocation2 + $0x4c] sm:$0xff]
      %v3358 = vld [vmem:[#allocation2 + $0x54] sm:$0xff]
      %v3359 = vld [vmem:[#allocation2 + $0x5c] sm:$0xff]
      %v3360 = vmul.f32 %v3352, %v1422
      %v3361 = vmul.f32 %v3353, %v1426
      %v3362 = vmul.f32 %v3354, %v1430
      %v3363 = vmul.f32 %v3355, %v1434
      %v3364 = vmul.f32 %v3356, %v1438
      %v3365 = vmul.f32 %v3357, %v1442
      %v3366 = vmul.f32 %v3358, %v1446
      %v3367 = vmul.f32 %v3359, %v1450
      %s3368 = scalar_lea.vmem %s4, 136
      %v3369 = vld [vmem:[%s3368] sm:$0xff]
      %3378 = vrot.lane.b32.xlu0 %v3360, 120
      %v3379 = vpop.permute.xlu0 %3378
      %3380 = vrot.lane.b32.xlu0 %v3361, 120
      %v3381 = vpop.permute.xlu0 %3380
      %3382 = vrot.lane.b32.xlu0 %v3362, 120
      %v3383 = vpop.permute.xlu0 %3382
      %3384 = vrot.lane.b32.xlu0 %v3363, 120
      %v3385 = vpop.permute.xlu0 %3384
      %3386 = vrot.lane.b32.xlu0 %v3364, 120
      %v3387 = vpop.permute.xlu0 %3386
      %3388 = vrot.lane.b32.xlu0 %v3365, 120
      %v3389 = vpop.permute.xlu0 %3388
      %3390 = vrot.lane.b32.xlu0 %v3366, 120
      %v3391 = vpop.permute.xlu0 %3390
      %3392 = vrot.lane.b32.xlu0 %v3367, 120
      %v3393 = vpop.permute.xlu0 %3392
      %v3394 = vsel %vm664, %v3379, 0
      %v3396 = vsel %vm664, %v3381, 0
      %v3398 = vsel %vm664, %v3383, 0
      %v3400 = vsel %vm664, %v3385, 0
      %v3402 = vsel %vm664, %v3387, 0
      %v3404 = vsel %vm664, %v3389, 0
      %v3406 = vsel %vm664, %v3391, 0
      %v3408 = vsel %vm664, %v3393, 0
      %3410 = vmatprep.subr.mxu0 0.0
      %3411 = vmatpush1.msra.mxu0 %v3369
      %3412 = vmatprep.subr.mxu0 0.0
      %3413 = vmatpush1.msra.mxu0 0.0
      %3414 = vmatprep.subr.mxu0 0.0
      %3415 = vmatpush1.msra.mxu0 0.0
      %3416 = vmatprep.subr.mxu0 0.0
      %3417 = vmatpush1.msra.mxu0 0.0
      %3418 = vmatprep.subr.mxu0 0.0
      %3419 = vmatpush1.msra.mxu0 0.0
      %3420 = vmatprep.subr.mxu0 0.0
      %3421 = vmatpush1.msra.mxu0 0.0
      %3422 = vmatprep.subr.mxu0 0.0
      %3423 = vmatpush1.msra.mxu0 0.0
      %3424 = vmatprep.subr.mxu0 0.0
      %3425 = vmatpush1.msra.mxu0 0.0
      %3426 = vmatprep.subr.mxu0 0.0
      %3427 = vmatpush1.msra.mxu0 0.0
      %3428 = vmatprep.subr.mxu0 0.0
      %3429 = vmatpush1.msra.mxu0 0.0
      %3430 = vmatprep.subr.mxu0 0.0
      %3431 = vmatpush1.msra.mxu0 0.0
      %3432 = vmatprep.subr.mxu0 0.0
      %3433 = vmatpush1.msra.mxu0 0.0
      %3434 = vmatprep.subr.mxu0 0.0
      %3435 = vmatpush1.msra.mxu0 0.0
      %3436 = vmatprep.subr.mxu0 0.0
      %3437 = vmatpush1.msra.mxu0 0.0
      %3438 = vmatprep.subr.mxu0 0.0
      %3439 = vmatpush1.msra.mxu0 0.0
      %3440 = vmatprep.subr.mxu0 0.0
      %3441 = vmatpush1.msra.mxu0 0.0
      %3442 = vmatprep.subr.mxu0 0.0
      %3443 = vmatpush1.msra.mxu0 0.0
      %3444 = vmatprep.subr.mxu0 0.0
      %3445 = vmatpush1.msra.mxu0 0.0
      %3446 = vmatprep.subr.mxu0 0.0
      %3447 = vmatpush1.msra.mxu0 0.0
      %3448 = vmatprep.subr.mxu0 0.0
      %3449 = vmatpush1.msra.mxu0 0.0
      %3450 = vmatprep.subr.mxu0 0.0
      %3451 = vmatpush1.msra.mxu0 0.0
      %3452 = vmatprep.subr.mxu0 0.0
      %3453 = vmatpush1.msra.mxu0 0.0
      %3454 = vmatprep.subr.mxu0 0.0
      %3455 = vmatpush1.msra.mxu0 0.0
      %3456 = vmatprep.subr.mxu0 0.0
      %3457 = vmatpush1.msra.mxu0 0.0
      %3458 = vmatprep.subr.mxu0 0.0
      %3459 = vmatpush1.msra.mxu0 0.0
      %3460 = vmatprep.subr.mxu0 0.0
      %3461 = vmatpush1.msra.mxu0 0.0
      %3462 = vmatprep.subr.mxu0 0.0
      %3463 = vmatpush1.msra.mxu0 0.0
      %3464 = vmatprep.subr.mxu0 0.0
      %3465 = vmatpush1.msra.mxu0 0.0
      %3466 = vmatprep.subr.mxu0 0.0
      %3467 = vmatpush1.msra.mxu0 0.0
      %3468 = vmatprep.subr.mxu0 0.0
      %3469 = vmatpush1.msra.mxu0 0.0
      %3470 = vmatprep.subr.mxu0 0.0
      %3471 = vmatpush1.msra.mxu0 0.0
      %3472 = vmatprep.subr.mxu0 0.0
      %3473 = vmatpush1.msra.mxu0 0.0
      %3474 = vmatprep.mubr.f32.mxu0 0.0
      %3475 = vmatmul.mubr.f32.gmra.mrb[0].mxu0 %v3394
      %v3476 = vpop.f32.mrb[0].mxu0
      %v3477 = vadd.f32 0.0, %v3476
      %v3478 = vpop.f32.mrb[0].mxu0
      %3479 = vmatprep.mubr.f32.mxu0 0.0
      %3480 = vmatmul.mubr.f32.gmra.mrb[0].mxu0 %v3396
      %v3481 = vpop.f32.mrb[0].mxu0
      %v3482 = vadd.f32 0.0, %v3481
      %v3483 = vpop.f32.mrb[0].mxu0
      %3484 = vmatprep.mubr.f32.mxu0 0.0
      %3485 = vmatmul.mubr.f32.gmra.mrb[0].mxu0 %v3398
      %v3486 = vpop.f32.mrb[0].mxu0
      %v3487 = vadd.f32 0.0, %v3486
      %v3488 = vpop.f32.mrb[0].mxu0
      %3489 = vmatprep.mubr.f32.mxu0 0.0
      %3490 = vmatmul.mubr.f32.gmra.mrb[0].mxu0 %v3400
      %v3491 = vpop.f32.mrb[0].mxu0
      %v3492 = vadd.f32 0.0, %v3491
      %v3493 = vpop.f32.mrb[0].mxu0
      %3494 = vmatprep.mubr.f32.mxu0 0.0
      %3495 = vmatmul.mubr.f32.gmra.mrb[0].mxu0 %v3402
      %v3496 = vpop.f32.mrb[0].mxu0
      %v3497 = vadd.f32 0.0, %v3496
      %v3498 = vpop.f32.mrb[0].mxu0
      %3499 = vmatprep.mubr.f32.mxu0 0.0
      %3500 = vmatmul.mubr.f32.gmra.mrb[0].mxu0 %v3404
      %v3501 = vpop.f32.mrb[0].mxu0
      %v3502 = vadd.f32 0.0, %v3501
      %v3503 = vpop.f32.mrb[0].mxu0
      %3504 = vmatprep.mubr.f32.mxu0 0.0
      %3505 = vmatmul.mubr.f32.gmra.mrb[0].mxu0 %v3406
      %v3506 = vpop.f32.mrb[0].mxu0
      %v3507 = vadd.f32 0.0, %v3506
      %v3508 = vpop.f32.mrb[0].mxu0
      %3509 = vmatprep.mubr.f32.mxu0 0.0
      %3510 = vmatmul.mubr.f32.gmra.mrb[0].mxu0 %v3408
      %v3511 = vpop.f32.mrb[0].mxu0
      %v3512 = vadd.f32 0.0, %v3511
      %v3513 = vpop.f32.mrb[0].mxu0
      %3514 = vdwg.mxu0
      %v3515 = vadd.f32 %v3344, %v3477
      %v3516 = vadd.f32 %v3345, %v3482
      %v3517 = vadd.f32 %v3346, %v3487
      %v3518 = vadd.f32 %v3347, %v3492
      %v3519 = vadd.f32 %v3348, %v3497
      %v3520 = vadd.f32 %v3349, %v3502
      %v3521 = vadd.f32 %v3350, %v3507
      %v3522 = vadd.f32 %v3351, %v3512
      %v3523 = vld [vmem:[%s7] sm:$0x1]
      %v3524 = vlaneseq
      %v3525 = vshrl.u32 %v3524, 7
      %v3526 = vsub.s32 0, %v3525
      %v3527 = vrot.slane %v3523, %v3526
      %v3528 = vadd.f32 %v3515, %v3527
      %v3529 = vadd.f32 %v3516, %v3527
      %v3530 = vadd.f32 %v3517, %v3527
      %v3531 = vadd.f32 %v3518, %v3527
      %v3532 = vadd.f32 %v3519, %v3527
      %v3533 = vadd.f32 %v3520, %v3527
      %v3534 = vadd.f32 %v3521, %v3527
      %v3535 = vadd.f32 %v3522, %v3527
      %v3536 = vadd.f32 %v3528, %v463
      %v3537 = vadd.f32 %v3529, %v466
      %v3538 = vadd.f32 %v3530, %v471
      %v3539 = vadd.f32 %v3531, %v474
      %v3540 = vadd.f32 %v3532, %v479
      %v3541 = vadd.f32 %v3533, %v482
      %v3542 = vadd.f32 %v3534, %v487
      %v3543 = vadd.f32 %v3535, %v490
      %vm3544 = vcmp.ge.f32.partialorder %v3536, 0.0
      %vm3545 = vcmp.ge.f32.partialorder %v3537, 0.0
      %vm3546 = vcmp.ge.f32.partialorder %v3538, 0.0
      %vm3547 = vcmp.ge.f32.partialorder %v3539, 0.0
      %vm3548 = vcmp.ge.f32.partialorder %v3540, 0.0
      %vm3549 = vcmp.ge.f32.partialorder %v3541, 0.0
      %vm3550 = vcmp.ge.f32.partialorder %v3542, 0.0
      %vm3551 = vcmp.ge.f32.partialorder %v3543, 0.0
      %v3552 = vld [vmem:[%s7 + $0x2] sm:$0x1]
      %v3553 = vlaneseq
      %v3554 = vshrl.u32 %v3553, 7
      %v3555 = vsub.s32 0, %v3554
      %v3556 = vrot.slane %v3552, %v3555
      %v3557 = vmul.f32 %v3556, %v3536
      %v3558 = vmul.f32 %v3556, %v3537
      %v3559 = vmul.f32 %v3556, %v3538
      %v3560 = vmul.f32 %v3556, %v3539
      %v3561 = vmul.f32 %v3556, %v3540
      %v3562 = vmul.f32 %v3556, %v3541
      %v3563 = vmul.f32 %v3556, %v3542
      %v3564 = vmul.f32 %v3556, %v3543
      %v3565 = vsel %vm3544, %v3536, %v3557
      %v3566 = vsel %vm3545, %v3537, %v3558
      %v3567 = vsel %vm3546, %v3538, %v3559
      %v3568 = vsel %vm3547, %v3539, %v3560
      %v3569 = vsel %vm3548, %v3540, %v3561
      %v3570 = vsel %vm3549, %v3541, %v3562
      %v3571 = vsel %vm3550, %v3542, %v3563
      %v3572 = vsel %vm3551, %v3543, %v3564
      %3573 = vst.msk [vmem:[#allocation3] sm:$0xff] %vm493, 0.0
      %vm3574 = vcmask 122880
      %3575 = vst.msk [vmem:[#allocation3 + $0x8] sm:$0x1] %vm3574, 0.0
      %3576 = vst.msk [vmem:[#allocation3 + $0x49] sm:$0xff] %vm493, 0.0
      %3577 = vst.msk [vmem:[#allocation3 + $0x51] sm:$0x1] %vm3574, 0.0
      %3578 = vst.msk [vmem:[#allocation3 + $0x9] sm:$0xff] %vm493, %v3565
      %3579 = vst.msk [vmem:[#allocation3 + $0x11] sm:$0xff] %vm493, %v3566
      %3580 = vst.msk [vmem:[#allocation3 + $0x19] sm:$0xff] %vm493, %v3567
      %3581 = vst.msk [vmem:[#allocation3 + $0x21] sm:$0xff] %vm493, %v3568
      %3582 = vst.msk [vmem:[#allocation3 + $0x29] sm:$0xff] %vm493, %v3569
      %3583 = vst.msk [vmem:[#allocation3 + $0x31] sm:$0xff] %vm493, %v3570
      %3584 = vst.msk [vmem:[#allocation3 + $0x39] sm:$0xff] %vm493, %v3571
      %3585 = vst.msk [vmem:[#allocation3 + $0x41] sm:$0xff] %vm493, %v3572
      %v3586 = vld [vmem:[#allocation3] sm:$0xff]
      %v3587 = vld [vmem:[#allocation3 + $0x8] sm:$0xff]
      %v3588 = vld [vmem:[#allocation3 + $0x10] sm:$0xff]
      %v3589 = vld [vmem:[#allocation3 + $0x18] sm:$0xff]
      %v3590 = vld [vmem:[#allocation3 + $0x20] sm:$0xff]
      %v3591 = vld [vmem:[#allocation3 + $0x28] sm:$0xff]
      %v3592 = vld [vmem:[#allocation3 + $0x30] sm:$0xff]
      %v3593 = vld [vmem:[#allocation3 + $0x38] sm:$0xff]
      %v3594 = vld [vmem:[%s2] sm:$0xff]
      %v3595 = vld [vmem:[%s2 + $0x8] sm:$0xff]
      %v3596 = vld [vmem:[%s2 + $0x10] sm:$0xff]
      %v3597 = vld [vmem:[%s2 + $0x18] sm:$0xff]
      %v3598 = vld [vmem:[%s2 + $0x20] sm:$0xff]
      %v3599 = vld [vmem:[%s2 + $0x28] sm:$0xff]
      %v3600 = vld [vmem:[%s2 + $0x30] sm:$0xff]
      %v3601 = vld [vmem:[%s2 + $0x38] sm:$0xff]
      %3603 = vset.pattern.permute.xlu0 1
      %3604 = vperm.xlu0 %3603, %v3594
      %v3605 = vpop.permute.xlu0 %3604
      %3608 = vset.pattern.permute.xlu0 1
      %3609 = vperm.xlu0 %3608, %v3595
      %v3610 = vpop.permute.xlu0 %3609
      %3613 = vset.pattern.permute.xlu0 1
      %3614 = vperm.xlu0 %3613, %v3596
      %v3615 = vpop.permute.xlu0 %3614
      %3618 = vset.pattern.permute.xlu0 1
      %3619 = vperm.xlu0 %3618, %v3597
      %v3620 = vpop.permute.xlu0 %3619
      %3623 = vset.pattern.permute.xlu0 1
      %3624 = vperm.xlu0 %3623, %v3598
      %v3625 = vpop.permute.xlu0 %3624
      %3628 = vset.pattern.permute.xlu0 1
      %3629 = vperm.xlu0 %3628, %v3599
      %v3630 = vpop.permute.xlu0 %3629
      %3633 = vset.pattern.permute.xlu0 1
      %3634 = vperm.xlu0 %3633, %v3600
      %v3635 = vpop.permute.xlu0 %3634
      %3638 = vset.pattern.permute.xlu0 1
      %3639 = vperm.xlu0 %3638, %v3601
      %v3640 = vpop.permute.xlu0 %3639
      %v3642 = vmul.f32 %v3586, %v3605
      %v3643 = vmul.f32 %v3587, %v3610
      %v3644 = vmul.f32 %v3588, %v3615
      %v3645 = vmul.f32 %v3589, %v3620
      %v3646 = vmul.f32 %v3590, %v3625
      %v3647 = vmul.f32 %v3591, %v3630
      %v3648 = vmul.f32 %v3592, %v3635
      %v3649 = vmul.f32 %v3593, %v3640
      %v3650 = vld [vmem:[%s5] sm:$0xff]
      %v3651 = vld [vmem:[%s5 + $0x8] sm:$0xff]
      %v3652 = vld [vmem:[#allocation3 + $0x1] sm:$0xff]
      %v3653 = vld [vmem:[#allocation3 + $0x9] sm:$0xff]
      %v3654 = vld [vmem:[#allocation3 + $0x11] sm:$0xff]
      %v3655 = vld [vmem:[#allocation3 + $0x19] sm:$0xff]
      %v3656 = vld [vmem:[#allocation3 + $0x21] sm:$0xff]
      %v3657 = vld [vmem:[#allocation3 + $0x29] sm:$0xff]
      %v3658 = vld [vmem:[#allocation3 + $0x31] sm:$0xff]
      %v3659 = vld [vmem:[#allocation3 + $0x39] sm:$0xff]
      %s3660 = scalar_lea.vmem %s5, 16
      %v3661 = vld [vmem:[%s3660] sm:$0xff]
      %v3662 = vld [vmem:[%s3660 + $0x8] sm:$0xff]
      %v3664 = vsel %vm493, %v3652, 0
      %v3667 = vsel %vm493, %v3653, 0
      %v3670 = vsel %vm493, %v3654, 0
      %v3673 = vsel %vm493, %v3655, 0
      %v3676 = vsel %vm493, %v3656, 0
      %v3679 = vsel %vm493, %v3657, 0
      %v3682 = vsel %vm493, %v3658, 0
      %v3685 = vsel %vm493, %v3659, 0
      %3687 = vmatprep.subr.mxu0 0.0
      %3688 = vmatpush1.msra.mxu0 %v3661
      %3689 = vmatprep.subr.mxu0 0.0
      %3690 = vmatpush1.msra.mxu0 %v3662
      %3691 = vmatprep.subr.mxu0 0.0
      %3692 = vmatpush1.msra.mxu0 0.0
      %3693 = vmatprep.subr.mxu0 0.0
      %3694 = vmatpush1.msra.mxu0 0.0
      %3695 = vmatprep.subr.mxu0 0.0
      %3696 = vmatpush1.msra.mxu0 0.0
      %3697 = vmatprep.subr.mxu0 0.0
      %3698 = vmatpush1.msra.mxu0 0.0
      %3699 = vmatprep.subr.mxu0 0.0
      %3700 = vmatpush1.msra.mxu0 0.0
      %3701 = vmatprep.subr.mxu0 0.0
      %3702 = vmatpush1.msra.mxu0 0.0
      %3703 = vmatprep.subr.mxu0 0.0
      %3704 = vmatpush1.msra.mxu0 0.0
      %3705 = vmatprep.subr.mxu0 0.0
      %3706 = vmatpush1.msra.mxu0 0.0
      %3707 = vmatprep.subr.mxu0 0.0
      %3708 = vmatpush1.msra.mxu0 0.0
      %3709 = vmatprep.subr.mxu0 0.0
      %3710 = vmatpush1.msra.mxu0 0.0
      %3711 = vmatprep.subr.mxu0 0.0
      %3712 = vmatpush1.msra.mxu0 0.0
      %3713 = vmatprep.subr.mxu0 0.0
      %3714 = vmatpush1.msra.mxu0 0.0
      %3715 = vmatprep.subr.mxu0 0.0
      %3716 = vmatpush1.msra.mxu0 0.0
      %3717 = vmatprep.subr.mxu0 0.0
      %3718 = vmatpush1.msra.mxu0 0.0
      %3719 = vmatprep.subr.mxu0 0.0
      %3720 = vmatpush1.msra.mxu0 0.0
      %3721 = vmatprep.subr.mxu0 0.0
      %3722 = vmatpush1.msra.mxu0 0.0
      %3723 = vmatprep.subr.mxu0 0.0
      %3724 = vmatpush1.msra.mxu0 0.0
      %3725 = vmatprep.subr.mxu0 0.0
      %3726 = vmatpush1.msra.mxu0 0.0
      %3727 = vmatprep.subr.mxu0 0.0
      %3728 = vmatpush1.msra.mxu0 0.0
      %3729 = vmatprep.subr.mxu0 0.0
      %3730 = vmatpush1.msra.mxu0 0.0
      %3731 = vmatprep.subr.mxu0 0.0
      %3732 = vmatpush1.msra.mxu0 0.0
      %3733 = vmatprep.subr.mxu0 0.0
      %3734 = vmatpush1.msra.mxu0 0.0
      %3735 = vmatprep.subr.mxu0 0.0
      %3736 = vmatpush1.msra.mxu0 0.0
      %3737 = vmatprep.subr.mxu0 0.0
      %3738 = vmatpush1.msra.mxu0 0.0
      %3739 = vmatprep.subr.mxu0 0.0
      %3740 = vmatpush1.msra.mxu0 0.0
      %3741 = vmatprep.subr.mxu0 0.0
      %3742 = vmatpush1.msra.mxu0 0.0
      %3743 = vmatprep.subr.mxu0 0.0
      %3744 = vmatpush1.msra.mxu0 0.0
      %3745 = vmatprep.subr.mxu0 0.0
      %3746 = vmatpush1.msra.mxu0 0.0
      %3747 = vmatprep.subr.mxu0 0.0
      %3748 = vmatpush1.msra.mxu0 0.0
      %3749 = vmatprep.subr.mxu0 0.0
      %3750 = vmatpush1.msra.mxu0 0.0
      %3751 = vmatprep.mubr.f32.mxu0 0.0
      %3752 = vmatmul.mubr.f32.gmra.mrb[0].mxu0 %v3664
      %v3753 = vpop.f32.mrb[0].mxu0
      %v3754 = vadd.f32 0.0, %v3753
      %v3755 = vpop.f32.mrb[0].mxu0
      %3756 = vmatprep.mubr.f32.mxu0 0.0
      %3757 = vmatmul.mubr.f32.gmra.mrb[0].mxu0 %v3667
      %v3758 = vpop.f32.mrb[0].mxu0
      %v3759 = vadd.f32 0.0, %v3758
      %v3760 = vpop.f32.mrb[0].mxu0
      %3761 = vmatprep.mubr.f32.mxu0 0.0
      %3762 = vmatmul.mubr.f32.gmra.mrb[0].mxu0 %v3670
      %v3763 = vpop.f32.mrb[0].mxu0
      %v3764 = vadd.f32 0.0, %v3763
      %v3765 = vpop.f32.mrb[0].mxu0
      %3766 = vmatprep.mubr.f32.mxu0 0.0
      %3767 = vmatmul.mubr.f32.gmra.mrb[0].mxu0 %v3673
      %v3768 = vpop.f32.mrb[0].mxu0
      %v3769 = vadd.f32 0.0, %v3768
      %v3770 = vpop.f32.mrb[0].mxu0
      %3771 = vmatprep.mubr.f32.mxu0 0.0
      %3772 = vmatmul.mubr.f32.gmra.mrb[0].mxu0 %v3676
      %v3773 = vpop.f32.mrb[0].mxu0
      %v3774 = vadd.f32 0.0, %v3773
      %v3775 = vpop.f32.mrb[0].mxu0
      %3776 = vmatprep.mubr.f32.mxu0 0.0
      %3777 = vmatmul.mubr.f32.gmra.mrb[0].mxu0 %v3679
      %v3778 = vpop.f32.mrb[0].mxu0
      %v3779 = vadd.f32 0.0, %v3778
      %v3780 = vpop.f32.mrb[0].mxu0
      %3781 = vmatprep.mubr.f32.mxu0 0.0
      %3782 = vmatmul.mubr.f32.gmra.mrb[0].mxu0 %v3682
      %v3783 = vpop.f32.mrb[0].mxu0
      %v3784 = vadd.f32 0.0, %v3783
      %v3785 = vpop.f32.mrb[0].mxu0
      %3786 = vmatprep.mubr.f32.mxu0 0.0
      %3787 = vmatmul.mubr.f32.gmra.mrb[0].mxu0 %v3685
      %v3788 = vpop.f32.mrb[0].mxu0
      %v3789 = vadd.f32 0.0, %v3788
      %v3790 = vpop.f32.mrb[0].mxu0
      %3791 = vdwg.mxu0
      %v3793 = vsel %vm493, %v3642, 0
      %v3796 = vsel %vm493, %v3643, 0
      %v3799 = vsel %vm493, %v3644, 0
      %v3802 = vsel %vm493, %v3645, 0
      %v3805 = vsel %vm493, %v3646, 0
      %v3808 = vsel %vm493, %v3647, 0
      %v3811 = vsel %vm493, %v3648, 0
      %v3814 = vsel %vm493, %v3649, 0
      %3816 = vmatprep.subr.mxu0 0.0
      %3817 = vmatpush1.msra.mxu0 %v3650
      %3818 = vmatprep.subr.mxu0 0.0
      %3819 = vmatpush1.msra.mxu0 %v3651
      %3820 = vmatprep.subr.mxu0 0.0
      %3821 = vmatpush1.msra.mxu0 0.0
      %3822 = vmatprep.subr.mxu0 0.0
      %3823 = vmatpush1.msra.mxu0 0.0
      %3824 = vmatprep.subr.mxu0 0.0
      %3825 = vmatpush1.msra.mxu0 0.0
      %3826 = vmatprep.subr.mxu0 0.0
      %3827 = vmatpush1.msra.mxu0 0.0
      %3828 = vmatprep.subr.mxu0 0.0
      %3829 = vmatpush1.msra.mxu0 0.0
      %3830 = vmatprep.subr.mxu0 0.0
      %3831 = vmatpush1.msra.mxu0 0.0
      %3832 = vmatprep.subr.mxu0 0.0
      %3833 = vmatpush1.msra.mxu0 0.0
      %3834 = vmatprep.subr.mxu0 0.0
      %3835 = vmatpush1.msra.mxu0 0.0
      %3836 = vmatprep.subr.mxu0 0.0
      %3837 = vmatpush1.msra.mxu0 0.0
      %3838 = vmatprep.subr.mxu0 0.0
      %3839 = vmatpush1.msra.mxu0 0.0
      %3840 = vmatprep.subr.mxu0 0.0
      %3841 = vmatpush1.msra.mxu0 0.0
      %3842 = vmatprep.subr.mxu0 0.0
      %3843 = vmatpush1.msra.mxu0 0.0
      %3844 = vmatprep.subr.mxu0 0.0
      %3845 = vmatpush1.msra.mxu0 0.0
      %3846 = vmatprep.subr.mxu0 0.0
      %3847 = vmatpush1.msra.mxu0 0.0
      %3848 = vmatprep.subr.mxu0 0.0
      %3849 = vmatpush1.msra.mxu0 0.0
      %3850 = vmatprep.subr.mxu0 0.0
      %3851 = vmatpush1.msra.mxu0 0.0
      %3852 = vmatprep.subr.mxu0 0.0
      %3853 = vmatpush1.msra.mxu0 0.0
      %3854 = vmatprep.subr.mxu0 0.0
      %3855 = vmatpush1.msra.mxu0 0.0
      %3856 = vmatprep.subr.mxu0 0.0
      %3857 = vmatpush1.msra.mxu0 0.0
      %3858 = vmatprep.subr.mxu0 0.0
      %3859 = vmatpush1.msra.mxu0 0.0
      %3860 = vmatprep.subr.mxu0 0.0
      %3861 = vmatpush1.msra.mxu0 0.0
      %3862 = vmatprep.subr.mxu0 0.0
      %3863 = vmatpush1.msra.mxu0 0.0
      %3864 = vmatprep.subr.mxu0 0.0
      %3865 = vmatpush1.msra.mxu0 0.0
      %3866 = vmatprep.subr.mxu0 0.0
      %3867 = vmatpush1.msra.mxu0 0.0
      %3868 = vmatprep.subr.mxu0 0.0
      %3869 = vmatpush1.msra.mxu0 0.0
      %3870 = vmatprep.subr.mxu0 0.0
      %3871 = vmatpush1.msra.mxu0 0.0
      %3872 = vmatprep.subr.mxu0 0.0
      %3873 = vmatpush1.msra.mxu0 0.0
      %3874 = vmatprep.subr.mxu0 0.0
      %3875 = vmatpush1.msra.mxu0 0.0
      %3876 = vmatprep.subr.mxu0 0.0
      %3877 = vmatpush1.msra.mxu0 0.0
      %3878 = vmatprep.subr.mxu0 0.0
      %3879 = vmatpush1.msra.mxu0 0.0
      %3880 = vmatprep.mubr.f32.mxu0 0.0
      %3881 = vmatmul.mubr.f32.gmra.mrb[0].mxu0 %v3793
      %v3882 = vpop.f32.mrb[0].mxu0
      %v3883 = vadd.f32 %v3754, %v3882
      %v3884 = vpop.f32.mrb[0].mxu0
      %3885 = vmatprep.mubr.f32.mxu0 0.0
      %3886 = vmatmul.mubr.f32.gmra.mrb[0].mxu0 %v3796
      %v3887 = vpop.f32.mrb[0].mxu0
      %v3888 = vadd.f32 %v3759, %v3887
      %v3889 = vpop.f32.mrb[0].mxu0
      %3890 = vmatprep.mubr.f32.mxu0 0.0
      %3891 = vmatmul.mubr.f32.gmra.mrb[0].mxu0 %v3799
      %v3892 = vpop.f32.mrb[0].mxu0
      %v3893 = vadd.f32 %v3764, %v3892
      %v3894 = vpop.f32.mrb[0].mxu0
      %3895 = vmatprep.mubr.f32.mxu0 0.0
      %3896 = vmatmul.mubr.f32.gmra.mrb[0].mxu0 %v3802
      %v3897 = vpop.f32.mrb[0].mxu0
      %v3898 = vadd.f32 %v3769, %v3897
      %v3899 = vpop.f32.mrb[0].mxu0
      %3900 = vmatprep.mubr.f32.mxu0 0.0
      %3901 = vmatmul.mubr.f32.gmra.mrb[0].mxu0 %v3805
      %v3902 = vpop.f32.mrb[0].mxu0
      %v3903 = vadd.f32 %v3774, %v3902
      %v3904 = vpop.f32.mrb[0].mxu0
      %3905 = vmatprep.mubr.f32.mxu0 0.0
      %3906 = vmatmul.mubr.f32.gmra.mrb[0].mxu0 %v3808
      %v3907 = vpop.f32.mrb[0].mxu0
      %v3908 = vadd.f32 %v3779, %v3907
      %v3909 = vpop.f32.mrb[0].mxu0
      %3910 = vmatprep.mubr.f32.mxu0 0.0
      %3911 = vmatmul.mubr.f32.gmra.mrb[0].mxu0 %v3811
      %v3912 = vpop.f32.mrb[0].mxu0
      %v3913 = vadd.f32 %v3784, %v3912
      %v3914 = vpop.f32.mrb[0].mxu0
      %3915 = vmatprep.mubr.f32.mxu0 0.0
      %3916 = vmatmul.mubr.f32.gmra.mrb[0].mxu0 %v3814
      %v3917 = vpop.f32.mrb[0].mxu0
      %v3918 = vadd.f32 %v3789, %v3917
      %v3919 = vpop.f32.mrb[0].mxu0
      %3920 = vdwg.mxu0
      %v3921 = vld [vmem:[#allocation3 + $0x2] sm:$0xff]
      %v3922 = vld [vmem:[#allocation3 + $0xa] sm:$0xff]
      %v3923 = vld [vmem:[#allocation3 + $0x12] sm:$0xff]
      %v3924 = vld [vmem:[#allocation3 + $0x1a] sm:$0xff]
      %v3925 = vld [vmem:[#allocation3 + $0x22] sm:$0xff]
      %v3926 = vld [vmem:[#allocation3 + $0x2a] sm:$0xff]
      %v3927 = vld [vmem:[#allocation3 + $0x32] sm:$0xff]
      %v3928 = vld [vmem:[#allocation3 + $0x3a] sm:$0xff]
      %3929 = vset.pattern.permute.xlu0 3
      %3930 = vperm.xlu0 %3929, %v3594
      %v3931 = vpop.permute.xlu0 %3930
      %3933 = vset.pattern.permute.xlu0 3
      %3934 = vperm.xlu0 %3933, %v3595
      %v3935 = vpop.permute.xlu0 %3934
      %3937 = vset.pattern.permute.xlu0 3
      %3938 = vperm.xlu0 %3937, %v3596
      %v3939 = vpop.permute.xlu0 %3938
      %3941 = vset.pattern.permute.xlu0 3
      %3942 = vperm.xlu0 %3941, %v3597
      %v3943 = vpop.permute.xlu0 %3942
      %3945 = vset.pattern.permute.xlu0 3
      %3946 = vperm.xlu0 %3945, %v3598
      %v3947 = vpop.permute.xlu0 %3946
      %3949 = vset.pattern.permute.xlu0 3
      %3950 = vperm.xlu0 %3949, %v3599
      %v3951 = vpop.permute.xlu0 %3950
      %3953 = vset.pattern.permute.xlu0 3
      %3954 = vperm.xlu0 %3953, %v3600
      %v3955 = vpop.permute.xlu0 %3954
      %3957 = vset.pattern.permute.xlu0 3
      %3958 = vperm.xlu0 %3957, %v3601
      %v3959 = vpop.permute.xlu0 %3958
      %v3961 = vmul.f32 %v3921, %v3931
      %v3962 = vmul.f32 %v3922, %v3935
      %v3963 = vmul.f32 %v3923, %v3939
      %v3964 = vmul.f32 %v3924, %v3943
      %v3965 = vmul.f32 %v3925, %v3947
      %v3966 = vmul.f32 %v3926, %v3951
      %v3967 = vmul.f32 %v3927, %v3955
      %v3968 = vmul.f32 %v3928, %v3959
      %s3969 = scalar_lea.vmem %s5, 32
      %v3970 = vld [vmem:[%s3969] sm:$0xff]
      %v3971 = vld [vmem:[%s3969 + $0x8] sm:$0xff]
      %v3973 = vsel %vm493, %v3961, 0
      %v3976 = vsel %vm493, %v3962, 0
      %v3979 = vsel %vm493, %v3963, 0
      %v3982 = vsel %vm493, %v3964, 0
      %v3985 = vsel %vm493, %v3965, 0
      %v3988 = vsel %vm493, %v3966, 0
      %v3991 = vsel %vm493, %v3967, 0
      %v3994 = vsel %vm493, %v3968, 0
      %3996 = vmatprep.subr.mxu0 0.0
      %3997 = vmatpush1.msra.mxu0 %v3970
      %3998 = vmatprep.subr.mxu0 0.0
      %3999 = vmatpush1.msra.mxu0 %v3971
      %4000 = vmatprep.subr.mxu0 0.0
      %4001 = vmatpush1.msra.mxu0 0.0
      %4002 = vmatprep.subr.mxu0 0.0
      %4003 = vmatpush1.msra.mxu0 0.0
      %4004 = vmatprep.subr.mxu0 0.0
      %4005 = vmatpush1.msra.mxu0 0.0
      %4006 = vmatprep.subr.mxu0 0.0
      %4007 = vmatpush1.msra.mxu0 0.0
      %4008 = vmatprep.subr.mxu0 0.0
      %4009 = vmatpush1.msra.mxu0 0.0
      %4010 = vmatprep.subr.mxu0 0.0
      %4011 = vmatpush1.msra.mxu0 0.0
      %4012 = vmatprep.subr.mxu0 0.0
      %4013 = vmatpush1.msra.mxu0 0.0
      %4014 = vmatprep.subr.mxu0 0.0
      %4015 = vmatpush1.msra.mxu0 0.0
      %4016 = vmatprep.subr.mxu0 0.0
      %4017 = vmatpush1.msra.mxu0 0.0
      %4018 = vmatprep.subr.mxu0 0.0
      %4019 = vmatpush1.msra.mxu0 0.0
      %4020 = vmatprep.subr.mxu0 0.0
      %4021 = vmatpush1.msra.mxu0 0.0
      %4022 = vmatprep.subr.mxu0 0.0
      %4023 = vmatpush1.msra.mxu0 0.0
      %4024 = vmatprep.subr.mxu0 0.0
      %4025 = vmatpush1.msra.mxu0 0.0
      %4026 = vmatprep.subr.mxu0 0.0
      %4027 = vmatpush1.msra.mxu0 0.0
      %4028 = vmatprep.subr.mxu0 0.0
      %4029 = vmatpush1.msra.mxu0 0.0
      %4030 = vmatprep.subr.mxu0 0.0
      %4031 = vmatpush1.msra.mxu0 0.0
      %4032 = vmatprep.subr.mxu0 0.0
      %4033 = vmatpush1.msra.mxu0 0.0
      %4034 = vmatprep.subr.mxu0 0.0
      %4035 = vmatpush1.msra.mxu0 0.0
      %4036 = vmatprep.subr.mxu0 0.0
      %4037 = vmatpush1.msra.mxu0 0.0
      %4038 = vmatprep.subr.mxu0 0.0
      %4039 = vmatpush1.msra.mxu0 0.0
      %4040 = vmatprep.subr.mxu0 0.0
      %4041 = vmatpush1.msra.mxu0 0.0
      %4042 = vmatprep.subr.mxu0 0.0
      %4043 = vmatpush1.msra.mxu0 0.0
      %4044 = vmatprep.subr.mxu0 0.0
      %4045 = vmatpush1.msra.mxu0 0.0
      %4046 = vmatprep.subr.mxu0 0.0
      %4047 = vmatpush1.msra.mxu0 0.0
      %4048 = vmatprep.subr.mxu0 0.0
      %4049 = vmatpush1.msra.mxu0 0.0
      %4050 = vmatprep.subr.mxu0 0.0
      %4051 = vmatpush1.msra.mxu0 0.0
      %4052 = vmatprep.subr.mxu0 0.0
      %4053 = vmatpush1.msra.mxu0 0.0
      %4054 = vmatprep.subr.mxu0 0.0
      %4055 = vmatpush1.msra.mxu0 0.0
      %4056 = vmatprep.subr.mxu0 0.0
      %4057 = vmatpush1.msra.mxu0 0.0
      %4058 = vmatprep.subr.mxu0 0.0
      %4059 = vmatpush1.msra.mxu0 0.0
      %4060 = vmatprep.mubr.f32.mxu0 0.0
      %4061 = vmatmul.mubr.f32.gmra.mrb[0].mxu0 %v3973
      %v4062 = vpop.f32.mrb[0].mxu0
      %v4063 = vadd.f32 0.0, %v4062
      %v4064 = vpop.f32.mrb[0].mxu0
      %4065 = vmatprep.mubr.f32.mxu0 0.0
      %4066 = vmatmul.mubr.f32.gmra.mrb[0].mxu0 %v3976
      %v4067 = vpop.f32.mrb[0].mxu0
      %v4068 = vadd.f32 0.0, %v4067
      %v4069 = vpop.f32.mrb[0].mxu0
      %4070 = vmatprep.mubr.f32.mxu0 0.0
      %4071 = vmatmul.mubr.f32.gmra.mrb[0].mxu0 %v3979
      %v4072 = vpop.f32.mrb[0].mxu0
      %v4073 = vadd.f32 0.0, %v4072
      %v4074 = vpop.f32.mrb[0].mxu0
      %4075 = vmatprep.mubr.f32.mxu0 0.0
      %4076 = vmatmul.mubr.f32.gmra.mrb[0].mxu0 %v3982
      %v4077 = vpop.f32.mrb[0].mxu0
      %v4078 = vadd.f32 0.0, %v4077
      %v4079 = vpop.f32.mrb[0].mxu0
      %4080 = vmatprep.mubr.f32.mxu0 0.0
      %4081 = vmatmul.mubr.f32.gmra.mrb[0].mxu0 %v3985
      %v4082 = vpop.f32.mrb[0].mxu0
      %v4083 = vadd.f32 0.0, %v4082
      %v4084 = vpop.f32.mrb[0].mxu0
      %4085 = vmatprep.mubr.f32.mxu0 0.0
      %4086 = vmatmul.mubr.f32.gmra.mrb[0].mxu0 %v3988
      %v4087 = vpop.f32.mrb[0].mxu0
      %v4088 = vadd.f32 0.0, %v4087
      %v4089 = vpop.f32.mrb[0].mxu0
      %4090 = vmatprep.mubr.f32.mxu0 0.0
      %4091 = vmatmul.mubr.f32.gmra.mrb[0].mxu0 %v3991
      %v4092 = vpop.f32.mrb[0].mxu0
      %v4093 = vadd.f32 0.0, %v4092
      %v4094 = vpop.f32.mrb[0].mxu0
      %4095 = vmatprep.mubr.f32.mxu0 0.0
      %4096 = vmatmul.mubr.f32.gmra.mrb[0].mxu0 %v3994
      %v4097 = vpop.f32.mrb[0].mxu0
      %v4098 = vadd.f32 0.0, %v4097
      %v4099 = vpop.f32.mrb[0].mxu0
      %4100 = vdwg.mxu0
      %v4101 = vadd.f32 %v3883, %v4063
      %v4102 = vadd.f32 %v3888, %v4068
      %v4103 = vadd.f32 %v3893, %v4073
      %v4104 = vadd.f32 %v3898, %v4078
      %v4105 = vadd.f32 %v3903, %v4083
      %v4106 = vadd.f32 %v3908, %v4088
      %v4107 = vadd.f32 %v3913, %v4093
      %v4108 = vadd.f32 %v3918, %v4098
      %v4109 = vld [vmem:[#allocation3 + $0x8] sm:$0xff]
      %v4110 = vld [vmem:[#allocation3 + $0x10] sm:$0xff]
      %v4111 = vld [vmem:[#allocation3 + $0x18] sm:$0xff]
      %v4112 = vld [vmem:[#allocation3 + $0x20] sm:$0xff]
      %v4113 = vld [vmem:[#allocation3 + $0x28] sm:$0xff]
      %v4114 = vld [vmem:[#allocation3 + $0x30] sm:$0xff]
      %v4115 = vld [vmem:[#allocation3 + $0x38] sm:$0xff]
      %v4116 = vld [vmem:[#allocation3 + $0x40] sm:$0xff]
      %v4117 = vmul.f32 %v4109, %v3605
      %v4118 = vmul.f32 %v4110, %v3610
      %v4119 = vmul.f32 %v4111, %v3615
      %v4120 = vmul.f32 %v4112, %v3620
      %v4121 = vmul.f32 %v4113, %v3625
      %v4122 = vmul.f32 %v4114, %v3630
      %v4123 = vmul.f32 %v4115, %v3635
      %v4124 = vmul.f32 %v4116, %v3640
      %s4125 = scalar_lea.vmem %s5, 48
      %v4126 = vld [vmem:[%s4125] sm:$0xff]
      %v4127 = vld [vmem:[%s4125 + $0x8] sm:$0xff]
      %v4129 = vsel %vm493, %v4117, 0
      %v4132 = vsel %vm493, %v4118, 0
      %v4135 = vsel %vm493, %v4119, 0
      %v4138 = vsel %vm493, %v4120, 0
      %v4141 = vsel %vm493, %v4121, 0
      %v4144 = vsel %vm493, %v4122, 0
      %v4147 = vsel %vm493, %v4123, 0
      %v4150 = vsel %vm493, %v4124, 0
      %4152 = vmatprep.subr.mxu0 0.0
      %4153 = vmatpush1.msra.mxu0 %v4126
      %4154 = vmatprep.subr.mxu0 0.0
      %4155 = vmatpush1.msra.mxu0 %v4127
      %4156 = vmatprep.subr.mxu0 0.0
      %4157 = vmatpush1.msra.mxu0 0.0
      %4158 = vmatprep.subr.mxu0 0.0
      %4159 = vmatpush1.msra.mxu0 0.0
      %4160 = vmatprep.subr.mxu0 0.0
      %4161 = vmatpush1.msra.mxu0 0.0
      %4162 = vmatprep.subr.mxu0 0.0
      %4163 = vmatpush1.msra.mxu0 0.0
      %4164 = vmatprep.subr.mxu0 0.0
      %4165 = vmatpush1.msra.mxu0 0.0
      %4166 = vmatprep.subr.mxu0 0.0
      %4167 = vmatpush1.msra.mxu0 0.0
      %4168 = vmatprep.subr.mxu0 0.0
      %4169 = vmatpush1.msra.mxu0 0.0
      %4170 = vmatprep.subr.mxu0 0.0
      %4171 = vmatpush1.msra.mxu0 0.0
      %4172 = vmatprep.subr.mxu0 0.0
      %4173 = vmatpush1.msra.mxu0 0.0
      %4174 = vmatprep.subr.mxu0 0.0
      %4175 = vmatpush1.msra.mxu0 0.0
      %4176 = vmatprep.subr.mxu0 0.0
      %4177 = vmatpush1.msra.mxu0 0.0
      %4178 = vmatprep.subr.mxu0 0.0
      %4179 = vmatpush1.msra.mxu0 0.0
      %4180 = vmatprep.subr.mxu0 0.0
      %4181 = vmatpush1.msra.mxu0 0.0
      %4182 = vmatprep.subr.mxu0 0.0
      %4183 = vmatpush1.msra.mxu0 0.0
      %4184 = vmatprep.subr.mxu0 0.0
      %4185 = vmatpush1.msra.mxu0 0.0
      %4186 = vmatprep.subr.mxu0 0.0
      %4187 = vmatpush1.msra.mxu0 0.0
      %4188 = vmatprep.subr.mxu0 0.0
      %4189 = vmatpush1.msra.mxu0 0.0
      %4190 = vmatprep.subr.mxu0 0.0
      %4191 = vmatpush1.msra.mxu0 0.0
      %4192 = vmatprep.subr.mxu0 0.0
      %4193 = vmatpush1.msra.mxu0 0.0
      %4194 = vmatprep.subr.mxu0 0.0
      %4195 = vmatpush1.msra.mxu0 0.0
      %4196 = vmatprep.subr.mxu0 0.0
      %4197 = vmatpush1.msra.mxu0 0.0
      %4198 = vmatprep.subr.mxu0 0.0
      %4199 = vmatpush1.msra.mxu0 0.0
      %4200 = vmatprep.subr.mxu0 0.0
      %4201 = vmatpush1.msra.mxu0 0.0
      %4202 = vmatprep.subr.mxu0 0.0
      %4203 = vmatpush1.msra.mxu0 0.0
      %4204 = vmatprep.subr.mxu0 0.0
      %4205 = vmatpush1.msra.mxu0 0.0
      %4206 = vmatprep.subr.mxu0 0.0
      %4207 = vmatpush1.msra.mxu0 0.0
      %4208 = vmatprep.subr.mxu0 0.0
      %4209 = vmatpush1.msra.mxu0 0.0
      %4210 = vmatprep.subr.mxu0 0.0
      %4211 = vmatpush1.msra.mxu0 0.0
      %4212 = vmatprep.subr.mxu0 0.0
      %4213 = vmatpush1.msra.mxu0 0.0
      %4214 = vmatprep.subr.mxu0 0.0
      %4215 = vmatpush1.msra.mxu0 0.0
      %4216 = vmatprep.mubr.f32.mxu0 0.0
      %4217 = vmatmul.mubr.f32.gmra.mrb[0].mxu0 %v4129
      %v4218 = vpop.f32.mrb[0].mxu0
      %v4219 = vadd.f32 0.0, %v4218
      %v4220 = vpop.f32.mrb[0].mxu0
      %4221 = vmatprep.mubr.f32.mxu0 0.0
      %4222 = vmatmul.mubr.f32.gmra.mrb[0].mxu0 %v4132
      %v4223 = vpop.f32.mrb[0].mxu0
      %v4224 = vadd.f32 0.0, %v4223
      %v4225 = vpop.f32.mrb[0].mxu0
      %4226 = vmatprep.mubr.f32.mxu0 0.0
      %4227 = vmatmul.mubr.f32.gmra.mrb[0].mxu0 %v4135
      %v4228 = vpop.f32.mrb[0].mxu0
      %v4229 = vadd.f32 0.0, %v4228
      %v4230 = vpop.f32.mrb[0].mxu0
      %4231 = vmatprep.mubr.f32.mxu0 0.0
      %4232 = vmatmul.mubr.f32.gmra.mrb[0].mxu0 %v4138
      %v4233 = vpop.f32.mrb[0].mxu0
      %v4234 = vadd.f32 0.0, %v4233
      %v4235 = vpop.f32.mrb[0].mxu0
      %4236 = vmatprep.mubr.f32.mxu0 0.0
      %4237 = vmatmul.mubr.f32.gmra.mrb[0].mxu0 %v4141
      %v4238 = vpop.f32.mrb[0].mxu0
      %v4239 = vadd.f32 0.0, %v4238
      %v4240 = vpop.f32.mrb[0].mxu0
      %4241 = vmatprep.mubr.f32.mxu0 0.0
      %4242 = vmatmul.mubr.f32.gmra.mrb[0].mxu0 %v4144
      %v4243 = vpop.f32.mrb[0].mxu0
      %v4244 = vadd.f32 0.0, %v4243
      %v4245 = vpop.f32.mrb[0].mxu0
      %4246 = vmatprep.mubr.f32.mxu0 0.0
      %4247 = vmatmul.mubr.f32.gmra.mrb[0].mxu0 %v4147
      %v4248 = vpop.f32.mrb[0].mxu0
      %v4249 = vadd.f32 0.0, %v4248
      %v4250 = vpop.f32.mrb[0].mxu0
      %4251 = vmatprep.mubr.f32.mxu0 0.0
      %4252 = vmatmul.mubr.f32.gmra.mrb[0].mxu0 %v4150
      %v4253 = vpop.f32.mrb[0].mxu0
      %v4254 = vadd.f32 0.0, %v4253
      %v4255 = vpop.f32.mrb[0].mxu0
      %4256 = vdwg.mxu0
      %v4257 = vadd.f32 %v4101, %v4219
      %v4258 = vadd.f32 %v4102, %v4224
      %v4259 = vadd.f32 %v4103, %v4229
      %v4260 = vadd.f32 %v4104, %v4234
      %v4261 = vadd.f32 %v4105, %v4239
      %v4262 = vadd.f32 %v4106, %v4244
      %v4263 = vadd.f32 %v4107, %v4249
      %v4264 = vadd.f32 %v4108, %v4254
      %v4265 = vld [vmem:[#allocation3 + $0x9] sm:$0xff]
      %v4266 = vld [vmem:[#allocation3 + $0x11] sm:$0xff]
      %v4267 = vld [vmem:[#allocation3 + $0x19] sm:$0xff]
      %v4268 = vld [vmem:[#allocation3 + $0x21] sm:$0xff]
      %v4269 = vld [vmem:[#allocation3 + $0x29] sm:$0xff]
      %v4270 = vld [vmem:[#allocation3 + $0x31] sm:$0xff]
      %v4271 = vld [vmem:[#allocation3 + $0x39] sm:$0xff]
      %v4272 = vld [vmem:[#allocation3 + $0x41] sm:$0xff]
      %s4273 = scalar_lea.vmem %s5, 64
      %v4274 = vld [vmem:[%s4273] sm:$0xff]
      %v4275 = vld [vmem:[%s4273 + $0x8] sm:$0xff]
      %v4277 = vsel %vm493, %v4265, 0
      %v4280 = vsel %vm493, %v4266, 0
      %v4283 = vsel %vm493, %v4267, 0
      %v4286 = vsel %vm493, %v4268, 0
      %v4289 = vsel %vm493, %v4269, 0
      %v4292 = vsel %vm493, %v4270, 0
      %v4295 = vsel %vm493, %v4271, 0
      %v4298 = vsel %vm493, %v4272, 0
      %4300 = vmatprep.subr.mxu0 0.0
      %4301 = vmatpush1.msra.mxu0 %v4274
      %4302 = vmatprep.subr.mxu0 0.0
      %4303 = vmatpush1.msra.mxu0 %v4275
      %4304 = vmatprep.subr.mxu0 0.0
      %4305 = vmatpush1.msra.mxu0 0.0
      %4306 = vmatprep.subr.mxu0 0.0
      %4307 = vmatpush1.msra.mxu0 0.0
      %4308 = vmatprep.subr.mxu0 0.0
      %4309 = vmatpush1.msra.mxu0 0.0
      %4310 = vmatprep.subr.mxu0 0.0
      %4311 = vmatpush1.msra.mxu0 0.0
      %4312 = vmatprep.subr.mxu0 0.0
      %4313 = vmatpush1.msra.mxu0 0.0
      %4314 = vmatprep.subr.mxu0 0.0
      %4315 = vmatpush1.msra.mxu0 0.0
      %4316 = vmatprep.subr.mxu0 0.0
      %4317 = vmatpush1.msra.mxu0 0.0
      %4318 = vmatprep.subr.mxu0 0.0
      %4319 = vmatpush1.msra.mxu0 0.0
      %4320 = vmatprep.subr.mxu0 0.0
      %4321 = vmatpush1.msra.mxu0 0.0
      %4322 = vmatprep.subr.mxu0 0.0
      %4323 = vmatpush1.msra.mxu0 0.0
      %4324 = vmatprep.subr.mxu0 0.0
      %4325 = vmatpush1.msra.mxu0 0.0
      %4326 = vmatprep.subr.mxu0 0.0
      %4327 = vmatpush1.msra.mxu0 0.0
      %4328 = vmatprep.subr.mxu0 0.0
      %4329 = vmatpush1.msra.mxu0 0.0
      %4330 = vmatprep.subr.mxu0 0.0
      %4331 = vmatpush1.msra.mxu0 0.0
      %4332 = vmatprep.subr.mxu0 0.0
      %4333 = vmatpush1.msra.mxu0 0.0
      %4334 = vmatprep.subr.mxu0 0.0
      %4335 = vmatpush1.msra.mxu0 0.0
      %4336 = vmatprep.subr.mxu0 0.0
      %4337 = vmatpush1.msra.mxu0 0.0
      %4338 = vmatprep.subr.mxu0 0.0
      %4339 = vmatpush1.msra.mxu0 0.0
      %4340 = vmatprep.subr.mxu0 0.0
      %4341 = vmatpush1.msra.mxu0 0.0
      %4342 = vmatprep.subr.mxu0 0.0
      %4343 = vmatpush1.msra.mxu0 0.0
      %4344 = vmatprep.subr.mxu0 0.0
      %4345 = vmatpush1.msra.mxu0 0.0
      %4346 = vmatprep.subr.mxu0 0.0
      %4347 = vmatpush1.msra.mxu0 0.0
      %4348 = vmatprep.subr.mxu0 0.0
      %4349 = vmatpush1.msra.mxu0 0.0
      %4350 = vmatprep.subr.mxu0 0.0
      %4351 = vmatpush1.msra.mxu0 0.0
      %4352 = vmatprep.subr.mxu0 0.0
      %4353 = vmatpush1.msra.mxu0 0.0
      %4354 = vmatprep.subr.mxu0 0.0
      %4355 = vmatpush1.msra.mxu0 0.0
      %4356 = vmatprep.subr.mxu0 0.0
      %4357 = vmatpush1.msra.mxu0 0.0
      %4358 = vmatprep.subr.mxu0 0.0
      %4359 = vmatpush1.msra.mxu0 0.0
      %4360 = vmatprep.subr.mxu0 0.0
      %4361 = vmatpush1.msra.mxu0 0.0
      %4362 = vmatprep.subr.mxu0 0.0
      %4363 = vmatpush1.msra.mxu0 0.0
      %4364 = vmatprep.mubr.f32.mxu0 0.0
      %4365 = vmatmul.mubr.f32.gmra.mrb[0].mxu0 %v4277
      %v4366 = vpop.f32.mrb[0].mxu0
      %v4367 = vadd.f32 0.0, %v4366
      %v4368 = vpop.f32.mrb[0].mxu0
      %4369 = vmatprep.mubr.f32.mxu0 0.0
      %4370 = vmatmul.mubr.f32.gmra.mrb[0].mxu0 %v4280
      %v4371 = vpop.f32.mrb[0].mxu0
      %v4372 = vadd.f32 0.0, %v4371
      %v4373 = vpop.f32.mrb[0].mxu0
      %4374 = vmatprep.mubr.f32.mxu0 0.0
      %4375 = vmatmul.mubr.f32.gmra.mrb[0].mxu0 %v4283
      %v4376 = vpop.f32.mrb[0].mxu0
      %v4377 = vadd.f32 0.0, %v4376
      %v4378 = vpop.f32.mrb[0].mxu0
      %4379 = vmatprep.mubr.f32.mxu0 0.0
      %4380 = vmatmul.mubr.f32.gmra.mrb[0].mxu0 %v4286
      %v4381 = vpop.f32.mrb[0].mxu0
      %v4382 = vadd.f32 0.0, %v4381
      %v4383 = vpop.f32.mrb[0].mxu0
      %4384 = vmatprep.mubr.f32.mxu0 0.0
      %4385 = vmatmul.mubr.f32.gmra.mrb[0].mxu0 %v4289
      %v4386 = vpop.f32.mrb[0].mxu0
      %v4387 = vadd.f32 0.0, %v4386
      %v4388 = vpop.f32.mrb[0].mxu0
      %4389 = vmatprep.mubr.f32.mxu0 0.0
      %4390 = vmatmul.mubr.f32.gmra.mrb[0].mxu0 %v4292
      %v4391 = vpop.f32.mrb[0].mxu0
      %v4392 = vadd.f32 0.0, %v4391
      %v4393 = vpop.f32.mrb[0].mxu0
      %4394 = vmatprep.mubr.f32.mxu0 0.0
      %4395 = vmatmul.mubr.f32.gmra.mrb[0].mxu0 %v4295
      %v4396 = vpop.f32.mrb[0].mxu0
      %v4397 = vadd.f32 0.0, %v4396
      %v4398 = vpop.f32.mrb[0].mxu0
      %4399 = vmatprep.mubr.f32.mxu0 0.0
      %4400 = vmatmul.mubr.f32.gmra.mrb[0].mxu0 %v4298
      %v4401 = vpop.f32.mrb[0].mxu0
      %v4402 = vadd.f32 0.0, %v4401
      %v4403 = vpop.f32.mrb[0].mxu0
      %4404 = vdwg.mxu0
      %v4405 = vadd.f32 %v4257, %v4367
      %v4406 = vadd.f32 %v4258, %v4372
      %v4407 = vadd.f32 %v4259, %v4377
      %v4408 = vadd.f32 %v4260, %v4382
      %v4409 = vadd.f32 %v4261, %v4387
      %v4410 = vadd.f32 %v4262, %v4392
      %v4411 = vadd.f32 %v4263, %v4397
      %v4412 = vadd.f32 %v4264, %v4402
      %v4413 = vld [vmem:[#allocation3 + $0xa] sm:$0xff]
      %v4414 = vld [vmem:[#allocation3 + $0x12] sm:$0xff]
      %v4415 = vld [vmem:[#allocation3 + $0x1a] sm:$0xff]
      %v4416 = vld [vmem:[#allocation3 + $0x22] sm:$0xff]
      %v4417 = vld [vmem:[#allocation3 + $0x2a] sm:$0xff]
      %v4418 = vld [vmem:[#allocation3 + $0x32] sm:$0xff]
      %v4419 = vld [vmem:[#allocation3 + $0x3a] sm:$0xff]
      %v4420 = vld [vmem:[#allocation3 + $0x42] sm:$0xff]
      %v4421 = vmul.f32 %v4413, %v3931
      %v4422 = vmul.f32 %v4414, %v3935
      %v4423 = vmul.f32 %v4415, %v3939
      %v4424 = vmul.f32 %v4416, %v3943
      %v4425 = vmul.f32 %v4417, %v3947
      %v4426 = vmul.f32 %v4418, %v3951
      %v4427 = vmul.f32 %v4419, %v3955
      %v4428 = vmul.f32 %v4420, %v3959
      %s4429 = scalar_lea.vmem %s5, 80
      %v4430 = vld [vmem:[%s4429] sm:$0xff]
      %v4431 = vld [vmem:[%s4429 + $0x8] sm:$0xff]
      %v4433 = vsel %vm493, %v4421, 0
      %v4436 = vsel %vm493, %v4422, 0
      %v4439 = vsel %vm493, %v4423, 0
      %v4442 = vsel %vm493, %v4424, 0
      %v4445 = vsel %vm493, %v4425, 0
      %v4448 = vsel %vm493, %v4426, 0
      %v4451 = vsel %vm493, %v4427, 0
      %v4454 = vsel %vm493, %v4428, 0
      %4456 = vmatprep.subr.mxu0 0.0
      %4457 = vmatpush1.msra.mxu0 %v4430
      %4458 = vmatprep.subr.mxu0 0.0
      %4459 = vmatpush1.msra.mxu0 %v4431
      %4460 = vmatprep.subr.mxu0 0.0
      %4461 = vmatpush1.msra.mxu0 0.0
      %4462 = vmatprep.subr.mxu0 0.0
      %4463 = vmatpush1.msra.mxu0 0.0
      %4464 = vmatprep.subr.mxu0 0.0
      %4465 = vmatpush1.msra.mxu0 0.0
      %4466 = vmatprep.subr.mxu0 0.0
      %4467 = vmatpush1.msra.mxu0 0.0
      %4468 = vmatprep.subr.mxu0 0.0
      %4469 = vmatpush1.msra.mxu0 0.0
      %4470 = vmatprep.subr.mxu0 0.0
      %4471 = vmatpush1.msra.mxu0 0.0
      %4472 = vmatprep.subr.mxu0 0.0
      %4473 = vmatpush1.msra.mxu0 0.0
      %4474 = vmatprep.subr.mxu0 0.0
      %4475 = vmatpush1.msra.mxu0 0.0
      %4476 = vmatprep.subr.mxu0 0.0
      %4477 = vmatpush1.msra.mxu0 0.0
      %4478 = vmatprep.subr.mxu0 0.0
      %4479 = vmatpush1.msra.mxu0 0.0
      %4480 = vmatprep.subr.mxu0 0.0
      %4481 = vmatpush1.msra.mxu0 0.0
      %4482 = vmatprep.subr.mxu0 0.0
      %4483 = vmatpush1.msra.mxu0 0.0
      %4484 = vmatprep.subr.mxu0 0.0
      %4485 = vmatpush1.msra.mxu0 0.0
      %4486 = vmatprep.subr.mxu0 0.0
      %4487 = vmatpush1.msra.mxu0 0.0
      %4488 = vmatprep.subr.mxu0 0.0
      %4489 = vmatpush1.msra.mxu0 0.0
      %4490 = vmatprep.subr.mxu0 0.0
      %4491 = vmatpush1.msra.mxu0 0.0
      %4492 = vmatprep.subr.mxu0 0.0
      %4493 = vmatpush1.msra.mxu0 0.0
      %4494 = vmatprep.subr.mxu0 0.0
      %4495 = vmatpush1.msra.mxu0 0.0
      %4496 = vmatprep.subr.mxu0 0.0
      %4497 = vmatpush1.msra.mxu0 0.0
      %4498 = vmatprep.subr.mxu0 0.0
      %4499 = vmatpush1.msra.mxu0 0.0
      %4500 = vmatprep.subr.mxu0 0.0
      %4501 = vmatpush1.msra.mxu0 0.0
      %4502 = vmatprep.subr.mxu0 0.0
      %4503 = vmatpush1.msra.mxu0 0.0
      %4504 = vmatprep.subr.mxu0 0.0
      %4505 = vmatpush1.msra.mxu0 0.0
      %4506 = vmatprep.subr.mxu0 0.0
      %4507 = vmatpush1.msra.mxu0 0.0
      %4508 = vmatprep.subr.mxu0 0.0
      %4509 = vmatpush1.msra.mxu0 0.0
      %4510 = vmatprep.subr.mxu0 0.0
      %4511 = vmatpush1.msra.mxu0 0.0
      %4512 = vmatprep.subr.mxu0 0.0
      %4513 = vmatpush1.msra.mxu0 0.0
      %4514 = vmatprep.subr.mxu0 0.0
      %4515 = vmatpush1.msra.mxu0 0.0
      %4516 = vmatprep.subr.mxu0 0.0
      %4517 = vmatpush1.msra.mxu0 0.0
      %4518 = vmatprep.subr.mxu0 0.0
      %4519 = vmatpush1.msra.mxu0 0.0
      %4520 = vmatprep.mubr.f32.mxu0 0.0
      %4521 = vmatmul.mubr.f32.gmra.mrb[0].mxu0 %v4433
      %v4522 = vpop.f32.mrb[0].mxu0
      %v4523 = vadd.f32 0.0, %v4522
      %v4524 = vpop.f32.mrb[0].mxu0
      %4525 = vmatprep.mubr.f32.mxu0 0.0
      %4526 = vmatmul.mubr.f32.gmra.mrb[0].mxu0 %v4436
      %v4527 = vpop.f32.mrb[0].mxu0
      %v4528 = vadd.f32 0.0, %v4527
      %v4529 = vpop.f32.mrb[0].mxu0
      %4530 = vmatprep.mubr.f32.mxu0 0.0
      %4531 = vmatmul.mubr.f32.gmra.mrb[0].mxu0 %v4439
      %v4532 = vpop.f32.mrb[0].mxu0
      %v4533 = vadd.f32 0.0, %v4532
      %v4534 = vpop.f32.mrb[0].mxu0
      %4535 = vmatprep.mubr.f32.mxu0 0.0
      %4536 = vmatmul.mubr.f32.gmra.mrb[0].mxu0 %v4442
      %v4537 = vpop.f32.mrb[0].mxu0
      %v4538 = vadd.f32 0.0, %v4537
      %v4539 = vpop.f32.mrb[0].mxu0
      %4540 = vmatprep.mubr.f32.mxu0 0.0
      %4541 = vmatmul.mubr.f32.gmra.mrb[0].mxu0 %v4445
      %v4542 = vpop.f32.mrb[0].mxu0
      %v4543 = vadd.f32 0.0, %v4542
      %v4544 = vpop.f32.mrb[0].mxu0
      %4545 = vmatprep.mubr.f32.mxu0 0.0
      %4546 = vmatmul.mubr.f32.gmra.mrb[0].mxu0 %v4448
      %v4547 = vpop.f32.mrb[0].mxu0
      %v4548 = vadd.f32 0.0, %v4547
      %v4549 = vpop.f32.mrb[0].mxu0
      %4550 = vmatprep.mubr.f32.mxu0 0.0
      %4551 = vmatmul.mubr.f32.gmra.mrb[0].mxu0 %v4451
      %v4552 = vpop.f32.mrb[0].mxu0
      %v4553 = vadd.f32 0.0, %v4552
      %v4554 = vpop.f32.mrb[0].mxu0
      %4555 = vmatprep.mubr.f32.mxu0 0.0
      %4556 = vmatmul.mubr.f32.gmra.mrb[0].mxu0 %v4454
      %v4557 = vpop.f32.mrb[0].mxu0
      %v4558 = vadd.f32 0.0, %v4557
      %v4559 = vpop.f32.mrb[0].mxu0
      %4560 = vdwg.mxu0
      %v4561 = vadd.f32 %v4405, %v4523
      %v4562 = vadd.f32 %v4406, %v4528
      %v4563 = vadd.f32 %v4407, %v4533
      %v4564 = vadd.f32 %v4408, %v4538
      %v4565 = vadd.f32 %v4409, %v4543
      %v4566 = vadd.f32 %v4410, %v4548
      %v4567 = vadd.f32 %v4411, %v4553
      %v4568 = vadd.f32 %v4412, %v4558
      %v4569 = vld [vmem:[#allocation3 + $0x10] sm:$0xff]
      %v4570 = vld [vmem:[#allocation3 + $0x18] sm:$0xff]
      %v4571 = vld [vmem:[#allocation3 + $0x20] sm:$0xff]
      %v4572 = vld [vmem:[#allocation3 + $0x28] sm:$0xff]
      %v4573 = vld [vmem:[#allocation3 + $0x30] sm:$0xff]
      %v4574 = vld [vmem:[#allocation3 + $0x38] sm:$0xff]
      %v4575 = vld [vmem:[#allocation3 + $0x40] sm:$0xff]
      %v4576 = vld [vmem:[#allocation3 + $0x48] sm:$0xff]
      %v4577 = vmul.f32 %v4569, %v3605
      %v4578 = vmul.f32 %v4570, %v3610
      %v4579 = vmul.f32 %v4571, %v3615
      %v4580 = vmul.f32 %v4572, %v3620
      %v4581 = vmul.f32 %v4573, %v3625
      %v4582 = vmul.f32 %v4574, %v3630
      %v4583 = vmul.f32 %v4575, %v3635
      %v4584 = vmul.f32 %v4576, %v3640
      %s4585 = scalar_lea.vmem %s5, 96
      %v4586 = vld [vmem:[%s4585] sm:$0xff]
      %v4587 = vld [vmem:[%s4585 + $0x8] sm:$0xff]
      %v4589 = vsel %vm493, %v4577, 0
      %v4592 = vsel %vm493, %v4578, 0
      %v4595 = vsel %vm493, %v4579, 0
      %v4598 = vsel %vm493, %v4580, 0
      %v4601 = vsel %vm493, %v4581, 0
      %v4604 = vsel %vm493, %v4582, 0
      %v4607 = vsel %vm493, %v4583, 0
      %v4610 = vsel %vm493, %v4584, 0
      %4612 = vmatprep.subr.mxu0 0.0
      %4613 = vmatpush1.msra.mxu0 %v4586
      %4614 = vmatprep.subr.mxu0 0.0
      %4615 = vmatpush1.msra.mxu0 %v4587
      %4616 = vmatprep.subr.mxu0 0.0
      %4617 = vmatpush1.msra.mxu0 0.0
      %4618 = vmatprep.subr.mxu0 0.0
      %4619 = vmatpush1.msra.mxu0 0.0
      %4620 = vmatprep.subr.mxu0 0.0
      %4621 = vmatpush1.msra.mxu0 0.0
      %4622 = vmatprep.subr.mxu0 0.0
      %4623 = vmatpush1.msra.mxu0 0.0
      %4624 = vmatprep.subr.mxu0 0.0
      %4625 = vmatpush1.msra.mxu0 0.0
      %4626 = vmatprep.subr.mxu0 0.0
      %4627 = vmatpush1.msra.mxu0 0.0
      %4628 = vmatprep.subr.mxu0 0.0
      %4629 = vmatpush1.msra.mxu0 0.0
      %4630 = vmatprep.subr.mxu0 0.0
      %4631 = vmatpush1.msra.mxu0 0.0
      %4632 = vmatprep.subr.mxu0 0.0
      %4633 = vmatpush1.msra.mxu0 0.0
      %4634 = vmatprep.subr.mxu0 0.0
      %4635 = vmatpush1.msra.mxu0 0.0
      %4636 = vmatprep.subr.mxu0 0.0
      %4637 = vmatpush1.msra.mxu0 0.0
      %4638 = vmatprep.subr.mxu0 0.0
      %4639 = vmatpush1.msra.mxu0 0.0
      %4640 = vmatprep.subr.mxu0 0.0
      %4641 = vmatpush1.msra.mxu0 0.0
      %4642 = vmatprep.subr.mxu0 0.0
      %4643 = vmatpush1.msra.mxu0 0.0
      %4644 = vmatprep.subr.mxu0 0.0
      %4645 = vmatpush1.msra.mxu0 0.0
      %4646 = vmatprep.subr.mxu0 0.0
      %4647 = vmatpush1.msra.mxu0 0.0
      %4648 = vmatprep.subr.mxu0 0.0
      %4649 = vmatpush1.msra.mxu0 0.0
      %4650 = vmatprep.subr.mxu0 0.0
      %4651 = vmatpush1.msra.mxu0 0.0
      %4652 = vmatprep.subr.mxu0 0.0
      %4653 = vmatpush1.msra.mxu0 0.0
      %4654 = vmatprep.subr.mxu0 0.0
      %4655 = vmatpush1.msra.mxu0 0.0
      %4656 = vmatprep.subr.mxu0 0.0
      %4657 = vmatpush1.msra.mxu0 0.0
      %4658 = vmatprep.subr.mxu0 0.0
      %4659 = vmatpush1.msra.mxu0 0.0
      %4660 = vmatprep.subr.mxu0 0.0
      %4661 = vmatpush1.msra.mxu0 0.0
      %4662 = vmatprep.subr.mxu0 0.0
      %4663 = vmatpush1.msra.mxu0 0.0
      %4664 = vmatprep.subr.mxu0 0.0
      %4665 = vmatpush1.msra.mxu0 0.0
      %4666 = vmatprep.subr.mxu0 0.0
      %4667 = vmatpush1.msra.mxu0 0.0
      %4668 = vmatprep.subr.mxu0 0.0
      %4669 = vmatpush1.msra.mxu0 0.0
      %4670 = vmatprep.subr.mxu0 0.0
      %4671 = vmatpush1.msra.mxu0 0.0
      %4672 = vmatprep.subr.mxu0 0.0
      %4673 = vmatpush1.msra.mxu0 0.0
      %4674 = vmatprep.subr.mxu0 0.0
      %4675 = vmatpush1.msra.mxu0 0.0
      %4676 = vmatprep.mubr.f32.mxu0 0.0
      %4677 = vmatmul.mubr.f32.gmra.mrb[0].mxu0 %v4589
      %v4678 = vpop.f32.mrb[0].mxu0
      %v4679 = vadd.f32 0.0, %v4678
      %v4680 = vpop.f32.mrb[0].mxu0
      %4681 = vmatprep.mubr.f32.mxu0 0.0
      %4682 = vmatmul.mubr.f32.gmra.mrb[0].mxu0 %v4592
      %v4683 = vpop.f32.mrb[0].mxu0
      %v4684 = vadd.f32 0.0, %v4683
      %v4685 = vpop.f32.mrb[0].mxu0
      %4686 = vmatprep.mubr.f32.mxu0 0.0
      %4687 = vmatmul.mubr.f32.gmra.mrb[0].mxu0 %v4595
      %v4688 = vpop.f32.mrb[0].mxu0
      %v4689 = vadd.f32 0.0, %v4688
      %v4690 = vpop.f32.mrb[0].mxu0
      %4691 = vmatprep.mubr.f32.mxu0 0.0
      %4692 = vmatmul.mubr.f32.gmra.mrb[0].mxu0 %v4598
      %v4693 = vpop.f32.mrb[0].mxu0
      %v4694 = vadd.f32 0.0, %v4693
      %v4695 = vpop.f32.mrb[0].mxu0
      %4696 = vmatprep.mubr.f32.mxu0 0.0
      %4697 = vmatmul.mubr.f32.gmra.mrb[0].mxu0 %v4601
      %v4698 = vpop.f32.mrb[0].mxu0
      %v4699 = vadd.f32 0.0, %v4698
      %v4700 = vpop.f32.mrb[0].mxu0
      %4701 = vmatprep.mubr.f32.mxu0 0.0
      %4702 = vmatmul.mubr.f32.gmra.mrb[0].mxu0 %v4604
      %v4703 = vpop.f32.mrb[0].mxu0
      %v4704 = vadd.f32 0.0, %v4703
      %v4705 = vpop.f32.mrb[0].mxu0
      %4706 = vmatprep.mubr.f32.mxu0 0.0
      %4707 = vmatmul.mubr.f32.gmra.mrb[0].mxu0 %v4607
      %v4708 = vpop.f32.mrb[0].mxu0
      %v4709 = vadd.f32 0.0, %v4708
      %v4710 = vpop.f32.mrb[0].mxu0
      %4711 = vmatprep.mubr.f32.mxu0 0.0
      %4712 = vmatmul.mubr.f32.gmra.mrb[0].mxu0 %v4610
      %v4713 = vpop.f32.mrb[0].mxu0
      %v4714 = vadd.f32 0.0, %v4713
      %v4715 = vpop.f32.mrb[0].mxu0
      %4716 = vdwg.mxu0
      %v4717 = vadd.f32 %v4561, %v4679
      %v4718 = vadd.f32 %v4562, %v4684
      %v4719 = vadd.f32 %v4563, %v4689
      %v4720 = vadd.f32 %v4564, %v4694
      %v4721 = vadd.f32 %v4565, %v4699
      %v4722 = vadd.f32 %v4566, %v4704
      %v4723 = vadd.f32 %v4567, %v4709
      %v4724 = vadd.f32 %v4568, %v4714
      %v4725 = vld [vmem:[#allocation3 + $0x11] sm:$0xff]
      %v4726 = vld [vmem:[#allocation3 + $0x19] sm:$0xff]
      %v4727 = vld [vmem:[#allocation3 + $0x21] sm:$0xff]
      %v4728 = vld [vmem:[#allocation3 + $0x29] sm:$0xff]
      %v4729 = vld [vmem:[#allocation3 + $0x31] sm:$0xff]
      %v4730 = vld [vmem:[#allocation3 + $0x39] sm:$0xff]
      %v4731 = vld [vmem:[#allocation3 + $0x41] sm:$0xff]
      %v4732 = vld [vmem:[#allocation3 + $0x49] sm:$0xff]
      %s4733 = scalar_lea.vmem %s5, 112
      %v4734 = vld [vmem:[%s4733] sm:$0xff]
      %v4735 = vld [vmem:[%s4733 + $0x8] sm:$0xff]
      %v4737 = vsel %vm493, %v4725, 0
      %v4740 = vsel %vm493, %v4726, 0
      %v4743 = vsel %vm493, %v4727, 0
      %v4746 = vsel %vm493, %v4728, 0
      %v4749 = vsel %vm493, %v4729, 0
      %v4752 = vsel %vm493, %v4730, 0
      %v4755 = vsel %vm493, %v4731, 0
      %v4758 = vsel %vm493, %v4732, 0
      %4760 = vmatprep.subr.mxu0 0.0
      %4761 = vmatpush1.msra.mxu0 %v4734
      %4762 = vmatprep.subr.mxu0 0.0
      %4763 = vmatpush1.msra.mxu0 %v4735
      %4764 = vmatprep.subr.mxu0 0.0
      %4765 = vmatpush1.msra.mxu0 0.0
      %4766 = vmatprep.subr.mxu0 0.0
      %4767 = vmatpush1.msra.mxu0 0.0
      %4768 = vmatprep.subr.mxu0 0.0
      %4769 = vmatpush1.msra.mxu0 0.0
      %4770 = vmatprep.subr.mxu0 0.0
      %4771 = vmatpush1.msra.mxu0 0.0
      %4772 = vmatprep.subr.mxu0 0.0
      %4773 = vmatpush1.msra.mxu0 0.0
      %4774 = vmatprep.subr.mxu0 0.0
      %4775 = vmatpush1.msra.mxu0 0.0
      %4776 = vmatprep.subr.mxu0 0.0
      %4777 = vmatpush1.msra.mxu0 0.0
      %4778 = vmatprep.subr.mxu0 0.0
      %4779 = vmatpush1.msra.mxu0 0.0
      %4780 = vmatprep.subr.mxu0 0.0
      %4781 = vmatpush1.msra.mxu0 0.0
      %4782 = vmatprep.subr.mxu0 0.0
      %4783 = vmatpush1.msra.mxu0 0.0
      %4784 = vmatprep.subr.mxu0 0.0
      %4785 = vmatpush1.msra.mxu0 0.0
      %4786 = vmatprep.subr.mxu0 0.0
      %4787 = vmatpush1.msra.mxu0 0.0
      %4788 = vmatprep.subr.mxu0 0.0
      %4789 = vmatpush1.msra.mxu0 0.0
      %4790 = vmatprep.subr.mxu0 0.0
      %4791 = vmatpush1.msra.mxu0 0.0
      %4792 = vmatprep.subr.mxu0 0.0
      %4793 = vmatpush1.msra.mxu0 0.0
      %4794 = vmatprep.subr.mxu0 0.0
      %4795 = vmatpush1.msra.mxu0 0.0
      %4796 = vmatprep.subr.mxu0 0.0
      %4797 = vmatpush1.msra.mxu0 0.0
      %4798 = vmatprep.subr.mxu0 0.0
      %4799 = vmatpush1.msra.mxu0 0.0
      %4800 = vmatprep.subr.mxu0 0.0
      %4801 = vmatpush1.msra.mxu0 0.0
      %4802 = vmatprep.subr.mxu0 0.0
      %4803 = vmatpush1.msra.mxu0 0.0
      %4804 = vmatprep.subr.mxu0 0.0
      %4805 = vmatpush1.msra.mxu0 0.0
      %4806 = vmatprep.subr.mxu0 0.0
      %4807 = vmatpush1.msra.mxu0 0.0
      %4808 = vmatprep.subr.mxu0 0.0
      %4809 = vmatpush1.msra.mxu0 0.0
      %4810 = vmatprep.subr.mxu0 0.0
      %4811 = vmatpush1.msra.mxu0 0.0
      %4812 = vmatprep.subr.mxu0 0.0
      %4813 = vmatpush1.msra.mxu0 0.0
      %4814 = vmatprep.subr.mxu0 0.0
      %4815 = vmatpush1.msra.mxu0 0.0
      %4816 = vmatprep.subr.mxu0 0.0
      %4817 = vmatpush1.msra.mxu0 0.0
      %4818 = vmatprep.subr.mxu0 0.0
      %4819 = vmatpush1.msra.mxu0 0.0
      %4820 = vmatprep.subr.mxu0 0.0
      %4821 = vmatpush1.msra.mxu0 0.0
      %4822 = vmatprep.subr.mxu0 0.0
      %4823 = vmatpush1.msra.mxu0 0.0
      %4824 = vmatprep.mubr.f32.mxu0 0.0
      %4825 = vmatmul.mubr.f32.gmra.mrb[0].mxu0 %v4737
      %v4826 = vpop.f32.mrb[0].mxu0
      %v4827 = vadd.f32 0.0, %v4826
      %v4828 = vpop.f32.mrb[0].mxu0
      %4829 = vmatprep.mubr.f32.mxu0 0.0
      %4830 = vmatmul.mubr.f32.gmra.mrb[0].mxu0 %v4740
      %v4831 = vpop.f32.mrb[0].mxu0
      %v4832 = vadd.f32 0.0, %v4831
      %v4833 = vpop.f32.mrb[0].mxu0
      %4834 = vmatprep.mubr.f32.mxu0 0.0
      %4835 = vmatmul.mubr.f32.gmra.mrb[0].mxu0 %v4743
      %v4836 = vpop.f32.mrb[0].mxu0
      %v4837 = vadd.f32 0.0, %v4836
      %v4838 = vpop.f32.mrb[0].mxu0
      %4839 = vmatprep.mubr.f32.mxu0 0.0
      %4840 = vmatmul.mubr.f32.gmra.mrb[0].mxu0 %v4746
      %v4841 = vpop.f32.mrb[0].mxu0
      %v4842 = vadd.f32 0.0, %v4841
      %v4843 = vpop.f32.mrb[0].mxu0
      %4844 = vmatprep.mubr.f32.mxu0 0.0
      %4845 = vmatmul.mubr.f32.gmra.mrb[0].mxu0 %v4749
      %v4846 = vpop.f32.mrb[0].mxu0
      %v4847 = vadd.f32 0.0, %v4846
      %v4848 = vpop.f32.mrb[0].mxu0
      %4849 = vmatprep.mubr.f32.mxu0 0.0
      %4850 = vmatmul.mubr.f32.gmra.mrb[0].mxu0 %v4752
      %v4851 = vpop.f32.mrb[0].mxu0
      %v4852 = vadd.f32 0.0, %v4851
      %v4853 = vpop.f32.mrb[0].mxu0
      %4854 = vmatprep.mubr.f32.mxu0 0.0
      %4855 = vmatmul.mubr.f32.gmra.mrb[0].mxu0 %v4755
      %v4856 = vpop.f32.mrb[0].mxu0
      %v4857 = vadd.f32 0.0, %v4856
      %v4858 = vpop.f32.mrb[0].mxu0
      %4859 = vmatprep.mubr.f32.mxu0 0.0
      %4860 = vmatmul.mubr.f32.gmra.mrb[0].mxu0 %v4758
      %v4861 = vpop.f32.mrb[0].mxu0
      %v4862 = vadd.f32 0.0, %v4861
      %v4863 = vpop.f32.mrb[0].mxu0
      %4864 = vdwg.mxu0
      %v4865 = vadd.f32 %v4717, %v4827
      %v4866 = vadd.f32 %v4718, %v4832
      %v4867 = vadd.f32 %v4719, %v4837
      %v4868 = vadd.f32 %v4720, %v4842
      %v4869 = vadd.f32 %v4721, %v4847
      %v4870 = vadd.f32 %v4722, %v4852
      %v4871 = vadd.f32 %v4723, %v4857
      %v4872 = vadd.f32 %v4724, %v4862
      %v4873 = vld [vmem:[#allocation3 + $0x12] sm:$0xff]
      %v4874 = vld [vmem:[#allocation3 + $0x1a] sm:$0xff]
      %v4875 = vld [vmem:[#allocation3 + $0x22] sm:$0xff]
      %v4876 = vld [vmem:[#allocation3 + $0x2a] sm:$0xff]
      %v4877 = vld [vmem:[#allocation3 + $0x32] sm:$0xff]
      %v4878 = vld [vmem:[#allocation3 + $0x3a] sm:$0xff]
      %v4879 = vld [vmem:[#allocation3 + $0x42] sm:$0xff]
      %v4880 = vld [vmem:[#allocation3 + $0x4a] sm:$0xff]
      %v4881 = vmul.f32 %v4873, %v3931
      %v4882 = vmul.f32 %v4874, %v3935
      %v4883 = vmul.f32 %v4875, %v3939
      %v4884 = vmul.f32 %v4876, %v3943
      %v4885 = vmul.f32 %v4877, %v3947
      %v4886 = vmul.f32 %v4878, %v3951
      %v4887 = vmul.f32 %v4879, %v3955
      %v4888 = vmul.f32 %v4880, %v3959
      %s4889 = scalar_lea.vmem %s5, 128
      %v4890 = vld [vmem:[%s4889] sm:$0xff]
      %v4891 = vld [vmem:[%s4889 + $0x8] sm:$0xff]
      %v4893 = vsel %vm493, %v4881, 0
      %v4896 = vsel %vm493, %v4882, 0
      %v4899 = vsel %vm493, %v4883, 0
      %v4902 = vsel %vm493, %v4884, 0
      %v4905 = vsel %vm493, %v4885, 0
      %v4908 = vsel %vm493, %v4886, 0
      %v4911 = vsel %vm493, %v4887, 0
      %v4914 = vsel %vm493, %v4888, 0
      %4916 = vmatprep.subr.mxu0 0.0
      %4917 = vmatpush1.msra.mxu0 %v4890
      %4918 = vmatprep.subr.mxu0 0.0
      %4919 = vmatpush1.msra.mxu0 %v4891
      %4920 = vmatprep.subr.mxu0 0.0
      %4921 = vmatpush1.msra.mxu0 0.0
      %4922 = vmatprep.subr.mxu0 0.0
      %4923 = vmatpush1.msra.mxu0 0.0
      %4924 = vmatprep.subr.mxu0 0.0
      %4925 = vmatpush1.msra.mxu0 0.0
      %4926 = vmatprep.subr.mxu0 0.0
      %4927 = vmatpush1.msra.mxu0 0.0
      %4928 = vmatprep.subr.mxu0 0.0
      %4929 = vmatpush1.msra.mxu0 0.0
      %4930 = vmatprep.subr.mxu0 0.0
      %4931 = vmatpush1.msra.mxu0 0.0
      %4932 = vmatprep.subr.mxu0 0.0
      %4933 = vmatpush1.msra.mxu0 0.0
      %4934 = vmatprep.subr.mxu0 0.0
      %4935 = vmatpush1.msra.mxu0 0.0
      %4936 = vmatprep.subr.mxu0 0.0
      %4937 = vmatpush1.msra.mxu0 0.0
      %4938 = vmatprep.subr.mxu0 0.0
      %4939 = vmatpush1.msra.mxu0 0.0
      %4940 = vmatprep.subr.mxu0 0.0
      %4941 = vmatpush1.msra.mxu0 0.0
      %4942 = vmatprep.subr.mxu0 0.0
      %4943 = vmatpush1.msra.mxu0 0.0
      %4944 = vmatprep.subr.mxu0 0.0
      %4945 = vmatpush1.msra.mxu0 0.0
      %4946 = vmatprep.subr.mxu0 0.0
      %4947 = vmatpush1.msra.mxu0 0.0
      %4948 = vmatprep.subr.mxu0 0.0
      %4949 = vmatpush1.msra.mxu0 0.0
      %4950 = vmatprep.subr.mxu0 0.0
      %4951 = vmatpush1.msra.mxu0 0.0
      %4952 = vmatprep.subr.mxu0 0.0
      %4953 = vmatpush1.msra.mxu0 0.0
      %4954 = vmatprep.subr.mxu0 0.0
      %4955 = vmatpush1.msra.mxu0 0.0
      %4956 = vmatprep.subr.mxu0 0.0
      %4957 = vmatpush1.msra.mxu0 0.0
      %4958 = vmatprep.subr.mxu0 0.0
      %4959 = vmatpush1.msra.mxu0 0.0
      %4960 = vmatprep.subr.mxu0 0.0
      %4961 = vmatpush1.msra.mxu0 0.0
      %4962 = vmatprep.subr.mxu0 0.0
      %4963 = vmatpush1.msra.mxu0 0.0
      %4964 = vmatprep.subr.mxu0 0.0
      %4965 = vmatpush1.msra.mxu0 0.0
      %4966 = vmatprep.subr.mxu0 0.0
      %4967 = vmatpush1.msra.mxu0 0.0
      %4968 = vmatprep.subr.mxu0 0.0
      %4969 = vmatpush1.msra.mxu0 0.0
      %4970 = vmatprep.subr.mxu0 0.0
      %4971 = vmatpush1.msra.mxu0 0.0
      %4972 = vmatprep.subr.mxu0 0.0
      %4973 = vmatpush1.msra.mxu0 0.0
      %4974 = vmatprep.subr.mxu0 0.0
      %4975 = vmatpush1.msra.mxu0 0.0
      %4976 = vmatprep.subr.mxu0 0.0
      %4977 = vmatpush1.msra.mxu0 0.0
      %4978 = vmatprep.subr.mxu0 0.0
      %4979 = vmatpush1.msra.mxu0 0.0
      %4980 = vmatprep.mubr.f32.mxu0 0.0
      %4981 = vmatmul.mubr.f32.gmra.mrb[0].mxu0 %v4893
      %v4982 = vpop.f32.mrb[0].mxu0
      %v4983 = vadd.f32 0.0, %v4982
      %v4984 = vpop.f32.mrb[0].mxu0
      %4985 = vmatprep.mubr.f32.mxu0 0.0
      %4986 = vmatmul.mubr.f32.gmra.mrb[0].mxu0 %v4896
      %v4987 = vpop.f32.mrb[0].mxu0
      %v4988 = vadd.f32 0.0, %v4987
      %v4989 = vpop.f32.mrb[0].mxu0
      %4990 = vmatprep.mubr.f32.mxu0 0.0
      %4991 = vmatmul.mubr.f32.gmra.mrb[0].mxu0 %v4899
      %v4992 = vpop.f32.mrb[0].mxu0
      %v4993 = vadd.f32 0.0, %v4992
      %v4994 = vpop.f32.mrb[0].mxu0
      %4995 = vmatprep.mubr.f32.mxu0 0.0
      %4996 = vmatmul.mubr.f32.gmra.mrb[0].mxu0 %v4902
      %v4997 = vpop.f32.mrb[0].mxu0
      %v4998 = vadd.f32 0.0, %v4997
      %v4999 = vpop.f32.mrb[0].mxu0
      %5000 = vmatprep.mubr.f32.mxu0 0.0
      %5001 = vmatmul.mubr.f32.gmra.mrb[0].mxu0 %v4905
      %v5002 = vpop.f32.mrb[0].mxu0
      %v5003 = vadd.f32 0.0, %v5002
      %v5004 = vpop.f32.mrb[0].mxu0
      %5005 = vmatprep.mubr.f32.mxu0 0.0
      %5006 = vmatmul.mubr.f32.gmra.mrb[0].mxu0 %v4908
      %v5007 = vpop.f32.mrb[0].mxu0
      %v5008 = vadd.f32 0.0, %v5007
      %v5009 = vpop.f32.mrb[0].mxu0
      %5010 = vmatprep.mubr.f32.mxu0 0.0
      %5011 = vmatmul.mubr.f32.gmra.mrb[0].mxu0 %v4911
      %v5012 = vpop.f32.mrb[0].mxu0
      %v5013 = vadd.f32 0.0, %v5012
      %v5014 = vpop.f32.mrb[0].mxu0
      %5015 = vmatprep.mubr.f32.mxu0 0.0
      %5016 = vmatmul.mubr.f32.gmra.mrb[0].mxu0 %v4914
      %v5017 = vpop.f32.mrb[0].mxu0
      %v5018 = vadd.f32 0.0, %v5017
      %v5019 = vpop.f32.mrb[0].mxu0
      %5020 = vdwg.mxu0
      %v5021 = vadd.f32 %v4865, %v4983
      %v5022 = vadd.f32 %v4866, %v4988
      %v5023 = vadd.f32 %v4867, %v4993
      %v5024 = vadd.f32 %v4868, %v4998
      %v5025 = vadd.f32 %v4869, %v5003
      %v5026 = vadd.f32 %v4870, %v5008
      %v5027 = vadd.f32 %v4871, %v5013
      %v5028 = vadd.f32 %v4872, %v5018
      %v5029 = vld [vmem:[%s7 + $0x3] sm:$0x1]
      %v5030 = vlaneseq
      %v5031 = vshrl.u32 %v5030, 7
      %v5032 = vsub.s32 0, %v5031
      %v5033 = vrot.slane %v5029, %v5032
      %v5034 = vadd.f32 %v5021, %v5033
      %v5035 = vadd.f32 %v5022, %v5033
      %v5036 = vadd.f32 %v5023, %v5033
      %v5037 = vadd.f32 %v5024, %v5033
      %v5038 = vadd.f32 %v5025, %v5033
      %v5039 = vadd.f32 %v5026, %v5033
      %v5040 = vadd.f32 %v5027, %v5033
      %v5041 = vadd.f32 %v5028, %v5033
      %vm5042 = vcmp.ge.f32.partialorder %v5034, 0.0
      %vm5043 = vcmp.ge.f32.partialorder %v5035, 0.0
      %vm5044 = vcmp.ge.f32.partialorder %v5036, 0.0
      %vm5045 = vcmp.ge.f32.partialorder %v5037, 0.0
      %vm5046 = vcmp.ge.f32.partialorder %v5038, 0.0
      %vm5047 = vcmp.ge.f32.partialorder %v5039, 0.0
      %vm5048 = vcmp.ge.f32.partialorder %v5040, 0.0
      %vm5049 = vcmp.ge.f32.partialorder %v5041, 0.0
      %v5050 = vld [vmem:[%s7 + $0x4] sm:$0x1]
      %v5051 = vlaneseq
      %v5052 = vshrl.u32 %v5051, 7
      %v5053 = vsub.s32 0, %v5052
      %v5054 = vrot.slane %v5050, %v5053
      %v5055 = vmul.f32 %v5054, %v5034
      %v5056 = vmul.f32 %v5054, %v5035
      %v5057 = vmul.f32 %v5054, %v5036
      %v5058 = vmul.f32 %v5054, %v5037
      %v5059 = vmul.f32 %v5054, %v5038
      %v5060 = vmul.f32 %v5054, %v5039
      %v5061 = vmul.f32 %v5054, %v5040
      %v5062 = vmul.f32 %v5054, %v5041
      %v5063 = vsel %vm5042, %v5034, %v5055
      %v5064 = vsel %vm5043, %v5035, %v5056
      %v5065 = vsel %vm5044, %v5036, %v5057
      %v5066 = vsel %vm5045, %v5037, %v5058
      %v5067 = vsel %vm5046, %v5038, %v5059
      %v5068 = vsel %vm5047, %v5039, %v5060
      %v5069 = vsel %vm5048, %v5040, %v5061
      %v5070 = vsel %vm5049, %v5041, %v5062
      %v5071 = vld [vmem:[%s6] sm:$0xff]
      %v5072 = vld [vmem:[%s6 + $0x8] sm:$0xff]
      %v5074 = vsel %vm493, %v5063, 0
      %v5077 = vsel %vm493, %v5064, 0
      %v5080 = vsel %vm493, %v5065, 0
      %v5083 = vsel %vm493, %v5066, 0
      %v5086 = vsel %vm493, %v5067, 0
      %v5089 = vsel %vm493, %v5068, 0
      %v5092 = vsel %vm493, %v5069, 0
      %v5095 = vsel %vm493, %v5070, 0
      %5097 = vmatprep.subr.mxu0 0.0
      %5098 = vmatpush1.msra.mxu0 %v5071
      %5099 = vmatprep.subr.mxu0 0.0
      %5100 = vmatpush1.msra.mxu0 %v5072
      %5101 = vmatprep.subr.mxu0 0.0
      %5102 = vmatpush1.msra.mxu0 0.0
      %5103 = vmatprep.subr.mxu0 0.0
      %5104 = vmatpush1.msra.mxu0 0.0
      %5105 = vmatprep.subr.mxu0 0.0
      %5106 = vmatpush1.msra.mxu0 0.0
      %5107 = vmatprep.subr.mxu0 0.0
      %5108 = vmatpush1.msra.mxu0 0.0
      %5109 = vmatprep.subr.mxu0 0.0
      %5110 = vmatpush1.msra.mxu0 0.0
      %5111 = vmatprep.subr.mxu0 0.0
      %5112 = vmatpush1.msra.mxu0 0.0
      %5113 = vmatprep.subr.mxu0 0.0
      %5114 = vmatpush1.msra.mxu0 0.0
      %5115 = vmatprep.subr.mxu0 0.0
      %5116 = vmatpush1.msra.mxu0 0.0
      %5117 = vmatprep.subr.mxu0 0.0
      %5118 = vmatpush1.msra.mxu0 0.0
      %5119 = vmatprep.subr.mxu0 0.0
      %5120 = vmatpush1.msra.mxu0 0.0
      %5121 = vmatprep.subr.mxu0 0.0
      %5122 = vmatpush1.msra.mxu0 0.0
      %5123 = vmatprep.subr.mxu0 0.0
      %5124 = vmatpush1.msra.mxu0 0.0
      %5125 = vmatprep.subr.mxu0 0.0
      %5126 = vmatpush1.msra.mxu0 0.0
      %5127 = vmatprep.subr.mxu0 0.0
      %5128 = vmatpush1.msra.mxu0 0.0
      %5129 = vmatprep.subr.mxu0 0.0
      %5130 = vmatpush1.msra.mxu0 0.0
      %5131 = vmatprep.subr.mxu0 0.0
      %5132 = vmatpush1.msra.mxu0 0.0
      %5133 = vmatprep.subr.mxu0 0.0
      %5134 = vmatpush1.msra.mxu0 0.0
      %5135 = vmatprep.subr.mxu0 0.0
      %5136 = vmatpush1.msra.mxu0 0.0
      %5137 = vmatprep.subr.mxu0 0.0
      %5138 = vmatpush1.msra.mxu0 0.0
      %5139 = vmatprep.subr.mxu0 0.0
      %5140 = vmatpush1.msra.mxu0 0.0
      %5141 = vmatprep.subr.mxu0 0.0
      %5142 = vmatpush1.msra.mxu0 0.0
      %5143 = vmatprep.subr.mxu0 0.0
      %5144 = vmatpush1.msra.mxu0 0.0
      %5145 = vmatprep.subr.mxu0 0.0
      %5146 = vmatpush1.msra.mxu0 0.0
      %5147 = vmatprep.subr.mxu0 0.0
      %5148 = vmatpush1.msra.mxu0 0.0
      %5149 = vmatprep.subr.mxu0 0.0
      %5150 = vmatpush1.msra.mxu0 0.0
      %5151 = vmatprep.subr.mxu0 0.0
      %5152 = vmatpush1.msra.mxu0 0.0
      %5153 = vmatprep.subr.mxu0 0.0
      %5154 = vmatpush1.msra.mxu0 0.0
      %5155 = vmatprep.subr.mxu0 0.0
      %5156 = vmatpush1.msra.mxu0 0.0
      %5157 = vmatprep.subr.mxu0 0.0
      %5158 = vmatpush1.msra.mxu0 0.0
      %5159 = vmatprep.subr.mxu0 0.0
      %5160 = vmatpush1.msra.mxu0 0.0
      %5161 = vmatprep.mubr.f32.mxu0 0.0
      %5162 = vmatmul.mubr.f32.gmra.mrb[0].mxu0 %v5074
      %v5163 = vpop.f32.mrb[0].mxu0
      %v5164 = vadd.f32 0.0, %v5163
      %v5165 = vpop.f32.mrb[0].mxu0
      %5166 = vmatprep.mubr.f32.mxu0 0.0
      %5167 = vmatmul.mubr.f32.gmra.mrb[0].mxu0 %v5077
      %v5168 = vpop.f32.mrb[0].mxu0
      %v5169 = vadd.f32 0.0, %v5168
      %v5170 = vpop.f32.mrb[0].mxu0
      %5171 = vmatprep.mubr.f32.mxu0 0.0
      %5172 = vmatmul.mubr.f32.gmra.mrb[0].mxu0 %v5080
      %v5173 = vpop.f32.mrb[0].mxu0
      %v5174 = vadd.f32 0.0, %v5173
      %v5175 = vpop.f32.mrb[0].mxu0
      %5176 = vmatprep.mubr.f32.mxu0 0.0
      %5177 = vmatmul.mubr.f32.gmra.mrb[0].mxu0 %v5083
      %v5178 = vpop.f32.mrb[0].mxu0
      %v5179 = vadd.f32 0.0, %v5178
      %v5180 = vpop.f32.mrb[0].mxu0
      %5181 = vmatprep.mubr.f32.mxu0 0.0
      %5182 = vmatmul.mubr.f32.gmra.mrb[0].mxu0 %v5086
      %v5183 = vpop.f32.mrb[0].mxu0
      %v5184 = vadd.f32 0.0, %v5183
      %v5185 = vpop.f32.mrb[0].mxu0
      %5186 = vmatprep.mubr.f32.mxu0 0.0
      %5187 = vmatmul.mubr.f32.gmra.mrb[0].mxu0 %v5089
      %v5188 = vpop.f32.mrb[0].mxu0
      %v5189 = vadd.f32 0.0, %v5188
      %v5190 = vpop.f32.mrb[0].mxu0
      %5191 = vmatprep.mubr.f32.mxu0 0.0
      %5192 = vmatmul.mubr.f32.gmra.mrb[0].mxu0 %v5092
      %v5193 = vpop.f32.mrb[0].mxu0
      %v5194 = vadd.f32 0.0, %v5193
      %v5195 = vpop.f32.mrb[0].mxu0
      %5196 = vmatprep.mubr.f32.mxu0 0.0
      %5197 = vmatmul.mubr.f32.gmra.mrb[0].mxu0 %v5095
      %v5198 = vpop.f32.mrb[0].mxu0
      %v5199 = vadd.f32 0.0, %v5198
      %v5200 = vpop.f32.mrb[0].mxu0
      %5201 = vdwg.mxu0
      %vm5202 = vcmask 7168
      %5203 = vst.msk [vmem:[%s325] sm:$0xff] %vm5202, %v5164
      %5204 = vst.msk [vmem:[%s325 + $0x8] sm:$0xff] %vm5202, %v5169
      %5205 = vst.msk [vmem:[%s325 + $0x10] sm:$0xff] %vm5202, %v5174
      %5206 = vst.msk [vmem:[%s325 + $0x18] sm:$0xff] %vm5202, %v5179
      %5207 = vst.msk [vmem:[%s325 + $0x20] sm:$0xff] %vm5202, %v5184
      %5208 = vst.msk [vmem:[%s325 + $0x28] sm:$0xff] %vm5202, %v5189
      %5209 = vst.msk [vmem:[%s325 + $0x30] sm:$0xff] %vm5202, %v5194
      %5210 = vst.msk [vmem:[%s325 + $0x38] sm:$0xff] %vm5202, %v5199
      %p5211 = scmp.lt.s32.totalorder %s19, 1
      %s5212 = scalar_select %p5211, %s19, 1
      %s5213 = smul.addr %s5212, 8
      %s5214 = smul.addr %s5213, 8
      %s5215 = scalar_lea.vmem %s8, %s5214
      // Predicated region
      $region53: #{ldcnet_forward.12} parent=51 // pred_check
        %p5216 = pneg %p215
      $region54: #{ldcnet_forward.12} parent=51 // pred_check_branch
        %5218 = sbr.rel (%p5216) target = $region56
      $region55: #{ldcnet_forward.12} parent=51 // pred_region
        _
      $region56: #{ldcnet_forward.12} parent=51 // pred_fallthru
        _
    $region52: #{ldcnet_forward.12} parent=5 // pred_fallthru
      _
    %p5219 = scmp.le.s32.totalorder 2, %s14
    // Predicated region
    $region57: #{ldcnet_forward.12} parent=5 // pred_check
      %p5220 = pneg %p5219
    $region58: #{ldcnet_forward.12} parent=5 // pred_check_branch
      %5222 = sbr.rel (%p5220) target = $region60
    $region59: #{ldcnet_forward.12} parent=5 // pred_region
      %s5223 = ssub.s32 %s14, 2
      // Predicated region
      $region61: #{ldcnet_forward.12} parent=59 // pred_check
        %p5224 = pneg %p221
      $region62: #{ldcnet_forward.12} parent=59 // pred_check_branch
        %5226 = sbr.rel (%p5224) target = $region64
      $region63: #{ldcnet_forward.12} parent=59 // pred_region
        %p5227 = scmp.lt.s32.totalorder %s20, 1
        %s5228 = scalar_select %p5227, %s20, 1
        %s5229 = smul.addr %s5228, 8
        %s5230 = smul.addr %s5229, 8
        %s5231 = scalar_lea.vmem %s8, %s5230
      $region64: #{ldcnet_forward.12} parent=59 // pred_fallthru
        _
    $region60: #{ldcnet_forward.12} parent=5 // pred_fallthru
      _
  $region6: #{ldcnet_forward.12} parent=0 // loop_footer
    %s18 = sadd.s32 1, %s14
  $region7: #{ldcnet_forward.12} parent=0 // loop_footer_branch
    %13 = sbr.rel target = $region3
  $region8: #{ldcnet_forward.12} parent=0 // loop_exit
    _

</llo_original>
